<compile_context>
chip_gen: v6e
topology: v6e:2x2x1
jax: 0.10.0
libtpu: 0.0.40
codegen_flags: <defaults>
</compile_context>

<pallas_src>
import functools

import jax
import jax.numpy as jnp
import numpy as np
from jax.experimental import pallas as pl
from jax.experimental.pallas import tpu as pltpu

EPS = 1e-5
LANE = 128


def _round_up(v, m):
    return (v + m - 1) // m * m


def _vmem_limit_bytes():
    """~3/4 of physical VMEM, capped at 96 MiB (48 MiB if the query fails)."""
    cap = None
    try:
        cap = getattr(pltpu.get_tpu_info(), "vmem_capacity_bytes", None)
    except Exception:
        cap = None
    if not cap:
        return 48 * 1024 * 1024
    return int(min(96 * 1024 * 1024, (cap * 3) // 4))


def _pick_batch_block(N, H, W, Cp, mm_bytes, vmem_limit):
    """Largest divisor B of N whose per-step working set fits comfortably in
    VMEM, stopping once B*H*W matmul rows are enough to amortize step overhead."""
    best = 1
    for b in range(1, N + 1):
        if N % b:
            continue
        xpad = b * (H + 2) * (W + 2) * Cp * mm_bytes
        patch = b * H * W * 9 * Cp * mm_bytes
        io = 2 * b * H * W * Cp * (4 + mm_bytes)   # double-buffered in/out blocks
        if xpad + patch + io > vmem_limit // 2:
            break
        best = b
        if b * H * W >= 2048:
            break
    return best


def _conv3x3_stats_kernel(x_ref, scale_ref, shift_ref, w_ref,
                          y_ref, stats_ref, xpad_ref, patch_ref,
                          *, fuse_bn_relu):
    """B images: [affine+relu of previous BN] -> 3x3 conv -> partial BN stats.

    x_ref     : [B, H, W, Cp]     input tile (raw x for conv1, conv1-out for conv2)
    scale_ref : [1, Cp] f32       folded BN scale of the previous BN (pass 2 only)
    shift_ref : [1, Cp] f32       folded BN shift of the previous BN (pass 2 only)
    w_ref     : [9*Cp, Cp]        conv weights, 9 taps folded into K (matmul dtype)
    y_ref     : [B, H, W, Cp]     conv output (matmul dtype)
    stats_ref : [1, 2, Cp]        per-step [sum, sum-of-squares] over B*H*W (f32)
    xpad_ref  : [B, H+2, W+2, Cp] scratch: zero-padded images (matmul dtype)
    patch_ref : [B*H*W, 9*Cp]     scratch: im2col matrix (matmul dtype)
    """
    B, H, W, Cp = x_ref.shape
    Cout = y_ref.shape[-1]
    mm_dtype = patch_ref.dtype

    a = x_ref[...].astype(jnp.float32)
    if fuse_bn_relu:
        # Fused affine form of the previous BatchNorm (+ ReLU), in f32.
        a = (a * scale_ref[...].reshape(1, 1, 1, Cp)
             + shift_ref[...].reshape(1, 1, 1, Cp))
        a = jnp.maximum(a, 0.0)
    a = a.astype(mm_dtype)

    # Zero only the 1-element border every step (interior is fully overwritten;
    # border is re-zeroed each step so megacore grid sharding stays correct).
    zdt = xpad_ref.dtype
    xpad_ref[:, 0:1, :, :] = jnp.zeros((B, 1, W + 2, Cp), zdt)
    xpad_ref[:, H + 1:H + 2, :, :] = jnp.zeros((B, 1, W + 2, Cp), zdt)
    xpad_ref[:, :, 0:1, :] = jnp.zeros((B, H + 2, 1, Cp), zdt)
    xpad_ref[:, :, W + 1:W + 2, :] = jnp.zeros((B, H + 2, 1, Cp), zdt)
    xpad_ref[:, 1:H + 1, 1:W + 1, :] = a

    # im2col: fold the 9 conv taps into the contraction dimension.
    # Column offsets t*Cp are 128-aligned (lane-dense) since Cp % 128 == 0.
    M = B * H * W
    for kh in range(3):
        for kw in range(3):
            t = 3 * kh + kw
            patch_ref[:, t * Cp:(t + 1) * Cp] = (
                xpad_ref[:, kh:kh + H, kw:kw + W, :].reshape(M, Cp))

    # Single MXU matmul per conv: [B*H*W, 9*Cp] @ [9*Cp, Cp], f32 accumulate.
    acc = jnp.dot(patch_ref[...], w_ref[...], preferred_element_type=jnp.float32)

    y_ref[...] = acc.reshape(B, H, W, Cout).astype(y_ref.dtype)

    # Fused partial BN statistics from the f32 accumulator (finalized outside).
    s = jnp.sum(acc, axis=0, keepdims=True)           # [1, Cp]
    ss = jnp.sum(acc * acc, axis=0, keepdims=True)    # [1, Cp]
    stats_ref[...] = jnp.concatenate([s, ss], axis=0).reshape(1, 2, Cout)


def _residual_bn_relu_kernel(y_ref, xid_ref, scale_ref, shift_ref, o_ref):
    """B images: out = relu(scale2 * conv2_out + shift2 + identity), f32 math."""
    Cp = o_ref.shape[-1]
    v = (y_ref[...].astype(jnp.float32) * scale_ref[...].reshape(1, 1, 1, Cp)
         + shift_ref[...].reshape(1, 1, 1, Cp)
         + xid_ref[...].astype(jnp.float32))
    o_ref[...] = jnp.maximum(v, 0.0).astype(o_ref.dtype)


def _conv_pass(x, scale, shift, w, cout, *, fuse_bn_relu, matmul_dtype,
               block_n, vmem_limit):
    """conv3x3 (stride 1, pad 1) over the batch, gridded B images per step."""
    N, H, W, Cp = x.shape
    B = block_n
    kernel = functools.partial(_conv3x3_stats_kernel, fuse_bn_relu=fuse_bn_relu)
    return pl.pallas_call(
        kernel,
        out_shape=(jax.ShapeDtypeStruct((N, H, W, cout), matmul_dtype),
                   jax.ShapeDtypeStruct((N // B, 2, cout), jnp.float32)),
        grid=(N // B,),
        in_specs=[
            pl.BlockSpec((B, H, W, Cp), lambda n: (n, 0, 0, 0)),
            pl.BlockSpec((1, Cp), lambda n: (0, 0)),
            pl.BlockSpec((1, Cp), lambda n: (0, 0)),
            pl.BlockSpec((9 * Cp, cout), lambda n: (0, 0)),
        ],
        out_specs=(
            pl.BlockSpec((B, H, W, cout), lambda n: (n, 0, 0, 0)),
            pl.BlockSpec((1, 2, cout), lambda n: (n, 0, 0)),
        ),
        scratch_shapes=[
            pltpu.VMEM((B, H + 2, W + 2, Cp), matmul_dtype),
            pltpu.VMEM((B * H * W, 9 * Cp), matmul_dtype),
        ],
        compiler_params=pltpu.CompilerParams(
            dimension_semantics=("parallel",),
            vmem_limit_bytes=vmem_limit),
    )(x, scale, shift, w)


def _finalize_pass(y2, x_nhwc, scale, shift, *, block_n, vmem_limit):
    """bn2 affine + residual add + relu, gridded B images per step (lane-dense)."""
    N, H, W, Cp = y2.shape
    B = block_n
    return pl.pallas_call(
        _residual_bn_relu_kernel,
        out_shape=jax.ShapeDtypeStruct((N, H, W, Cp), x_nhwc.dtype),
        grid=(N // B,),
        in_specs=[
            pl.BlockSpec((B, H, W, Cp), lambda n: (n, 0, 0, 0)),
            pl.BlockSpec((B, H, W, Cp), lambda n: (n, 0, 0, 0)),
            pl.BlockSpec((1, Cp), lambda n: (0, 0)),
            pl.BlockSpec((1, Cp), lambda n: (0, 0)),
        ],
        out_specs=pl.BlockSpec((B, H, W, Cp), lambda n: (n, 0, 0, 0)),
        compiler_params=pltpu.CompilerParams(
            dimension_semantics=("parallel",),
            vmem_limit_bytes=vmem_limit),
    )(y2, x_nhwc, scale, shift)


def _bn_affine(stats, gamma, beta, count):
    """Fold batch stats and (gamma, beta) into per-channel (scale, shift), f32."""
    total = jnp.sum(stats, axis=0)                 # [2, Cp]
    mean = total[0] / count
    var = total[1] / count - mean * mean           # biased variance (training BN)
    scale = gamma * jax.lax.rsqrt(var + EPS)
    shift = beta - mean * scale
    return scale.reshape(1, -1), shift.reshape(1, -1)


def basic_block_forward(x_nchw, params, *, matmul_dtype=jnp.bfloat16):
    """x_nchw: [N, Cin, H, W] (PyTorch layout). Returns [N, Cout, H, W]."""
    N, Cin, H, W = x_nchw.shape
    Cout = params["w1"].shape[0]
    # TODO(synk): downsample (1x1 conv + BN on identity) / stride>1 not implemented.
    assert Cin == Cout, "no-downsample path requires in_channels == out_channels"
    C = Cin
    Cp = _round_up(C, LANE)          # lane-dense channel padding

    vmem_limit = _vmem_limit_bytes()
    mm_bytes = np.dtype(matmul_dtype).itemsize
    B = _pick_batch_block(N, H, W, Cp, mm_bytes, vmem_limit)

    x_nhwc = jnp.transpose(x_nchw, (0, 2, 3, 1))
    if Cp != C:
        x_nhwc = jnp.pad(x_nhwc, ((0, 0), (0, 0), (0, 0), (0, Cp - C)))

    # PyTorch conv weight [Cout, Cin, 3, 3] -> [(kh*3+kw)*Cp + cin, Cp], padded.
    def prep_w(w):
        wt = jnp.transpose(w, (2, 3, 1, 0))                   # (3, 3, Cin, Cout)
        wt = jnp.pad(wt, ((0, 0), (0, 0), (0, Cp - C), (0, Cp - C)))
        return wt.reshape(9 * Cp, Cp).astype(matmul_dtype)

    w1 = prep_w(params["w1"])
    w2 = prep_w(params["w2"])

    def prep_v(v):                                            # pad with zeros
        return jnp.pad(v.astype(jnp.float32), (0, Cp - C))

    gamma1, beta1 = prep_v(params["gamma1"]), prep_v(params["beta1"])
    gamma2, beta2 = prep_v(params["gamma2"]), prep_v(params["beta2"])

    count = N * H * W
    unit = jnp.ones((1, Cp), jnp.float32)
    zero = jnp.zeros((1, Cp), jnp.float32)

    # Pass 1: conv1 + fused partial BN1 stats.
    y1, stats1 = _conv_pass(x_nhwc, unit, zero, w1, Cp, fuse_bn_relu=False,
                            matmul_dtype=matmul_dtype, block_n=B,
                            vmem_limit=vmem_limit)
    scale1, shift1 = _bn_affine(stats1, gamma1, beta1, count)

    # Pass 2: bn1-affine + relu + conv2 + fused partial BN2 stats.
    y2, stats2 = _conv_pass(y1, scale1, shift1, w2, Cp, fuse_bn_relu=True,
                            matmul_dtype=matmul_dtype, block_n=B,
                            vmem_limit=vmem_limit)
    scale2, shift2 = _bn_affine(stats2, gamma2, beta2, count)

    # Pass 3: bn2-affine + residual add + relu.
    out_nhwc = _finalize_pass(y2, x_nhwc, scale2, shift2,
                              block_n=B, vmem_limit=vmem_limit)
    out_nhwc = out_nhwc[..., :C]
    return jnp.transpose(out_nhwc, (0, 3, 1, 2))  # back to NCHW


# ----------------------------- pure-JAX reference -----------------------------
def _reference(x, p):
    def conv3x3(x_nchw, w):
        return jax.lax.conv_general_dilated(
            x_nchw, w, window_strides=(1, 1), padding=((1, 1), (1, 1)),
            dimension_numbers=("NCHW", "OIHW", "NCHW"))

    def bn_train(y, g, b):
        mean = jnp.mean(y, axis=(0, 2, 3), keepdims=True)
        var = jnp.mean((y - mean) ** 2, axis=(0, 2, 3), keepdims=True)
        return (y - mean) * jax.lax.rsqrt(var + EPS) \
            * g.reshape(1, -1, 1, 1) + b.reshape(1, -1, 1, 1)

    y = jax.nn.relu(bn_train(conv3x3(x, p["w1"]), p["gamma1"], p["beta1"]))
    y = bn_train(conv3x3(y, p["w2"]), p["gamma2"], p["beta2"])
    return jax.nn.relu(y + x)


if __name__ == "__main__":
    N, C, H, W = 2, 4, 16, 16  # in_channels == out_channels, stride=1, no downsample

    key = jax.random.PRNGKey(0)
    kx, kw1, kw2 = jax.random.split(key, 3)

    x = jax.random.normal(kx, (N, C, H, W), jnp.float32)
    params = {
        "w1": 0.1 * jax.random.normal(kw1, (C, C, 3, 3), jnp.float32),
        "w2": 0.1 * jax.random.normal(kw2, (C, C, 3, 3), jnp.float32),
        "gamma1": jnp.ones((C,), jnp.float32),   # PyTorch BN init
        "beta1": jnp.zeros((C,), jnp.float32),
        "gamma2": jnp.ones((C,), jnp.float32),
        "beta2": jnp.zeros((C,), jnp.float32),
    }

    fwd = jax.jit(basic_block_forward, static_argnames=("matmul_dtype",))
    ref = jax.block_until_ready(_reference(x, params))

    # f32 matmul path (f32 intermediates): tight check against the f32 reference.
    out_f32 = jax.block_until_ready(fwd(x, params, matmul_dtype=jnp.float32))
    np.testing.assert_allclose(np.asarray(out_f32), np.asarray(ref),
                               atol=2e-4, rtol=2e-4)
    assert out_f32.shape == (N, C, H, W)

    # bf16 matmul path (default; bf16 operands + bf16 HBM intermediates): loose check.
    out_bf16 = jax.block_until_ready(fwd(x, params, matmul_dtype=jnp.bfloat16))
    np.testing.assert_allclose(np.asarray(out_bf16), np.asarray(ref),
                               atol=5e-2, rtol=5e-2)

    print("KERNEL_OK")
</pallas_src>

<mosaic_0001>
module attributes {stable_mosaic.version = 11 : i64} {
  func.func @_conv3x3_stats_kernel(%arg0: i32, %arg1: memref<2x16x16x128xf32, #tpu.memory_space<vmem>>, %arg2: memref<1x128xf32, #tpu.memory_space<vmem>>, %arg3: memref<1x128xf32, #tpu.memory_space<vmem>>, %arg4: memref<1152x128xf32, #tpu.memory_space<vmem>>, %arg5: memref<2x16x16x128xf32, #tpu.memory_space<vmem>>, %arg6: memref<1x2x128xf32, #tpu.memory_space<vmem>>, %arg7: memref<2x18x18x128xf32, #tpu.memory_space<vmem>>, %arg8: memref<512x1152xf32, #tpu.memory_space<vmem>>) attributes {dimension_semantics = [#tpu.dimension_semantics<parallel>], iteration_bounds = array<i64: 1>, scalar_prefetch = 0 : i64, scratch_operands = 2 : i64, tpu.core_type = #tpu.core_type<tc>, window_params = [{transform_indices = @transform_0, window_bounds = array<i64: 2, 16, 16, 128>}, {pipeline_mode = #tpu.pipeline_mode<synchronous>, transform_indices = @transform_1, window_bounds = array<i64: 1, 128>}, {pipeline_mode = #tpu.pipeline_mode<synchronous>, transform_indices = @transform_2, window_bounds = array<i64: 1, 128>}, {pipeline_mode = #tpu.pipeline_mode<synchronous>, transform_indices = @transform_3, window_bounds = array<i64: 1152, 128>}, {transform_indices = @transform_4, window_bounds = array<i64: 2, 16, 16, 128>}, {transform_indices = @transform_5, window_bounds = array<i64: 1, 2, 128>}]} {
    %c0 = arith.constant 0 : index
    %c0_0 = arith.constant 0 : index
    %c0_1 = arith.constant 0 : index
    %c0_2 = arith.constant 0 : index
    %0 = vector.load %arg1[%c0, %c0_0, %c0_1, %c0_2] : memref<2x16x16x128xf32, #tpu.memory_space<vmem>>, vector<2x16x16x128xf32>
    %cst = arith.constant 0.000000e+00 : f32
    %1 = vector.broadcast %cst : f32 to vector<2x1x18x128xf32>
    %c0_3 = arith.constant 0 : index
    %c0_4 = arith.constant 0 : index
    %c0_5 = arith.constant 0 : index
    %c0_6 = arith.constant 0 : index
    %2 = vector.load %arg7[%c0_3, %c0_4, %c0_5, %c0_6] : memref<2x18x18x128xf32, #tpu.memory_space<vmem>>, vector<2x1x18x128xf32>
    tpu.vector_store %arg7[%c0_3, %c0_4, %c0_5, %c0_6], %1 {strides = array<i32>} : memref<2x18x18x128xf32, #tpu.memory_space<vmem>>, vector<2x1x18x128xf32>,
    %cst_7 = arith.constant 0.000000e+00 : f32
    %3 = vector.broadcast %cst_7 : f32 to vector<2x1x18x128xf32>
    %c0_8 = arith.constant 0 : index
    %c17 = arith.constant 17 : index
    %c0_9 = arith.constant 0 : index
    %c0_10 = arith.constant 0 : index
    %4 = vector.load %arg7[%c0_8, %c17, %c0_9, %c0_10] : memref<2x18x18x128xf32, #tpu.memory_space<vmem>>, vector<2x1x18x128xf32>
    tpu.vector_store %arg7[%c0_8, %c17, %c0_9, %c0_10], %3 {strides = array<i32>} : memref<2x18x18x128xf32, #tpu.memory_space<vmem>>, vector<2x1x18x128xf32>,
    %cst_11 = arith.constant 0.000000e+00 : f32
    %5 = vector.broadcast %cst_11 : f32 to vector<2x18x1x128xf32>
    %c0_12 = arith.constant 0 : index
    %c0_13 = arith.constant 0 : index
    %c0_14 = arith.constant 0 : index
    %c0_15 = arith.constant 0 : index
    %6 = vector.load %arg7[%c0_12, %c0_13, %c0_14, %c0_15] : memref<2x18x18x128xf32, #tpu.memory_space<vmem>>, vector<2x18x1x128xf32>
    tpu.vector_store %arg7[%c0_12, %c0_13, %c0_14, %c0_15], %5 {strides = array<i32>} : memref<2x18x18x128xf32, #tpu.memory_space<vmem>>, vector<2x18x1x128xf32>,
    %cst_16 = arith.constant 0.000000e+00 : f32
    %7 = vector.broadcast %cst_16 : f32 to vector<2x18x1x128xf32>
    %c0_17 = arith.constant 0 : index
    %c0_18 = arith.constant 0 : index
    %c17_19 = arith.constant 17 : index
    %c0_20 = arith.constant 0 : index
    %8 = vector.load %arg7[%c0_17, %c0_18, %c17_19, %c0_20] : memref<2x18x18x128xf32, #tpu.memory_space<vmem>>, vector<2x18x1x128xf32>
    tpu.vector_store %arg7[%c0_17, %c0_18, %c17_19, %c0_20], %7 {strides = array<i32>} : memref<2x18x18x128xf32, #tpu.memory_space<vmem>>, vector<2x18x1x128xf32>,
    %c0_21 = arith.constant 0 : index
    %c1 = arith.constant 1 : index
    %c1_22 = arith.constant 1 : index
    %c0_23 = arith.constant 0 : index
    %9 = vector.load %arg7[%c0_21, %c1, %c1_22, %c0_23] : memref<2x18x18x128xf32, #tpu.memory_space<vmem>>, vector<2x16x16x128xf32>
    tpu.vector_store %arg7[%c0_21, %c1, %c1_22, %c0_23], %0 {strides = array<i32>} : memref<2x18x18x128xf32, #tpu.memory_space<vmem>>, vector<2x16x16x128xf32>,
    %c0_24 = arith.constant 0 : index
    %c0_25 = arith.constant 0 : index
    %c0_26 = arith.constant 0 : index
    %c0_27 = arith.constant 0 : index
    %10 = vector.load %arg7[%c0_24, %c0_25, %c0_26, %c0_27] : memref<2x18x18x128xf32, #tpu.memory_space<vmem>>, vector<2x16x16x128xf32>
    %11 = vector.shape_cast %10 : vector<2x16x16x128xf32> to vector<512x128xf32>
    %c0_28 = arith.constant 0 : index
    %c0_29 = arith.constant 0 : index
    %12 = vector.load %arg8[%c0_28, %c0_29] : memref<512x1152xf32, #tpu.memory_space<vmem>>, vector<512x128xf32>
    tpu.vector_store %arg8[%c0_28, %c0_29], %11 {strides = array<i32>} : memref<512x1152xf32, #tpu.memory_space<vmem>>, vector<512x128xf32>,
    %c0_30 = arith.constant 0 : index
    %c0_31 = arith.constant 0 : index
    %c1_32 = arith.constant 1 : index
    %c0_33 = arith.constant 0 : index
    %13 = vector.load %arg7[%c0_30, %c0_31, %c1_32, %c0_33] : memref<2x18x18x128xf32, #tpu.memory_space<vmem>>, vector<2x16x16x128xf32>
    %14 = vector.shape_cast %13 : vector<2x16x16x128xf32> to vector<512x128xf32>
    %c0_34 = arith.constant 0 : index
    %c128 = arith.constant 128 : index
    %15 = vector.load %arg8[%c0_34, %c128] : memref<512x1152xf32, #tpu.memory_space<vmem>>, vector<512x128xf32>
    tpu.vector_store %arg8[%c0_34, %c128], %14 {strides = array<i32>} : memref<512x1152xf32, #tpu.memory_space<vmem>>, vector<512x128xf32>,
    %c0_35 = arith.constant 0 : index
    %c0_36 = arith.constant 0 : index
    %c2 = arith.constant 2 : index
    %c0_37 = arith.constant 0 : index
    %16 = vector.load %arg7[%c0_35, %c0_36, %c2, %c0_37] : memref<2x18x18x128xf32, #tpu.memory_space<vmem>>, vector<2x16x16x128xf32>
    %17 = vector.shape_cast %16 : vector<2x16x16x128xf32> to vector<512x128xf32>
    %c0_38 = arith.constant 0 : index
    %c256 = arith.constant 256 : index
    %18 = vector.load %arg8[%c0_38, %c256] : memref<512x1152xf32, #tpu.memory_space<vmem>>, vector<512x128xf32>
    tpu.vector_store %arg8[%c0_38, %c256], %17 {strides = array<i32>} : memref<512x1152xf32, #tpu.memory_space<vmem>>, vector<512x128xf32>,
    %c0_39 = arith.constant 0 : index
    %c1_40 = arith.constant 1 : index
    %c0_41 = arith.constant 0 : index
    %c0_42 = arith.constant 0 : index
    %19 = vector.load %arg7[%c0_39, %c1_40, %c0_41, %c0_42] : memref<2x18x18x128xf32, #tpu.memory_space<vmem>>, vector<2x16x16x128xf32>
    %20 = vector.shape_cast %19 : vector<2x16x16x128xf32> to vector<512x128xf32>
    %c0_43 = arith.constant 0 : index
    %c384 = arith.constant 384 : index
    %21 = vector.load %arg8[%c0_43, %c384] : memref<512x1152xf32, #tpu.memory_space<vmem>>, vector<512x128xf32>
    tpu.vector_store %arg8[%c0_43, %c384], %20 {strides = array<i32>} : memref<512x1152xf32, #tpu.memory_space<vmem>>, vector<512x128xf32>,
    %c0_44 = arith.constant 0 : index
    %c1_45 = arith.constant 1 : index
    %c1_46 = arith.constant 1 : index
    %c0_47 = arith.constant 0 : index
    %22 = vector.load %arg7[%c0_44, %c1_45, %c1_46, %c0_47] : memref<2x18x18x128xf32, #tpu.memory_space<vmem>>, vector<2x16x16x128xf32>
    %23 = vector.shape_cast %22 : vector<2x16x16x128xf32> to vector<512x128xf32>
    %c0_48 = arith.constant 0 : index
    %c512 = arith.constant 512 : index
    %24 = vector.load %arg8[%c0_48, %c512] : memref<512x1152xf32, #tpu.memory_space<vmem>>, vector<512x128xf32>
    tpu.vector_store %arg8[%c0_48, %c512], %23 {strides = array<i32>} : memref<512x1152xf32, #tpu.memory_space<vmem>>, vector<512x128xf32>,
    %c0_49 = arith.constant 0 : index
    %c1_50 = arith.constant 1 : index
    %c2_51 = arith.constant 2 : index
    %c0_52 = arith.constant 0 : index
    %25 = vector.load %arg7[%c0_49, %c1_50, %c2_51, %c0_52] : memref<2x18x18x128xf32, #tpu.memory_space<vmem>>, vector<2x16x16x128xf32>
    %26 = vector.shape_cast %25 : vector<2x16x16x128xf32> to vector<512x128xf32>
    %c0_53 = arith.constant 0 : index
    %c640 = arith.constant 640 : index
    %27 = vector.load %arg8[%c0_53, %c640] : memref<512x1152xf32, #tpu.memory_space<vmem>>, vector<512x128xf32>
    tpu.vector_store %arg8[%c0_53, %c640], %26 {strides = array<i32>} : memref<512x1152xf32, #tpu.memory_space<vmem>>, vector<512x128xf32>,
    %c0_54 = arith.constant 0 : index
    %c2_55 = arith.constant 2 : index
    %c0_56 = arith.constant 0 : index
    %c0_57 = arith.constant 0 : index
    %28 = vector.load %arg7[%c0_54, %c2_55, %c0_56, %c0_57] : memref<2x18x18x128xf32, #tpu.memory_space<vmem>>, vector<2x16x16x128xf32>
    %29 = vector.shape_cast %28 : vector<2x16x16x128xf32> to vector<512x128xf32>
    %c0_58 = arith.constant 0 : index
    %c768 = arith.constant 768 : index
    %30 = vector.load %arg8[%c0_58, %c768] : memref<512x1152xf32, #tpu.memory_space<vmem>>, vector<512x128xf32>
    tpu.vector_store %arg8[%c0_58, %c768], %29 {strides = array<i32>} : memref<512x1152xf32, #tpu.memory_space<vmem>>, vector<512x128xf32>,
    %c0_59 = arith.constant 0 : index
    %c2_60 = arith.constant 2 : index
    %c1_61 = arith.constant 1 : index
    %c0_62 = arith.constant 0 : index
    %31 = vector.load %arg7[%c0_59, %c2_60, %c1_61, %c0_62] : memref<2x18x18x128xf32, #tpu.memory_space<vmem>>, vector<2x16x16x128xf32>
    %32 = vector.shape_cast %31 : vector<2x16x16x128xf32> to vector<512x128xf32>
    %c0_63 = arith.constant 0 : index
    %c896 = arith.constant 896 : index
    %33 = vector.load %arg8[%c0_63, %c896] : memref<512x1152xf32, #tpu.memory_space<vmem>>, vector<512x128xf32>
    tpu.vector_store %arg8[%c0_63, %c896], %32 {strides = array<i32>} : memref<512x1152xf32, #tpu.memory_space<vmem>>, vector<512x128xf32>,
    %c0_64 = arith.constant 0 : index
    %c2_65 = arith.constant 2 : index
    %c2_66 = arith.constant 2 : index
    %c0_67 = arith.constant 0 : index
    %34 = vector.load %arg7[%c0_64, %c2_65, %c2_66, %c0_67] : memref<2x18x18x128xf32, #tpu.memory_space<vmem>>, vector<2x16x16x128xf32>
    %35 = vector.shape_cast %34 : vector<2x16x16x128xf32> to vector<512x128xf32>
    %c0_68 = arith.constant 0 : index
    %c1024 = arith.constant 1024 : index
    %36 = vector.load %arg8[%c0_68, %c1024] : memref<512x1152xf32, #tpu.memory_space<vmem>>, vector<512x128xf32>
    tpu.vector_store %arg8[%c0_68, %c1024], %35 {strides = array<i32>} : memref<512x1152xf32, #tpu.memory_space<vmem>>, vector<512x128xf32>,
    %c0_69 = arith.constant 0 : index
    %c0_70 = arith.constant 0 : index
    %37 = vector.load %arg8[%c0_69, %c0_70] : memref<512x1152xf32, #tpu.memory_space<vmem>>, vector<512x1152xf32>
    %c0_71 = arith.constant 0 : index
    %c0_72 = arith.constant 0 : index
    %38 = vector.load %arg4[%c0_71, %c0_72] : memref<1152x128xf32, #tpu.memory_space<vmem>>, vector<1152x128xf32>
    %cst_73 = arith.constant dense<0.000000e+00> : vector<512x128xf32>
    %39 = tpu.matmul %37, %38, %cst_73 {dimension_numbers = #tpu.dot_dimension_numbers<[1], [0], [0], [1], [0, 0, 1, 1], [], []>} : vector<512x1152xf32>, vector<1152x128xf32>, vector<512x128xf32> -> vector<512x128xf32>
    %40 = vector.shape_cast %39 : vector<512x128xf32> to vector<2x16x16x128xf32>
    %c0_74 = arith.constant 0 : index
    %c0_75 = arith.constant 0 : index
    %c0_76 = arith.constant 0 : index
    %c0_77 = arith.constant 0 : index
    %41 = vector.load %arg5[%c0_74, %c0_75, %c0_76, %c0_77] : memref<2x16x16x128xf32, #tpu.memory_space<vmem>>, vector<2x16x16x128xf32>
    tpu.vector_store %arg5[%c0_74, %c0_75, %c0_76, %c0_77], %40 {strides = array<i32>} : memref<2x16x16x128xf32, #tpu.memory_space<vmem>>, vector<2x16x16x128xf32>,
    %cst_78 = arith.constant dense<0.000000e+00> : vector<128xf32>
    %42 = vector.multi_reduction <add>, %39, %cst_78 [0] : vector<512x128xf32> to vector<128xf32>
    %43 = vector.shape_cast %42 : vector<128xf32> to vector<1x128xf32>
    %44 = arith.mulf %39, %39 : vector<512x128xf32>
    %cst_79 = arith.constant dense<0.000000e+00> : vector<128xf32>
    %45 = vector.multi_reduction <add>, %44, %cst_79 [0] : vector<512x128xf32> to vector<128xf32>
    %46 = vector.shape_cast %45 : vector<128xf32> to vector<1x128xf32>
    %47 = tpu.concatenate %43, %46 in 0 : vector<1x128xf32>, vector<1x128xf32> -> vector<2x128xf32>
    %48 = vector.shape_cast %47 : vector<2x128xf32> to vector<1x2x128xf32>
    %c0_80 = arith.constant 0 : index
    %c0_81 = arith.constant 0 : index
    %c0_82 = arith.constant 0 : index
    %49 = vector.load %arg6[%c0_80, %c0_81, %c0_82] : memref<1x2x128xf32, #tpu.memory_space<vmem>>, vector<1x2x128xf32>
    tpu.vector_store %arg6[%c0_80, %c0_81, %c0_82], %48 {strides = array<i32>} : memref<1x2x128xf32, #tpu.memory_space<vmem>>, vector<1x2x128xf32>,
    return
  }
  func.func @transform_0(%arg0: i32) -> (i32, i32, i32, i32) {
    %c0_i32 = arith.constant 0 : i32
    %c0_i32_0 = arith.constant 0 : i32
    %c0_i32_1 = arith.constant 0 : i32
    %c0_i32_2 = arith.constant 0 : i32
    return %arg0, %c0_i32, %c0_i32_0, %c0_i32_1 : i32, i32, i32, i32
  }
  func.func @transform_1(%arg0: i32) -> (i32, i32) {
    %c0_i32 = arith.constant 0 : i32
    %c0_i32_0 = arith.constant 0 : i32
    %c0_i32_1 = arith.constant 0 : i32
    return %c0_i32, %c0_i32_0 : i32, i32
  }
  func.func @transform_2(%arg0: i32) -> (i32, i32) {
    %c0_i32 = arith.constant 0 : i32
    %c0_i32_0 = arith.constant 0 : i32
    %c0_i32_1 = arith.constant 0 : i32
    return %c0_i32, %c0_i32_0 : i32, i32
  }
  func.func @transform_3(%arg0: i32) -> (i32, i32) {
    %c0_i32 = arith.constant 0 : i32
    %c0_i32_0 = arith.constant 0 : i32
    %c0_i32_1 = arith.constant 0 : i32
    return %c0_i32, %c0_i32_0 : i32, i32
  }
  func.func @transform_4(%arg0: i32) -> (i32, i32, i32, i32) {
    %c0_i32 = arith.constant 0 : i32
    %c0_i32_0 = arith.constant 0 : i32
    %c0_i32_1 = arith.constant 0 : i32
    %c0_i32_2 = arith.constant 0 : i32
    return %arg0, %c0_i32, %c0_i32_0, %c0_i32_1 : i32, i32, i32, i32
  }
  func.func @transform_5(%arg0: i32) -> (i32, i32, i32) {
    %c0_i32 = arith.constant 0 : i32
    %c0_i32_0 = arith.constant 0 : i32
    %c0_i32_1 = arith.constant 0 : i32
    return %arg0, %c0_i32, %c0_i32_0 : i32, i32, i32
  }
}

module attributes {stable_mosaic.version = 11 : i64} {
  func.func @_conv3x3_stats_kernel(%arg0: i32, %arg1: memref<2x16x16x128xf32, #tpu.memory_space<vmem>>, %arg2: memref<1x128xf32, #tpu.memory_space<vmem>>, %arg3: memref<1x128xf32, #tpu.memory_space<vmem>>, %arg4: memref<1152x128xf32, #tpu.memory_space<vmem>>, %arg5: memref<2x16x16x128xf32, #tpu.memory_space<vmem>>, %arg6: memref<1x2x128xf32, #tpu.memory_space<vmem>>, %arg7: memref<2x18x18x128xf32, #tpu.memory_space<vmem>>, %arg8: memref<512x1152xf32, #tpu.memory_space<vmem>>) attributes {dimension_semantics = [#tpu.dimension_semantics<parallel>], iteration_bounds = array<i64: 1>, scalar_prefetch = 0 : i64, scratch_operands = 2 : i64, tpu.core_type = #tpu.core_type<tc>, window_params = [{transform_indices = @transform_0, window_bounds = array<i64: 2, 16, 16, 128>}, {pipeline_mode = #tpu.pipeline_mode<synchronous>, transform_indices = @transform_1, window_bounds = array<i64: 1, 128>}, {pipeline_mode = #tpu.pipeline_mode<synchronous>, transform_indices = @transform_2, window_bounds = array<i64: 1, 128>}, {pipeline_mode = #tpu.pipeline_mode<synchronous>, transform_indices = @transform_3, window_bounds = array<i64: 1152, 128>}, {transform_indices = @transform_4, window_bounds = array<i64: 2, 16, 16, 128>}, {transform_indices = @transform_5, window_bounds = array<i64: 1, 2, 128>}]} {
    %c0 = arith.constant 0 : index
    %c0_0 = arith.constant 0 : index
    %c0_1 = arith.constant 0 : index
    %c0_2 = arith.constant 0 : index
    %0 = vector.load %arg1[%c0, %c0_0, %c0_1, %c0_2] : memref<2x16x16x128xf32, #tpu.memory_space<vmem>>, vector<2x16x16x128xf32>
    %c0_3 = arith.constant 0 : index
    %c0_4 = arith.constant 0 : index
    %1 = vector.load %arg2[%c0_3, %c0_4] : memref<1x128xf32, #tpu.memory_space<vmem>>, vector<1x128xf32>
    %2 = vector.shape_cast %1 : vector<1x128xf32> to vector<1x1x1x128xf32>
    %3 = vector.broadcast %2 : vector<1x1x1x128xf32> to vector<2x16x16x128xf32>
    %4 = arith.mulf %0, %3 : vector<2x16x16x128xf32>
    %c0_5 = arith.constant 0 : index
    %c0_6 = arith.constant 0 : index
    %5 = vector.load %arg3[%c0_5, %c0_6] : memref<1x128xf32, #tpu.memory_space<vmem>>, vector<1x128xf32>
    %6 = vector.shape_cast %5 : vector<1x128xf32> to vector<1x1x1x128xf32>
    %7 = vector.broadcast %6 : vector<1x1x1x128xf32> to vector<2x16x16x128xf32>
    %8 = arith.addf %4, %7 : vector<2x16x16x128xf32>
    %cst = arith.constant 0.000000e+00 : f32
    %9 = vector.broadcast %cst : f32 to vector<2x16x16x128xf32>
    %10 = arith.maximumf %8, %9 : vector<2x16x16x128xf32>
    %cst_7 = arith.constant 0.000000e+00 : f32
    %11 = vector.broadcast %cst_7 : f32 to vector<2x1x18x128xf32>
    %c0_8 = arith.constant 0 : index
    %c0_9 = arith.constant 0 : index
    %c0_10 = arith.constant 0 : index
    %c0_11 = arith.constant 0 : index
    %12 = vector.load %arg7[%c0_8, %c0_9, %c0_10, %c0_11] : memref<2x18x18x128xf32, #tpu.memory_space<vmem>>, vector<2x1x18x128xf32>
    tpu.vector_store %arg7[%c0_8, %c0_9, %c0_10, %c0_11], %11 {strides = array<i32>} : memref<2x18x18x128xf32, #tpu.memory_space<vmem>>, vector<2x1x18x128xf32>,
    %cst_12 = arith.constant 0.000000e+00 : f32
    %13 = vector.broadcast %cst_12 : f32 to vector<2x1x18x128xf32>
    %c0_13 = arith.constant 0 : index
    %c17 = arith.constant 17 : index
    %c0_14 = arith.constant 0 : index
    %c0_15 = arith.constant 0 : index
    %14 = vector.load %arg7[%c0_13, %c17, %c0_14, %c0_15] : memref<2x18x18x128xf32, #tpu.memory_space<vmem>>, vector<2x1x18x128xf32>
    tpu.vector_store %arg7[%c0_13, %c17, %c0_14, %c0_15], %13 {strides = array<i32>} : memref<2x18x18x128xf32, #tpu.memory_space<vmem>>, vector<2x1x18x128xf32>,
    %cst_16 = arith.constant 0.000000e+00 : f32
    %15 = vector.broadcast %cst_16 : f32 to vector<2x18x1x128xf32>
    %c0_17 = arith.constant 0 : index
    %c0_18 = arith.constant 0 : index
    %c0_19 = arith.constant 0 : index
    %c0_20 = arith.constant 0 : index
    %16 = vector.load %arg7[%c0_17, %c0_18, %c0_19, %c0_20] : memref<2x18x18x128xf32, #tpu.memory_space<vmem>>, vector<2x18x1x128xf32>
    tpu.vector_store %arg7[%c0_17, %c0_18, %c0_19, %c0_20], %15 {strides = array<i32>} : memref<2x18x18x128xf32, #tpu.memory_space<vmem>>, vector<2x18x1x128xf32>,
    %cst_21 = arith.constant 0.000000e+00 : f32
    %17 = vector.broadcast %cst_21 : f32 to vector<2x18x1x128xf32>
    %c0_22 = arith.constant 0 : index
    %c0_23 = arith.constant 0 : index
    %c17_24 = arith.constant 17 : index
    %c0_25 = arith.constant 0 : index
    %18 = vector.load %arg7[%c0_22, %c0_23, %c17_24, %c0_25] : memref<2x18x18x128xf32, #tpu.memory_space<vmem>>, vector<2x18x1x128xf32>
    tpu.vector_store %arg7[%c0_22, %c0_23, %c17_24, %c0_25], %17 {strides = array<i32>} : memref<2x18x18x128xf32, #tpu.memory_space<vmem>>, vector<2x18x1x128xf32>,
    %c0_26 = arith.constant 0 : index
    %c1 = arith.constant 1 : index
    %c1_27 = arith.constant 1 : index
    %c0_28 = arith.constant 0 : index
    %19 = vector.load %arg7[%c0_26, %c1, %c1_27, %c0_28] : memref<2x18x18x128xf32, #tpu.memory_space<vmem>>, vector<2x16x16x128xf32>
    tpu.vector_store %arg7[%c0_26, %c1, %c1_27, %c0_28], %10 {strides = array<i32>} : memref<2x18x18x128xf32, #tpu.memory_space<vmem>>, vector<2x16x16x128xf32>,
    %c0_29 = arith.constant 0 : index
    %c0_30 = arith.constant 0 : index
    %c0_31 = arith.constant 0 : index
    %c0_32 = arith.constant 0 : index
    %20 = vector.load %arg7[%c0_29, %c0_30, %c0_31, %c0_32] : memref<2x18x18x128xf32, #tpu.memory_space<vmem>>, vector<2x16x16x128xf32>
    %21 = vector.shape_cast %20 : vector<2x16x16x128xf32> to vector<512x128xf32>
    %c0_33 = arith.constant 0 : index
    %c0_34 = arith.constant 0 : index
    %22 = vector.load %arg8[%c0_33, %c0_34] : memref<512x1152xf32, #tpu.memory_space<vmem>>, vector<512x128xf32>
    tpu.vector_store %arg8[%c0_33, %c0_34], %21 {strides = array<i32>} : memref<512x1152xf32, #tpu.memory_space<vmem>>, vector<512x128xf32>,
    %c0_35 = arith.constant 0 : index
    %c0_36 = arith.constant 0 : index
    %c1_37 = arith.constant 1 : index
    %c0_38 = arith.constant 0 : index
    %23 = vector.load %arg7[%c0_35, %c0_36, %c1_37, %c0_38] : memref<2x18x18x128xf32, #tpu.memory_space<vmem>>, vector<2x16x16x128xf32>
    %24 = vector.shape_cast %23 : vector<2x16x16x128xf32> to vector<512x128xf32>
    %c0_39 = arith.constant 0 : index
    %c128 = arith.constant 128 : index
    %25 = vector.load %arg8[%c0_39, %c128] : memref<512x1152xf32, #tpu.memory_space<vmem>>, vector<512x128xf32>
    tpu.vector_store %arg8[%c0_39, %c128], %24 {strides = array<i32>} : memref<512x1152xf32, #tpu.memory_space<vmem>>, vector<512x128xf32>,
    %c0_40 = arith.constant 0 : index
    %c0_41 = arith.constant 0 : index
    %c2 = arith.constant 2 : index
    %c0_42 = arith.constant 0 : index
    %26 = vector.load %arg7[%c0_40, %c0_41, %c2, %c0_42] : memref<2x18x18x128xf32, #tpu.memory_space<vmem>>, vector<2x16x16x128xf32>
    %27 = vector.shape_cast %26 : vector<2x16x16x128xf32> to vector<512x128xf32>
    %c0_43 = arith.constant 0 : index
    %c256 = arith.constant 256 : index
    %28 = vector.load %arg8[%c0_43, %c256] : memref<512x1152xf32, #tpu.memory_space<vmem>>, vector<512x128xf32>
    tpu.vector_store %arg8[%c0_43, %c256], %27 {strides = array<i32>} : memref<512x1152xf32, #tpu.memory_space<vmem>>, vector<512x128xf32>,
    %c0_44 = arith.constant 0 : index
    %c1_45 = arith.constant 1 : index
    %c0_46 = arith.constant 0 : index
    %c0_47 = arith.constant 0 : index
    %29 = vector.load %arg7[%c0_44, %c1_45, %c0_46, %c0_47] : memref<2x18x18x128xf32, #tpu.memory_space<vmem>>, vector<2x16x16x128xf32>
    %30 = vector.shape_cast %29 : vector<2x16x16x128xf32> to vector<512x128xf32>
    %c0_48 = arith.constant 0 : index
    %c384 = arith.constant 384 : index
    %31 = vector.load %arg8[%c0_48, %c384] : memref<512x1152xf32, #tpu.memory_space<vmem>>, vector<512x128xf32>
    tpu.vector_store %arg8[%c0_48, %c384], %30 {strides = array<i32>} : memref<512x1152xf32, #tpu.memory_space<vmem>>, vector<512x128xf32>,
    %c0_49 = arith.constant 0 : index
    %c1_50 = arith.constant 1 : index
    %c1_51 = arith.constant 1 : index
    %c0_52 = arith.constant 0 : index
    %32 = vector.load %arg7[%c0_49, %c1_50, %c1_51, %c0_52] : memref<2x18x18x128xf32, #tpu.memory_space<vmem>>, vector<2x16x16x128xf32>
    %33 = vector.shape_cast %32 : vector<2x16x16x128xf32> to vector<512x128xf32>
    %c0_53 = arith.constant 0 : index
    %c512 = arith.constant 512 : index
    %34 = vector.load %arg8[%c0_53, %c512] : memref<512x1152xf32, #tpu.memory_space<vmem>>, vector<512x128xf32>
    tpu.vector_store %arg8[%c0_53, %c512], %33 {strides = array<i32>} : memref<512x1152xf32, #tpu.memory_space<vmem>>, vector<512x128xf32>,
    %c0_54 = arith.constant 0 : index
    %c1_55 = arith.constant 1 : index
    %c2_56 = arith.constant 2 : index
    %c0_57 = arith.constant 0 : index
    %35 = vector.load %arg7[%c0_54, %c1_55, %c2_56, %c0_57] : memref<2x18x18x128xf32, #tpu.memory_space<vmem>>, vector<2x16x16x128xf32>
    %36 = vector.shape_cast %35 : vector<2x16x16x128xf32> to vector<512x128xf32>
    %c0_58 = arith.constant 0 : index
    %c640 = arith.constant 640 : index
    %37 = vector.load %arg8[%c0_58, %c640] : memref<512x1152xf32, #tpu.memory_space<vmem>>, vector<512x128xf32>
    tpu.vector_store %arg8[%c0_58, %c640], %36 {strides = array<i32>} : memref<512x1152xf32, #tpu.memory_space<vmem>>, vector<512x128xf32>,
    %c0_59 = arith.constant 0 : index
    %c2_60 = arith.constant 2 : index
    %c0_61 = arith.constant 0 : index
    %c0_62 = arith.constant 0 : index
    %38 = vector.load %arg7[%c0_59, %c2_60, %c0_61, %c0_62] : memref<2x18x18x128xf32, #tpu.memory_space<vmem>>, vector<2x16x16x128xf32>
    %39 = vector.shape_cast %38 : vector<2x16x16x128xf32> to vector<512x128xf32>
    %c0_63 = arith.constant 0 : index
    %c768 = arith.constant 768 : index
    %40 = vector.load %arg8[%c0_63, %c768] : memref<512x1152xf32, #tpu.memory_space<vmem>>, vector<512x128xf32>
    tpu.vector_store %arg8[%c0_63, %c768], %39 {strides = array<i32>} : memref<512x1152xf32, #tpu.memory_space<vmem>>, vector<512x128xf32>,
    %c0_64 = arith.constant 0 : index
    %c2_65 = arith.constant 2 : index
    %c1_66 = arith.constant 1 : index
    %c0_67 = arith.constant 0 : index
    %41 = vector.load %arg7[%c0_64, %c2_65, %c1_66, %c0_67] : memref<2x18x18x128xf32, #tpu.memory_space<vmem>>, vector<2x16x16x128xf32>
    %42 = vector.shape_cast %41 : vector<2x16x16x128xf32> to vector<512x128xf32>
    %c0_68 = arith.constant 0 : index
    %c896 = arith.constant 896 : index
    %43 = vector.load %arg8[%c0_68, %c896] : memref<512x1152xf32, #tpu.memory_space<vmem>>, vector<512x128xf32>
    tpu.vector_store %arg8[%c0_68, %c896], %42 {strides = array<i32>} : memref<512x1152xf32, #tpu.memory_space<vmem>>, vector<512x128xf32>,
    %c0_69 = arith.constant 0 : index
    %c2_70 = arith.constant 2 : index
    %c2_71 = arith.constant 2 : index
    %c0_72 = arith.constant 0 : index
    %44 = vector.load %arg7[%c0_69, %c2_70, %c2_71, %c0_72] : memref<2x18x18x128xf32, #tpu.memory_space<vmem>>, vector<2x16x16x128xf32>
    %45 = vector.shape_cast %44 : vector<2x16x16x128xf32> to vector<512x128xf32>
    %c0_73 = arith.constant 0 : index
    %c1024 = arith.constant 1024 : index
    %46 = vector.load %arg8[%c0_73, %c1024] : memref<512x1152xf32, #tpu.memory_space<vmem>>, vector<512x128xf32>
    tpu.vector_store %arg8[%c0_73, %c1024], %45 {strides = array<i32>} : memref<512x1152xf32, #tpu.memory_space<vmem>>, vector<512x128xf32>,
    %c0_74 = arith.constant 0 : index
    %c0_75 = arith.constant 0 : index
    %47 = vector.load %arg8[%c0_74, %c0_75] : memref<512x1152xf32, #tpu.memory_space<vmem>>, vector<512x1152xf32>
    %c0_76 = arith.constant 0 : index
    %c0_77 = arith.constant 0 : index
    %48 = vector.load %arg4[%c0_76, %c0_77] : memref<1152x128xf32, #tpu.memory_space<vmem>>, vector<1152x128xf32>
    %cst_78 = arith.constant dense<0.000000e+00> : vector<512x128xf32>
    %49 = tpu.matmul %47, %48, %cst_78 {dimension_numbers = #tpu.dot_dimension_numbers<[1], [0], [0], [1], [0, 0, 1, 1], [], []>} : vector<512x1152xf32>, vector<1152x128xf32>, vector<512x128xf32> -> vector<512x128xf32>
    %50 = vector.shape_cast %49 : vector<512x128xf32> to vector<2x16x16x128xf32>
    %c0_79 = arith.constant 0 : index
    %c0_80 = arith.constant 0 : index
    %c0_81 = arith.constant 0 : index
    %c0_82 = arith.constant 0 : index
    %51 = vector.load %arg5[%c0_79, %c0_80, %c0_81, %c0_82] : memref<2x16x16x128xf32, #tpu.memory_space<vmem>>, vector<2x16x16x128xf32>
    tpu.vector_store %arg5[%c0_79, %c0_80, %c0_81, %c0_82], %50 {strides = array<i32>} : memref<2x16x16x128xf32, #tpu.memory_space<vmem>>, vector<2x16x16x128xf32>,
    %cst_83 = arith.constant dense<0.000000e+00> : vector<128xf32>
    %52 = vector.multi_reduction <add>, %49, %cst_83 [0] : vector<512x128xf32> to vector<128xf32>
    %53 = vector.shape_cast %52 : vector<128xf32> to vector<1x128xf32>
    %54 = arith.mulf %49, %49 : vector<512x128xf32>
    %cst_84 = arith.constant dense<0.000000e+00> : vector<128xf32>
    %55 = vector.multi_reduction <add>, %54, %cst_84 [0] : vector<512x128xf32> to vector<128xf32>
    %56 = vector.shape_cast %55 : vector<128xf32> to vector<1x128xf32>
    %57 = tpu.concatenate %53, %56 in 0 : vector<1x128xf32>, vector<1x128xf32> -> vector<2x128xf32>
    %58 = vector.shape_cast %57 : vector<2x128xf32> to vector<1x2x128xf32>
    %c0_85 = arith.constant 0 : index
    %c0_86 = arith.constant 0 : index
    %c0_87 = arith.constant 0 : index
    %59 = vector.load %arg6[%c0_85, %c0_86, %c0_87] : memref<1x2x128xf32, #tpu.memory_space<vmem>>, vector<1x2x128xf32>
    tpu.vector_store %arg6[%c0_85, %c0_86, %c0_87], %58 {strides = array<i32>} : memref<1x2x128xf32, #tpu.memory_space<vmem>>, vector<1x2x128xf32>,
    return
  }
  func.func @transform_0(%arg0: i32) -> (i32, i32, i32, i32) {
    %c0_i32 = arith.constant 0 : i32
    %c0_i32_0 = arith.constant 0 : i32
    %c0_i32_1 = arith.constant 0 : i32
    %c0_i32_2 = arith.constant 0 : i32
    return %arg0, %c0_i32, %c0_i32_0, %c0_i32_1 : i32, i32, i32, i32
  }
  func.func @transform_1(%arg0: i32) -> (i32, i32) {
    %c0_i32 = arith.constant 0 : i32
    %c0_i32_0 = arith.constant 0 : i32
    %c0_i32_1 = arith.constant 0 : i32
    return %c0_i32, %c0_i32_0 : i32, i32
  }
  func.func @transform_2(%arg0: i32) -> (i32, i32) {
    %c0_i32 = arith.constant 0 : i32
    %c0_i32_0 = arith.constant 0 : i32
    %c0_i32_1 = arith.constant 0 : i32
    return %c0_i32, %c0_i32_0 : i32, i32
  }
  func.func @transform_3(%arg0: i32) -> (i32, i32) {
    %c0_i32 = arith.constant 0 : i32
    %c0_i32_0 = arith.constant 0 : i32
    %c0_i32_1 = arith.constant 0 : i32
    return %c0_i32, %c0_i32_0 : i32, i32
  }
  func.func @transform_4(%arg0: i32) -> (i32, i32, i32, i32) {
    %c0_i32 = arith.constant 0 : i32
    %c0_i32_0 = arith.constant 0 : i32
    %c0_i32_1 = arith.constant 0 : i32
    %c0_i32_2 = arith.constant 0 : i32
    return %arg0, %c0_i32, %c0_i32_0, %c0_i32_1 : i32, i32, i32, i32
  }
  func.func @transform_5(%arg0: i32) -> (i32, i32, i32) {
    %c0_i32 = arith.constant 0 : i32
    %c0_i32_0 = arith.constant 0 : i32
    %c0_i32_1 = arith.constant 0 : i32
    return %arg0, %c0_i32, %c0_i32_0 : i32, i32, i32
  }
}

module attributes {stable_mosaic.version = 11 : i64} {
  func.func @_residual_bn_relu_kernel(%arg0: i32, %arg1: memref<2x16x16x128xf32, #tpu.memory_space<vmem>>, %arg2: memref<2x16x16x128xf32, #tpu.memory_space<vmem>>, %arg3: memref<1x128xf32, #tpu.memory_space<vmem>>, %arg4: memref<1x128xf32, #tpu.memory_space<vmem>>, %arg5: memref<2x16x16x128xf32, #tpu.memory_space<vmem>>) attributes {dimension_semantics = [#tpu.dimension_semantics<parallel>], iteration_bounds = array<i64: 1>, scalar_prefetch = 0 : i64, scratch_operands = 0 : i64, tpu.core_type = #tpu.core_type<tc>, window_params = [{transform_indices = @transform_0, window_bounds = array<i64: 2, 16, 16, 128>}, {transform_indices = @transform_1, window_bounds = array<i64: 2, 16, 16, 128>}, {pipeline_mode = #tpu.pipeline_mode<synchronous>, transform_indices = @transform_2, window_bounds = array<i64: 1, 128>}, {pipeline_mode = #tpu.pipeline_mode<synchronous>, transform_indices = @transform_3, window_bounds = array<i64: 1, 128>}, {transform_indices = @transform_4, window_bounds = array<i64: 2, 16, 16, 128>}]} {
    %c0 = arith.constant 0 : index
    %c0_0 = arith.constant 0 : index
    %c0_1 = arith.constant 0 : index
    %c0_2 = arith.constant 0 : index
    %0 = vector.load %arg1[%c0, %c0_0, %c0_1, %c0_2] : memref<2x16x16x128xf32, #tpu.memory_space<vmem>>, vector<2x16x16x128xf32>
    %c0_3 = arith.constant 0 : index
    %c0_4 = arith.constant 0 : index
    %1 = vector.load %arg3[%c0_3, %c0_4] : memref<1x128xf32, #tpu.memory_space<vmem>>, vector<1x128xf32>
    %2 = vector.shape_cast %1 : vector<1x128xf32> to vector<1x1x1x128xf32>
    %3 = vector.broadcast %2 : vector<1x1x1x128xf32> to vector<2x16x16x128xf32>
    %4 = arith.mulf %0, %3 : vector<2x16x16x128xf32>
    %c0_5 = arith.constant 0 : index
    %c0_6 = arith.constant 0 : index
    %5 = vector.load %arg4[%c0_5, %c0_6] : memref<1x128xf32, #tpu.memory_space<vmem>>, vector<1x128xf32>
    %6 = vector.shape_cast %5 : vector<1x128xf32> to vector<1x1x1x128xf32>
    %7 = vector.broadcast %6 : vector<1x1x1x128xf32> to vector<2x16x16x128xf32>
    %8 = arith.addf %4, %7 : vector<2x16x16x128xf32>
    %c0_7 = arith.constant 0 : index
    %c0_8 = arith.constant 0 : index
    %c0_9 = arith.constant 0 : index
    %c0_10 = arith.constant 0 : index
    %9 = vector.load %arg2[%c0_7, %c0_8, %c0_9, %c0_10] : memref<2x16x16x128xf32, #tpu.memory_space<vmem>>, vector<2x16x16x128xf32>
    %10 = arith.addf %8, %9 : vector<2x16x16x128xf32>
    %cst = arith.constant 0.000000e+00 : f32
    %11 = vector.broadcast %cst : f32 to vector<2x16x16x128xf32>
    %12 = arith.maximumf %10, %11 : vector<2x16x16x128xf32>
    %c0_11 = arith.constant 0 : index
    %c0_12 = arith.constant 0 : index
    %c0_13 = arith.constant 0 : index
    %c0_14 = arith.constant 0 : index
    %13 = vector.load %arg5[%c0_11, %c0_12, %c0_13, %c0_14] : memref<2x16x16x128xf32, #tpu.memory_space<vmem>>, vector<2x16x16x128xf32>
    tpu.vector_store %arg5[%c0_11, %c0_12, %c0_13, %c0_14], %12 {strides = array<i32>} : memref<2x16x16x128xf32, #tpu.memory_space<vmem>>, vector<2x16x16x128xf32>,
    return
  }
  func.func @transform_0(%arg0: i32) -> (i32, i32, i32, i32) {
    %c0_i32 = arith.constant 0 : i32
    %c0_i32_0 = arith.constant 0 : i32
    %c0_i32_1 = arith.constant 0 : i32
    %c0_i32_2 = arith.constant 0 : i32
    return %arg0, %c0_i32, %c0_i32_0, %c0_i32_1 : i32, i32, i32, i32
  }
  func.func @transform_1(%arg0: i32) -> (i32, i32, i32, i32) {
    %c0_i32 = arith.constant 0 : i32
    %c0_i32_0 = arith.constant 0 : i32
    %c0_i32_1 = arith.constant 0 : i32
    %c0_i32_2 = arith.constant 0 : i32
    return %arg0, %c0_i32, %c0_i32_0, %c0_i32_1 : i32, i32, i32, i32
  }
  func.func @transform_2(%arg0: i32) -> (i32, i32) {
    %c0_i32 = arith.constant 0 : i32
    %c0_i32_0 = arith.constant 0 : i32
    %c0_i32_1 = arith.constant 0 : i32
    return %c0_i32, %c0_i32_0 : i32, i32
  }
  func.func @transform_3(%arg0: i32) -> (i32, i32) {
    %c0_i32 = arith.constant 0 : i32
    %c0_i32_0 = arith.constant 0 : i32
    %c0_i32_1 = arith.constant 0 : i32
    return %c0_i32, %c0_i32_0 : i32, i32
  }
  func.func @transform_4(%arg0: i32) -> (i32, i32, i32, i32) {
    %c0_i32 = arith.constant 0 : i32
    %c0_i32_0 = arith.constant 0 : i32
    %c0_i32_1 = arith.constant 0 : i32
    %c0_i32_2 = arith.constant 0 : i32
    return %arg0, %c0_i32, %c0_i32_0, %c0_i32_1 : i32, i32, i32, i32
  }
}

</mosaic_0001>

<llo_original>
// kernel: basic_block_forward.5
$region0: #{basic_block_forward.5}
  #allocation0 [shape = 'u32[]', space=smem, size = 0x4, offset = 0x4, fixed_abs, tag = 'smem constant byte address 0x4 - core index']
  #allocation1 [shape = 'u32[144,128]{1,0:T(1,128)}', space=vmem, size = 0x12000, scoped, tag = 'internal scratch']
  %s0 = inlined_call_operand.vmem [shape: f32[2,16,16,128], index: 0, kind: input, shape index: {}]
  %s1 = inlined_call_operand.vmem [shape: f32[2,16,16,128], index: 1, kind: input, shape index: {}]
  %s2 = inlined_call_operand.vmem [shape: f32[1,128], index: 2, kind: input, shape index: {}]
  %s3 = inlined_call_operand.vmem [shape: f32[1,128], index: 3, kind: input, shape index: {}]
  %s4 = inlined_call_operand.vmem [shape: f32[2,16,16,128], index: 4, kind: output, shape index: {}]
  %s5 = sld [smem:[#allocation0]]
  $region26: #{basic_block_forward.5} parent=0
    _
  %s7 = ssub.s32 1, %s5
  %s8 = scalar_select 0, %s7, %s5
  // Predicated region
  $region2: #{basic_block_forward.5} parent=0 // pred_check
    _
  $region3: #{basic_block_forward.5} parent=0 // pred_check_branch
    %10 = sbr.rel (0) target = $region5
  $region4: #{basic_block_forward.5} parent=0 // pred_region
    _
  $region5: #{basic_block_forward.5} parent=0 // pred_fallthru
    _
  // Predicated region
  $region6: #{basic_block_forward.5} parent=0 // pred_check
    _
  $region7: #{basic_block_forward.5} parent=0 // pred_check_branch
    %12 = sbr.rel (0) target = $region9
  $region8: #{basic_block_forward.5} parent=0 // pred_region
    _
  $region9: #{basic_block_forward.5} parent=0 // pred_fallthru
    _
  // Predicated region
  $region10: #{basic_block_forward.5} parent=0 // pred_check
    _
  $region11: #{basic_block_forward.5} parent=0 // pred_check_branch
    %14 = sbr.rel (0) target = $region13
  $region12: #{basic_block_forward.5} parent=0 // pred_region
    _
  $region13: #{basic_block_forward.5} parent=0 // pred_fallthru
    _
  // Predicated region
  $region14: #{basic_block_forward.5} parent=0 // pred_check
    _
  $region15: #{basic_block_forward.5} parent=0 // pred_check_branch
    %16 = sbr.rel (0) target = $region17
  $region16: #{basic_block_forward.5} parent=0 // pred_region
    _
  $region17: #{basic_block_forward.5} parent=0 // pred_fallthru
    _
  %v17 = vld [vmem:[%s0] sm:$0xff]
  %v18 = vld [vmem:[%s0 + $0x8] sm:$0xff]
  %v19 = vld [vmem:[%s0 + $0x10] sm:$0xff]
  %v20 = vld [vmem:[%s0 + $0x18] sm:$0xff]
  %v21 = vld [vmem:[%s0 + $0x20] sm:$0xff]
  %v22 = vld [vmem:[%s0 + $0x28] sm:$0xff]
  %v23 = vld [vmem:[%s0 + $0x30] sm:$0xff]
  %v24 = vld [vmem:[%s0 + $0x38] sm:$0xff]
  %v25 = vld [vmem:[%s0 + $0x40] sm:$0xff]
  %v26 = vld [vmem:[%s0 + $0x48] sm:$0xff]
  %v27 = vld [vmem:[%s0 + $0x50] sm:$0xff]
  %v28 = vld [vmem:[%s0 + $0x58] sm:$0xff]
  %v29 = vld [vmem:[%s0 + $0x60] sm:$0xff]
  %v30 = vld [vmem:[%s0 + $0x68] sm:$0xff]
  %v31 = vld [vmem:[%s0 + $0x70] sm:$0xff]
  %v32 = vld [vmem:[%s0 + $0x78] sm:$0xff]
  %v33 = vld [vmem:[%s0 + $0x80] sm:$0xff]
  %v34 = vld [vmem:[%s0 + $0x88] sm:$0xff]
  %v35 = vld [vmem:[%s0 + $0x90] sm:$0xff]
  %v36 = vld [vmem:[%s0 + $0x98] sm:$0xff]
  %v37 = vld [vmem:[%s0 + $0xa0] sm:$0xff]
  %v38 = vld [vmem:[%s0 + $0xa8] sm:$0xff]
  %v39 = vld [vmem:[%s0 + $0xb0] sm:$0xff]
  %v40 = vld [vmem:[%s0 + $0xb8] sm:$0xff]
  %v41 = vld [vmem:[%s0 + $0xc0] sm:$0xff]
  %v42 = vld [vmem:[%s0 + $0xc8] sm:$0xff]
  %v43 = vld [vmem:[%s0 + $0xd0] sm:$0xff]
  %v44 = vld [vmem:[%s0 + $0xd8] sm:$0xff]
  %v45 = vld [vmem:[%s0 + $0xe0] sm:$0xff]
  %v46 = vld [vmem:[%s0 + $0xe8] sm:$0xff]
  %v47 = vld [vmem:[%s0 + $0xf0] sm:$0xff]
  %v48 = vld [vmem:[%s0 + $0xf8] sm:$0xff]
  %v49 = vld [vmem:[%s0 + $0x100] sm:$0xff]
  %v50 = vld [vmem:[%s0 + $0x108] sm:$0xff]
  %v51 = vld [vmem:[%s0 + $0x110] sm:$0xff]
  %v52 = vld [vmem:[%s0 + $0x118] sm:$0xff]
  %v53 = vld [vmem:[%s0 + $0x120] sm:$0xff]
  %v54 = vld [vmem:[%s0 + $0x128] sm:$0xff]
  %v55 = vld [vmem:[%s0 + $0x130] sm:$0xff]
  %v56 = vld [vmem:[%s0 + $0x138] sm:$0xff]
  %v57 = vld [vmem:[%s0 + $0x140] sm:$0xff]
  %v58 = vld [vmem:[%s0 + $0x148] sm:$0xff]
  %v59 = vld [vmem:[%s0 + $0x150] sm:$0xff]
  %v60 = vld [vmem:[%s0 + $0x158] sm:$0xff]
  %v61 = vld [vmem:[%s0 + $0x160] sm:$0xff]
  %v62 = vld [vmem:[%s0 + $0x168] sm:$0xff]
  %v63 = vld [vmem:[%s0 + $0x170] sm:$0xff]
  %v64 = vld [vmem:[%s0 + $0x178] sm:$0xff]
  %v65 = vld [vmem:[%s0 + $0x180] sm:$0xff]
  %v66 = vld [vmem:[%s0 + $0x188] sm:$0xff]
  %v67 = vld [vmem:[%s0 + $0x190] sm:$0xff]
  %v68 = vld [vmem:[%s0 + $0x198] sm:$0xff]
  %v69 = vld [vmem:[%s0 + $0x1a0] sm:$0xff]
  %v70 = vld [vmem:[%s0 + $0x1a8] sm:$0xff]
  %v71 = vld [vmem:[%s0 + $0x1b0] sm:$0xff]
  %v72 = vld [vmem:[%s0 + $0x1b8] sm:$0xff]
  %v73 = vld [vmem:[%s0 + $0x1c0] sm:$0xff]
  %v74 = vld [vmem:[%s0 + $0x1c8] sm:$0xff]
  %v75 = vld [vmem:[%s0 + $0x1d0] sm:$0xff]
  %v76 = vld [vmem:[%s0 + $0x1d8] sm:$0xff]
  %v77 = vld [vmem:[%s0 + $0x1e0] sm:$0xff]
  %v78 = vld [vmem:[%s0 + $0x1e8] sm:$0xff]
  %v79 = vld [vmem:[%s0 + $0x1f0] sm:$0xff]
  %v80 = vld [vmem:[%s0 + $0x1f8] sm:$0xff]
  %v81 = vld [vmem:[%s2] sm:$0x1]
  %v83 = vlaneseq
  %v84 = vshrl.u32 %v83, 7
  %v85 = vsub.s32 0, %v84
  %v86 = vrot.slane %v81, %v85
  %v88 = vmul.f32 %v17, %v86
  %v89 = vmul.f32 %v18, %v86
  %v90 = vmul.f32 %v19, %v86
  %v91 = vmul.f32 %v20, %v86
  %v92 = vmul.f32 %v21, %v86
  %v93 = vmul.f32 %v22, %v86
  %v94 = vmul.f32 %v23, %v86
  %v95 = vmul.f32 %v24, %v86
  %v96 = vmul.f32 %v25, %v86
  %v97 = vmul.f32 %v26, %v86
  %v98 = vmul.f32 %v27, %v86
  %v99 = vmul.f32 %v28, %v86
  %v100 = vmul.f32 %v29, %v86
  %v101 = vmul.f32 %v30, %v86
  %v102 = vmul.f32 %v31, %v86
  %v103 = vmul.f32 %v32, %v86
  %v104 = vmul.f32 %v33, %v86
  %v105 = vmul.f32 %v34, %v86
  %v106 = vmul.f32 %v35, %v86
  %v107 = vmul.f32 %v36, %v86
  %v108 = vmul.f32 %v37, %v86
  %v109 = vmul.f32 %v38, %v86
  %v110 = vmul.f32 %v39, %v86
  %v111 = vmul.f32 %v40, %v86
  %v112 = vmul.f32 %v41, %v86
  %v113 = vmul.f32 %v42, %v86
  %v114 = vmul.f32 %v43, %v86
  %v115 = vmul.f32 %v44, %v86
  %v116 = vmul.f32 %v45, %v86
  %v117 = vmul.f32 %v46, %v86
  %v118 = vmul.f32 %v47, %v86
  %v119 = vmul.f32 %v48, %v86
  %v120 = vmul.f32 %v49, %v86
  %v121 = vmul.f32 %v50, %v86
  %v122 = vmul.f32 %v51, %v86
  %v123 = vmul.f32 %v52, %v86
  %v124 = vmul.f32 %v53, %v86
  %v125 = vmul.f32 %v54, %v86
  %v126 = vmul.f32 %v55, %v86
  %v127 = vmul.f32 %v56, %v86
  %v128 = vmul.f32 %v57, %v86
  %v129 = vmul.f32 %v58, %v86
  %v130 = vmul.f32 %v59, %v86
  %v131 = vmul.f32 %v60, %v86
  %v132 = vmul.f32 %v61, %v86
  %v133 = vmul.f32 %v62, %v86
  %v134 = vmul.f32 %v63, %v86
  %v135 = vmul.f32 %v64, %v86
  %v136 = vmul.f32 %v65, %v86
  %v137 = vmul.f32 %v66, %v86
  %v138 = vmul.f32 %v67, %v86
  %v139 = vmul.f32 %v68, %v86
  %v140 = vmul.f32 %v69, %v86
  %v141 = vmul.f32 %v70, %v86
  %v142 = vmul.f32 %v71, %v86
  %v143 = vmul.f32 %v72, %v86
  %v144 = vmul.f32 %v73, %v86
  %v145 = vmul.f32 %v74, %v86
  %v146 = vmul.f32 %v75, %v86
  %v147 = vmul.f32 %v76, %v86
  %v148 = vmul.f32 %v77, %v86
  %v149 = vmul.f32 %v78, %v86
  %v150 = vmul.f32 %v79, %v86
  %v151 = vmul.f32 %v80, %v86
  %v152 = vld [vmem:[%s3] sm:$0x1]
  %v154 = vlaneseq
  %v155 = vshrl.u32 %v154, 7
  %v156 = vsub.s32 0, %v155
  %v157 = vrot.slane %v152, %v156
  %v159 = vadd.f32 %v88, %v157
  %v160 = vadd.f32 %v89, %v157
  %v161 = vadd.f32 %v90, %v157
  %v162 = vadd.f32 %v91, %v157
  %v163 = vadd.f32 %v92, %v157
  %v164 = vadd.f32 %v93, %v157
  %v165 = vadd.f32 %v94, %v157
  %v166 = vadd.f32 %v95, %v157
  %v167 = vadd.f32 %v96, %v157
  %v168 = vadd.f32 %v97, %v157
  %v169 = vadd.f32 %v98, %v157
  %v170 = vadd.f32 %v99, %v157
  %v171 = vadd.f32 %v100, %v157
  %v172 = vadd.f32 %v101, %v157
  %v173 = vadd.f32 %v102, %v157
  %v174 = vadd.f32 %v103, %v157
  %v175 = vadd.f32 %v104, %v157
  %v176 = vadd.f32 %v105, %v157
  %v177 = vadd.f32 %v106, %v157
  %v178 = vadd.f32 %v107, %v157
  %v179 = vadd.f32 %v108, %v157
  %v180 = vadd.f32 %v109, %v157
  %v181 = vadd.f32 %v110, %v157
  %v182 = vadd.f32 %v111, %v157
  %v183 = vadd.f32 %v112, %v157
  %v184 = vadd.f32 %v113, %v157
  %v185 = vadd.f32 %v114, %v157
  %v186 = vadd.f32 %v115, %v157
  %v187 = vadd.f32 %v116, %v157
  %v188 = vadd.f32 %v117, %v157
  %v189 = vadd.f32 %v118, %v157
  %v190 = vadd.f32 %v119, %v157
  %v191 = vadd.f32 %v120, %v157
  %v192 = vadd.f32 %v121, %v157
  %v193 = vadd.f32 %v122, %v157
  %v194 = vadd.f32 %v123, %v157
  %v195 = vadd.f32 %v124, %v157
  %v196 = vadd.f32 %v125, %v157
  %v197 = vadd.f32 %v126, %v157
  %v198 = vadd.f32 %v127, %v157
  %v199 = vadd.f32 %v128, %v157
  %v200 = vadd.f32 %v129, %v157
  %v201 = vadd.f32 %v130, %v157
  %v202 = vadd.f32 %v131, %v157
  %v203 = vadd.f32 %v132, %v157
  %v204 = vadd.f32 %v133, %v157
  %v205 = vadd.f32 %v134, %v157
  %v206 = vadd.f32 %v135, %v157
  %v207 = vadd.f32 %v136, %v157
  %v208 = vadd.f32 %v137, %v157
  %v209 = vadd.f32 %v138, %v157
  %v210 = vadd.f32 %v139, %v157
  %v211 = vadd.f32 %v140, %v157
  %v212 = vadd.f32 %v141, %v157
  %v213 = vadd.f32 %v142, %v157
  %v214 = vadd.f32 %v143, %v157
  %v215 = vadd.f32 %v144, %v157
  %v216 = vadd.f32 %v145, %v157
  %v217 = vadd.f32 %v146, %v157
  %v218 = vadd.f32 %v147, %v157
  %v219 = vadd.f32 %v148, %v157
  %v220 = vadd.f32 %v149, %v157
  %v221 = vadd.f32 %v150, %v157
  %v222 = vadd.f32 %v151, %v157
  %v223 = vld [vmem:[%s1] sm:$0xff]
  %v224 = vld [vmem:[%s1 + $0x8] sm:$0xff]
  %v225 = vld [vmem:[%s1 + $0x10] sm:$0xff]
  %v226 = vld [vmem:[%s1 + $0x18] sm:$0xff]
  %v227 = vld [vmem:[%s1 + $0x20] sm:$0xff]
  %v228 = vld [vmem:[%s1 + $0x28] sm:$0xff]
  %v229 = vld [vmem:[%s1 + $0x30] sm:$0xff]
  %v230 = vld [vmem:[%s1 + $0x38] sm:$0xff]
  %v231 = vld [vmem:[%s1 + $0x40] sm:$0xff]
  %v232 = vld [vmem:[%s1 + $0x48] sm:$0xff]
  %v233 = vld [vmem:[%s1 + $0x50] sm:$0xff]
  %v234 = vld [vmem:[%s1 + $0x58] sm:$0xff]
  %v235 = vld [vmem:[%s1 + $0x60] sm:$0xff]
  %v236 = vld [vmem:[%s1 + $0x68] sm:$0xff]
  %v237 = vld [vmem:[%s1 + $0x70] sm:$0xff]
  %v238 = vld [vmem:[%s1 + $0x78] sm:$0xff]
  %v239 = vld [vmem:[%s1 + $0x80] sm:$0xff]
  %v240 = vld [vmem:[%s1 + $0x88] sm:$0xff]
  %v241 = vld [vmem:[%s1 + $0x90] sm:$0xff]
  %v242 = vld [vmem:[%s1 + $0x98] sm:$0xff]
  %v243 = vld [vmem:[%s1 + $0xa0] sm:$0xff]
  %v244 = vld [vmem:[%s1 + $0xa8] sm:$0xff]
  %v245 = vld [vmem:[%s1 + $0xb0] sm:$0xff]
  %v246 = vld [vmem:[%s1 + $0xb8] sm:$0xff]
  %v247 = vld [vmem:[%s1 + $0xc0] sm:$0xff]
  %v248 = vld [vmem:[%s1 + $0xc8] sm:$0xff]
  %v249 = vld [vmem:[%s1 + $0xd0] sm:$0xff]
  %v250 = vld [vmem:[%s1 + $0xd8] sm:$0xff]
  %v251 = vld [vmem:[%s1 + $0xe0] sm:$0xff]
  %v252 = vld [vmem:[%s1 + $0xe8] sm:$0xff]
  %v253 = vld [vmem:[%s1 + $0xf0] sm:$0xff]
  %v254 = vld [vmem:[%s1 + $0xf8] sm:$0xff]
  %v255 = vld [vmem:[%s1 + $0x100] sm:$0xff]
  %v256 = vld [vmem:[%s1 + $0x108] sm:$0xff]
  %v257 = vld [vmem:[%s1 + $0x110] sm:$0xff]
  %v258 = vld [vmem:[%s1 + $0x118] sm:$0xff]
  %v259 = vld [vmem:[%s1 + $0x120] sm:$0xff]
  %v260 = vld [vmem:[%s1 + $0x128] sm:$0xff]
  %v261 = vld [vmem:[%s1 + $0x130] sm:$0xff]
  %v262 = vld [vmem:[%s1 + $0x138] sm:$0xff]
  %v263 = vld [vmem:[%s1 + $0x140] sm:$0xff]
  %v264 = vld [vmem:[%s1 + $0x148] sm:$0xff]
  %v265 = vld [vmem:[%s1 + $0x150] sm:$0xff]
  %v266 = vld [vmem:[%s1 + $0x158] sm:$0xff]
  %v267 = vld [vmem:[%s1 + $0x160] sm:$0xff]
  %v268 = vld [vmem:[%s1 + $0x168] sm:$0xff]
  %v269 = vld [vmem:[%s1 + $0x170] sm:$0xff]
  %v270 = vld [vmem:[%s1 + $0x178] sm:$0xff]
  %v271 = vld [vmem:[%s1 + $0x180] sm:$0xff]
  %v272 = vld [vmem:[%s1 + $0x188] sm:$0xff]
  %v273 = vld [vmem:[%s1 + $0x190] sm:$0xff]
  %v274 = vld [vmem:[%s1 + $0x198] sm:$0xff]
  %v275 = vld [vmem:[%s1 + $0x1a0] sm:$0xff]
  %v276 = vld [vmem:[%s1 + $0x1a8] sm:$0xff]
  %v277 = vld [vmem:[%s1 + $0x1b0] sm:$0xff]
  %v278 = vld [vmem:[%s1 + $0x1b8] sm:$0xff]
  %v279 = vld [vmem:[%s1 + $0x1c0] sm:$0xff]
  %v280 = vld [vmem:[%s1 + $0x1c8] sm:$0xff]
  %v281 = vld [vmem:[%s1 + $0x1d0] sm:$0xff]
  %v282 = vld [vmem:[%s1 + $0x1d8] sm:$0xff]
  %v283 = vld [vmem:[%s1 + $0x1e0] sm:$0xff]
  %v284 = vld [vmem:[%s1 + $0x1e8] sm:$0xff]
  %v285 = vld [vmem:[%s1 + $0x1f0] sm:$0xff]
  %v286 = vld [vmem:[%s1 + $0x1f8] sm:$0xff]
  %v287 = vadd.f32 %v159, %v223
  %v288 = vadd.f32 %v160, %v224
  %v289 = vadd.f32 %v161, %v225
  %v290 = vadd.f32 %v162, %v226
  %v291 = vadd.f32 %v163, %v227
  %v292 = vadd.f32 %v164, %v228
  %v293 = vadd.f32 %v165, %v229
  %v294 = vadd.f32 %v166, %v230
  %v295 = vadd.f32 %v167, %v231
  %v296 = vadd.f32 %v168, %v232
  %v297 = vadd.f32 %v169, %v233
  %v298 = vadd.f32 %v170, %v234
  %v299 = vadd.f32 %v171, %v235
  %v300 = vadd.f32 %v172, %v236
  %v301 = vadd.f32 %v173, %v237
  %v302 = vadd.f32 %v174, %v238
  %v303 = vadd.f32 %v175, %v239
  %v304 = vadd.f32 %v176, %v240
  %v305 = vadd.f32 %v177, %v241
  %v306 = vadd.f32 %v178, %v242
  %v307 = vadd.f32 %v179, %v243
  %v308 = vadd.f32 %v180, %v244
  %v309 = vadd.f32 %v181, %v245
  %v310 = vadd.f32 %v182, %v246
  %v311 = vadd.f32 %v183, %v247
  %v312 = vadd.f32 %v184, %v248
  %v313 = vadd.f32 %v185, %v249
  %v314 = vadd.f32 %v186, %v250
  %v315 = vadd.f32 %v187, %v251
  %v316 = vadd.f32 %v188, %v252
  %v317 = vadd.f32 %v189, %v253
  %v318 = vadd.f32 %v190, %v254
  %v319 = vadd.f32 %v191, %v255
  %v320 = vadd.f32 %v192, %v256
  %v321 = vadd.f32 %v193, %v257
  %v322 = vadd.f32 %v194, %v258
  %v323 = vadd.f32 %v195, %v259
  %v324 = vadd.f32 %v196, %v260
  %v325 = vadd.f32 %v197, %v261
  %v326 = vadd.f32 %v198, %v262
  %v327 = vadd.f32 %v199, %v263
  %v328 = vadd.f32 %v200, %v264
  %v329 = vadd.f32 %v201, %v265
  %v330 = vadd.f32 %v202, %v266
  %v331 = vadd.f32 %v203, %v267
  %v332 = vadd.f32 %v204, %v268
  %v333 = vadd.f32 %v205, %v269
  %v334 = vadd.f32 %v206, %v270
  %v335 = vadd.f32 %v207, %v271
  %v336 = vadd.f32 %v208, %v272
  %v337 = vadd.f32 %v209, %v273
  %v338 = vadd.f32 %v210, %v274
  %v339 = vadd.f32 %v211, %v275
  %v340 = vadd.f32 %v212, %v276
  %v341 = vadd.f32 %v213, %v277
  %v342 = vadd.f32 %v214, %v278
  %v343 = vadd.f32 %v215, %v279
  %v344 = vadd.f32 %v216, %v280
  %v345 = vadd.f32 %v217, %v281
  %v346 = vadd.f32 %v218, %v282
  %v347 = vadd.f32 %v219, %v283
  %v348 = vadd.f32 %v220, %v284
  %v349 = vadd.f32 %v221, %v285
  %v350 = vadd.f32 %v222, %v286
  %v351 = vmax.f32 %v287, 0.0
  %v352 = vmax.f32 %v288, 0.0
  %v353 = vmax.f32 %v289, 0.0
  %v354 = vmax.f32 %v290, 0.0
  %v355 = vmax.f32 %v291, 0.0
  %v356 = vmax.f32 %v292, 0.0
  %v357 = vmax.f32 %v293, 0.0
  %v358 = vmax.f32 %v294, 0.0
  %v359 = vmax.f32 %v295, 0.0
  %v360 = vmax.f32 %v296, 0.0
  %v361 = vmax.f32 %v297, 0.0
  %v362 = vmax.f32 %v298, 0.0
  %v363 = vmax.f32 %v299, 0.0
  %v364 = vmax.f32 %v300, 0.0
  %v365 = vmax.f32 %v301, 0.0
  %v366 = vmax.f32 %v302, 0.0
  %v367 = vmax.f32 %v303, 0.0
  %v368 = vmax.f32 %v304, 0.0
  %v369 = vmax.f32 %v305, 0.0
  %v370 = vmax.f32 %v306, 0.0
  %v371 = vmax.f32 %v307, 0.0
  %v372 = vmax.f32 %v308, 0.0
  %v373 = vmax.f32 %v309, 0.0
  %v374 = vmax.f32 %v310, 0.0
  %v375 = vmax.f32 %v311, 0.0
  %v376 = vmax.f32 %v312, 0.0
  %v377 = vmax.f32 %v313, 0.0
  %v378 = vmax.f32 %v314, 0.0
  %v379 = vmax.f32 %v315, 0.0
  %v380 = vmax.f32 %v316, 0.0
  %v381 = vmax.f32 %v317, 0.0
  %v382 = vmax.f32 %v318, 0.0
  %v383 = vmax.f32 %v319, 0.0
  %v384 = vmax.f32 %v320, 0.0
  %v385 = vmax.f32 %v321, 0.0
  %v386 = vmax.f32 %v322, 0.0
  %v387 = vmax.f32 %v323, 0.0
  %v388 = vmax.f32 %v324, 0.0
  %v389 = vmax.f32 %v325, 0.0
  %v390 = vmax.f32 %v326, 0.0
  %v391 = vmax.f32 %v327, 0.0
  %v392 = vmax.f32 %v328, 0.0
  %v393 = vmax.f32 %v329, 0.0
  %v394 = vmax.f32 %v330, 0.0
  %v395 = vmax.f32 %v331, 0.0
  %v396 = vmax.f32 %v332, 0.0
  %v397 = vmax.f32 %v333, 0.0
  %v398 = vmax.f32 %v334, 0.0
  %v399 = vmax.f32 %v335, 0.0
  %v400 = vmax.f32 %v336, 0.0
  %v401 = vmax.f32 %v337, 0.0
  %v402 = vmax.f32 %v338, 0.0
  %v403 = vmax.f32 %v339, 0.0
  %v404 = vmax.f32 %v340, 0.0
  %v405 = vmax.f32 %v341, 0.0
  %v406 = vmax.f32 %v342, 0.0
  %v407 = vmax.f32 %v343, 0.0
  %v408 = vmax.f32 %v344, 0.0
  %v409 = vmax.f32 %v345, 0.0
  %v410 = vmax.f32 %v346, 0.0
  %v411 = vmax.f32 %v347, 0.0
  %v412 = vmax.f32 %v348, 0.0
  %v413 = vmax.f32 %v349, 0.0
  %v414 = vmax.f32 %v350, 0.0
  %415 = vst [vmem:[%s4] sm:$0xff] %v351
  %416 = vst [vmem:[%s4 + $0x8] sm:$0xff] %v352
  %417 = vst [vmem:[%s4 + $0x10] sm:$0xff] %v353
  %418 = vst [vmem:[%s4 + $0x18] sm:$0xff] %v354
  %419 = vst [vmem:[%s4 + $0x20] sm:$0xff] %v355
  %420 = vst [vmem:[%s4 + $0x28] sm:$0xff] %v356
  %421 = vst [vmem:[%s4 + $0x30] sm:$0xff] %v357
  %422 = vst [vmem:[%s4 + $0x38] sm:$0xff] %v358
  %423 = vst [vmem:[%s4 + $0x40] sm:$0xff] %v359
  %424 = vst [vmem:[%s4 + $0x48] sm:$0xff] %v360
  %425 = vst [vmem:[%s4 + $0x50] sm:$0xff] %v361
  %426 = vst [vmem:[%s4 + $0x58] sm:$0xff] %v362
  %427 = vst [vmem:[%s4 + $0x60] sm:$0xff] %v363
  %428 = vst [vmem:[%s4 + $0x68] sm:$0xff] %v364
  %429 = vst [vmem:[%s4 + $0x70] sm:$0xff] %v365
  %430 = vst [vmem:[%s4 + $0x78] sm:$0xff] %v366
  %431 = vst [vmem:[%s4 + $0x80] sm:$0xff] %v367
  %432 = vst [vmem:[%s4 + $0x88] sm:$0xff] %v368
  %433 = vst [vmem:[%s4 + $0x90] sm:$0xff] %v369
  %434 = vst [vmem:[%s4 + $0x98] sm:$0xff] %v370
  %435 = vst [vmem:[%s4 + $0xa0] sm:$0xff] %v371
  %436 = vst [vmem:[%s4 + $0xa8] sm:$0xff] %v372
  %437 = vst [vmem:[%s4 + $0xb0] sm:$0xff] %v373
  %438 = vst [vmem:[%s4 + $0xb8] sm:$0xff] %v374
  %439 = vst [vmem:[%s4 + $0xc0] sm:$0xff] %v375
  %440 = vst [vmem:[%s4 + $0xc8] sm:$0xff] %v376
  %441 = vst [vmem:[%s4 + $0xd0] sm:$0xff] %v377
  %442 = vst [vmem:[%s4 + $0xd8] sm:$0xff] %v378
  %443 = vst [vmem:[%s4 + $0xe0] sm:$0xff] %v379
  %444 = vst [vmem:[%s4 + $0xe8] sm:$0xff] %v380
  %445 = vst [vmem:[%s4 + $0xf0] sm:$0xff] %v381
  %446 = vst [vmem:[%s4 + $0xf8] sm:$0xff] %v382
  %447 = vst [vmem:[%s4 + $0x100] sm:$0xff] %v383
  %448 = vst [vmem:[%s4 + $0x108] sm:$0xff] %v384
  %449 = vst [vmem:[%s4 + $0x110] sm:$0xff] %v385
  %450 = vst [vmem:[%s4 + $0x118] sm:$0xff] %v386
  %451 = vst [vmem:[%s4 + $0x120] sm:$0xff] %v387
  %452 = vst [vmem:[%s4 + $0x128] sm:$0xff] %v388
  %453 = vst [vmem:[%s4 + $0x130] sm:$0xff] %v389
  %454 = vst [vmem:[%s4 + $0x138] sm:$0xff] %v390
  %455 = vst [vmem:[%s4 + $0x140] sm:$0xff] %v391
  %456 = vst [vmem:[%s4 + $0x148] sm:$0xff] %v392
  %457 = vst [vmem:[%s4 + $0x150] sm:$0xff] %v393
  %458 = vst [vmem:[%s4 + $0x158] sm:$0xff] %v394
  %459 = vst [vmem:[%s4 + $0x160] sm:$0xff] %v395
  %460 = vst [vmem:[%s4 + $0x168] sm:$0xff] %v396
  %461 = vst [vmem:[%s4 + $0x170] sm:$0xff] %v397
  %462 = vst [vmem:[%s4 + $0x178] sm:$0xff] %v398
  %463 = vst [vmem:[%s4 + $0x180] sm:$0xff] %v399
  %464 = vst [vmem:[%s4 + $0x188] sm:$0xff] %v400
  %465 = vst [vmem:[%s4 + $0x190] sm:$0xff] %v401
  %466 = vst [vmem:[%s4 + $0x198] sm:$0xff] %v402
  %467 = vst [vmem:[%s4 + $0x1a0] sm:$0xff] %v403
  %468 = vst [vmem:[%s4 + $0x1a8] sm:$0xff] %v404
  %469 = vst [vmem:[%s4 + $0x1b0] sm:$0xff] %v405
  %470 = vst [vmem:[%s4 + $0x1b8] sm:$0xff] %v406
  %471 = vst [vmem:[%s4 + $0x1c0] sm:$0xff] %v407
  %472 = vst [vmem:[%s4 + $0x1c8] sm:$0xff] %v408
  %473 = vst [vmem:[%s4 + $0x1d0] sm:$0xff] %v409
  %474 = vst [vmem:[%s4 + $0x1d8] sm:$0xff] %v410
  %475 = vst [vmem:[%s4 + $0x1e0] sm:$0xff] %v411
  %476 = vst [vmem:[%s4 + $0x1e8] sm:$0xff] %v412
  %477 = vst [vmem:[%s4 + $0x1f0] sm:$0xff] %v413
  %478 = vst [vmem:[%s4 + $0x1f8] sm:$0xff] %v414
  // Predicated region
  $region18: #{basic_block_forward.5} parent=0 // pred_check
    _
  $region19: #{basic_block_forward.5} parent=0 // pred_check_branch
    %480 = sbr.rel (0) target = $region21
  $region20: #{basic_block_forward.5} parent=0 // pred_region
    _
  $region21: #{basic_block_forward.5} parent=0 // pred_fallthru
    _
  // Predicated region
  $region22: #{basic_block_forward.5} parent=0 // pred_check
    _
  $region23: #{basic_block_forward.5} parent=0 // pred_check_branch
    %482 = sbr.rel (0) target = $region25
  $region24: #{basic_block_forward.5} parent=0 // pred_region
    _
  $region25: #{basic_block_forward.5} parent=0 // pred_fallthru
    _

// kernel: basic_block_forward.3
$region0: #{basic_block_forward.3}
  #allocation0 [shape = 'u32[]', space=smem, size = 0x4, offset = 0x4, fixed_abs, tag = 'smem constant byte address 0x4 - core index']
  #allocation1 [shape = 'u32[144,128]{1,0:T(1,128)}', space=vmem, size = 0x12000, scoped, tag = 'internal scratch']
  #allocation2 [shape = 'f32[2,18,18,128]{3,2,1,0:T(8,128)}', space=vmem, size = 0x6c000, scoped, tag = 'scratch operand']
  #allocation3 [shape = 'f32[512,1152]{1,0:T(8,128)}', space=vmem, size = 0x240000, scoped, tag = 'scratch operand']
  %s0 = inlined_call_operand.vmem [shape: f32[2,16,16,128], index: 0, kind: input, shape index: {}]
  %s1 = inlined_call_operand.vmem [shape: f32[1,128], index: 1, kind: input, shape index: {}]
  %s2 = inlined_call_operand.vmem [shape: f32[1,128], index: 2, kind: input, shape index: {}]
  %s3 = inlined_call_operand.vmem [shape: f32[1152,128], index: 3, kind: input, shape index: {}]
  %s4 = inlined_call_operand.vmem [shape: f32[2,16,16,128], index: 4, kind: output, shape index: {0}]
  %s5 = inlined_call_operand.vmem [shape: f32[1,2,128], index: 5, kind: output, shape index: {1}]
  %6 = xla_tuple %s4, %s5
  %s7 = sld [smem:[#allocation0]]
  $region34: #{basic_block_forward.3} parent=0
    _
  %s9 = ssub.s32 1, %s7
  %s10 = scalar_select 0, %s9, %s7
  // Predicated region
  $region2: #{basic_block_forward.3} parent=0 // pred_check
    _
  $region3: #{basic_block_forward.3} parent=0 // pred_check_branch
    %12 = sbr.rel (0) target = $region5
  $region4: #{basic_block_forward.3} parent=0 // pred_region
    _
  $region5: #{basic_block_forward.3} parent=0 // pred_fallthru
    _
  // Predicated region
  $region6: #{basic_block_forward.3} parent=0 // pred_check
    _
  $region7: #{basic_block_forward.3} parent=0 // pred_check_branch
    %14 = sbr.rel (0) target = $region9
  $region8: #{basic_block_forward.3} parent=0 // pred_region
    _
  $region9: #{basic_block_forward.3} parent=0 // pred_fallthru
    _
  // Predicated region
  $region10: #{basic_block_forward.3} parent=0 // pred_check
    _
  $region11: #{basic_block_forward.3} parent=0 // pred_check_branch
    %16 = sbr.rel (0) target = $region13
  $region12: #{basic_block_forward.3} parent=0 // pred_region
    _
  $region13: #{basic_block_forward.3} parent=0 // pred_fallthru
    _
  // Predicated region
  $region14: #{basic_block_forward.3} parent=0 // pred_check
    _
  $region15: #{basic_block_forward.3} parent=0 // pred_check_branch
    %18 = sbr.rel (0) target = $region17
  $region16: #{basic_block_forward.3} parent=0 // pred_region
    _
  $region17: #{basic_block_forward.3} parent=0 // pred_fallthru
    _
  %v19 = vld [vmem:[%s0] sm:$0xff]
  %v20 = vld [vmem:[%s0 + $0x8] sm:$0xff]
  %v21 = vld [vmem:[%s0 + $0x10] sm:$0xff]
  %v22 = vld [vmem:[%s0 + $0x18] sm:$0xff]
  %v23 = vld [vmem:[%s0 + $0x20] sm:$0xff]
  %v24 = vld [vmem:[%s0 + $0x28] sm:$0xff]
  %v25 = vld [vmem:[%s0 + $0x30] sm:$0xff]
  %v26 = vld [vmem:[%s0 + $0x38] sm:$0xff]
  %v27 = vld [vmem:[%s0 + $0x40] sm:$0xff]
  %v28 = vld [vmem:[%s0 + $0x48] sm:$0xff]
  %v29 = vld [vmem:[%s0 + $0x50] sm:$0xff]
  %v30 = vld [vmem:[%s0 + $0x58] sm:$0xff]
  %v31 = vld [vmem:[%s0 + $0x60] sm:$0xff]
  %v32 = vld [vmem:[%s0 + $0x68] sm:$0xff]
  %v33 = vld [vmem:[%s0 + $0x70] sm:$0xff]
  %v34 = vld [vmem:[%s0 + $0x78] sm:$0xff]
  %v35 = vld [vmem:[%s0 + $0x80] sm:$0xff]
  %v36 = vld [vmem:[%s0 + $0x88] sm:$0xff]
  %v37 = vld [vmem:[%s0 + $0x90] sm:$0xff]
  %v38 = vld [vmem:[%s0 + $0x98] sm:$0xff]
  %v39 = vld [vmem:[%s0 + $0xa0] sm:$0xff]
  %v40 = vld [vmem:[%s0 + $0xa8] sm:$0xff]
  %v41 = vld [vmem:[%s0 + $0xb0] sm:$0xff]
  %v42 = vld [vmem:[%s0 + $0xb8] sm:$0xff]
  %v43 = vld [vmem:[%s0 + $0xc0] sm:$0xff]
  %v44 = vld [vmem:[%s0 + $0xc8] sm:$0xff]
  %v45 = vld [vmem:[%s0 + $0xd0] sm:$0xff]
  %v46 = vld [vmem:[%s0 + $0xd8] sm:$0xff]
  %v47 = vld [vmem:[%s0 + $0xe0] sm:$0xff]
  %v48 = vld [vmem:[%s0 + $0xe8] sm:$0xff]
  %v49 = vld [vmem:[%s0 + $0xf0] sm:$0xff]
  %v50 = vld [vmem:[%s0 + $0xf8] sm:$0xff]
  %v51 = vld [vmem:[%s0 + $0x100] sm:$0xff]
  %v52 = vld [vmem:[%s0 + $0x108] sm:$0xff]
  %v53 = vld [vmem:[%s0 + $0x110] sm:$0xff]
  %v54 = vld [vmem:[%s0 + $0x118] sm:$0xff]
  %v55 = vld [vmem:[%s0 + $0x120] sm:$0xff]
  %v56 = vld [vmem:[%s0 + $0x128] sm:$0xff]
  %v57 = vld [vmem:[%s0 + $0x130] sm:$0xff]
  %v58 = vld [vmem:[%s0 + $0x138] sm:$0xff]
  %v59 = vld [vmem:[%s0 + $0x140] sm:$0xff]
  %v60 = vld [vmem:[%s0 + $0x148] sm:$0xff]
  %v61 = vld [vmem:[%s0 + $0x150] sm:$0xff]
  %v62 = vld [vmem:[%s0 + $0x158] sm:$0xff]
  %v63 = vld [vmem:[%s0 + $0x160] sm:$0xff]
  %v64 = vld [vmem:[%s0 + $0x168] sm:$0xff]
  %v65 = vld [vmem:[%s0 + $0x170] sm:$0xff]
  %v66 = vld [vmem:[%s0 + $0x178] sm:$0xff]
  %v67 = vld [vmem:[%s0 + $0x180] sm:$0xff]
  %v68 = vld [vmem:[%s0 + $0x188] sm:$0xff]
  %v69 = vld [vmem:[%s0 + $0x190] sm:$0xff]
  %v70 = vld [vmem:[%s0 + $0x198] sm:$0xff]
  %v71 = vld [vmem:[%s0 + $0x1a0] sm:$0xff]
  %v72 = vld [vmem:[%s0 + $0x1a8] sm:$0xff]
  %v73 = vld [vmem:[%s0 + $0x1b0] sm:$0xff]
  %v74 = vld [vmem:[%s0 + $0x1b8] sm:$0xff]
  %v75 = vld [vmem:[%s0 + $0x1c0] sm:$0xff]
  %v76 = vld [vmem:[%s0 + $0x1c8] sm:$0xff]
  %v77 = vld [vmem:[%s0 + $0x1d0] sm:$0xff]
  %v78 = vld [vmem:[%s0 + $0x1d8] sm:$0xff]
  %v79 = vld [vmem:[%s0 + $0x1e0] sm:$0xff]
  %v80 = vld [vmem:[%s0 + $0x1e8] sm:$0xff]
  %v81 = vld [vmem:[%s0 + $0x1f0] sm:$0xff]
  %v82 = vld [vmem:[%s0 + $0x1f8] sm:$0xff]
  %83 = vst [vmem:[#allocation2] sm:$0xff] 0.0
  %84 = vst [vmem:[#allocation2 + $0x8] sm:$0xff] 0.0
  %85 = vst [vmem:[#allocation2 + $0x10] sm:$0x3] 0.0
  %86 = vst [vmem:[#allocation2 + $0x1b0] sm:$0xff] 0.0
  %87 = vst [vmem:[#allocation2 + $0x1b8] sm:$0xff] 0.0
  %88 = vst [vmem:[#allocation2 + $0x1c0] sm:$0x3] 0.0
  %s89 = scalar_lea.vmem [#allocation2], 408
  %90 = vst [vmem:[%s89] sm:$0xff] 0.0
  %91 = vst [vmem:[%s89 + $0x8] sm:$0xff] 0.0
  %92 = vst [vmem:[%s89 + $0x10] sm:$0x3] 0.0
  %93 = vst [vmem:[%s89 + $0x1b0] sm:$0xff] 0.0
  %94 = vst [vmem:[%s89 + $0x1b8] sm:$0xff] 0.0
  %95 = vst [vmem:[%s89 + $0x1c0] sm:$0x3] 0.0
  %96 = vst [vmem:[#allocation2] sm:$0x1] 0.0
  %97 = vst [vmem:[#allocation2 + $0x18] sm:$0x1] 0.0
  %98 = vst [vmem:[#allocation2 + $0x30] sm:$0x1] 0.0
  %99 = vst [vmem:[#allocation2 + $0x48] sm:$0x1] 0.0
  %100 = vst [vmem:[#allocation2 + $0x60] sm:$0x1] 0.0
  %101 = vst [vmem:[#allocation2 + $0x78] sm:$0x1] 0.0
  %102 = vst [vmem:[#allocation2 + $0x90] sm:$0x1] 0.0
  %103 = vst [vmem:[#allocation2 + $0xa8] sm:$0x1] 0.0
  %104 = vst [vmem:[#allocation2 + $0xc0] sm:$0x1] 0.0
  %105 = vst [vmem:[#allocation2 + $0xd8] sm:$0x1] 0.0
  %106 = vst [vmem:[#allocation2 + $0xf0] sm:$0x1] 0.0
  %107 = vst [vmem:[#allocation2 + $0x108] sm:$0x1] 0.0
  %108 = vst [vmem:[#allocation2 + $0x120] sm:$0x1] 0.0
  %109 = vst [vmem:[#allocation2 + $0x138] sm:$0x1] 0.0
  %110 = vst [vmem:[#allocation2 + $0x150] sm:$0x1] 0.0
  %111 = vst [vmem:[#allocation2 + $0x168] sm:$0x1] 0.0
  %112 = vst [vmem:[#allocation2 + $0x180] sm:$0x1] 0.0
  %113 = vst [vmem:[#allocation2 + $0x198] sm:$0x1] 0.0
  %114 = vst [vmem:[#allocation2 + $0x1b0] sm:$0x1] 0.0
  %115 = vst [vmem:[#allocation2 + $0x1c8] sm:$0x1] 0.0
  %116 = vst [vmem:[#allocation2 + $0x1e0] sm:$0x1] 0.0
  %117 = vst [vmem:[#allocation2 + $0x1f8] sm:$0x1] 0.0
  %118 = vst [vmem:[#allocation2 + $0x210] sm:$0x1] 0.0
  %119 = vst [vmem:[#allocation2 + $0x228] sm:$0x1] 0.0
  %120 = vst [vmem:[#allocation2 + $0x240] sm:$0x1] 0.0
  %121 = vst [vmem:[#allocation2 + $0x258] sm:$0x1] 0.0
  %122 = vst [vmem:[#allocation2 + $0x270] sm:$0x1] 0.0
  %123 = vst [vmem:[#allocation2 + $0x288] sm:$0x1] 0.0
  %124 = vst [vmem:[#allocation2 + $0x2a0] sm:$0x1] 0.0
  %125 = vst [vmem:[#allocation2 + $0x2b8] sm:$0x1] 0.0
  %126 = vst [vmem:[#allocation2 + $0x2d0] sm:$0x1] 0.0
  %127 = vst [vmem:[#allocation2 + $0x2e8] sm:$0x1] 0.0
  %128 = vst [vmem:[#allocation2 + $0x300] sm:$0x1] 0.0
  %129 = vst [vmem:[#allocation2 + $0x318] sm:$0x1] 0.0
  %130 = vst [vmem:[#allocation2 + $0x330] sm:$0x1] 0.0
  %131 = vst [vmem:[#allocation2 + $0x348] sm:$0x1] 0.0
  %132 = vst [vmem:[#allocation2 + $0x11] sm:$0x1] 0.0
  %133 = vst [vmem:[#allocation2 + $0x29] sm:$0x1] 0.0
  %134 = vst [vmem:[#allocation2 + $0x41] sm:$0x1] 0.0
  %135 = vst [vmem:[#allocation2 + $0x59] sm:$0x1] 0.0
  %136 = vst [vmem:[#allocation2 + $0x71] sm:$0x1] 0.0
  %137 = vst [vmem:[#allocation2 + $0x89] sm:$0x1] 0.0
  %138 = vst [vmem:[#allocation2 + $0xa1] sm:$0x1] 0.0
  %139 = vst [vmem:[#allocation2 + $0xb9] sm:$0x1] 0.0
  %140 = vst [vmem:[#allocation2 + $0xd1] sm:$0x1] 0.0
  %141 = vst [vmem:[#allocation2 + $0xe9] sm:$0x1] 0.0
  %142 = vst [vmem:[#allocation2 + $0x101] sm:$0x1] 0.0
  %143 = vst [vmem:[#allocation2 + $0x119] sm:$0x1] 0.0
  %144 = vst [vmem:[#allocation2 + $0x131] sm:$0x1] 0.0
  %145 = vst [vmem:[#allocation2 + $0x149] sm:$0x1] 0.0
  %146 = vst [vmem:[#allocation2 + $0x161] sm:$0x1] 0.0
  %147 = vst [vmem:[#allocation2 + $0x179] sm:$0x1] 0.0
  %148 = vst [vmem:[#allocation2 + $0x191] sm:$0x1] 0.0
  %149 = vst [vmem:[#allocation2 + $0x1a9] sm:$0x1] 0.0
  %150 = vst [vmem:[#allocation2 + $0x1c1] sm:$0x1] 0.0
  %151 = vst [vmem:[#allocation2 + $0x1d9] sm:$0x1] 0.0
  %152 = vst [vmem:[#allocation2 + $0x1f1] sm:$0x1] 0.0
  %153 = vst [vmem:[#allocation2 + $0x209] sm:$0x1] 0.0
  %154 = vst [vmem:[#allocation2 + $0x221] sm:$0x1] 0.0
  %155 = vst [vmem:[#allocation2 + $0x239] sm:$0x1] 0.0
  %156 = vst [vmem:[#allocation2 + $0x251] sm:$0x1] 0.0
  %157 = vst [vmem:[#allocation2 + $0x269] sm:$0x1] 0.0
  %158 = vst [vmem:[#allocation2 + $0x281] sm:$0x1] 0.0
  %159 = vst [vmem:[#allocation2 + $0x299] sm:$0x1] 0.0
  %160 = vst [vmem:[#allocation2 + $0x2b1] sm:$0x1] 0.0
  %161 = vst [vmem:[#allocation2 + $0x2c9] sm:$0x1] 0.0
  %162 = vst [vmem:[#allocation2 + $0x2e1] sm:$0x1] 0.0
  %163 = vst [vmem:[#allocation2 + $0x2f9] sm:$0x1] 0.0
  %164 = vst [vmem:[#allocation2 + $0x311] sm:$0x1] 0.0
  %165 = vst [vmem:[#allocation2 + $0x329] sm:$0x1] 0.0
  %166 = vst [vmem:[#allocation2 + $0x341] sm:$0x1] 0.0
  %167 = vst [vmem:[#allocation2 + $0x359] sm:$0x1] 0.0
  %s168 = scalar_lea.vmem [#allocation2], 24
  %169 = vst [vmem:[%s168 + $0x1] sm:$0xff] %v19
  %170 = vst [vmem:[%s168 + $0x9] sm:$0xff] %v20
  %171 = vst [vmem:[%s168 + $0x19] sm:$0xff] %v21
  %172 = vst [vmem:[%s168 + $0x21] sm:$0xff] %v22
  %173 = vst [vmem:[%s168 + $0x31] sm:$0xff] %v23
  %174 = vst [vmem:[%s168 + $0x39] sm:$0xff] %v24
  %175 = vst [vmem:[%s168 + $0x49] sm:$0xff] %v25
  %176 = vst [vmem:[%s168 + $0x51] sm:$0xff] %v26
  %177 = vst [vmem:[%s168 + $0x61] sm:$0xff] %v27
  %178 = vst [vmem:[%s168 + $0x69] sm:$0xff] %v28
  %179 = vst [vmem:[%s168 + $0x79] sm:$0xff] %v29
  %180 = vst [vmem:[%s168 + $0x81] sm:$0xff] %v30
  %181 = vst [vmem:[%s168 + $0x91] sm:$0xff] %v31
  %182 = vst [vmem:[%s168 + $0x99] sm:$0xff] %v32
  %183 = vst [vmem:[%s168 + $0xa9] sm:$0xff] %v33
  %184 = vst [vmem:[%s168 + $0xb1] sm:$0xff] %v34
  %185 = vst [vmem:[%s168 + $0xc1] sm:$0xff] %v35
  %186 = vst [vmem:[%s168 + $0xc9] sm:$0xff] %v36
  %187 = vst [vmem:[%s168 + $0xd9] sm:$0xff] %v37
  %188 = vst [vmem:[%s168 + $0xe1] sm:$0xff] %v38
  %189 = vst [vmem:[%s168 + $0xf1] sm:$0xff] %v39
  %190 = vst [vmem:[%s168 + $0xf9] sm:$0xff] %v40
  %191 = vst [vmem:[%s168 + $0x109] sm:$0xff] %v41
  %192 = vst [vmem:[%s168 + $0x111] sm:$0xff] %v42
  %193 = vst [vmem:[%s168 + $0x121] sm:$0xff] %v43
  %194 = vst [vmem:[%s168 + $0x129] sm:$0xff] %v44
  %195 = vst [vmem:[%s168 + $0x139] sm:$0xff] %v45
  %196 = vst [vmem:[%s168 + $0x141] sm:$0xff] %v46
  %197 = vst [vmem:[%s168 + $0x151] sm:$0xff] %v47
  %198 = vst [vmem:[%s168 + $0x159] sm:$0xff] %v48
  %199 = vst [vmem:[%s168 + $0x169] sm:$0xff] %v49
  %200 = vst [vmem:[%s168 + $0x171] sm:$0xff] %v50
  %201 = vst [vmem:[%s168 + $0x1b1] sm:$0xff] %v51
  %202 = vst [vmem:[%s168 + $0x1b9] sm:$0xff] %v52
  %203 = vst [vmem:[%s168 + $0x1c9] sm:$0xff] %v53
  %204 = vst [vmem:[%s168 + $0x1d1] sm:$0xff] %v54
  %205 = vst [vmem:[%s168 + $0x1e1] sm:$0xff] %v55
  %206 = vst [vmem:[%s168 + $0x1e9] sm:$0xff] %v56
  %207 = vst [vmem:[%s168 + $0x1f9] sm:$0xff] %v57
  %208 = vst [vmem:[%s168 + $0x201] sm:$0xff] %v58
  %209 = vst [vmem:[%s168 + $0x211] sm:$0xff] %v59
  %210 = vst [vmem:[%s168 + $0x219] sm:$0xff] %v60
  %211 = vst [vmem:[%s168 + $0x229] sm:$0xff] %v61
  %212 = vst [vmem:[%s168 + $0x231] sm:$0xff] %v62
  %213 = vst [vmem:[%s168 + $0x241] sm:$0xff] %v63
  %214 = vst [vmem:[%s168 + $0x249] sm:$0xff] %v64
  %215 = vst [vmem:[%s168 + $0x259] sm:$0xff] %v65
  %216 = vst [vmem:[%s168 + $0x261] sm:$0xff] %v66
  %217 = vst [vmem:[%s168 + $0x271] sm:$0xff] %v67
  %218 = vst [vmem:[%s168 + $0x279] sm:$0xff] %v68
  %219 = vst [vmem:[%s168 + $0x289] sm:$0xff] %v69
  %220 = vst [vmem:[%s168 + $0x291] sm:$0xff] %v70
  %221 = vst [vmem:[%s168 + $0x2a1] sm:$0xff] %v71
  %222 = vst [vmem:[%s168 + $0x2a9] sm:$0xff] %v72
  %223 = vst [vmem:[%s168 + $0x2b9] sm:$0xff] %v73
  %224 = vst [vmem:[%s168 + $0x2c1] sm:$0xff] %v74
  %225 = vst [vmem:[%s168 + $0x2d1] sm:$0xff] %v75
  %226 = vst [vmem:[%s168 + $0x2d9] sm:$0xff] %v76
  %227 = vst [vmem:[%s168 + $0x2e9] sm:$0xff] %v77
  %228 = vst [vmem:[%s168 + $0x2f1] sm:$0xff] %v78
  %229 = vst [vmem:[%s168 + $0x301] sm:$0xff] %v79
  %230 = vst [vmem:[%s168 + $0x309] sm:$0xff] %v80
  %231 = vst [vmem:[%s168 + $0x319] sm:$0xff] %v81
  %232 = vst [vmem:[%s168 + $0x321] sm:$0xff] %v82
  %v233 = vld [vmem:[#allocation2] sm:$0xff]
  %v234 = vld [vmem:[#allocation2 + $0x8] sm:$0xff]
  %v235 = vld [vmem:[#allocation2 + $0x18] sm:$0xff]
  %v236 = vld [vmem:[#allocation2 + $0x20] sm:$0xff]
  %v237 = vld [vmem:[#allocation2 + $0x30] sm:$0xff]
  %v238 = vld [vmem:[#allocation2 + $0x38] sm:$0xff]
  %v239 = vld [vmem:[#allocation2 + $0x48] sm:$0xff]
  %v240 = vld [vmem:[#allocation2 + $0x50] sm:$0xff]
  %v241 = vld [vmem:[#allocation2 + $0x60] sm:$0xff]
  %v242 = vld [vmem:[#allocation2 + $0x68] sm:$0xff]
  %v243 = vld [vmem:[#allocation2 + $0x78] sm:$0xff]
  %v244 = vld [vmem:[#allocation2 + $0x80] sm:$0xff]
  %v245 = vld [vmem:[#allocation2 + $0x90] sm:$0xff]
  %v246 = vld [vmem:[#allocation2 + $0x98] sm:$0xff]
  %v247 = vld [vmem:[#allocation2 + $0xa8] sm:$0xff]
  %v248 = vld [vmem:[#allocation2 + $0xb0] sm:$0xff]
  %v249 = vld [vmem:[#allocation2 + $0xc0] sm:$0xff]
  %v250 = vld [vmem:[#allocation2 + $0xc8] sm:$0xff]
  %v251 = vld [vmem:[#allocation2 + $0xd8] sm:$0xff]
  %v252 = vld [vmem:[#allocation2 + $0xe0] sm:$0xff]
  %v253 = vld [vmem:[#allocation2 + $0xf0] sm:$0xff]
  %v254 = vld [vmem:[#allocation2 + $0xf8] sm:$0xff]
  %v255 = vld [vmem:[#allocation2 + $0x108] sm:$0xff]
  %v256 = vld [vmem:[#allocation2 + $0x110] sm:$0xff]
  %v257 = vld [vmem:[#allocation2 + $0x120] sm:$0xff]
  %v258 = vld [vmem:[#allocation2 + $0x128] sm:$0xff]
  %v259 = vld [vmem:[#allocation2 + $0x138] sm:$0xff]
  %v260 = vld [vmem:[#allocation2 + $0x140] sm:$0xff]
  %v261 = vld [vmem:[#allocation2 + $0x150] sm:$0xff]
  %v262 = vld [vmem:[#allocation2 + $0x158] sm:$0xff]
  %v263 = vld [vmem:[#allocation2 + $0x168] sm:$0xff]
  %v264 = vld [vmem:[#allocation2 + $0x170] sm:$0xff]
  %v265 = vld [vmem:[#allocation2 + $0x1b0] sm:$0xff]
  %v266 = vld [vmem:[#allocation2 + $0x1b8] sm:$0xff]
  %v267 = vld [vmem:[#allocation2 + $0x1c8] sm:$0xff]
  %v268 = vld [vmem:[#allocation2 + $0x1d0] sm:$0xff]
  %v269 = vld [vmem:[#allocation2 + $0x1e0] sm:$0xff]
  %v270 = vld [vmem:[#allocation2 + $0x1e8] sm:$0xff]
  %v271 = vld [vmem:[#allocation2 + $0x1f8] sm:$0xff]
  %v272 = vld [vmem:[#allocation2 + $0x200] sm:$0xff]
  %v273 = vld [vmem:[#allocation2 + $0x210] sm:$0xff]
  %v274 = vld [vmem:[#allocation2 + $0x218] sm:$0xff]
  %v275 = vld [vmem:[#allocation2 + $0x228] sm:$0xff]
  %v276 = vld [vmem:[#allocation2 + $0x230] sm:$0xff]
  %v277 = vld [vmem:[#allocation2 + $0x240] sm:$0xff]
  %v278 = vld [vmem:[#allocation2 + $0x248] sm:$0xff]
  %v279 = vld [vmem:[#allocation2 + $0x258] sm:$0xff]
  %v280 = vld [vmem:[#allocation2 + $0x260] sm:$0xff]
  %v281 = vld [vmem:[#allocation2 + $0x270] sm:$0xff]
  %v282 = vld [vmem:[#allocation2 + $0x278] sm:$0xff]
  %v283 = vld [vmem:[#allocation2 + $0x288] sm:$0xff]
  %v284 = vld [vmem:[#allocation2 + $0x290] sm:$0xff]
  %v285 = vld [vmem:[#allocation2 + $0x2a0] sm:$0xff]
  %v286 = vld [vmem:[#allocation2 + $0x2a8] sm:$0xff]
  %v287 = vld [vmem:[#allocation2 + $0x2b8] sm:$0xff]
  %v288 = vld [vmem:[#allocation2 + $0x2c0] sm:$0xff]
  %v289 = vld [vmem:[#allocation2 + $0x2d0] sm:$0xff]
  %v290 = vld [vmem:[#allocation2 + $0x2d8] sm:$0xff]
  %v291 = vld [vmem:[#allocation2 + $0x2e8] sm:$0xff]
  %v292 = vld [vmem:[#allocation2 + $0x2f0] sm:$0xff]
  %v293 = vld [vmem:[#allocation2 + $0x300] sm:$0xff]
  %v294 = vld [vmem:[#allocation2 + $0x308] sm:$0xff]
  %v295 = vld [vmem:[#allocation2 + $0x318] sm:$0xff]
  %v296 = vld [vmem:[#allocation2 + $0x320] sm:$0xff]
  %297 = vst [vmem:[#allocation3] sm:$0xff] %v233
  %298 = vst [vmem:[#allocation3 + $0x48] sm:$0xff] %v234
  %299 = vst [vmem:[#allocation3 + $0x90] sm:$0xff] %v235
  %300 = vst [vmem:[#allocation3 + $0xd8] sm:$0xff] %v236
  %301 = vst [vmem:[#allocation3 + $0x120] sm:$0xff] %v237
  %302 = vst [vmem:[#allocation3 + $0x168] sm:$0xff] %v238
  %303 = vst [vmem:[#allocation3 + $0x1b0] sm:$0xff] %v239
  %304 = vst [vmem:[#allocation3 + $0x1f8] sm:$0xff] %v240
  %305 = vst [vmem:[#allocation3 + $0x240] sm:$0xff] %v241
  %306 = vst [vmem:[#allocation3 + $0x288] sm:$0xff] %v242
  %307 = vst [vmem:[#allocation3 + $0x2d0] sm:$0xff] %v243
  %308 = vst [vmem:[#allocation3 + $0x318] sm:$0xff] %v244
  %309 = vst [vmem:[#allocation3 + $0x360] sm:$0xff] %v245
  %310 = vst [vmem:[#allocation3 + $0x3a8] sm:$0xff] %v246
  %311 = vst [vmem:[#allocation3 + $0x3f0] sm:$0xff] %v247
  %312 = vst [vmem:[#allocation3 + $0x438] sm:$0xff] %v248
  %313 = vst [vmem:[#allocation3 + $0x480] sm:$0xff] %v249
  %314 = vst [vmem:[#allocation3 + $0x4c8] sm:$0xff] %v250
  %315 = vst [vmem:[#allocation3 + $0x510] sm:$0xff] %v251
  %316 = vst [vmem:[#allocation3 + $0x558] sm:$0xff] %v252
  %317 = vst [vmem:[#allocation3 + $0x5a0] sm:$0xff] %v253
  %318 = vst [vmem:[#allocation3 + $0x5e8] sm:$0xff] %v254
  %319 = vst [vmem:[#allocation3 + $0x630] sm:$0xff] %v255
  %320 = vst [vmem:[#allocation3 + $0x678] sm:$0xff] %v256
  %321 = vst [vmem:[#allocation3 + $0x6c0] sm:$0xff] %v257
  %322 = vst [vmem:[#allocation3 + $0x708] sm:$0xff] %v258
  %323 = vst [vmem:[#allocation3 + $0x750] sm:$0xff] %v259
  %324 = vst [vmem:[#allocation3 + $0x798] sm:$0xff] %v260
  %325 = vst [vmem:[#allocation3 + $0x7e0] sm:$0xff] %v261
  %326 = vst [vmem:[#allocation3 + $0x828] sm:$0xff] %v262
  %327 = vst [vmem:[#allocation3 + $0x870] sm:$0xff] %v263
  %328 = vst [vmem:[#allocation3 + $0x8b8] sm:$0xff] %v264
  %329 = vst [vmem:[#allocation3 + $0x900] sm:$0xff] %v265
  %330 = vst [vmem:[#allocation3 + $0x948] sm:$0xff] %v266
  %331 = vst [vmem:[#allocation3 + $0x990] sm:$0xff] %v267
  %332 = vst [vmem:[#allocation3 + $0x9d8] sm:$0xff] %v268
  %333 = vst [vmem:[#allocation3 + $0xa20] sm:$0xff] %v269
  %334 = vst [vmem:[#allocation3 + $0xa68] sm:$0xff] %v270
  %335 = vst [vmem:[#allocation3 + $0xab0] sm:$0xff] %v271
  %336 = vst [vmem:[#allocation3 + $0xaf8] sm:$0xff] %v272
  %337 = vst [vmem:[#allocation3 + $0xb40] sm:$0xff] %v273
  %338 = vst [vmem:[#allocation3 + $0xb88] sm:$0xff] %v274
  %339 = vst [vmem:[#allocation3 + $0xbd0] sm:$0xff] %v275
  %340 = vst [vmem:[#allocation3 + $0xc18] sm:$0xff] %v276
  %341 = vst [vmem:[#allocation3 + $0xc60] sm:$0xff] %v277
  %342 = vst [vmem:[#allocation3 + $0xca8] sm:$0xff] %v278
  %343 = vst [vmem:[#allocation3 + $0xcf0] sm:$0xff] %v279
  %344 = vst [vmem:[#allocation3 + $0xd38] sm:$0xff] %v280
  %345 = vst [vmem:[#allocation3 + $0xd80] sm:$0xff] %v281
  %346 = vst [vmem:[#allocation3 + $0xdc8] sm:$0xff] %v282
  %347 = vst [vmem:[#allocation3 + $0xe10] sm:$0xff] %v283
  %348 = vst [vmem:[#allocation3 + $0xe58] sm:$0xff] %v284
  %349 = vst [vmem:[#allocation3 + $0xea0] sm:$0xff] %v285
  %350 = vst [vmem:[#allocation3 + $0xee8] sm:$0xff] %v286
  %351 = vst [vmem:[#allocation3 + $0xf30] sm:$0xff] %v287
  %352 = vst [vmem:[#allocation3 + $0xf78] sm:$0xff] %v288
  %353 = vst [vmem:[#allocation3 + $0xfc0] sm:$0xff] %v289
  %354 = vst [vmem:[#allocation3 + $0x1008] sm:$0xff] %v290
  %355 = vst [vmem:[#allocation3 + $0x1050] sm:$0xff] %v291
  %356 = vst [vmem:[#allocation3 + $0x1098] sm:$0xff] %v292
  %357 = vst [vmem:[#allocation3 + $0x10e0] sm:$0xff] %v293
  %358 = vst [vmem:[#allocation3 + $0x1128] sm:$0xff] %v294
  %359 = vst [vmem:[#allocation3 + $0x1170] sm:$0xff] %v295
  %360 = vst [vmem:[#allocation3 + $0x11b8] sm:$0xff] %v296
  %v361 = vld [vmem:[#allocation2 + $0x1] sm:$0xff]
  %v362 = vld [vmem:[#allocation2 + $0x9] sm:$0xff]
  %v363 = vld [vmem:[#allocation2 + $0x19] sm:$0xff]
  %v364 = vld [vmem:[#allocation2 + $0x21] sm:$0xff]
  %v365 = vld [vmem:[#allocation2 + $0x31] sm:$0xff]
  %v366 = vld [vmem:[#allocation2 + $0x39] sm:$0xff]
  %v367 = vld [vmem:[#allocation2 + $0x49] sm:$0xff]
  %v368 = vld [vmem:[#allocation2 + $0x51] sm:$0xff]
  %v369 = vld [vmem:[#allocation2 + $0x61] sm:$0xff]
  %v370 = vld [vmem:[#allocation2 + $0x69] sm:$0xff]
  %v371 = vld [vmem:[#allocation2 + $0x79] sm:$0xff]
  %v372 = vld [vmem:[#allocation2 + $0x81] sm:$0xff]
  %v373 = vld [vmem:[#allocation2 + $0x91] sm:$0xff]
  %v374 = vld [vmem:[#allocation2 + $0x99] sm:$0xff]
  %v375 = vld [vmem:[#allocation2 + $0xa9] sm:$0xff]
  %v376 = vld [vmem:[#allocation2 + $0xb1] sm:$0xff]
  %v377 = vld [vmem:[#allocation2 + $0xc1] sm:$0xff]
  %v378 = vld [vmem:[#allocation2 + $0xc9] sm:$0xff]
  %v379 = vld [vmem:[#allocation2 + $0xd9] sm:$0xff]
  %v380 = vld [vmem:[#allocation2 + $0xe1] sm:$0xff]
  %v381 = vld [vmem:[#allocation2 + $0xf1] sm:$0xff]
  %v382 = vld [vmem:[#allocation2 + $0xf9] sm:$0xff]
  %v383 = vld [vmem:[#allocation2 + $0x109] sm:$0xff]
  %v384 = vld [vmem:[#allocation2 + $0x111] sm:$0xff]
  %v385 = vld [vmem:[#allocation2 + $0x121] sm:$0xff]
  %v386 = vld [vmem:[#allocation2 + $0x129] sm:$0xff]
  %v387 = vld [vmem:[#allocation2 + $0x139] sm:$0xff]
  %v388 = vld [vmem:[#allocation2 + $0x141] sm:$0xff]
  %v389 = vld [vmem:[#allocation2 + $0x151] sm:$0xff]
  %v390 = vld [vmem:[#allocation2 + $0x159] sm:$0xff]
  %v391 = vld [vmem:[#allocation2 + $0x169] sm:$0xff]
  %v392 = vld [vmem:[#allocation2 + $0x171] sm:$0xff]
  %v393 = vld [vmem:[#allocation2 + $0x1b1] sm:$0xff]
  %v394 = vld [vmem:[#allocation2 + $0x1b9] sm:$0xff]
  %v395 = vld [vmem:[#allocation2 + $0x1c9] sm:$0xff]
  %v396 = vld [vmem:[#allocation2 + $0x1d1] sm:$0xff]
  %v397 = vld [vmem:[#allocation2 + $0x1e1] sm:$0xff]
  %v398 = vld [vmem:[#allocation2 + $0x1e9] sm:$0xff]
  %v399 = vld [vmem:[#allocation2 + $0x1f9] sm:$0xff]
  %v400 = vld [vmem:[#allocation2 + $0x201] sm:$0xff]
  %v401 = vld [vmem:[#allocation2 + $0x211] sm:$0xff]
  %v402 = vld [vmem:[#allocation2 + $0x219] sm:$0xff]
  %v403 = vld [vmem:[#allocation2 + $0x229] sm:$0xff]
  %v404 = vld [vmem:[#allocation2 + $0x231] sm:$0xff]
  %v405 = vld [vmem:[#allocation2 + $0x241] sm:$0xff]
  %v406 = vld [vmem:[#allocation2 + $0x249] sm:$0xff]
  %v407 = vld [vmem:[#allocation2 + $0x259] sm:$0xff]
  %v408 = vld [vmem:[#allocation2 + $0x261] sm:$0xff]
  %v409 = vld [vmem:[#allocation2 + $0x271] sm:$0xff]
  %v410 = vld [vmem:[#allocation2 + $0x279] sm:$0xff]
  %v411 = vld [vmem:[#allocation2 + $0x289] sm:$0xff]
  %v412 = vld [vmem:[#allocation2 + $0x291] sm:$0xff]
  %v413 = vld [vmem:[#allocation2 + $0x2a1] sm:$0xff]
  %v414 = vld [vmem:[#allocation2 + $0x2a9] sm:$0xff]
  %v415 = vld [vmem:[#allocation2 + $0x2b9] sm:$0xff]
  %v416 = vld [vmem:[#allocation2 + $0x2c1] sm:$0xff]
  %v417 = vld [vmem:[#allocation2 + $0x2d1] sm:$0xff]
  %v418 = vld [vmem:[#allocation2 + $0x2d9] sm:$0xff]
  %v419 = vld [vmem:[#allocation2 + $0x2e9] sm:$0xff]
  %v420 = vld [vmem:[#allocation2 + $0x2f1] sm:$0xff]
  %v421 = vld [vmem:[#allocation2 + $0x301] sm:$0xff]
  %v422 = vld [vmem:[#allocation2 + $0x309] sm:$0xff]
  %v423 = vld [vmem:[#allocation2 + $0x319] sm:$0xff]
  %v424 = vld [vmem:[#allocation2 + $0x321] sm:$0xff]
  %425 = vst [vmem:[#allocation3 + $0x8] sm:$0xff] %v361
  %426 = vst [vmem:[#allocation3 + $0x50] sm:$0xff] %v362
  %427 = vst [vmem:[#allocation3 + $0x98] sm:$0xff] %v363
  %428 = vst [vmem:[#allocation3 + $0xe0] sm:$0xff] %v364
  %429 = vst [vmem:[#allocation3 + $0x128] sm:$0xff] %v365
  %430 = vst [vmem:[#allocation3 + $0x170] sm:$0xff] %v366
  %431 = vst [vmem:[#allocation3 + $0x1b8] sm:$0xff] %v367
  %432 = vst [vmem:[#allocation3 + $0x200] sm:$0xff] %v368
  %433 = vst [vmem:[#allocation3 + $0x248] sm:$0xff] %v369
  %434 = vst [vmem:[#allocation3 + $0x290] sm:$0xff] %v370
  %435 = vst [vmem:[#allocation3 + $0x2d8] sm:$0xff] %v371
  %436 = vst [vmem:[#allocation3 + $0x320] sm:$0xff] %v372
  %437 = vst [vmem:[#allocation3 + $0x368] sm:$0xff] %v373
  %438 = vst [vmem:[#allocation3 + $0x3b0] sm:$0xff] %v374
  %439 = vst [vmem:[#allocation3 + $0x3f8] sm:$0xff] %v375
  %440 = vst [vmem:[#allocation3 + $0x440] sm:$0xff] %v376
  %441 = vst [vmem:[#allocation3 + $0x488] sm:$0xff] %v377
  %442 = vst [vmem:[#allocation3 + $0x4d0] sm:$0xff] %v378
  %443 = vst [vmem:[#allocation3 + $0x518] sm:$0xff] %v379
  %444 = vst [vmem:[#allocation3 + $0x560] sm:$0xff] %v380
  %445 = vst [vmem:[#allocation3 + $0x5a8] sm:$0xff] %v381
  %446 = vst [vmem:[#allocation3 + $0x5f0] sm:$0xff] %v382
  %447 = vst [vmem:[#allocation3 + $0x638] sm:$0xff] %v383
  %448 = vst [vmem:[#allocation3 + $0x680] sm:$0xff] %v384
  %449 = vst [vmem:[#allocation3 + $0x6c8] sm:$0xff] %v385
  %450 = vst [vmem:[#allocation3 + $0x710] sm:$0xff] %v386
  %451 = vst [vmem:[#allocation3 + $0x758] sm:$0xff] %v387
  %452 = vst [vmem:[#allocation3 + $0x7a0] sm:$0xff] %v388
  %453 = vst [vmem:[#allocation3 + $0x7e8] sm:$0xff] %v389
  %454 = vst [vmem:[#allocation3 + $0x830] sm:$0xff] %v390
  %455 = vst [vmem:[#allocation3 + $0x878] sm:$0xff] %v391
  %456 = vst [vmem:[#allocation3 + $0x8c0] sm:$0xff] %v392
  %457 = vst [vmem:[#allocation3 + $0x908] sm:$0xff] %v393
  %458 = vst [vmem:[#allocation3 + $0x950] sm:$0xff] %v394
  %459 = vst [vmem:[#allocation3 + $0x998] sm:$0xff] %v395
  %460 = vst [vmem:[#allocation3 + $0x9e0] sm:$0xff] %v396
  %461 = vst [vmem:[#allocation3 + $0xa28] sm:$0xff] %v397
  %462 = vst [vmem:[#allocation3 + $0xa70] sm:$0xff] %v398
  %463 = vst [vmem:[#allocation3 + $0xab8] sm:$0xff] %v399
  %464 = vst [vmem:[#allocation3 + $0xb00] sm:$0xff] %v400
  %465 = vst [vmem:[#allocation3 + $0xb48] sm:$0xff] %v401
  %466 = vst [vmem:[#allocation3 + $0xb90] sm:$0xff] %v402
  %467 = vst [vmem:[#allocation3 + $0xbd8] sm:$0xff] %v403
  %468 = vst [vmem:[#allocation3 + $0xc20] sm:$0xff] %v404
  %469 = vst [vmem:[#allocation3 + $0xc68] sm:$0xff] %v405
  %470 = vst [vmem:[#allocation3 + $0xcb0] sm:$0xff] %v406
  %471 = vst [vmem:[#allocation3 + $0xcf8] sm:$0xff] %v407
  %472 = vst [vmem:[#allocation3 + $0xd40] sm:$0xff] %v408
  %473 = vst [vmem:[#allocation3 + $0xd88] sm:$0xff] %v409
  %474 = vst [vmem:[#allocation3 + $0xdd0] sm:$0xff] %v410
  %475 = vst [vmem:[#allocation3 + $0xe18] sm:$0xff] %v411
  %476 = vst [vmem:[#allocation3 + $0xe60] sm:$0xff] %v412
  %477 = vst [vmem:[#allocation3 + $0xea8] sm:$0xff] %v413
  %478 = vst [vmem:[#allocation3 + $0xef0] sm:$0xff] %v414
  %479 = vst [vmem:[#allocation3 + $0xf38] sm:$0xff] %v415
  %480 = vst [vmem:[#allocation3 + $0xf80] sm:$0xff] %v416
  %481 = vst [vmem:[#allocation3 + $0xfc8] sm:$0xff] %v417
  %482 = vst [vmem:[#allocation3 + $0x1010] sm:$0xff] %v418
  %483 = vst [vmem:[#allocation3 + $0x1058] sm:$0xff] %v419
  %484 = vst [vmem:[#allocation3 + $0x10a0] sm:$0xff] %v420
  %485 = vst [vmem:[#allocation3 + $0x10e8] sm:$0xff] %v421
  %486 = vst [vmem:[#allocation3 + $0x1130] sm:$0xff] %v422
  %487 = vst [vmem:[#allocation3 + $0x1178] sm:$0xff] %v423
  %488 = vst [vmem:[#allocation3 + $0x11c0] sm:$0xff] %v424
  %v489 = vld [vmem:[#allocation2 + $0x2] sm:$0xff]
  %v490 = vld [vmem:[#allocation2 + $0xa] sm:$0xff]
  %v491 = vld [vmem:[#allocation2 + $0x1a] sm:$0xff]
  %v492 = vld [vmem:[#allocation2 + $0x22] sm:$0xff]
  %v493 = vld [vmem:[#allocation2 + $0x32] sm:$0xff]
  %v494 = vld [vmem:[#allocation2 + $0x3a] sm:$0xff]
  %v495 = vld [vmem:[#allocation2 + $0x4a] sm:$0xff]
  %v496 = vld [vmem:[#allocation2 + $0x52] sm:$0xff]
  %v497 = vld [vmem:[#allocation2 + $0x62] sm:$0xff]
  %v498 = vld [vmem:[#allocation2 + $0x6a] sm:$0xff]
  %v499 = vld [vmem:[#allocation2 + $0x7a] sm:$0xff]
  %v500 = vld [vmem:[#allocation2 + $0x82] sm:$0xff]
  %v501 = vld [vmem:[#allocation2 + $0x92] sm:$0xff]
  %v502 = vld [vmem:[#allocation2 + $0x9a] sm:$0xff]
  %v503 = vld [vmem:[#allocation2 + $0xaa] sm:$0xff]
  %v504 = vld [vmem:[#allocation2 + $0xb2] sm:$0xff]
  %v505 = vld [vmem:[#allocation2 + $0xc2] sm:$0xff]
  %v506 = vld [vmem:[#allocation2 + $0xca] sm:$0xff]
  %v507 = vld [vmem:[#allocation2 + $0xda] sm:$0xff]
  %v508 = vld [vmem:[#allocation2 + $0xe2] sm:$0xff]
  %v509 = vld [vmem:[#allocation2 + $0xf2] sm:$0xff]
  %v510 = vld [vmem:[#allocation2 + $0xfa] sm:$0xff]
  %v511 = vld [vmem:[#allocation2 + $0x10a] sm:$0xff]
  %v512 = vld [vmem:[#allocation2 + $0x112] sm:$0xff]
  %v513 = vld [vmem:[#allocation2 + $0x122] sm:$0xff]
  %v514 = vld [vmem:[#allocation2 + $0x12a] sm:$0xff]
  %v515 = vld [vmem:[#allocation2 + $0x13a] sm:$0xff]
  %v516 = vld [vmem:[#allocation2 + $0x142] sm:$0xff]
  %v517 = vld [vmem:[#allocation2 + $0x152] sm:$0xff]
  %v518 = vld [vmem:[#allocation2 + $0x15a] sm:$0xff]
  %v519 = vld [vmem:[#allocation2 + $0x16a] sm:$0xff]
  %v520 = vld [vmem:[#allocation2 + $0x172] sm:$0xff]
  %v521 = vld [vmem:[#allocation2 + $0x1b2] sm:$0xff]
  %v522 = vld [vmem:[#allocation2 + $0x1ba] sm:$0xff]
  %v523 = vld [vmem:[#allocation2 + $0x1ca] sm:$0xff]
  %v524 = vld [vmem:[#allocation2 + $0x1d2] sm:$0xff]
  %v525 = vld [vmem:[#allocation2 + $0x1e2] sm:$0xff]
  %v526 = vld [vmem:[#allocation2 + $0x1ea] sm:$0xff]
  %v527 = vld [vmem:[#allocation2 + $0x1fa] sm:$0xff]
  %v528 = vld [vmem:[#allocation2 + $0x202] sm:$0xff]
  %v529 = vld [vmem:[#allocation2 + $0x212] sm:$0xff]
  %v530 = vld [vmem:[#allocation2 + $0x21a] sm:$0xff]
  %v531 = vld [vmem:[#allocation2 + $0x22a] sm:$0xff]
  %v532 = vld [vmem:[#allocation2 + $0x232] sm:$0xff]
  %v533 = vld [vmem:[#allocation2 + $0x242] sm:$0xff]
  %v534 = vld [vmem:[#allocation2 + $0x24a] sm:$0xff]
  %v535 = vld [vmem:[#allocation2 + $0x25a] sm:$0xff]
  %v536 = vld [vmem:[#allocation2 + $0x262] sm:$0xff]
  %v537 = vld [vmem:[#allocation2 + $0x272] sm:$0xff]
  %v538 = vld [vmem:[#allocation2 + $0x27a] sm:$0xff]
  %v539 = vld [vmem:[#allocation2 + $0x28a] sm:$0xff]
  %v540 = vld [vmem:[#allocation2 + $0x292] sm:$0xff]
  %v541 = vld [vmem:[#allocation2 + $0x2a2] sm:$0xff]
  %v542 = vld [vmem:[#allocation2 + $0x2aa] sm:$0xff]
  %v543 = vld [vmem:[#allocation2 + $0x2ba] sm:$0xff]
  %v544 = vld [vmem:[#allocation2 + $0x2c2] sm:$0xff]
  %v545 = vld [vmem:[#allocation2 + $0x2d2] sm:$0xff]
  %v546 = vld [vmem:[#allocation2 + $0x2da] sm:$0xff]
  %v547 = vld [vmem:[#allocation2 + $0x2ea] sm:$0xff]
  %v548 = vld [vmem:[#allocation2 + $0x2f2] sm:$0xff]
  %v549 = vld [vmem:[#allocation2 + $0x302] sm:$0xff]
  %v550 = vld [vmem:[#allocation2 + $0x30a] sm:$0xff]
  %v551 = vld [vmem:[#allocation2 + $0x31a] sm:$0xff]
  %v552 = vld [vmem:[#allocation2 + $0x322] sm:$0xff]
  %553 = vst [vmem:[#allocation3 + $0x10] sm:$0xff] %v489
  %554 = vst [vmem:[#allocation3 + $0x58] sm:$0xff] %v490
  %555 = vst [vmem:[#allocation3 + $0xa0] sm:$0xff] %v491
  %556 = vst [vmem:[#allocation3 + $0xe8] sm:$0xff] %v492
  %557 = vst [vmem:[#allocation3 + $0x130] sm:$0xff] %v493
  %558 = vst [vmem:[#allocation3 + $0x178] sm:$0xff] %v494
  %559 = vst [vmem:[#allocation3 + $0x1c0] sm:$0xff] %v495
  %560 = vst [vmem:[#allocation3 + $0x208] sm:$0xff] %v496
  %561 = vst [vmem:[#allocation3 + $0x250] sm:$0xff] %v497
  %562 = vst [vmem:[#allocation3 + $0x298] sm:$0xff] %v498
  %563 = vst [vmem:[#allocation3 + $0x2e0] sm:$0xff] %v499
  %564 = vst [vmem:[#allocation3 + $0x328] sm:$0xff] %v500
  %565 = vst [vmem:[#allocation3 + $0x370] sm:$0xff] %v501
  %566 = vst [vmem:[#allocation3 + $0x3b8] sm:$0xff] %v502
  %567 = vst [vmem:[#allocation3 + $0x400] sm:$0xff] %v503
  %568 = vst [vmem:[#allocation3 + $0x448] sm:$0xff] %v504
  %569 = vst [vmem:[#allocation3 + $0x490] sm:$0xff] %v505
  %570 = vst [vmem:[#allocation3 + $0x4d8] sm:$0xff] %v506
  %571 = vst [vmem:[#allocation3 + $0x520] sm:$0xff] %v507
  %572 = vst [vmem:[#allocation3 + $0x568] sm:$0xff] %v508
  %573 = vst [vmem:[#allocation3 + $0x5b0] sm:$0xff] %v509
  %574 = vst [vmem:[#allocation3 + $0x5f8] sm:$0xff] %v510
  %575 = vst [vmem:[#allocation3 + $0x640] sm:$0xff] %v511
  %576 = vst [vmem:[#allocation3 + $0x688] sm:$0xff] %v512
  %577 = vst [vmem:[#allocation3 + $0x6d0] sm:$0xff] %v513
  %578 = vst [vmem:[#allocation3 + $0x718] sm:$0xff] %v514
  %579 = vst [vmem:[#allocation3 + $0x760] sm:$0xff] %v515
  %580 = vst [vmem:[#allocation3 + $0x7a8] sm:$0xff] %v516
  %581 = vst [vmem:[#allocation3 + $0x7f0] sm:$0xff] %v517
  %582 = vst [vmem:[#allocation3 + $0x838] sm:$0xff] %v518
  %583 = vst [vmem:[#allocation3 + $0x880] sm:$0xff] %v519
  %584 = vst [vmem:[#allocation3 + $0x8c8] sm:$0xff] %v520
  %585 = vst [vmem:[#allocation3 + $0x910] sm:$0xff] %v521
  %586 = vst [vmem:[#allocation3 + $0x958] sm:$0xff] %v522
  %587 = vst [vmem:[#allocation3 + $0x9a0] sm:$0xff] %v523
  %588 = vst [vmem:[#allocation3 + $0x9e8] sm:$0xff] %v524
  %589 = vst [vmem:[#allocation3 + $0xa30] sm:$0xff] %v525
  %590 = vst [vmem:[#allocation3 + $0xa78] sm:$0xff] %v526
  %591 = vst [vmem:[#allocation3 + $0xac0] sm:$0xff] %v527
  %592 = vst [vmem:[#allocation3 + $0xb08] sm:$0xff] %v528
  %593 = vst [vmem:[#allocation3 + $0xb50] sm:$0xff] %v529
  %594 = vst [vmem:[#allocation3 + $0xb98] sm:$0xff] %v530
  %595 = vst [vmem:[#allocation3 + $0xbe0] sm:$0xff] %v531
  %596 = vst [vmem:[#allocation3 + $0xc28] sm:$0xff] %v532
  %597 = vst [vmem:[#allocation3 + $0xc70] sm:$0xff] %v533
  %598 = vst [vmem:[#allocation3 + $0xcb8] sm:$0xff] %v534
  %599 = vst [vmem:[#allocation3 + $0xd00] sm:$0xff] %v535
  %600 = vst [vmem:[#allocation3 + $0xd48] sm:$0xff] %v536
  %601 = vst [vmem:[#allocation3 + $0xd90] sm:$0xff] %v537
  %602 = vst [vmem:[#allocation3 + $0xdd8] sm:$0xff] %v538
  %603 = vst [vmem:[#allocation3 + $0xe20] sm:$0xff] %v539
  %604 = vst [vmem:[#allocation3 + $0xe68] sm:$0xff] %v540
  %605 = vst [vmem:[#allocation3 + $0xeb0] sm:$0xff] %v541
  %606 = vst [vmem:[#allocation3 + $0xef8] sm:$0xff] %v542
  %607 = vst [vmem:[#allocation3 + $0xf40] sm:$0xff] %v543
  %608 = vst [vmem:[#allocation3 + $0xf88] sm:$0xff] %v544
  %609 = vst [vmem:[#allocation3 + $0xfd0] sm:$0xff] %v545
  %610 = vst [vmem:[#allocation3 + $0x1018] sm:$0xff] %v546
  %611 = vst [vmem:[#allocation3 + $0x1060] sm:$0xff] %v547
  %612 = vst [vmem:[#allocation3 + $0x10a8] sm:$0xff] %v548
  %613 = vst [vmem:[#allocation3 + $0x10f0] sm:$0xff] %v549
  %614 = vst [vmem:[#allocation3 + $0x1138] sm:$0xff] %v550
  %615 = vst [vmem:[#allocation3 + $0x1180] sm:$0xff] %v551
  %616 = vst [vmem:[#allocation3 + $0x11c8] sm:$0xff] %v552
  %v617 = vld [vmem:[%s168] sm:$0xff]
  %v618 = vld [vmem:[%s168 + $0x8] sm:$0xff]
  %v619 = vld [vmem:[%s168 + $0x18] sm:$0xff]
  %v620 = vld [vmem:[%s168 + $0x20] sm:$0xff]
  %v621 = vld [vmem:[%s168 + $0x30] sm:$0xff]
  %v622 = vld [vmem:[%s168 + $0x38] sm:$0xff]
  %v623 = vld [vmem:[%s168 + $0x48] sm:$0xff]
  %v624 = vld [vmem:[%s168 + $0x50] sm:$0xff]
  %v625 = vld [vmem:[%s168 + $0x60] sm:$0xff]
  %v626 = vld [vmem:[%s168 + $0x68] sm:$0xff]
  %v627 = vld [vmem:[%s168 + $0x78] sm:$0xff]
  %v628 = vld [vmem:[%s168 + $0x80] sm:$0xff]
  %v629 = vld [vmem:[%s168 + $0x90] sm:$0xff]
  %v630 = vld [vmem:[%s168 + $0x98] sm:$0xff]
  %v631 = vld [vmem:[%s168 + $0xa8] sm:$0xff]
  %v632 = vld [vmem:[%s168 + $0xb0] sm:$0xff]
  %v633 = vld [vmem:[%s168 + $0xc0] sm:$0xff]
  %v634 = vld [vmem:[%s168 + $0xc8] sm:$0xff]
  %v635 = vld [vmem:[%s168 + $0xd8] sm:$0xff]
  %v636 = vld [vmem:[%s168 + $0xe0] sm:$0xff]
  %v637 = vld [vmem:[%s168 + $0xf0] sm:$0xff]
  %v638 = vld [vmem:[%s168 + $0xf8] sm:$0xff]
  %v639 = vld [vmem:[%s168 + $0x108] sm:$0xff]
  %v640 = vld [vmem:[%s168 + $0x110] sm:$0xff]
  %v641 = vld [vmem:[%s168 + $0x120] sm:$0xff]
  %v642 = vld [vmem:[%s168 + $0x128] sm:$0xff]
  %v643 = vld [vmem:[%s168 + $0x138] sm:$0xff]
  %v644 = vld [vmem:[%s168 + $0x140] sm:$0xff]
  %v645 = vld [vmem:[%s168 + $0x150] sm:$0xff]
  %v646 = vld [vmem:[%s168 + $0x158] sm:$0xff]
  %v647 = vld [vmem:[%s168 + $0x168] sm:$0xff]
  %v648 = vld [vmem:[%s168 + $0x170] sm:$0xff]
  %v649 = vld [vmem:[%s168 + $0x1b0] sm:$0xff]
  %v650 = vld [vmem:[%s168 + $0x1b8] sm:$0xff]
  %v651 = vld [vmem:[%s168 + $0x1c8] sm:$0xff]
  %v652 = vld [vmem:[%s168 + $0x1d0] sm:$0xff]
  %v653 = vld [vmem:[%s168 + $0x1e0] sm:$0xff]
  %v654 = vld [vmem:[%s168 + $0x1e8] sm:$0xff]
  %v655 = vld [vmem:[%s168 + $0x1f8] sm:$0xff]
  %v656 = vld [vmem:[%s168 + $0x200] sm:$0xff]
  %v657 = vld [vmem:[%s168 + $0x210] sm:$0xff]
  %v658 = vld [vmem:[%s168 + $0x218] sm:$0xff]
  %v659 = vld [vmem:[%s168 + $0x228] sm:$0xff]
  %v660 = vld [vmem:[%s168 + $0x230] sm:$0xff]
  %v661 = vld [vmem:[%s168 + $0x240] sm:$0xff]
  %v662 = vld [vmem:[%s168 + $0x248] sm:$0xff]
  %v663 = vld [vmem:[%s168 + $0x258] sm:$0xff]
  %v664 = vld [vmem:[%s168 + $0x260] sm:$0xff]
  %v665 = vld [vmem:[%s168 + $0x270] sm:$0xff]
  %v666 = vld [vmem:[%s168 + $0x278] sm:$0xff]
  %v667 = vld [vmem:[%s168 + $0x288] sm:$0xff]
  %v668 = vld [vmem:[%s168 + $0x290] sm:$0xff]
  %v669 = vld [vmem:[%s168 + $0x2a0] sm:$0xff]
  %v670 = vld [vmem:[%s168 + $0x2a8] sm:$0xff]
  %v671 = vld [vmem:[%s168 + $0x2b8] sm:$0xff]
  %v672 = vld [vmem:[%s168 + $0x2c0] sm:$0xff]
  %v673 = vld [vmem:[%s168 + $0x2d0] sm:$0xff]
  %v674 = vld [vmem:[%s168 + $0x2d8] sm:$0xff]
  %v675 = vld [vmem:[%s168 + $0x2e8] sm:$0xff]
  %v676 = vld [vmem:[%s168 + $0x2f0] sm:$0xff]
  %v677 = vld [vmem:[%s168 + $0x300] sm:$0xff]
  %v678 = vld [vmem:[%s168 + $0x308] sm:$0xff]
  %v679 = vld [vmem:[%s168 + $0x318] sm:$0xff]
  %v680 = vld [vmem:[%s168 + $0x320] sm:$0xff]
  %681 = vst [vmem:[#allocation3 + $0x18] sm:$0xff] %v617
  %682 = vst [vmem:[#allocation3 + $0x60] sm:$0xff] %v618
  %683 = vst [vmem:[#allocation3 + $0xa8] sm:$0xff] %v619
  %684 = vst [vmem:[#allocation3 + $0xf0] sm:$0xff] %v620
  %685 = vst [vmem:[#allocation3 + $0x138] sm:$0xff] %v621
  %686 = vst [vmem:[#allocation3 + $0x180] sm:$0xff] %v622
  %687 = vst [vmem:[#allocation3 + $0x1c8] sm:$0xff] %v623
  %688 = vst [vmem:[#allocation3 + $0x210] sm:$0xff] %v624
  %689 = vst [vmem:[#allocation3 + $0x258] sm:$0xff] %v625
  %690 = vst [vmem:[#allocation3 + $0x2a0] sm:$0xff] %v626
  %691 = vst [vmem:[#allocation3 + $0x2e8] sm:$0xff] %v627
  %692 = vst [vmem:[#allocation3 + $0x330] sm:$0xff] %v628
  %693 = vst [vmem:[#allocation3 + $0x378] sm:$0xff] %v629
  %694 = vst [vmem:[#allocation3 + $0x3c0] sm:$0xff] %v630
  %695 = vst [vmem:[#allocation3 + $0x408] sm:$0xff] %v631
  %696 = vst [vmem:[#allocation3 + $0x450] sm:$0xff] %v632
  %697 = vst [vmem:[#allocation3 + $0x498] sm:$0xff] %v633
  %698 = vst [vmem:[#allocation3 + $0x4e0] sm:$0xff] %v634
  %699 = vst [vmem:[#allocation3 + $0x528] sm:$0xff] %v635
  %700 = vst [vmem:[#allocation3 + $0x570] sm:$0xff] %v636
  %701 = vst [vmem:[#allocation3 + $0x5b8] sm:$0xff] %v637
  %702 = vst [vmem:[#allocation3 + $0x600] sm:$0xff] %v638
  %703 = vst [vmem:[#allocation3 + $0x648] sm:$0xff] %v639
  %704 = vst [vmem:[#allocation3 + $0x690] sm:$0xff] %v640
  %705 = vst [vmem:[#allocation3 + $0x6d8] sm:$0xff] %v641
  %706 = vst [vmem:[#allocation3 + $0x720] sm:$0xff] %v642
  %707 = vst [vmem:[#allocation3 + $0x768] sm:$0xff] %v643
  %708 = vst [vmem:[#allocation3 + $0x7b0] sm:$0xff] %v644
  %709 = vst [vmem:[#allocation3 + $0x7f8] sm:$0xff] %v645
  %710 = vst [vmem:[#allocation3 + $0x840] sm:$0xff] %v646
  %711 = vst [vmem:[#allocation3 + $0x888] sm:$0xff] %v647
  %712 = vst [vmem:[#allocation3 + $0x8d0] sm:$0xff] %v648
  %713 = vst [vmem:[#allocation3 + $0x918] sm:$0xff] %v649
  %714 = vst [vmem:[#allocation3 + $0x960] sm:$0xff] %v650
  %715 = vst [vmem:[#allocation3 + $0x9a8] sm:$0xff] %v651
  %716 = vst [vmem:[#allocation3 + $0x9f0] sm:$0xff] %v652
  %717 = vst [vmem:[#allocation3 + $0xa38] sm:$0xff] %v653
  %718 = vst [vmem:[#allocation3 + $0xa80] sm:$0xff] %v654
  %719 = vst [vmem:[#allocation3 + $0xac8] sm:$0xff] %v655
  %720 = vst [vmem:[#allocation3 + $0xb10] sm:$0xff] %v656
  %721 = vst [vmem:[#allocation3 + $0xb58] sm:$0xff] %v657
  %722 = vst [vmem:[#allocation3 + $0xba0] sm:$0xff] %v658
  %723 = vst [vmem:[#allocation3 + $0xbe8] sm:$0xff] %v659
  %724 = vst [vmem:[#allocation3 + $0xc30] sm:$0xff] %v660
  %725 = vst [vmem:[#allocation3 + $0xc78] sm:$0xff] %v661
  %726 = vst [vmem:[#allocation3 + $0xcc0] sm:$0xff] %v662
  %727 = vst [vmem:[#allocation3 + $0xd08] sm:$0xff] %v663
  %728 = vst [vmem:[#allocation3 + $0xd50] sm:$0xff] %v664
  %729 = vst [vmem:[#allocation3 + $0xd98] sm:$0xff] %v665
  %730 = vst [vmem:[#allocation3 + $0xde0] sm:$0xff] %v666
  %731 = vst [vmem:[#allocation3 + $0xe28] sm:$0xff] %v667
  %732 = vst [vmem:[#allocation3 + $0xe70] sm:$0xff] %v668
  %733 = vst [vmem:[#allocation3 + $0xeb8] sm:$0xff] %v669
  %734 = vst [vmem:[#allocation3 + $0xf00] sm:$0xff] %v670
  %735 = vst [vmem:[#allocation3 + $0xf48] sm:$0xff] %v671
  %736 = vst [vmem:[#allocation3 + $0xf90] sm:$0xff] %v672
  %737 = vst [vmem:[#allocation3 + $0xfd8] sm:$0xff] %v673
  %738 = vst [vmem:[#allocation3 + $0x1020] sm:$0xff] %v674
  %739 = vst [vmem:[#allocation3 + $0x1068] sm:$0xff] %v675
  %740 = vst [vmem:[#allocation3 + $0x10b0] sm:$0xff] %v676
  %741 = vst [vmem:[#allocation3 + $0x10f8] sm:$0xff] %v677
  %742 = vst [vmem:[#allocation3 + $0x1140] sm:$0xff] %v678
  %743 = vst [vmem:[#allocation3 + $0x1188] sm:$0xff] %v679
  %744 = vst [vmem:[#allocation3 + $0x11d0] sm:$0xff] %v680
  %v745 = vld [vmem:[%s168 + $0x1] sm:$0xff]
  %v746 = vld [vmem:[%s168 + $0x9] sm:$0xff]
  %v747 = vld [vmem:[%s168 + $0x19] sm:$0xff]
  %v748 = vld [vmem:[%s168 + $0x21] sm:$0xff]
  %v749 = vld [vmem:[%s168 + $0x31] sm:$0xff]
  %v750 = vld [vmem:[%s168 + $0x39] sm:$0xff]
  %v751 = vld [vmem:[%s168 + $0x49] sm:$0xff]
  %v752 = vld [vmem:[%s168 + $0x51] sm:$0xff]
  %v753 = vld [vmem:[%s168 + $0x61] sm:$0xff]
  %v754 = vld [vmem:[%s168 + $0x69] sm:$0xff]
  %v755 = vld [vmem:[%s168 + $0x79] sm:$0xff]
  %v756 = vld [vmem:[%s168 + $0x81] sm:$0xff]
  %v757 = vld [vmem:[%s168 + $0x91] sm:$0xff]
  %v758 = vld [vmem:[%s168 + $0x99] sm:$0xff]
  %v759 = vld [vmem:[%s168 + $0xa9] sm:$0xff]
  %v760 = vld [vmem:[%s168 + $0xb1] sm:$0xff]
  %v761 = vld [vmem:[%s168 + $0xc1] sm:$0xff]
  %v762 = vld [vmem:[%s168 + $0xc9] sm:$0xff]
  %v763 = vld [vmem:[%s168 + $0xd9] sm:$0xff]
  %v764 = vld [vmem:[%s168 + $0xe1] sm:$0xff]
  %v765 = vld [vmem:[%s168 + $0xf1] sm:$0xff]
  %v766 = vld [vmem:[%s168 + $0xf9] sm:$0xff]
  %v767 = vld [vmem:[%s168 + $0x109] sm:$0xff]
  %v768 = vld [vmem:[%s168 + $0x111] sm:$0xff]
  %v769 = vld [vmem:[%s168 + $0x121] sm:$0xff]
  %v770 = vld [vmem:[%s168 + $0x129] sm:$0xff]
  %v771 = vld [vmem:[%s168 + $0x139] sm:$0xff]
  %v772 = vld [vmem:[%s168 + $0x141] sm:$0xff]
  %v773 = vld [vmem:[%s168 + $0x151] sm:$0xff]
  %v774 = vld [vmem:[%s168 + $0x159] sm:$0xff]
  %v775 = vld [vmem:[%s168 + $0x169] sm:$0xff]
  %v776 = vld [vmem:[%s168 + $0x171] sm:$0xff]
  %v777 = vld [vmem:[%s168 + $0x1b1] sm:$0xff]
  %v778 = vld [vmem:[%s168 + $0x1b9] sm:$0xff]
  %v779 = vld [vmem:[%s168 + $0x1c9] sm:$0xff]
  %v780 = vld [vmem:[%s168 + $0x1d1] sm:$0xff]
  %v781 = vld [vmem:[%s168 + $0x1e1] sm:$0xff]
  %v782 = vld [vmem:[%s168 + $0x1e9] sm:$0xff]
  %v783 = vld [vmem:[%s168 + $0x1f9] sm:$0xff]
  %v784 = vld [vmem:[%s168 + $0x201] sm:$0xff]
  %v785 = vld [vmem:[%s168 + $0x211] sm:$0xff]
  %v786 = vld [vmem:[%s168 + $0x219] sm:$0xff]
  %v787 = vld [vmem:[%s168 + $0x229] sm:$0xff]
  %v788 = vld [vmem:[%s168 + $0x231] sm:$0xff]
  %v789 = vld [vmem:[%s168 + $0x241] sm:$0xff]
  %v790 = vld [vmem:[%s168 + $0x249] sm:$0xff]
  %v791 = vld [vmem:[%s168 + $0x259] sm:$0xff]
  %v792 = vld [vmem:[%s168 + $0x261] sm:$0xff]
  %v793 = vld [vmem:[%s168 + $0x271] sm:$0xff]
  %v794 = vld [vmem:[%s168 + $0x279] sm:$0xff]
  %v795 = vld [vmem:[%s168 + $0x289] sm:$0xff]
  %v796 = vld [vmem:[%s168 + $0x291] sm:$0xff]
  %v797 = vld [vmem:[%s168 + $0x2a1] sm:$0xff]
  %v798 = vld [vmem:[%s168 + $0x2a9] sm:$0xff]
  %v799 = vld [vmem:[%s168 + $0x2b9] sm:$0xff]
  %v800 = vld [vmem:[%s168 + $0x2c1] sm:$0xff]
  %v801 = vld [vmem:[%s168 + $0x2d1] sm:$0xff]
  %v802 = vld [vmem:[%s168 + $0x2d9] sm:$0xff]
  %v803 = vld [vmem:[%s168 + $0x2e9] sm:$0xff]
  %v804 = vld [vmem:[%s168 + $0x2f1] sm:$0xff]
  %v805 = vld [vmem:[%s168 + $0x301] sm:$0xff]
  %v806 = vld [vmem:[%s168 + $0x309] sm:$0xff]
  %v807 = vld [vmem:[%s168 + $0x319] sm:$0xff]
  %v808 = vld [vmem:[%s168 + $0x321] sm:$0xff]
  %809 = vst [vmem:[#allocation3 + $0x20] sm:$0xff] %v745
  %810 = vst [vmem:[#allocation3 + $0x68] sm:$0xff] %v746
  %811 = vst [vmem:[#allocation3 + $0xb0] sm:$0xff] %v747
  %812 = vst [vmem:[#allocation3 + $0xf8] sm:$0xff] %v748
  %813 = vst [vmem:[#allocation3 + $0x140] sm:$0xff] %v749
  %814 = vst [vmem:[#allocation3 + $0x188] sm:$0xff] %v750
  %815 = vst [vmem:[#allocation3 + $0x1d0] sm:$0xff] %v751
  %816 = vst [vmem:[#allocation3 + $0x218] sm:$0xff] %v752
  %817 = vst [vmem:[#allocation3 + $0x260] sm:$0xff] %v753
  %818 = vst [vmem:[#allocation3 + $0x2a8] sm:$0xff] %v754
  %819 = vst [vmem:[#allocation3 + $0x2f0] sm:$0xff] %v755
  %820 = vst [vmem:[#allocation3 + $0x338] sm:$0xff] %v756
  %821 = vst [vmem:[#allocation3 + $0x380] sm:$0xff] %v757
  %822 = vst [vmem:[#allocation3 + $0x3c8] sm:$0xff] %v758
  %823 = vst [vmem:[#allocation3 + $0x410] sm:$0xff] %v759
  %824 = vst [vmem:[#allocation3 + $0x458] sm:$0xff] %v760
  %825 = vst [vmem:[#allocation3 + $0x4a0] sm:$0xff] %v761
  %826 = vst [vmem:[#allocation3 + $0x4e8] sm:$0xff] %v762
  %827 = vst [vmem:[#allocation3 + $0x530] sm:$0xff] %v763
  %828 = vst [vmem:[#allocation3 + $0x578] sm:$0xff] %v764
  %829 = vst [vmem:[#allocation3 + $0x5c0] sm:$0xff] %v765
  %830 = vst [vmem:[#allocation3 + $0x608] sm:$0xff] %v766
  %831 = vst [vmem:[#allocation3 + $0x650] sm:$0xff] %v767
  %832 = vst [vmem:[#allocation3 + $0x698] sm:$0xff] %v768
  %833 = vst [vmem:[#allocation3 + $0x6e0] sm:$0xff] %v769
  %834 = vst [vmem:[#allocation3 + $0x728] sm:$0xff] %v770
  %835 = vst [vmem:[#allocation3 + $0x770] sm:$0xff] %v771
  %836 = vst [vmem:[#allocation3 + $0x7b8] sm:$0xff] %v772
  %837 = vst [vmem:[#allocation3 + $0x800] sm:$0xff] %v773
  %838 = vst [vmem:[#allocation3 + $0x848] sm:$0xff] %v774
  %839 = vst [vmem:[#allocation3 + $0x890] sm:$0xff] %v775
  %840 = vst [vmem:[#allocation3 + $0x8d8] sm:$0xff] %v776
  %841 = vst [vmem:[#allocation3 + $0x920] sm:$0xff] %v777
  %842 = vst [vmem:[#allocation3 + $0x968] sm:$0xff] %v778
  %843 = vst [vmem:[#allocation3 + $0x9b0] sm:$0xff] %v779
  %844 = vst [vmem:[#allocation3 + $0x9f8] sm:$0xff] %v780
  %845 = vst [vmem:[#allocation3 + $0xa40] sm:$0xff] %v781
  %846 = vst [vmem:[#allocation3 + $0xa88] sm:$0xff] %v782
  %847 = vst [vmem:[#allocation3 + $0xad0] sm:$0xff] %v783
  %848 = vst [vmem:[#allocation3 + $0xb18] sm:$0xff] %v784
  %849 = vst [vmem:[#allocation3 + $0xb60] sm:$0xff] %v785
  %850 = vst [vmem:[#allocation3 + $0xba8] sm:$0xff] %v786
  %851 = vst [vmem:[#allocation3 + $0xbf0] sm:$0xff] %v787
  %852 = vst [vmem:[#allocation3 + $0xc38] sm:$0xff] %v788
  %853 = vst [vmem:[#allocation3 + $0xc80] sm:$0xff] %v789
  %854 = vst [vmem:[#allocation3 + $0xcc8] sm:$0xff] %v790
  %855 = vst [vmem:[#allocation3 + $0xd10] sm:$0xff] %v791
  %856 = vst [vmem:[#allocation3 + $0xd58] sm:$0xff] %v792
  %857 = vst [vmem:[#allocation3 + $0xda0] sm:$0xff] %v793
  %858 = vst [vmem:[#allocation3 + $0xde8] sm:$0xff] %v794
  %859 = vst [vmem:[#allocation3 + $0xe30] sm:$0xff] %v795
  %860 = vst [vmem:[#allocation3 + $0xe78] sm:$0xff] %v796
  %861 = vst [vmem:[#allocation3 + $0xec0] sm:$0xff] %v797
  %862 = vst [vmem:[#allocation3 + $0xf08] sm:$0xff] %v798
  %863 = vst [vmem:[#allocation3 + $0xf50] sm:$0xff] %v799
  %864 = vst [vmem:[#allocation3 + $0xf98] sm:$0xff] %v800
  %865 = vst [vmem:[#allocation3 + $0xfe0] sm:$0xff] %v801
  %866 = vst [vmem:[#allocation3 + $0x1028] sm:$0xff] %v802
  %867 = vst [vmem:[#allocation3 + $0x1070] sm:$0xff] %v803
  %868 = vst [vmem:[#allocation3 + $0x10b8] sm:$0xff] %v804
  %869 = vst [vmem:[#allocation3 + $0x1100] sm:$0xff] %v805
  %870 = vst [vmem:[#allocation3 + $0x1148] sm:$0xff] %v806
  %871 = vst [vmem:[#allocation3 + $0x1190] sm:$0xff] %v807
  %872 = vst [vmem:[#allocation3 + $0x11d8] sm:$0xff] %v808
  %v873 = vld [vmem:[%s168 + $0x2] sm:$0xff]
  %v874 = vld [vmem:[%s168 + $0xa] sm:$0xff]
  %v875 = vld [vmem:[%s168 + $0x1a] sm:$0xff]
  %v876 = vld [vmem:[%s168 + $0x22] sm:$0xff]
  %v877 = vld [vmem:[%s168 + $0x32] sm:$0xff]
  %v878 = vld [vmem:[%s168 + $0x3a] sm:$0xff]
  %v879 = vld [vmem:[%s168 + $0x4a] sm:$0xff]
  %v880 = vld [vmem:[%s168 + $0x52] sm:$0xff]
  %v881 = vld [vmem:[%s168 + $0x62] sm:$0xff]
  %v882 = vld [vmem:[%s168 + $0x6a] sm:$0xff]
  %v883 = vld [vmem:[%s168 + $0x7a] sm:$0xff]
  %v884 = vld [vmem:[%s168 + $0x82] sm:$0xff]
  %v885 = vld [vmem:[%s168 + $0x92] sm:$0xff]
  %v886 = vld [vmem:[%s168 + $0x9a] sm:$0xff]
  %v887 = vld [vmem:[%s168 + $0xaa] sm:$0xff]
  %v888 = vld [vmem:[%s168 + $0xb2] sm:$0xff]
  %v889 = vld [vmem:[%s168 + $0xc2] sm:$0xff]
  %v890 = vld [vmem:[%s168 + $0xca] sm:$0xff]
  %v891 = vld [vmem:[%s168 + $0xda] sm:$0xff]
  %v892 = vld [vmem:[%s168 + $0xe2] sm:$0xff]
  %v893 = vld [vmem:[%s168 + $0xf2] sm:$0xff]
  %v894 = vld [vmem:[%s168 + $0xfa] sm:$0xff]
  %v895 = vld [vmem:[%s168 + $0x10a] sm:$0xff]
  %v896 = vld [vmem:[%s168 + $0x112] sm:$0xff]
  %v897 = vld [vmem:[%s168 + $0x122] sm:$0xff]
  %v898 = vld [vmem:[%s168 + $0x12a] sm:$0xff]
  %v899 = vld [vmem:[%s168 + $0x13a] sm:$0xff]
  %v900 = vld [vmem:[%s168 + $0x142] sm:$0xff]
  %v901 = vld [vmem:[%s168 + $0x152] sm:$0xff]
  %v902 = vld [vmem:[%s168 + $0x15a] sm:$0xff]
  %v903 = vld [vmem:[%s168 + $0x16a] sm:$0xff]
  %v904 = vld [vmem:[%s168 + $0x172] sm:$0xff]
  %v905 = vld [vmem:[%s168 + $0x1b2] sm:$0xff]
  %v906 = vld [vmem:[%s168 + $0x1ba] sm:$0xff]
  %v907 = vld [vmem:[%s168 + $0x1ca] sm:$0xff]
  %v908 = vld [vmem:[%s168 + $0x1d2] sm:$0xff]
  %v909 = vld [vmem:[%s168 + $0x1e2] sm:$0xff]
  %v910 = vld [vmem:[%s168 + $0x1ea] sm:$0xff]
  %v911 = vld [vmem:[%s168 + $0x1fa] sm:$0xff]
  %v912 = vld [vmem:[%s168 + $0x202] sm:$0xff]
  %v913 = vld [vmem:[%s168 + $0x212] sm:$0xff]
  %v914 = vld [vmem:[%s168 + $0x21a] sm:$0xff]
  %v915 = vld [vmem:[%s168 + $0x22a] sm:$0xff]
  %v916 = vld [vmem:[%s168 + $0x232] sm:$0xff]
  %v917 = vld [vmem:[%s168 + $0x242] sm:$0xff]
  %v918 = vld [vmem:[%s168 + $0x24a] sm:$0xff]
  %v919 = vld [vmem:[%s168 + $0x25a] sm:$0xff]
  %v920 = vld [vmem:[%s168 + $0x262] sm:$0xff]
  %v921 = vld [vmem:[%s168 + $0x272] sm:$0xff]
  %v922 = vld [vmem:[%s168 + $0x27a] sm:$0xff]
  %v923 = vld [vmem:[%s168 + $0x28a] sm:$0xff]
  %v924 = vld [vmem:[%s168 + $0x292] sm:$0xff]
  %v925 = vld [vmem:[%s168 + $0x2a2] sm:$0xff]
  %v926 = vld [vmem:[%s168 + $0x2aa] sm:$0xff]
  %v927 = vld [vmem:[%s168 + $0x2ba] sm:$0xff]
  %v928 = vld [vmem:[%s168 + $0x2c2] sm:$0xff]
  %v929 = vld [vmem:[%s168 + $0x2d2] sm:$0xff]
  %v930 = vld [vmem:[%s168 + $0x2da] sm:$0xff]
  %v931 = vld [vmem:[%s168 + $0x2ea] sm:$0xff]
  %v932 = vld [vmem:[%s168 + $0x2f2] sm:$0xff]
  %v933 = vld [vmem:[%s168 + $0x302] sm:$0xff]
  %v934 = vld [vmem:[%s168 + $0x30a] sm:$0xff]
  %v935 = vld [vmem:[%s168 + $0x31a] sm:$0xff]
  %v936 = vld [vmem:[%s168 + $0x322] sm:$0xff]
  %937 = vst [vmem:[#allocation3 + $0x28] sm:$0xff] %v873
  %938 = vst [vmem:[#allocation3 + $0x70] sm:$0xff] %v874
  %939 = vst [vmem:[#allocation3 + $0xb8] sm:$0xff] %v875
  %940 = vst [vmem:[#allocation3 + $0x100] sm:$0xff] %v876
  %941 = vst [vmem:[#allocation3 + $0x148] sm:$0xff] %v877
  %942 = vst [vmem:[#allocation3 + $0x190] sm:$0xff] %v878
  %943 = vst [vmem:[#allocation3 + $0x1d8] sm:$0xff] %v879
  %944 = vst [vmem:[#allocation3 + $0x220] sm:$0xff] %v880
  %945 = vst [vmem:[#allocation3 + $0x268] sm:$0xff] %v881
  %946 = vst [vmem:[#allocation3 + $0x2b0] sm:$0xff] %v882
  %947 = vst [vmem:[#allocation3 + $0x2f8] sm:$0xff] %v883
  %948 = vst [vmem:[#allocation3 + $0x340] sm:$0xff] %v884
  %949 = vst [vmem:[#allocation3 + $0x388] sm:$0xff] %v885
  %950 = vst [vmem:[#allocation3 + $0x3d0] sm:$0xff] %v886
  %951 = vst [vmem:[#allocation3 + $0x418] sm:$0xff] %v887
  %952 = vst [vmem:[#allocation3 + $0x460] sm:$0xff] %v888
  %953 = vst [vmem:[#allocation3 + $0x4a8] sm:$0xff] %v889
  %954 = vst [vmem:[#allocation3 + $0x4f0] sm:$0xff] %v890
  %955 = vst [vmem:[#allocation3 + $0x538] sm:$0xff] %v891
  %956 = vst [vmem:[#allocation3 + $0x580] sm:$0xff] %v892
  %957 = vst [vmem:[#allocation3 + $0x5c8] sm:$0xff] %v893
  %958 = vst [vmem:[#allocation3 + $0x610] sm:$0xff] %v894
  %959 = vst [vmem:[#allocation3 + $0x658] sm:$0xff] %v895
  %960 = vst [vmem:[#allocation3 + $0x6a0] sm:$0xff] %v896
  %961 = vst [vmem:[#allocation3 + $0x6e8] sm:$0xff] %v897
  %962 = vst [vmem:[#allocation3 + $0x730] sm:$0xff] %v898
  %963 = vst [vmem:[#allocation3 + $0x778] sm:$0xff] %v899
  %964 = vst [vmem:[#allocation3 + $0x7c0] sm:$0xff] %v900
  %965 = vst [vmem:[#allocation3 + $0x808] sm:$0xff] %v901
  %966 = vst [vmem:[#allocation3 + $0x850] sm:$0xff] %v902
  %967 = vst [vmem:[#allocation3 + $0x898] sm:$0xff] %v903
  %968 = vst [vmem:[#allocation3 + $0x8e0] sm:$0xff] %v904
  %969 = vst [vmem:[#allocation3 + $0x928] sm:$0xff] %v905
  %970 = vst [vmem:[#allocation3 + $0x970] sm:$0xff] %v906
  %971 = vst [vmem:[#allocation3 + $0x9b8] sm:$0xff] %v907
  %972 = vst [vmem:[#allocation3 + $0xa00] sm:$0xff] %v908
  %973 = vst [vmem:[#allocation3 + $0xa48] sm:$0xff] %v909
  %974 = vst [vmem:[#allocation3 + $0xa90] sm:$0xff] %v910
  %975 = vst [vmem:[#allocation3 + $0xad8] sm:$0xff] %v911
  %976 = vst [vmem:[#allocation3 + $0xb20] sm:$0xff] %v912
  %977 = vst [vmem:[#allocation3 + $0xb68] sm:$0xff] %v913
  %978 = vst [vmem:[#allocation3 + $0xbb0] sm:$0xff] %v914
  %979 = vst [vmem:[#allocation3 + $0xbf8] sm:$0xff] %v915
  %980 = vst [vmem:[#allocation3 + $0xc40] sm:$0xff] %v916
  %981 = vst [vmem:[#allocation3 + $0xc88] sm:$0xff] %v917
  %982 = vst [vmem:[#allocation3 + $0xcd0] sm:$0xff] %v918
  %983 = vst [vmem:[#allocation3 + $0xd18] sm:$0xff] %v919
  %984 = vst [vmem:[#allocation3 + $0xd60] sm:$0xff] %v920
  %985 = vst [vmem:[#allocation3 + $0xda8] sm:$0xff] %v921
  %986 = vst [vmem:[#allocation3 + $0xdf0] sm:$0xff] %v922
  %987 = vst [vmem:[#allocation3 + $0xe38] sm:$0xff] %v923
  %988 = vst [vmem:[#allocation3 + $0xe80] sm:$0xff] %v924
  %989 = vst [vmem:[#allocation3 + $0xec8] sm:$0xff] %v925
  %990 = vst [vmem:[#allocation3 + $0xf10] sm:$0xff] %v926
  %991 = vst [vmem:[#allocation3 + $0xf58] sm:$0xff] %v927
  %992 = vst [vmem:[#allocation3 + $0xfa0] sm:$0xff] %v928
  %993 = vst [vmem:[#allocation3 + $0xfe8] sm:$0xff] %v929
  %994 = vst [vmem:[#allocation3 + $0x1030] sm:$0xff] %v930
  %995 = vst [vmem:[#allocation3 + $0x1078] sm:$0xff] %v931
  %996 = vst [vmem:[#allocation3 + $0x10c0] sm:$0xff] %v932
  %997 = vst [vmem:[#allocation3 + $0x1108] sm:$0xff] %v933
  %998 = vst [vmem:[#allocation3 + $0x1150] sm:$0xff] %v934
  %999 = vst [vmem:[#allocation3 + $0x1198] sm:$0xff] %v935
  %1000 = vst [vmem:[#allocation3 + $0x11e0] sm:$0xff] %v936
  %s1001 = scalar_lea.vmem [#allocation2], 48
  %v1002 = vld [vmem:[%s1001] sm:$0xff]
  %v1003 = vld [vmem:[%s1001 + $0x8] sm:$0xff]
  %v1004 = vld [vmem:[%s1001 + $0x18] sm:$0xff]
  %v1005 = vld [vmem:[%s1001 + $0x20] sm:$0xff]
  %v1006 = vld [vmem:[%s1001 + $0x30] sm:$0xff]
  %v1007 = vld [vmem:[%s1001 + $0x38] sm:$0xff]
  %v1008 = vld [vmem:[%s1001 + $0x48] sm:$0xff]
  %v1009 = vld [vmem:[%s1001 + $0x50] sm:$0xff]
  %v1010 = vld [vmem:[%s1001 + $0x60] sm:$0xff]
  %v1011 = vld [vmem:[%s1001 + $0x68] sm:$0xff]
  %v1012 = vld [vmem:[%s1001 + $0x78] sm:$0xff]
  %v1013 = vld [vmem:[%s1001 + $0x80] sm:$0xff]
  %v1014 = vld [vmem:[%s1001 + $0x90] sm:$0xff]
  %v1015 = vld [vmem:[%s1001 + $0x98] sm:$0xff]
  %v1016 = vld [vmem:[%s1001 + $0xa8] sm:$0xff]
  %v1017 = vld [vmem:[%s1001 + $0xb0] sm:$0xff]
  %v1018 = vld [vmem:[%s1001 + $0xc0] sm:$0xff]
  %v1019 = vld [vmem:[%s1001 + $0xc8] sm:$0xff]
  %v1020 = vld [vmem:[%s1001 + $0xd8] sm:$0xff]
  %v1021 = vld [vmem:[%s1001 + $0xe0] sm:$0xff]
  %v1022 = vld [vmem:[%s1001 + $0xf0] sm:$0xff]
  %v1023 = vld [vmem:[%s1001 + $0xf8] sm:$0xff]
  %v1024 = vld [vmem:[%s1001 + $0x108] sm:$0xff]
  %v1025 = vld [vmem:[%s1001 + $0x110] sm:$0xff]
  %v1026 = vld [vmem:[%s1001 + $0x120] sm:$0xff]
  %v1027 = vld [vmem:[%s1001 + $0x128] sm:$0xff]
  %v1028 = vld [vmem:[%s1001 + $0x138] sm:$0xff]
  %v1029 = vld [vmem:[%s1001 + $0x140] sm:$0xff]
  %v1030 = vld [vmem:[%s1001 + $0x150] sm:$0xff]
  %v1031 = vld [vmem:[%s1001 + $0x158] sm:$0xff]
  %v1032 = vld [vmem:[%s1001 + $0x168] sm:$0xff]
  %v1033 = vld [vmem:[%s1001 + $0x170] sm:$0xff]
  %v1034 = vld [vmem:[%s1001 + $0x1b0] sm:$0xff]
  %v1035 = vld [vmem:[%s1001 + $0x1b8] sm:$0xff]
  %v1036 = vld [vmem:[%s1001 + $0x1c8] sm:$0xff]
  %v1037 = vld [vmem:[%s1001 + $0x1d0] sm:$0xff]
  %v1038 = vld [vmem:[%s1001 + $0x1e0] sm:$0xff]
  %v1039 = vld [vmem:[%s1001 + $0x1e8] sm:$0xff]
  %v1040 = vld [vmem:[%s1001 + $0x1f8] sm:$0xff]
  %v1041 = vld [vmem:[%s1001 + $0x200] sm:$0xff]
  %v1042 = vld [vmem:[%s1001 + $0x210] sm:$0xff]
  %v1043 = vld [vmem:[%s1001 + $0x218] sm:$0xff]
  %v1044 = vld [vmem:[%s1001 + $0x228] sm:$0xff]
  %v1045 = vld [vmem:[%s1001 + $0x230] sm:$0xff]
  %v1046 = vld [vmem:[%s1001 + $0x240] sm:$0xff]
  %v1047 = vld [vmem:[%s1001 + $0x248] sm:$0xff]
  %v1048 = vld [vmem:[%s1001 + $0x258] sm:$0xff]
  %v1049 = vld [vmem:[%s1001 + $0x260] sm:$0xff]
  %v1050 = vld [vmem:[%s1001 + $0x270] sm:$0xff]
  %v1051 = vld [vmem:[%s1001 + $0x278] sm:$0xff]
  %v1052 = vld [vmem:[%s1001 + $0x288] sm:$0xff]
  %v1053 = vld [vmem:[%s1001 + $0x290] sm:$0xff]
  %v1054 = vld [vmem:[%s1001 + $0x2a0] sm:$0xff]
  %v1055 = vld [vmem:[%s1001 + $0x2a8] sm:$0xff]
  %v1056 = vld [vmem:[%s1001 + $0x2b8] sm:$0xff]
  %v1057 = vld [vmem:[%s1001 + $0x2c0] sm:$0xff]
  %v1058 = vld [vmem:[%s1001 + $0x2d0] sm:$0xff]
  %v1059 = vld [vmem:[%s1001 + $0x2d8] sm:$0xff]
  %v1060 = vld [vmem:[%s1001 + $0x2e8] sm:$0xff]
  %v1061 = vld [vmem:[%s1001 + $0x2f0] sm:$0xff]
  %v1062 = vld [vmem:[%s1001 + $0x300] sm:$0xff]
  %v1063 = vld [vmem:[%s1001 + $0x308] sm:$0xff]
  %v1064 = vld [vmem:[%s1001 + $0x318] sm:$0xff]
  %v1065 = vld [vmem:[%s1001 + $0x320] sm:$0xff]
  %1066 = vst [vmem:[#allocation3 + $0x30] sm:$0xff] %v1002
  %1067 = vst [vmem:[#allocation3 + $0x78] sm:$0xff] %v1003
  %1068 = vst [vmem:[#allocation3 + $0xc0] sm:$0xff] %v1004
  %1069 = vst [vmem:[#allocation3 + $0x108] sm:$0xff] %v1005
  %1070 = vst [vmem:[#allocation3 + $0x150] sm:$0xff] %v1006
  %1071 = vst [vmem:[#allocation3 + $0x198] sm:$0xff] %v1007
  %1072 = vst [vmem:[#allocation3 + $0x1e0] sm:$0xff] %v1008
  %1073 = vst [vmem:[#allocation3 + $0x228] sm:$0xff] %v1009
  %1074 = vst [vmem:[#allocation3 + $0x270] sm:$0xff] %v1010
  %1075 = vst [vmem:[#allocation3 + $0x2b8] sm:$0xff] %v1011
  %1076 = vst [vmem:[#allocation3 + $0x300] sm:$0xff] %v1012
  %1077 = vst [vmem:[#allocation3 + $0x348] sm:$0xff] %v1013
  %1078 = vst [vmem:[#allocation3 + $0x390] sm:$0xff] %v1014
  %1079 = vst [vmem:[#allocation3 + $0x3d8] sm:$0xff] %v1015
  %1080 = vst [vmem:[#allocation3 + $0x420] sm:$0xff] %v1016
  %1081 = vst [vmem:[#allocation3 + $0x468] sm:$0xff] %v1017
  %1082 = vst [vmem:[#allocation3 + $0x4b0] sm:$0xff] %v1018
  %1083 = vst [vmem:[#allocation3 + $0x4f8] sm:$0xff] %v1019
  %1084 = vst [vmem:[#allocation3 + $0x540] sm:$0xff] %v1020
  %1085 = vst [vmem:[#allocation3 + $0x588] sm:$0xff] %v1021
  %1086 = vst [vmem:[#allocation3 + $0x5d0] sm:$0xff] %v1022
  %1087 = vst [vmem:[#allocation3 + $0x618] sm:$0xff] %v1023
  %1088 = vst [vmem:[#allocation3 + $0x660] sm:$0xff] %v1024
  %1089 = vst [vmem:[#allocation3 + $0x6a8] sm:$0xff] %v1025
  %1090 = vst [vmem:[#allocation3 + $0x6f0] sm:$0xff] %v1026
  %1091 = vst [vmem:[#allocation3 + $0x738] sm:$0xff] %v1027
  %1092 = vst [vmem:[#allocation3 + $0x780] sm:$0xff] %v1028
  %1093 = vst [vmem:[#allocation3 + $0x7c8] sm:$0xff] %v1029
  %1094 = vst [vmem:[#allocation3 + $0x810] sm:$0xff] %v1030
  %1095 = vst [vmem:[#allocation3 + $0x858] sm:$0xff] %v1031
  %1096 = vst [vmem:[#allocation3 + $0x8a0] sm:$0xff] %v1032
  %1097 = vst [vmem:[#allocation3 + $0x8e8] sm:$0xff] %v1033
  %1098 = vst [vmem:[#allocation3 + $0x930] sm:$0xff] %v1034
  %1099 = vst [vmem:[#allocation3 + $0x978] sm:$0xff] %v1035
  %1100 = vst [vmem:[#allocation3 + $0x9c0] sm:$0xff] %v1036
  %1101 = vst [vmem:[#allocation3 + $0xa08] sm:$0xff] %v1037
  %1102 = vst [vmem:[#allocation3 + $0xa50] sm:$0xff] %v1038
  %1103 = vst [vmem:[#allocation3 + $0xa98] sm:$0xff] %v1039
  %1104 = vst [vmem:[#allocation3 + $0xae0] sm:$0xff] %v1040
  %1105 = vst [vmem:[#allocation3 + $0xb28] sm:$0xff] %v1041
  %1106 = vst [vmem:[#allocation3 + $0xb70] sm:$0xff] %v1042
  %1107 = vst [vmem:[#allocation3 + $0xbb8] sm:$0xff] %v1043
  %1108 = vst [vmem:[#allocation3 + $0xc00] sm:$0xff] %v1044
  %1109 = vst [vmem:[#allocation3 + $0xc48] sm:$0xff] %v1045
  %1110 = vst [vmem:[#allocation3 + $0xc90] sm:$0xff] %v1046
  %1111 = vst [vmem:[#allocation3 + $0xcd8] sm:$0xff] %v1047
  %1112 = vst [vmem:[#allocation3 + $0xd20] sm:$0xff] %v1048
  %1113 = vst [vmem:[#allocation3 + $0xd68] sm:$0xff] %v1049
  %1114 = vst [vmem:[#allocation3 + $0xdb0] sm:$0xff] %v1050
  %1115 = vst [vmem:[#allocation3 + $0xdf8] sm:$0xff] %v1051
  %1116 = vst [vmem:[#allocation3 + $0xe40] sm:$0xff] %v1052
  %1117 = vst [vmem:[#allocation3 + $0xe88] sm:$0xff] %v1053
  %1118 = vst [vmem:[#allocation3 + $0xed0] sm:$0xff] %v1054
  %1119 = vst [vmem:[#allocation3 + $0xf18] sm:$0xff] %v1055
  %1120 = vst [vmem:[#allocation3 + $0xf60] sm:$0xff] %v1056
  %1121 = vst [vmem:[#allocation3 + $0xfa8] sm:$0xff] %v1057
  %1122 = vst [vmem:[#allocation3 + $0xff0] sm:$0xff] %v1058
  %1123 = vst [vmem:[#allocation3 + $0x1038] sm:$0xff] %v1059
  %1124 = vst [vmem:[#allocation3 + $0x1080] sm:$0xff] %v1060
  %1125 = vst [vmem:[#allocation3 + $0x10c8] sm:$0xff] %v1061
  %1126 = vst [vmem:[#allocation3 + $0x1110] sm:$0xff] %v1062
  %1127 = vst [vmem:[#allocation3 + $0x1158] sm:$0xff] %v1063
  %1128 = vst [vmem:[#allocation3 + $0x11a0] sm:$0xff] %v1064
  %1129 = vst [vmem:[#allocation3 + $0x11e8] sm:$0xff] %v1065
  %v1130 = vld [vmem:[%s1001 + $0x1] sm:$0xff]
  %v1131 = vld [vmem:[%s1001 + $0x9] sm:$0xff]
  %v1132 = vld [vmem:[%s1001 + $0x19] sm:$0xff]
  %v1133 = vld [vmem:[%s1001 + $0x21] sm:$0xff]
  %v1134 = vld [vmem:[%s1001 + $0x31] sm:$0xff]
  %v1135 = vld [vmem:[%s1001 + $0x39] sm:$0xff]
  %v1136 = vld [vmem:[%s1001 + $0x49] sm:$0xff]
  %v1137 = vld [vmem:[%s1001 + $0x51] sm:$0xff]
  %v1138 = vld [vmem:[%s1001 + $0x61] sm:$0xff]
  %v1139 = vld [vmem:[%s1001 + $0x69] sm:$0xff]
  %v1140 = vld [vmem:[%s1001 + $0x79] sm:$0xff]
  %v1141 = vld [vmem:[%s1001 + $0x81] sm:$0xff]
  %v1142 = vld [vmem:[%s1001 + $0x91] sm:$0xff]
  %v1143 = vld [vmem:[%s1001 + $0x99] sm:$0xff]
  %v1144 = vld [vmem:[%s1001 + $0xa9] sm:$0xff]
  %v1145 = vld [vmem:[%s1001 + $0xb1] sm:$0xff]
  %v1146 = vld [vmem:[%s1001 + $0xc1] sm:$0xff]
  %v1147 = vld [vmem:[%s1001 + $0xc9] sm:$0xff]
  %v1148 = vld [vmem:[%s1001 + $0xd9] sm:$0xff]
  %v1149 = vld [vmem:[%s1001 + $0xe1] sm:$0xff]
  %v1150 = vld [vmem:[%s1001 + $0xf1] sm:$0xff]
  %v1151 = vld [vmem:[%s1001 + $0xf9] sm:$0xff]
  %v1152 = vld [vmem:[%s1001 + $0x109] sm:$0xff]
  %v1153 = vld [vmem:[%s1001 + $0x111] sm:$0xff]
  %v1154 = vld [vmem:[%s1001 + $0x121] sm:$0xff]
  %v1155 = vld [vmem:[%s1001 + $0x129] sm:$0xff]
  %v1156 = vld [vmem:[%s1001 + $0x139] sm:$0xff]
  %v1157 = vld [vmem:[%s1001 + $0x141] sm:$0xff]
  %v1158 = vld [vmem:[%s1001 + $0x151] sm:$0xff]
  %v1159 = vld [vmem:[%s1001 + $0x159] sm:$0xff]
  %v1160 = vld [vmem:[%s1001 + $0x169] sm:$0xff]
  %v1161 = vld [vmem:[%s1001 + $0x171] sm:$0xff]
  %v1162 = vld [vmem:[%s1001 + $0x1b1] sm:$0xff]
  %v1163 = vld [vmem:[%s1001 + $0x1b9] sm:$0xff]
  %v1164 = vld [vmem:[%s1001 + $0x1c9] sm:$0xff]
  %v1165 = vld [vmem:[%s1001 + $0x1d1] sm:$0xff]
  %v1166 = vld [vmem:[%s1001 + $0x1e1] sm:$0xff]
  %v1167 = vld [vmem:[%s1001 + $0x1e9] sm:$0xff]
  %v1168 = vld [vmem:[%s1001 + $0x1f9] sm:$0xff]
  %v1169 = vld [vmem:[%s1001 + $0x201] sm:$0xff]
  %v1170 = vld [vmem:[%s1001 + $0x211] sm:$0xff]
  %v1171 = vld [vmem:[%s1001 + $0x219] sm:$0xff]
  %v1172 = vld [vmem:[%s1001 + $0x229] sm:$0xff]
  %v1173 = vld [vmem:[%s1001 + $0x231] sm:$0xff]
  %v1174 = vld [vmem:[%s1001 + $0x241] sm:$0xff]
  %v1175 = vld [vmem:[%s1001 + $0x249] sm:$0xff]
  %v1176 = vld [vmem:[%s1001 + $0x259] sm:$0xff]
  %v1177 = vld [vmem:[%s1001 + $0x261] sm:$0xff]
  %v1178 = vld [vmem:[%s1001 + $0x271] sm:$0xff]
  %v1179 = vld [vmem:[%s1001 + $0x279] sm:$0xff]
  %v1180 = vld [vmem:[%s1001 + $0x289] sm:$0xff]
  %v1181 = vld [vmem:[%s1001 + $0x291] sm:$0xff]
  %v1182 = vld [vmem:[%s1001 + $0x2a1] sm:$0xff]
  %v1183 = vld [vmem:[%s1001 + $0x2a9] sm:$0xff]
  %v1184 = vld [vmem:[%s1001 + $0x2b9] sm:$0xff]
  %v1185 = vld [vmem:[%s1001 + $0x2c1] sm:$0xff]
  %v1186 = vld [vmem:[%s1001 + $0x2d1] sm:$0xff]
  %v1187 = vld [vmem:[%s1001 + $0x2d9] sm:$0xff]
  %v1188 = vld [vmem:[%s1001 + $0x2e9] sm:$0xff]
  %v1189 = vld [vmem:[%s1001 + $0x2f1] sm:$0xff]
  %v1190 = vld [vmem:[%s1001 + $0x301] sm:$0xff]
  %v1191 = vld [vmem:[%s1001 + $0x309] sm:$0xff]
  %v1192 = vld [vmem:[%s1001 + $0x319] sm:$0xff]
  %v1193 = vld [vmem:[%s1001 + $0x321] sm:$0xff]
  %1194 = vst [vmem:[#allocation3 + $0x38] sm:$0xff] %v1130
  %1195 = vst [vmem:[#allocation3 + $0x80] sm:$0xff] %v1131
  %1196 = vst [vmem:[#allocation3 + $0xc8] sm:$0xff] %v1132
  %1197 = vst [vmem:[#allocation3 + $0x110] sm:$0xff] %v1133
  %1198 = vst [vmem:[#allocation3 + $0x158] sm:$0xff] %v1134
  %1199 = vst [vmem:[#allocation3 + $0x1a0] sm:$0xff] %v1135
  %1200 = vst [vmem:[#allocation3 + $0x1e8] sm:$0xff] %v1136
  %1201 = vst [vmem:[#allocation3 + $0x230] sm:$0xff] %v1137
  %1202 = vst [vmem:[#allocation3 + $0x278] sm:$0xff] %v1138
  %1203 = vst [vmem:[#allocation3 + $0x2c0] sm:$0xff] %v1139
  %1204 = vst [vmem:[#allocation3 + $0x308] sm:$0xff] %v1140
  %1205 = vst [vmem:[#allocation3 + $0x350] sm:$0xff] %v1141
  %1206 = vst [vmem:[#allocation3 + $0x398] sm:$0xff] %v1142
  %1207 = vst [vmem:[#allocation3 + $0x3e0] sm:$0xff] %v1143
  %1208 = vst [vmem:[#allocation3 + $0x428] sm:$0xff] %v1144
  %1209 = vst [vmem:[#allocation3 + $0x470] sm:$0xff] %v1145
  %1210 = vst [vmem:[#allocation3 + $0x4b8] sm:$0xff] %v1146
  %1211 = vst [vmem:[#allocation3 + $0x500] sm:$0xff] %v1147
  %1212 = vst [vmem:[#allocation3 + $0x548] sm:$0xff] %v1148
  %1213 = vst [vmem:[#allocation3 + $0x590] sm:$0xff] %v1149
  %1214 = vst [vmem:[#allocation3 + $0x5d8] sm:$0xff] %v1150
  %1215 = vst [vmem:[#allocation3 + $0x620] sm:$0xff] %v1151
  %1216 = vst [vmem:[#allocation3 + $0x668] sm:$0xff] %v1152
  %1217 = vst [vmem:[#allocation3 + $0x6b0] sm:$0xff] %v1153
  %1218 = vst [vmem:[#allocation3 + $0x6f8] sm:$0xff] %v1154
  %1219 = vst [vmem:[#allocation3 + $0x740] sm:$0xff] %v1155
  %1220 = vst [vmem:[#allocation3 + $0x788] sm:$0xff] %v1156
  %1221 = vst [vmem:[#allocation3 + $0x7d0] sm:$0xff] %v1157
  %1222 = vst [vmem:[#allocation3 + $0x818] sm:$0xff] %v1158
  %1223 = vst [vmem:[#allocation3 + $0x860] sm:$0xff] %v1159
  %1224 = vst [vmem:[#allocation3 + $0x8a8] sm:$0xff] %v1160
  %1225 = vst [vmem:[#allocation3 + $0x8f0] sm:$0xff] %v1161
  %1226 = vst [vmem:[#allocation3 + $0x938] sm:$0xff] %v1162
  %1227 = vst [vmem:[#allocation3 + $0x980] sm:$0xff] %v1163
  %1228 = vst [vmem:[#allocation3 + $0x9c8] sm:$0xff] %v1164
  %1229 = vst [vmem:[#allocation3 + $0xa10] sm:$0xff] %v1165
  %1230 = vst [vmem:[#allocation3 + $0xa58] sm:$0xff] %v1166
  %1231 = vst [vmem:[#allocation3 + $0xaa0] sm:$0xff] %v1167
  %1232 = vst [vmem:[#allocation3 + $0xae8] sm:$0xff] %v1168
  %1233 = vst [vmem:[#allocation3 + $0xb30] sm:$0xff] %v1169
  %1234 = vst [vmem:[#allocation3 + $0xb78] sm:$0xff] %v1170
  %1235 = vst [vmem:[#allocation3 + $0xbc0] sm:$0xff] %v1171
  %1236 = vst [vmem:[#allocation3 + $0xc08] sm:$0xff] %v1172
  %1237 = vst [vmem:[#allocation3 + $0xc50] sm:$0xff] %v1173
  %1238 = vst [vmem:[#allocation3 + $0xc98] sm:$0xff] %v1174
  %1239 = vst [vmem:[#allocation3 + $0xce0] sm:$0xff] %v1175
  %1240 = vst [vmem:[#allocation3 + $0xd28] sm:$0xff] %v1176
  %1241 = vst [vmem:[#allocation3 + $0xd70] sm:$0xff] %v1177
  %1242 = vst [vmem:[#allocation3 + $0xdb8] sm:$0xff] %v1178
  %1243 = vst [vmem:[#allocation3 + $0xe00] sm:$0xff] %v1179
  %1244 = vst [vmem:[#allocation3 + $0xe48] sm:$0xff] %v1180
  %1245 = vst [vmem:[#allocation3 + $0xe90] sm:$0xff] %v1181
  %1246 = vst [vmem:[#allocation3 + $0xed8] sm:$0xff] %v1182
  %1247 = vst [vmem:[#allocation3 + $0xf20] sm:$0xff] %v1183
  %1248 = vst [vmem:[#allocation3 + $0xf68] sm:$0xff] %v1184
  %1249 = vst [vmem:[#allocation3 + $0xfb0] sm:$0xff] %v1185
  %1250 = vst [vmem:[#allocation3 + $0xff8] sm:$0xff] %v1186
  %1251 = vst [vmem:[#allocation3 + $0x1040] sm:$0xff] %v1187
  %1252 = vst [vmem:[#allocation3 + $0x1088] sm:$0xff] %v1188
  %1253 = vst [vmem:[#allocation3 + $0x10d0] sm:$0xff] %v1189
  %1254 = vst [vmem:[#allocation3 + $0x1118] sm:$0xff] %v1190
  %1255 = vst [vmem:[#allocation3 + $0x1160] sm:$0xff] %v1191
  %1256 = vst [vmem:[#allocation3 + $0x11a8] sm:$0xff] %v1192
  %1257 = vst [vmem:[#allocation3 + $0x11f0] sm:$0xff] %v1193
  %v1258 = vld [vmem:[%s1001 + $0x2] sm:$0xff]
  %v1259 = vld [vmem:[%s1001 + $0xa] sm:$0xff]
  %v1260 = vld [vmem:[%s1001 + $0x1a] sm:$0xff]
  %v1261 = vld [vmem:[%s1001 + $0x22] sm:$0xff]
  %v1262 = vld [vmem:[%s1001 + $0x32] sm:$0xff]
  %v1263 = vld [vmem:[%s1001 + $0x3a] sm:$0xff]
  %v1264 = vld [vmem:[%s1001 + $0x4a] sm:$0xff]
  %v1265 = vld [vmem:[%s1001 + $0x52] sm:$0xff]
  %v1266 = vld [vmem:[%s1001 + $0x62] sm:$0xff]
  %v1267 = vld [vmem:[%s1001 + $0x6a] sm:$0xff]
  %v1268 = vld [vmem:[%s1001 + $0x7a] sm:$0xff]
  %v1269 = vld [vmem:[%s1001 + $0x82] sm:$0xff]
  %v1270 = vld [vmem:[%s1001 + $0x92] sm:$0xff]
  %v1271 = vld [vmem:[%s1001 + $0x9a] sm:$0xff]
  %v1272 = vld [vmem:[%s1001 + $0xaa] sm:$0xff]
  %v1273 = vld [vmem:[%s1001 + $0xb2] sm:$0xff]
  %v1274 = vld [vmem:[%s1001 + $0xc2] sm:$0xff]
  %v1275 = vld [vmem:[%s1001 + $0xca] sm:$0xff]
  %v1276 = vld [vmem:[%s1001 + $0xda] sm:$0xff]
  %v1277 = vld [vmem:[%s1001 + $0xe2] sm:$0xff]
  %v1278 = vld [vmem:[%s1001 + $0xf2] sm:$0xff]
  %v1279 = vld [vmem:[%s1001 + $0xfa] sm:$0xff]
  %v1280 = vld [vmem:[%s1001 + $0x10a] sm:$0xff]
  %v1281 = vld [vmem:[%s1001 + $0x112] sm:$0xff]
  %v1282 = vld [vmem:[%s1001 + $0x122] sm:$0xff]
  %v1283 = vld [vmem:[%s1001 + $0x12a] sm:$0xff]
  %v1284 = vld [vmem:[%s1001 + $0x13a] sm:$0xff]
  %v1285 = vld [vmem:[%s1001 + $0x142] sm:$0xff]
  %v1286 = vld [vmem:[%s1001 + $0x152] sm:$0xff]
  %v1287 = vld [vmem:[%s1001 + $0x15a] sm:$0xff]
  %v1288 = vld [vmem:[%s1001 + $0x16a] sm:$0xff]
  %v1289 = vld [vmem:[%s1001 + $0x172] sm:$0xff]
  %v1290 = vld [vmem:[%s1001 + $0x1b2] sm:$0xff]
  %v1291 = vld [vmem:[%s1001 + $0x1ba] sm:$0xff]
  %v1292 = vld [vmem:[%s1001 + $0x1ca] sm:$0xff]
  %v1293 = vld [vmem:[%s1001 + $0x1d2] sm:$0xff]
  %v1294 = vld [vmem:[%s1001 + $0x1e2] sm:$0xff]
  %v1295 = vld [vmem:[%s1001 + $0x1ea] sm:$0xff]
  %v1296 = vld [vmem:[%s1001 + $0x1fa] sm:$0xff]
  %v1297 = vld [vmem:[%s1001 + $0x202] sm:$0xff]
  %v1298 = vld [vmem:[%s1001 + $0x212] sm:$0xff]
  %v1299 = vld [vmem:[%s1001 + $0x21a] sm:$0xff]
  %v1300 = vld [vmem:[%s1001 + $0x22a] sm:$0xff]
  %v1301 = vld [vmem:[%s1001 + $0x232] sm:$0xff]
  %v1302 = vld [vmem:[%s1001 + $0x242] sm:$0xff]
  %v1303 = vld [vmem:[%s1001 + $0x24a] sm:$0xff]
  %v1304 = vld [vmem:[%s1001 + $0x25a] sm:$0xff]
  %v1305 = vld [vmem:[%s1001 + $0x262] sm:$0xff]
  %v1306 = vld [vmem:[%s1001 + $0x272] sm:$0xff]
  %v1307 = vld [vmem:[%s1001 + $0x27a] sm:$0xff]
  %v1308 = vld [vmem:[%s1001 + $0x28a] sm:$0xff]
  %v1309 = vld [vmem:[%s1001 + $0x292] sm:$0xff]
  %v1310 = vld [vmem:[%s1001 + $0x2a2] sm:$0xff]
  %v1311 = vld [vmem:[%s1001 + $0x2aa] sm:$0xff]
  %v1312 = vld [vmem:[%s1001 + $0x2ba] sm:$0xff]
  %v1313 = vld [vmem:[%s1001 + $0x2c2] sm:$0xff]
  %v1314 = vld [vmem:[%s1001 + $0x2d2] sm:$0xff]
  %v1315 = vld [vmem:[%s1001 + $0x2da] sm:$0xff]
  %v1316 = vld [vmem:[%s1001 + $0x2ea] sm:$0xff]
  %v1317 = vld [vmem:[%s1001 + $0x2f2] sm:$0xff]
  %v1318 = vld [vmem:[%s1001 + $0x302] sm:$0xff]
  %v1319 = vld [vmem:[%s1001 + $0x30a] sm:$0xff]
  %v1320 = vld [vmem:[%s1001 + $0x31a] sm:$0xff]
  %v1321 = vld [vmem:[%s1001 + $0x322] sm:$0xff]
  %1322 = vst [vmem:[#allocation3 + $0x40] sm:$0xff] %v1258
  %1323 = vst [vmem:[#allocation3 + $0x88] sm:$0xff] %v1259
  %1324 = vst [vmem:[#allocation3 + $0xd0] sm:$0xff] %v1260
  %1325 = vst [vmem:[#allocation3 + $0x118] sm:$0xff] %v1261
  %1326 = vst [vmem:[#allocation3 + $0x160] sm:$0xff] %v1262
  %1327 = vst [vmem:[#allocation3 + $0x1a8] sm:$0xff] %v1263
  %1328 = vst [vmem:[#allocation3 + $0x1f0] sm:$0xff] %v1264
  %1329 = vst [vmem:[#allocation3 + $0x238] sm:$0xff] %v1265
  %1330 = vst [vmem:[#allocation3 + $0x280] sm:$0xff] %v1266
  %1331 = vst [vmem:[#allocation3 + $0x2c8] sm:$0xff] %v1267
  %1332 = vst [vmem:[#allocation3 + $0x310] sm:$0xff] %v1268
  %1333 = vst [vmem:[#allocation3 + $0x358] sm:$0xff] %v1269
  %1334 = vst [vmem:[#allocation3 + $0x3a0] sm:$0xff] %v1270
  %1335 = vst [vmem:[#allocation3 + $0x3e8] sm:$0xff] %v1271
  %1336 = vst [vmem:[#allocation3 + $0x430] sm:$0xff] %v1272
  %1337 = vst [vmem:[#allocation3 + $0x478] sm:$0xff] %v1273
  %1338 = vst [vmem:[#allocation3 + $0x4c0] sm:$0xff] %v1274
  %1339 = vst [vmem:[#allocation3 + $0x508] sm:$0xff] %v1275
  %1340 = vst [vmem:[#allocation3 + $0x550] sm:$0xff] %v1276
  %1341 = vst [vmem:[#allocation3 + $0x598] sm:$0xff] %v1277
  %1342 = vst [vmem:[#allocation3 + $0x5e0] sm:$0xff] %v1278
  %1343 = vst [vmem:[#allocation3 + $0x628] sm:$0xff] %v1279
  %1344 = vst [vmem:[#allocation3 + $0x670] sm:$0xff] %v1280
  %1345 = vst [vmem:[#allocation3 + $0x6b8] sm:$0xff] %v1281
  %1346 = vst [vmem:[#allocation3 + $0x700] sm:$0xff] %v1282
  %1347 = vst [vmem:[#allocation3 + $0x748] sm:$0xff] %v1283
  %1348 = vst [vmem:[#allocation3 + $0x790] sm:$0xff] %v1284
  %1349 = vst [vmem:[#allocation3 + $0x7d8] sm:$0xff] %v1285
  %1350 = vst [vmem:[#allocation3 + $0x820] sm:$0xff] %v1286
  %1351 = vst [vmem:[#allocation3 + $0x868] sm:$0xff] %v1287
  %1352 = vst [vmem:[#allocation3 + $0x8b0] sm:$0xff] %v1288
  %1353 = vst [vmem:[#allocation3 + $0x8f8] sm:$0xff] %v1289
  %1354 = vst [vmem:[#allocation3 + $0x940] sm:$0xff] %v1290
  %1355 = vst [vmem:[#allocation3 + $0x988] sm:$0xff] %v1291
  %1356 = vst [vmem:[#allocation3 + $0x9d0] sm:$0xff] %v1292
  %1357 = vst [vmem:[#allocation3 + $0xa18] sm:$0xff] %v1293
  %1358 = vst [vmem:[#allocation3 + $0xa60] sm:$0xff] %v1294
  %1359 = vst [vmem:[#allocation3 + $0xaa8] sm:$0xff] %v1295
  %1360 = vst [vmem:[#allocation3 + $0xaf0] sm:$0xff] %v1296
  %1361 = vst [vmem:[#allocation3 + $0xb38] sm:$0xff] %v1297
  %1362 = vst [vmem:[#allocation3 + $0xb80] sm:$0xff] %v1298
  %1363 = vst [vmem:[#allocation3 + $0xbc8] sm:$0xff] %v1299
  %1364 = vst [vmem:[#allocation3 + $0xc10] sm:$0xff] %v1300
  %1365 = vst [vmem:[#allocation3 + $0xc58] sm:$0xff] %v1301
  %1366 = vst [vmem:[#allocation3 + $0xca0] sm:$0xff] %v1302
  %1367 = vst [vmem:[#allocation3 + $0xce8] sm:$0xff] %v1303
  %1368 = vst [vmem:[#allocation3 + $0xd30] sm:$0xff] %v1304
  %1369 = vst [vmem:[#allocation3 + $0xd78] sm:$0xff] %v1305
  %1370 = vst [vmem:[#allocation3 + $0xdc0] sm:$0xff] %v1306
  %1371 = vst [vmem:[#allocation3 + $0xe08] sm:$0xff] %v1307
  %1372 = vst [vmem:[#allocation3 + $0xe50] sm:$0xff] %v1308
  %1373 = vst [vmem:[#allocation3 + $0xe98] sm:$0xff] %v1309
  %1374 = vst [vmem:[#allocation3 + $0xee0] sm:$0xff] %v1310
  %1375 = vst [vmem:[#allocation3 + $0xf28] sm:$0xff] %v1311
  %1376 = vst [vmem:[#allocation3 + $0xf70] sm:$0xff] %v1312
  %1377 = vst [vmem:[#allocation3 + $0xfb8] sm:$0xff] %v1313
  %1378 = vst [vmem:[#allocation3 + $0x1000] sm:$0xff] %v1314
  %1379 = vst [vmem:[#allocation3 + $0x1048] sm:$0xff] %v1315
  %1380 = vst [vmem:[#allocation3 + $0x1090] sm:$0xff] %v1316
  %1381 = vst [vmem:[#allocation3 + $0x10d8] sm:$0xff] %v1317
  %1382 = vst [vmem:[#allocation3 + $0x1120] sm:$0xff] %v1318
  %1383 = vst [vmem:[#allocation3 + $0x1168] sm:$0xff] %v1319
  %1384 = vst [vmem:[#allocation3 + $0x11b0] sm:$0xff] %v1320
  %1385 = vst [vmem:[#allocation3 + $0x11f8] sm:$0xff] %v1321
  %v1386 = vld [vmem:[#allocation3] sm:$0xff]
  %v1387 = vld [vmem:[#allocation3 + $0x8] sm:$0xff]
  %v1388 = vld [vmem:[#allocation3 + $0x10] sm:$0xff]
  %v1389 = vld [vmem:[#allocation3 + $0x18] sm:$0xff]
  %v1390 = vld [vmem:[#allocation3 + $0x20] sm:$0xff]
  %v1391 = vld [vmem:[#allocation3 + $0x28] sm:$0xff]
  %v1392 = vld [vmem:[#allocation3 + $0x30] sm:$0xff]
  %v1393 = vld [vmem:[#allocation3 + $0x38] sm:$0xff]
  %v1394 = vld [vmem:[#allocation3 + $0x40] sm:$0xff]
  %v1395 = vld [vmem:[#allocation3 + $0x48] sm:$0xff]
  %v1396 = vld [vmem:[#allocation3 + $0x50] sm:$0xff]
  %v1397 = vld [vmem:[#allocation3 + $0x58] sm:$0xff]
  %v1398 = vld [vmem:[#allocation3 + $0x60] sm:$0xff]
  %v1399 = vld [vmem:[#allocation3 + $0x68] sm:$0xff]
  %v1400 = vld [vmem:[#allocation3 + $0x70] sm:$0xff]
  %v1401 = vld [vmem:[#allocation3 + $0x78] sm:$0xff]
  %v1402 = vld [vmem:[#allocation3 + $0x80] sm:$0xff]
  %v1403 = vld [vmem:[#allocation3 + $0x88] sm:$0xff]
  %v1404 = vld [vmem:[#allocation3 + $0x90] sm:$0xff]
  %v1405 = vld [vmem:[#allocation3 + $0x98] sm:$0xff]
  %v1406 = vld [vmem:[#allocation3 + $0xa0] sm:$0xff]
  %v1407 = vld [vmem:[#allocation3 + $0xa8] sm:$0xff]
  %v1408 = vld [vmem:[#allocation3 + $0xb0] sm:$0xff]
  %v1409 = vld [vmem:[#allocation3 + $0xb8] sm:$0xff]
  %v1410 = vld [vmem:[#allocation3 + $0xc0] sm:$0xff]
  %v1411 = vld [vmem:[#allocation3 + $0xc8] sm:$0xff]
  %v1412 = vld [vmem:[#allocation3 + $0xd0] sm:$0xff]
  %v1413 = vld [vmem:[#allocation3 + $0xd8] sm:$0xff]
  %v1414 = vld [vmem:[#allocation3 + $0xe0] sm:$0xff]
  %v1415 = vld [vmem:[#allocation3 + $0xe8] sm:$0xff]
  %v1416 = vld [vmem:[#allocation3 + $0xf0] sm:$0xff]
  %v1417 = vld [vmem:[#allocation3 + $0xf8] sm:$0xff]
  %v1418 = vld [vmem:[#allocation3 + $0x100] sm:$0xff]
  %v1419 = vld [vmem:[#allocation3 + $0x108] sm:$0xff]
  %v1420 = vld [vmem:[#allocation3 + $0x110] sm:$0xff]
  %v1421 = vld [vmem:[#allocation3 + $0x118] sm:$0xff]
  %v1422 = vld [vmem:[#allocation3 + $0x120] sm:$0xff]
  %v1423 = vld [vmem:[#allocation3 + $0x128] sm:$0xff]
  %v1424 = vld [vmem:[#allocation3 + $0x130] sm:$0xff]
  %v1425 = vld [vmem:[#allocation3 + $0x138] sm:$0xff]
  %v1426 = vld [vmem:[#allocation3 + $0x140] sm:$0xff]
  %v1427 = vld [vmem:[#allocation3 + $0x148] sm:$0xff]
  %v1428 = vld [vmem:[#allocation3 + $0x150] sm:$0xff]
  %v1429 = vld [vmem:[#allocation3 + $0x158] sm:$0xff]
  %v1430 = vld [vmem:[#allocation3 + $0x160] sm:$0xff]
  %v1431 = vld [vmem:[#allocation3 + $0x168] sm:$0xff]
  %v1432 = vld [vmem:[#allocation3 + $0x170] sm:$0xff]
  %v1433 = vld [vmem:[#allocation3 + $0x178] sm:$0xff]
  %v1434 = vld [vmem:[#allocation3 + $0x180] sm:$0xff]
  %v1435 = vld [vmem:[#allocation3 + $0x188] sm:$0xff]
  %v1436 = vld [vmem:[#allocation3 + $0x190] sm:$0xff]
  %v1437 = vld [vmem:[#allocation3 + $0x198] sm:$0xff]
  %v1438 = vld [vmem:[#allocation3 + $0x1a0] sm:$0xff]
  %v1439 = vld [vmem:[#allocation3 + $0x1a8] sm:$0xff]
  %v1440 = vld [vmem:[#allocation3 + $0x1b0] sm:$0xff]
  %v1441 = vld [vmem:[#allocation3 + $0x1b8] sm:$0xff]
  %v1442 = vld [vmem:[#allocation3 + $0x1c0] sm:$0xff]
  %v1443 = vld [vmem:[#allocation3 + $0x1c8] sm:$0xff]
  %v1444 = vld [vmem:[#allocation3 + $0x1d0] sm:$0xff]
  %v1445 = vld [vmem:[#allocation3 + $0x1d8] sm:$0xff]
  %v1446 = vld [vmem:[#allocation3 + $0x1e0] sm:$0xff]
  %v1447 = vld [vmem:[#allocation3 + $0x1e8] sm:$0xff]
  %v1448 = vld [vmem:[#allocation3 + $0x1f0] sm:$0xff]
  %v1449 = vld [vmem:[#allocation3 + $0x1f8] sm:$0xff]
  %v1450 = vld [vmem:[#allocation3 + $0x200] sm:$0xff]
  %v1451 = vld [vmem:[#allocation3 + $0x208] sm:$0xff]
  %v1452 = vld [vmem:[#allocation3 + $0x210] sm:$0xff]
  %v1453 = vld [vmem:[#allocation3 + $0x218] sm:$0xff]
  %v1454 = vld [vmem:[#allocation3 + $0x220] sm:$0xff]
  %v1455 = vld [vmem:[#allocation3 + $0x228] sm:$0xff]
  %v1456 = vld [vmem:[#allocation3 + $0x230] sm:$0xff]
  %v1457 = vld [vmem:[#allocation3 + $0x238] sm:$0xff]
  %v1458 = vld [vmem:[#allocation3 + $0x240] sm:$0xff]
  %v1459 = vld [vmem:[#allocation3 + $0x248] sm:$0xff]
  %v1460 = vld [vmem:[#allocation3 + $0x250] sm:$0xff]
  %v1461 = vld [vmem:[#allocation3 + $0x258] sm:$0xff]
  %v1462 = vld [vmem:[#allocation3 + $0x260] sm:$0xff]
  %v1463 = vld [vmem:[#allocation3 + $0x268] sm:$0xff]
  %v1464 = vld [vmem:[#allocation3 + $0x270] sm:$0xff]
  %v1465 = vld [vmem:[#allocation3 + $0x278] sm:$0xff]
  %v1466 = vld [vmem:[#allocation3 + $0x280] sm:$0xff]
  %v1467 = vld [vmem:[#allocation3 + $0x288] sm:$0xff]
  %v1468 = vld [vmem:[#allocation3 + $0x290] sm:$0xff]
  %v1469 = vld [vmem:[#allocation3 + $0x298] sm:$0xff]
  %v1470 = vld [vmem:[#allocation3 + $0x2a0] sm:$0xff]
  %v1471 = vld [vmem:[#allocation3 + $0x2a8] sm:$0xff]
  %v1472 = vld [vmem:[#allocation3 + $0x2b0] sm:$0xff]
  %v1473 = vld [vmem:[#allocation3 + $0x2b8] sm:$0xff]
  %v1474 = vld [vmem:[#allocation3 + $0x2c0] sm:$0xff]
  %v1475 = vld [vmem:[#allocation3 + $0x2c8] sm:$0xff]
  %v1476 = vld [vmem:[#allocation3 + $0x2d0] sm:$0xff]
  %v1477 = vld [vmem:[#allocation3 + $0x2d8] sm:$0xff]
  %v1478 = vld [vmem:[#allocation3 + $0x2e0] sm:$0xff]
  %v1479 = vld [vmem:[#allocation3 + $0x2e8] sm:$0xff]
  %v1480 = vld [vmem:[#allocation3 + $0x2f0] sm:$0xff]
  %v1481 = vld [vmem:[#allocation3 + $0x2f8] sm:$0xff]
  %v1482 = vld [vmem:[#allocation3 + $0x300] sm:$0xff]
  %v1483 = vld [vmem:[#allocation3 + $0x308] sm:$0xff]
  %v1484 = vld [vmem:[#allocation3 + $0x310] sm:$0xff]
  %v1485 = vld [vmem:[#allocation3 + $0x318] sm:$0xff]
  %v1486 = vld [vmem:[#allocation3 + $0x320] sm:$0xff]
  %v1487 = vld [vmem:[#allocation3 + $0x328] sm:$0xff]
  %v1488 = vld [vmem:[#allocation3 + $0x330] sm:$0xff]
  %v1489 = vld [vmem:[#allocation3 + $0x338] sm:$0xff]
  %v1490 = vld [vmem:[#allocation3 + $0x340] sm:$0xff]
  %v1491 = vld [vmem:[#allocation3 + $0x348] sm:$0xff]
  %v1492 = vld [vmem:[#allocation3 + $0x350] sm:$0xff]
  %v1493 = vld [vmem:[#allocation3 + $0x358] sm:$0xff]
  %v1494 = vld [vmem:[#allocation3 + $0x360] sm:$0xff]
  %v1495 = vld [vmem:[#allocation3 + $0x368] sm:$0xff]
  %v1496 = vld [vmem:[#allocation3 + $0x370] sm:$0xff]
  %v1497 = vld [vmem:[#allocation3 + $0x378] sm:$0xff]
  %v1498 = vld [vmem:[#allocation3 + $0x380] sm:$0xff]
  %v1499 = vld [vmem:[#allocation3 + $0x388] sm:$0xff]
  %v1500 = vld [vmem:[#allocation3 + $0x390] sm:$0xff]
  %v1501 = vld [vmem:[#allocation3 + $0x398] sm:$0xff]
  %v1502 = vld [vmem:[#allocation3 + $0x3a0] sm:$0xff]
  %v1503 = vld [vmem:[#allocation3 + $0x3a8] sm:$0xff]
  %v1504 = vld [vmem:[#allocation3 + $0x3b0] sm:$0xff]
  %v1505 = vld [vmem:[#allocation3 + $0x3b8] sm:$0xff]
  %v1506 = vld [vmem:[#allocation3 + $0x3c0] sm:$0xff]
  %v1507 = vld [vmem:[#allocation3 + $0x3c8] sm:$0xff]
  %v1508 = vld [vmem:[#allocation3 + $0x3d0] sm:$0xff]
  %v1509 = vld [vmem:[#allocation3 + $0x3d8] sm:$0xff]
  %v1510 = vld [vmem:[#allocation3 + $0x3e0] sm:$0xff]
  %v1511 = vld [vmem:[#allocation3 + $0x3e8] sm:$0xff]
  %v1512 = vld [vmem:[#allocation3 + $0x3f0] sm:$0xff]
  %v1513 = vld [vmem:[#allocation3 + $0x3f8] sm:$0xff]
  %v1514 = vld [vmem:[#allocation3 + $0x400] sm:$0xff]
  %v1515 = vld [vmem:[#allocation3 + $0x408] sm:$0xff]
  %v1516 = vld [vmem:[#allocation3 + $0x410] sm:$0xff]
  %v1517 = vld [vmem:[#allocation3 + $0x418] sm:$0xff]
  %v1518 = vld [vmem:[#allocation3 + $0x420] sm:$0xff]
  %v1519 = vld [vmem:[#allocation3 + $0x428] sm:$0xff]
  %v1520 = vld [vmem:[#allocation3 + $0x430] sm:$0xff]
  %v1521 = vld [vmem:[#allocation3 + $0x438] sm:$0xff]
  %v1522 = vld [vmem:[#allocation3 + $0x440] sm:$0xff]
  %v1523 = vld [vmem:[#allocation3 + $0x448] sm:$0xff]
  %v1524 = vld [vmem:[#allocation3 + $0x450] sm:$0xff]
  %v1525 = vld [vmem:[#allocation3 + $0x458] sm:$0xff]
  %v1526 = vld [vmem:[#allocation3 + $0x460] sm:$0xff]
  %v1527 = vld [vmem:[#allocation3 + $0x468] sm:$0xff]
  %v1528 = vld [vmem:[#allocation3 + $0x470] sm:$0xff]
  %v1529 = vld [vmem:[#allocation3 + $0x478] sm:$0xff]
  %v1530 = vld [vmem:[#allocation3 + $0x480] sm:$0xff]
  %v1531 = vld [vmem:[#allocation3 + $0x488] sm:$0xff]
  %v1532 = vld [vmem:[#allocation3 + $0x490] sm:$0xff]
  %v1533 = vld [vmem:[#allocation3 + $0x498] sm:$0xff]
  %v1534 = vld [vmem:[#allocation3 + $0x4a0] sm:$0xff]
  %v1535 = vld [vmem:[#allocation3 + $0x4a8] sm:$0xff]
  %v1536 = vld [vmem:[#allocation3 + $0x4b0] sm:$0xff]
  %v1537 = vld [vmem:[#allocation3 + $0x4b8] sm:$0xff]
  %v1538 = vld [vmem:[#allocation3 + $0x4c0] sm:$0xff]
  %v1539 = vld [vmem:[#allocation3 + $0x4c8] sm:$0xff]
  %v1540 = vld [vmem:[#allocation3 + $0x4d0] sm:$0xff]
  %v1541 = vld [vmem:[#allocation3 + $0x4d8] sm:$0xff]
  %v1542 = vld [vmem:[#allocation3 + $0x4e0] sm:$0xff]
  %v1543 = vld [vmem:[#allocation3 + $0x4e8] sm:$0xff]
  %v1544 = vld [vmem:[#allocation3 + $0x4f0] sm:$0xff]
  %v1545 = vld [vmem:[#allocation3 + $0x4f8] sm:$0xff]
  %v1546 = vld [vmem:[#allocation3 + $0x500] sm:$0xff]
  %v1547 = vld [vmem:[#allocation3 + $0x508] sm:$0xff]
  %v1548 = vld [vmem:[#allocation3 + $0x510] sm:$0xff]
  %v1549 = vld [vmem:[#allocation3 + $0x518] sm:$0xff]
  %v1550 = vld [vmem:[#allocation3 + $0x520] sm:$0xff]
  %v1551 = vld [vmem:[#allocation3 + $0x528] sm:$0xff]
  %v1552 = vld [vmem:[#allocation3 + $0x530] sm:$0xff]
  %v1553 = vld [vmem:[#allocation3 + $0x538] sm:$0xff]
  %v1554 = vld [vmem:[#allocation3 + $0x540] sm:$0xff]
  %v1555 = vld [vmem:[#allocation3 + $0x548] sm:$0xff]
  %v1556 = vld [vmem:[#allocation3 + $0x550] sm:$0xff]
  %v1557 = vld [vmem:[#allocation3 + $0x558] sm:$0xff]
  %v1558 = vld [vmem:[#allocation3 + $0x560] sm:$0xff]
  %v1559 = vld [vmem:[#allocation3 + $0x568] sm:$0xff]
  %v1560 = vld [vmem:[#allocation3 + $0x570] sm:$0xff]
  %v1561 = vld [vmem:[#allocation3 + $0x578] sm:$0xff]
  %v1562 = vld [vmem:[#allocation3 + $0x580] sm:$0xff]
  %v1563 = vld [vmem:[#allocation3 + $0x588] sm:$0xff]
  %v1564 = vld [vmem:[#allocation3 + $0x590] sm:$0xff]
  %v1565 = vld [vmem:[#allocation3 + $0x598] sm:$0xff]
  %v1566 = vld [vmem:[#allocation3 + $0x5a0] sm:$0xff]
  %v1567 = vld [vmem:[#allocation3 + $0x5a8] sm:$0xff]
  %v1568 = vld [vmem:[#allocation3 + $0x5b0] sm:$0xff]
  %v1569 = vld [vmem:[#allocation3 + $0x5b8] sm:$0xff]
  %v1570 = vld [vmem:[#allocation3 + $0x5c0] sm:$0xff]
  %v1571 = vld [vmem:[#allocation3 + $0x5c8] sm:$0xff]
  %v1572 = vld [vmem:[#allocation3 + $0x5d0] sm:$0xff]
  %v1573 = vld [vmem:[#allocation3 + $0x5d8] sm:$0xff]
  %v1574 = vld [vmem:[#allocation3 + $0x5e0] sm:$0xff]
  %v1575 = vld [vmem:[#allocation3 + $0x5e8] sm:$0xff]
  %v1576 = vld [vmem:[#allocation3 + $0x5f0] sm:$0xff]
  %v1577 = vld [vmem:[#allocation3 + $0x5f8] sm:$0xff]
  %v1578 = vld [vmem:[#allocation3 + $0x600] sm:$0xff]
  %v1579 = vld [vmem:[#allocation3 + $0x608] sm:$0xff]
  %v1580 = vld [vmem:[#allocation3 + $0x610] sm:$0xff]
  %v1581 = vld [vmem:[#allocation3 + $0x618] sm:$0xff]
  %v1582 = vld [vmem:[#allocation3 + $0x620] sm:$0xff]
  %v1583 = vld [vmem:[#allocation3 + $0x628] sm:$0xff]
  %v1584 = vld [vmem:[#allocation3 + $0x630] sm:$0xff]
  %v1585 = vld [vmem:[#allocation3 + $0x638] sm:$0xff]
  %v1586 = vld [vmem:[#allocation3 + $0x640] sm:$0xff]
  %v1587 = vld [vmem:[#allocation3 + $0x648] sm:$0xff]
  %v1588 = vld [vmem:[#allocation3 + $0x650] sm:$0xff]
  %v1589 = vld [vmem:[#allocation3 + $0x658] sm:$0xff]
  %v1590 = vld [vmem:[#allocation3 + $0x660] sm:$0xff]
  %v1591 = vld [vmem:[#allocation3 + $0x668] sm:$0xff]
  %v1592 = vld [vmem:[#allocation3 + $0x670] sm:$0xff]
  %v1593 = vld [vmem:[#allocation3 + $0x678] sm:$0xff]
  %v1594 = vld [vmem:[#allocation3 + $0x680] sm:$0xff]
  %v1595 = vld [vmem:[#allocation3 + $0x688] sm:$0xff]
  %v1596 = vld [vmem:[#allocation3 + $0x690] sm:$0xff]
  %v1597 = vld [vmem:[#allocation3 + $0x698] sm:$0xff]
  %v1598 = vld [vmem:[#allocation3 + $0x6a0] sm:$0xff]
  %v1599 = vld [vmem:[#allocation3 + $0x6a8] sm:$0xff]
  %v1600 = vld [vmem:[#allocation3 + $0x6b0] sm:$0xff]
  %v1601 = vld [vmem:[#allocation3 + $0x6b8] sm:$0xff]
  %v1602 = vld [vmem:[#allocation3 + $0x6c0] sm:$0xff]
  %v1603 = vld [vmem:[#allocation3 + $0x6c8] sm:$0xff]
  %v1604 = vld [vmem:[#allocation3 + $0x6d0] sm:$0xff]
  %v1605 = vld [vmem:[#allocation3 + $0x6d8] sm:$0xff]
  %v1606 = vld [vmem:[#allocation3 + $0x6e0] sm:$0xff]
  %v1607 = vld [vmem:[#allocation3 + $0x6e8] sm:$0xff]
  %v1608 = vld [vmem:[#allocation3 + $0x6f0] sm:$0xff]
  %v1609 = vld [vmem:[#allocation3 + $0x6f8] sm:$0xff]
  %v1610 = vld [vmem:[#allocation3 + $0x700] sm:$0xff]
  %v1611 = vld [vmem:[#allocation3 + $0x708] sm:$0xff]
  %v1612 = vld [vmem:[#allocation3 + $0x710] sm:$0xff]
  %v1613 = vld [vmem:[#allocation3 + $0x718] sm:$0xff]
  %v1614 = vld [vmem:[#allocation3 + $0x720] sm:$0xff]
  %v1615 = vld [vmem:[#allocation3 + $0x728] sm:$0xff]
  %v1616 = vld [vmem:[#allocation3 + $0x730] sm:$0xff]
  %v1617 = vld [vmem:[#allocation3 + $0x738] sm:$0xff]
  %v1618 = vld [vmem:[#allocation3 + $0x740] sm:$0xff]
  %v1619 = vld [vmem:[#allocation3 + $0x748] sm:$0xff]
  %v1620 = vld [vmem:[#allocation3 + $0x750] sm:$0xff]
  %v1621 = vld [vmem:[#allocation3 + $0x758] sm:$0xff]
  %v1622 = vld [vmem:[#allocation3 + $0x760] sm:$0xff]
  %v1623 = vld [vmem:[#allocation3 + $0x768] sm:$0xff]
  %v1624 = vld [vmem:[#allocation3 + $0x770] sm:$0xff]
  %v1625 = vld [vmem:[#allocation3 + $0x778] sm:$0xff]
  %v1626 = vld [vmem:[#allocation3 + $0x780] sm:$0xff]
  %v1627 = vld [vmem:[#allocation3 + $0x788] sm:$0xff]
  %v1628 = vld [vmem:[#allocation3 + $0x790] sm:$0xff]
  %v1629 = vld [vmem:[#allocation3 + $0x798] sm:$0xff]
  %v1630 = vld [vmem:[#allocation3 + $0x7a0] sm:$0xff]
  %v1631 = vld [vmem:[#allocation3 + $0x7a8] sm:$0xff]
  %v1632 = vld [vmem:[#allocation3 + $0x7b0] sm:$0xff]
  %v1633 = vld [vmem:[#allocation3 + $0x7b8] sm:$0xff]
  %v1634 = vld [vmem:[#allocation3 + $0x7c0] sm:$0xff]
  %v1635 = vld [vmem:[#allocation3 + $0x7c8] sm:$0xff]
  %v1636 = vld [vmem:[#allocation3 + $0x7d0] sm:$0xff]
  %v1637 = vld [vmem:[#allocation3 + $0x7d8] sm:$0xff]
  %v1638 = vld [vmem:[#allocation3 + $0x7e0] sm:$0xff]
  %v1639 = vld [vmem:[#allocation3 + $0x7e8] sm:$0xff]
  %v1640 = vld [vmem:[#allocation3 + $0x7f0] sm:$0xff]
  %v1641 = vld [vmem:[#allocation3 + $0x7f8] sm:$0xff]
  %v1642 = vld [vmem:[#allocation3 + $0x800] sm:$0xff]
  %v1643 = vld [vmem:[#allocation3 + $0x808] sm:$0xff]
  %v1644 = vld [vmem:[#allocation3 + $0x810] sm:$0xff]
  %v1645 = vld [vmem:[#allocation3 + $0x818] sm:$0xff]
  %v1646 = vld [vmem:[#allocation3 + $0x820] sm:$0xff]
  %v1647 = vld [vmem:[#allocation3 + $0x828] sm:$0xff]
  %v1648 = vld [vmem:[#allocation3 + $0x830] sm:$0xff]
  %v1649 = vld [vmem:[#allocation3 + $0x838] sm:$0xff]
  %v1650 = vld [vmem:[#allocation3 + $0x840] sm:$0xff]
  %v1651 = vld [vmem:[#allocation3 + $0x848] sm:$0xff]
  %v1652 = vld [vmem:[#allocation3 + $0x850] sm:$0xff]
  %v1653 = vld [vmem:[#allocation3 + $0x858] sm:$0xff]
  %v1654 = vld [vmem:[#allocation3 + $0x860] sm:$0xff]
  %v1655 = vld [vmem:[#allocation3 + $0x868] sm:$0xff]
  %v1656 = vld [vmem:[#allocation3 + $0x870] sm:$0xff]
  %v1657 = vld [vmem:[#allocation3 + $0x878] sm:$0xff]
  %v1658 = vld [vmem:[#allocation3 + $0x880] sm:$0xff]
  %v1659 = vld [vmem:[#allocation3 + $0x888] sm:$0xff]
  %v1660 = vld [vmem:[#allocation3 + $0x890] sm:$0xff]
  %v1661 = vld [vmem:[#allocation3 + $0x898] sm:$0xff]
  %v1662 = vld [vmem:[#allocation3 + $0x8a0] sm:$0xff]
  %v1663 = vld [vmem:[#allocation3 + $0x8a8] sm:$0xff]
  %v1664 = vld [vmem:[#allocation3 + $0x8b0] sm:$0xff]
  %v1665 = vld [vmem:[#allocation3 + $0x8b8] sm:$0xff]
  %v1666 = vld [vmem:[#allocation3 + $0x8c0] sm:$0xff]
  %v1667 = vld [vmem:[#allocation3 + $0x8c8] sm:$0xff]
  %v1668 = vld [vmem:[#allocation3 + $0x8d0] sm:$0xff]
  %v1669 = vld [vmem:[#allocation3 + $0x8d8] sm:$0xff]
  %v1670 = vld [vmem:[#allocation3 + $0x8e0] sm:$0xff]
  %v1671 = vld [vmem:[#allocation3 + $0x8e8] sm:$0xff]
  %v1672 = vld [vmem:[#allocation3 + $0x8f0] sm:$0xff]
  %v1673 = vld [vmem:[#allocation3 + $0x8f8] sm:$0xff]
  %v1674 = vld [vmem:[#allocation3 + $0x900] sm:$0xff]
  %v1675 = vld [vmem:[#allocation3 + $0x908] sm:$0xff]
  %v1676 = vld [vmem:[#allocation3 + $0x910] sm:$0xff]
  %v1677 = vld [vmem:[#allocation3 + $0x918] sm:$0xff]
  %v1678 = vld [vmem:[#allocation3 + $0x920] sm:$0xff]
  %v1679 = vld [vmem:[#allocation3 + $0x928] sm:$0xff]
  %v1680 = vld [vmem:[#allocation3 + $0x930] sm:$0xff]
  %v1681 = vld [vmem:[#allocation3 + $0x938] sm:$0xff]
  %v1682 = vld [vmem:[#allocation3 + $0x940] sm:$0xff]
  %v1683 = vld [vmem:[#allocation3 + $0x948] sm:$0xff]
  %v1684 = vld [vmem:[#allocation3 + $0x950] sm:$0xff]
  %v1685 = vld [vmem:[#allocation3 + $0x958] sm:$0xff]
  %v1686 = vld [vmem:[#allocation3 + $0x960] sm:$0xff]
  %v1687 = vld [vmem:[#allocation3 + $0x968] sm:$0xff]
  %v1688 = vld [vmem:[#allocation3 + $0x970] sm:$0xff]
  %v1689 = vld [vmem:[#allocation3 + $0x978] sm:$0xff]
  %v1690 = vld [vmem:[#allocation3 + $0x980] sm:$0xff]
  %v1691 = vld [vmem:[#allocation3 + $0x988] sm:$0xff]
  %v1692 = vld [vmem:[#allocation3 + $0x990] sm:$0xff]
  %v1693 = vld [vmem:[#allocation3 + $0x998] sm:$0xff]
  %v1694 = vld [vmem:[#allocation3 + $0x9a0] sm:$0xff]
  %v1695 = vld [vmem:[#allocation3 + $0x9a8] sm:$0xff]
  %v1696 = vld [vmem:[#allocation3 + $0x9b0] sm:$0xff]
  %v1697 = vld [vmem:[#allocation3 + $0x9b8] sm:$0xff]
  %v1698 = vld [vmem:[#allocation3 + $0x9c0] sm:$0xff]
  %v1699 = vld [vmem:[#allocation3 + $0x9c8] sm:$0xff]
  %v1700 = vld [vmem:[#allocation3 + $0x9d0] sm:$0xff]
  %v1701 = vld [vmem:[#allocation3 + $0x9d8] sm:$0xff]
  %v1702 = vld [vmem:[#allocation3 + $0x9e0] sm:$0xff]
  %v1703 = vld [vmem:[#allocation3 + $0x9e8] sm:$0xff]
  %v1704 = vld [vmem:[#allocation3 + $0x9f0] sm:$0xff]
  %v1705 = vld [vmem:[#allocation3 + $0x9f8] sm:$0xff]
  %v1706 = vld [vmem:[#allocation3 + $0xa00] sm:$0xff]
  %v1707 = vld [vmem:[#allocation3 + $0xa08] sm:$0xff]
  %v1708 = vld [vmem:[#allocation3 + $0xa10] sm:$0xff]
  %v1709 = vld [vmem:[#allocation3 + $0xa18] sm:$0xff]
  %v1710 = vld [vmem:[#allocation3 + $0xa20] sm:$0xff]
  %v1711 = vld [vmem:[#allocation3 + $0xa28] sm:$0xff]
  %v1712 = vld [vmem:[#allocation3 + $0xa30] sm:$0xff]
  %v1713 = vld [vmem:[#allocation3 + $0xa38] sm:$0xff]
  %v1714 = vld [vmem:[#allocation3 + $0xa40] sm:$0xff]
  %v1715 = vld [vmem:[#allocation3 + $0xa48] sm:$0xff]
  %v1716 = vld [vmem:[#allocation3 + $0xa50] sm:$0xff]
  %v1717 = vld [vmem:[#allocation3 + $0xa58] sm:$0xff]
  %v1718 = vld [vmem:[#allocation3 + $0xa60] sm:$0xff]
  %v1719 = vld [vmem:[#allocation3 + $0xa68] sm:$0xff]
  %v1720 = vld [vmem:[#allocation3 + $0xa70] sm:$0xff]
  %v1721 = vld [vmem:[#allocation3 + $0xa78] sm:$0xff]
  %v1722 = vld [vmem:[#allocation3 + $0xa80] sm:$0xff]
  %v1723 = vld [vmem:[#allocation3 + $0xa88] sm:$0xff]
  %v1724 = vld [vmem:[#allocation3 + $0xa90] sm:$0xff]
  %v1725 = vld [vmem:[#allocation3 + $0xa98] sm:$0xff]
  %v1726 = vld [vmem:[#allocation3 + $0xaa0] sm:$0xff]
  %v1727 = vld [vmem:[#allocation3 + $0xaa8] sm:$0xff]
  %v1728 = vld [vmem:[#allocation3 + $0xab0] sm:$0xff]
  %v1729 = vld [vmem:[#allocation3 + $0xab8] sm:$0xff]
  %v1730 = vld [vmem:[#allocation3 + $0xac0] sm:$0xff]
  %v1731 = vld [vmem:[#allocation3 + $0xac8] sm:$0xff]
  %v1732 = vld [vmem:[#allocation3 + $0xad0] sm:$0xff]
  %v1733 = vld [vmem:[#allocation3 + $0xad8] sm:$0xff]
  %v1734 = vld [vmem:[#allocation3 + $0xae0] sm:$0xff]
  %v1735 = vld [vmem:[#allocation3 + $0xae8] sm:$0xff]
  %v1736 = vld [vmem:[#allocation3 + $0xaf0] sm:$0xff]
  %v1737 = vld [vmem:[#allocation3 + $0xaf8] sm:$0xff]
  %v1738 = vld [vmem:[#allocation3 + $0xb00] sm:$0xff]
  %v1739 = vld [vmem:[#allocation3 + $0xb08] sm:$0xff]
  %v1740 = vld [vmem:[#allocation3 + $0xb10] sm:$0xff]
  %v1741 = vld [vmem:[#allocation3 + $0xb18] sm:$0xff]
  %v1742 = vld [vmem:[#allocation3 + $0xb20] sm:$0xff]
  %v1743 = vld [vmem:[#allocation3 + $0xb28] sm:$0xff]
  %v1744 = vld [vmem:[#allocation3 + $0xb30] sm:$0xff]
  %v1745 = vld [vmem:[#allocation3 + $0xb38] sm:$0xff]
  %v1746 = vld [vmem:[#allocation3 + $0xb40] sm:$0xff]
  %v1747 = vld [vmem:[#allocation3 + $0xb48] sm:$0xff]
  %v1748 = vld [vmem:[#allocation3 + $0xb50] sm:$0xff]
  %v1749 = vld [vmem:[#allocation3 + $0xb58] sm:$0xff]
  %v1750 = vld [vmem:[#allocation3 + $0xb60] sm:$0xff]
  %v1751 = vld [vmem:[#allocation3 + $0xb68] sm:$0xff]
  %v1752 = vld [vmem:[#allocation3 + $0xb70] sm:$0xff]
  %v1753 = vld [vmem:[#allocation3 + $0xb78] sm:$0xff]
  %v1754 = vld [vmem:[#allocation3 + $0xb80] sm:$0xff]
  %v1755 = vld [vmem:[#allocation3 + $0xb88] sm:$0xff]
  %v1756 = vld [vmem:[#allocation3 + $0xb90] sm:$0xff]
  %v1757 = vld [vmem:[#allocation3 + $0xb98] sm:$0xff]
  %v1758 = vld [vmem:[#allocation3 + $0xba0] sm:$0xff]
  %v1759 = vld [vmem:[#allocation3 + $0xba8] sm:$0xff]
  %v1760 = vld [vmem:[#allocation3 + $0xbb0] sm:$0xff]
  %v1761 = vld [vmem:[#allocation3 + $0xbb8] sm:$0xff]
  %v1762 = vld [vmem:[#allocation3 + $0xbc0] sm:$0xff]
  %v1763 = vld [vmem:[#allocation3 + $0xbc8] sm:$0xff]
  %v1764 = vld [vmem:[#allocation3 + $0xbd0] sm:$0xff]
  %v1765 = vld [vmem:[#allocation3 + $0xbd8] sm:$0xff]
  %v1766 = vld [vmem:[#allocation3 + $0xbe0] sm:$0xff]
  %v1767 = vld [vmem:[#allocation3 + $0xbe8] sm:$0xff]
  %v1768 = vld [vmem:[#allocation3 + $0xbf0] sm:$0xff]
  %v1769 = vld [vmem:[#allocation3 + $0xbf8] sm:$0xff]
  %v1770 = vld [vmem:[#allocation3 + $0xc00] sm:$0xff]
  %v1771 = vld [vmem:[#allocation3 + $0xc08] sm:$0xff]
  %v1772 = vld [vmem:[#allocation3 + $0xc10] sm:$0xff]
  %v1773 = vld [vmem:[#allocation3 + $0xc18] sm:$0xff]
  %v1774 = vld [vmem:[#allocation3 + $0xc20] sm:$0xff]
  %v1775 = vld [vmem:[#allocation3 + $0xc28] sm:$0xff]
  %v1776 = vld [vmem:[#allocation3 + $0xc30] sm:$0xff]
  %v1777 = vld [vmem:[#allocation3 + $0xc38] sm:$0xff]
  %v1778 = vld [vmem:[#allocation3 + $0xc40] sm:$0xff]
  %v1779 = vld [vmem:[#allocation3 + $0xc48] sm:$0xff]
  %v1780 = vld [vmem:[#allocation3 + $0xc50] sm:$0xff]
  %v1781 = vld [vmem:[#allocation3 + $0xc58] sm:$0xff]
  %v1782 = vld [vmem:[#allocation3 + $0xc60] sm:$0xff]
  %v1783 = vld [vmem:[#allocation3 + $0xc68] sm:$0xff]
  %v1784 = vld [vmem:[#allocation3 + $0xc70] sm:$0xff]
  %v1785 = vld [vmem:[#allocation3 + $0xc78] sm:$0xff]
  %v1786 = vld [vmem:[#allocation3 + $0xc80] sm:$0xff]
  %v1787 = vld [vmem:[#allocation3 + $0xc88] sm:$0xff]
  %v1788 = vld [vmem:[#allocation3 + $0xc90] sm:$0xff]
  %v1789 = vld [vmem:[#allocation3 + $0xc98] sm:$0xff]
  %v1790 = vld [vmem:[#allocation3 + $0xca0] sm:$0xff]
  %v1791 = vld [vmem:[#allocation3 + $0xca8] sm:$0xff]
  %v1792 = vld [vmem:[#allocation3 + $0xcb0] sm:$0xff]
  %v1793 = vld [vmem:[#allocation3 + $0xcb8] sm:$0xff]
  %v1794 = vld [vmem:[#allocation3 + $0xcc0] sm:$0xff]
  %v1795 = vld [vmem:[#allocation3 + $0xcc8] sm:$0xff]
  %v1796 = vld [vmem:[#allocation3 + $0xcd0] sm:$0xff]
  %v1797 = vld [vmem:[#allocation3 + $0xcd8] sm:$0xff]
  %v1798 = vld [vmem:[#allocation3 + $0xce0] sm:$0xff]
  %v1799 = vld [vmem:[#allocation3 + $0xce8] sm:$0xff]
  %v1800 = vld [vmem:[#allocation3 + $0xcf0] sm:$0xff]
  %v1801 = vld [vmem:[#allocation3 + $0xcf8] sm:$0xff]
  %v1802 = vld [vmem:[#allocation3 + $0xd00] sm:$0xff]
  %v1803 = vld [vmem:[#allocation3 + $0xd08] sm:$0xff]
  %v1804 = vld [vmem:[#allocation3 + $0xd10] sm:$0xff]
  %v1805 = vld [vmem:[#allocation3 + $0xd18] sm:$0xff]
  %v1806 = vld [vmem:[#allocation3 + $0xd20] sm:$0xff]
  %v1807 = vld [vmem:[#allocation3 + $0xd28] sm:$0xff]
  %v1808 = vld [vmem:[#allocation3 + $0xd30] sm:$0xff]
  %v1809 = vld [vmem:[#allocation3 + $0xd38] sm:$0xff]
  %v1810 = vld [vmem:[#allocation3 + $0xd40] sm:$0xff]
  %v1811 = vld [vmem:[#allocation3 + $0xd48] sm:$0xff]
  %v1812 = vld [vmem:[#allocation3 + $0xd50] sm:$0xff]
  %v1813 = vld [vmem:[#allocation3 + $0xd58] sm:$0xff]
  %v1814 = vld [vmem:[#allocation3 + $0xd60] sm:$0xff]
  %v1815 = vld [vmem:[#allocation3 + $0xd68] sm:$0xff]
  %v1816 = vld [vmem:[#allocation3 + $0xd70] sm:$0xff]
  %v1817 = vld [vmem:[#allocation3 + $0xd78] sm:$0xff]
  %v1818 = vld [vmem:[#allocation3 + $0xd80] sm:$0xff]
  %v1819 = vld [vmem:[#allocation3 + $0xd88] sm:$0xff]
  %v1820 = vld [vmem:[#allocation3 + $0xd90] sm:$0xff]
  %v1821 = vld [vmem:[#allocation3 + $0xd98] sm:$0xff]
  %v1822 = vld [vmem:[#allocation3 + $0xda0] sm:$0xff]
  %v1823 = vld [vmem:[#allocation3 + $0xda8] sm:$0xff]
  %v1824 = vld [vmem:[#allocation3 + $0xdb0] sm:$0xff]
  %v1825 = vld [vmem:[#allocation3 + $0xdb8] sm:$0xff]
  %v1826 = vld [vmem:[#allocation3 + $0xdc0] sm:$0xff]
  %v1827 = vld [vmem:[#allocation3 + $0xdc8] sm:$0xff]
  %v1828 = vld [vmem:[#allocation3 + $0xdd0] sm:$0xff]
  %v1829 = vld [vmem:[#allocation3 + $0xdd8] sm:$0xff]
  %v1830 = vld [vmem:[#allocation3 + $0xde0] sm:$0xff]
  %v1831 = vld [vmem:[#allocation3 + $0xde8] sm:$0xff]
  %v1832 = vld [vmem:[#allocation3 + $0xdf0] sm:$0xff]
  %v1833 = vld [vmem:[#allocation3 + $0xdf8] sm:$0xff]
  %v1834 = vld [vmem:[#allocation3 + $0xe00] sm:$0xff]
  %v1835 = vld [vmem:[#allocation3 + $0xe08] sm:$0xff]
  %v1836 = vld [vmem:[#allocation3 + $0xe10] sm:$0xff]
  %v1837 = vld [vmem:[#allocation3 + $0xe18] sm:$0xff]
  %v1838 = vld [vmem:[#allocation3 + $0xe20] sm:$0xff]
  %v1839 = vld [vmem:[#allocation3 + $0xe28] sm:$0xff]
  %v1840 = vld [vmem:[#allocation3 + $0xe30] sm:$0xff]
  %v1841 = vld [vmem:[#allocation3 + $0xe38] sm:$0xff]
  %v1842 = vld [vmem:[#allocation3 + $0xe40] sm:$0xff]
  %v1843 = vld [vmem:[#allocation3 + $0xe48] sm:$0xff]
  %v1844 = vld [vmem:[#allocation3 + $0xe50] sm:$0xff]
  %v1845 = vld [vmem:[#allocation3 + $0xe58] sm:$0xff]
  %v1846 = vld [vmem:[#allocation3 + $0xe60] sm:$0xff]
  %v1847 = vld [vmem:[#allocation3 + $0xe68] sm:$0xff]
  %v1848 = vld [vmem:[#allocation3 + $0xe70] sm:$0xff]
  %v1849 = vld [vmem:[#allocation3 + $0xe78] sm:$0xff]
  %v1850 = vld [vmem:[#allocation3 + $0xe80] sm:$0xff]
  %v1851 = vld [vmem:[#allocation3 + $0xe88] sm:$0xff]
  %v1852 = vld [vmem:[#allocation3 + $0xe90] sm:$0xff]
  %v1853 = vld [vmem:[#allocation3 + $0xe98] sm:$0xff]
  %v1854 = vld [vmem:[#allocation3 + $0xea0] sm:$0xff]
  %v1855 = vld [vmem:[#allocation3 + $0xea8] sm:$0xff]
  %v1856 = vld [vmem:[#allocation3 + $0xeb0] sm:$0xff]
  %v1857 = vld [vmem:[#allocation3 + $0xeb8] sm:$0xff]
  %v1858 = vld [vmem:[#allocation3 + $0xec0] sm:$0xff]
  %v1859 = vld [vmem:[#allocation3 + $0xec8] sm:$0xff]
  %v1860 = vld [vmem:[#allocation3 + $0xed0] sm:$0xff]
  %v1861 = vld [vmem:[#allocation3 + $0xed8] sm:$0xff]
  %v1862 = vld [vmem:[#allocation3 + $0xee0] sm:$0xff]
  %v1863 = vld [vmem:[#allocation3 + $0xee8] sm:$0xff]
  %v1864 = vld [vmem:[#allocation3 + $0xef0] sm:$0xff]
  %v1865 = vld [vmem:[#allocation3 + $0xef8] sm:$0xff]
  %v1866 = vld [vmem:[#allocation3 + $0xf00] sm:$0xff]
  %v1867 = vld [vmem:[#allocation3 + $0xf08] sm:$0xff]
  %v1868 = vld [vmem:[#allocation3 + $0xf10] sm:$0xff]
  %v1869 = vld [vmem:[#allocation3 + $0xf18] sm:$0xff]
  %v1870 = vld [vmem:[#allocation3 + $0xf20] sm:$0xff]
  %v1871 = vld [vmem:[#allocation3 + $0xf28] sm:$0xff]
  %v1872 = vld [vmem:[#allocation3 + $0xf30] sm:$0xff]
  %v1873 = vld [vmem:[#allocation3 + $0xf38] sm:$0xff]
  %v1874 = vld [vmem:[#allocation3 + $0xf40] sm:$0xff]
  %v1875 = vld [vmem:[#allocation3 + $0xf48] sm:$0xff]
  %v1876 = vld [vmem:[#allocation3 + $0xf50] sm:$0xff]
  %v1877 = vld [vmem:[#allocation3 + $0xf58] sm:$0xff]
  %v1878 = vld [vmem:[#allocation3 + $0xf60] sm:$0xff]
  %v1879 = vld [vmem:[#allocation3 + $0xf68] sm:$0xff]
  %v1880 = vld [vmem:[#allocation3 + $0xf70] sm:$0xff]
  %v1881 = vld [vmem:[#allocation3 + $0xf78] sm:$0xff]
  %v1882 = vld [vmem:[#allocation3 + $0xf80] sm:$0xff]
  %v1883 = vld [vmem:[#allocation3 + $0xf88] sm:$0xff]
  %v1884 = vld [vmem:[#allocation3 + $0xf90] sm:$0xff]
  %v1885 = vld [vmem:[#allocation3 + $0xf98] sm:$0xff]
  %v1886 = vld [vmem:[#allocation3 + $0xfa0] sm:$0xff]
  %v1887 = vld [vmem:[#allocation3 + $0xfa8] sm:$0xff]
  %v1888 = vld [vmem:[#allocation3 + $0xfb0] sm:$0xff]
  %v1889 = vld [vmem:[#allocation3 + $0xfb8] sm:$0xff]
  %v1890 = vld [vmem:[#allocation3 + $0xfc0] sm:$0xff]
  %v1891 = vld [vmem:[#allocation3 + $0xfc8] sm:$0xff]
  %v1892 = vld [vmem:[#allocation3 + $0xfd0] sm:$0xff]
  %v1893 = vld [vmem:[#allocation3 + $0xfd8] sm:$0xff]
  %v1894 = vld [vmem:[#allocation3 + $0xfe0] sm:$0xff]
  %v1895 = vld [vmem:[#allocation3 + $0xfe8] sm:$0xff]
  %v1896 = vld [vmem:[#allocation3 + $0xff0] sm:$0xff]
  %v1897 = vld [vmem:[#allocation3 + $0xff8] sm:$0xff]
  %v1898 = vld [vmem:[#allocation3 + $0x1000] sm:$0xff]
  %v1899 = vld [vmem:[#allocation3 + $0x1008] sm:$0xff]
  %v1900 = vld [vmem:[#allocation3 + $0x1010] sm:$0xff]
  %v1901 = vld [vmem:[#allocation3 + $0x1018] sm:$0xff]
  %v1902 = vld [vmem:[#allocation3 + $0x1020] sm:$0xff]
  %v1903 = vld [vmem:[#allocation3 + $0x1028] sm:$0xff]
  %v1904 = vld [vmem:[#allocation3 + $0x1030] sm:$0xff]
  %v1905 = vld [vmem:[#allocation3 + $0x1038] sm:$0xff]
  %v1906 = vld [vmem:[#allocation3 + $0x1040] sm:$0xff]
  %v1907 = vld [vmem:[#allocation3 + $0x1048] sm:$0xff]
  %v1908 = vld [vmem:[#allocation3 + $0x1050] sm:$0xff]
  %v1909 = vld [vmem:[#allocation3 + $0x1058] sm:$0xff]
  %v1910 = vld [vmem:[#allocation3 + $0x1060] sm:$0xff]
  %v1911 = vld [vmem:[#allocation3 + $0x1068] sm:$0xff]
  %v1912 = vld [vmem:[#allocation3 + $0x1070] sm:$0xff]
  %v1913 = vld [vmem:[#allocation3 + $0x1078] sm:$0xff]
  %v1914 = vld [vmem:[#allocation3 + $0x1080] sm:$0xff]
  %v1915 = vld [vmem:[#allocation3 + $0x1088] sm:$0xff]
  %v1916 = vld [vmem:[#allocation3 + $0x1090] sm:$0xff]
  %v1917 = vld [vmem:[#allocation3 + $0x1098] sm:$0xff]
  %v1918 = vld [vmem:[#allocation3 + $0x10a0] sm:$0xff]
  %v1919 = vld [vmem:[#allocation3 + $0x10a8] sm:$0xff]
  %v1920 = vld [vmem:[#allocation3 + $0x10b0] sm:$0xff]
  %v1921 = vld [vmem:[#allocation3 + $0x10b8] sm:$0xff]
  %v1922 = vld [vmem:[#allocation3 + $0x10c0] sm:$0xff]
  %v1923 = vld [vmem:[#allocation3 + $0x10c8] sm:$0xff]
  %v1924 = vld [vmem:[#allocation3 + $0x10d0] sm:$0xff]
  %v1925 = vld [vmem:[#allocation3 + $0x10d8] sm:$0xff]
  %v1926 = vld [vmem:[#allocation3 + $0x10e0] sm:$0xff]
  %v1927 = vld [vmem:[#allocation3 + $0x10e8] sm:$0xff]
  %v1928 = vld [vmem:[#allocation3 + $0x10f0] sm:$0xff]
  %v1929 = vld [vmem:[#allocation3 + $0x10f8] sm:$0xff]
  %v1930 = vld [vmem:[#allocation3 + $0x1100] sm:$0xff]
  %v1931 = vld [vmem:[#allocation3 + $0x1108] sm:$0xff]
  %v1932 = vld [vmem:[#allocation3 + $0x1110] sm:$0xff]
  %v1933 = vld [vmem:[#allocation3 + $0x1118] sm:$0xff]
  %v1934 = vld [vmem:[#allocation3 + $0x1120] sm:$0xff]
  %v1935 = vld [vmem:[#allocation3 + $0x1128] sm:$0xff]
  %v1936 = vld [vmem:[#allocation3 + $0x1130] sm:$0xff]
  %v1937 = vld [vmem:[#allocation3 + $0x1138] sm:$0xff]
  %v1938 = vld [vmem:[#allocation3 + $0x1140] sm:$0xff]
  %v1939 = vld [vmem:[#allocation3 + $0x1148] sm:$0xff]
  %v1940 = vld [vmem:[#allocation3 + $0x1150] sm:$0xff]
  %v1941 = vld [vmem:[#allocation3 + $0x1158] sm:$0xff]
  %v1942 = vld [vmem:[#allocation3 + $0x1160] sm:$0xff]
  %v1943 = vld [vmem:[#allocation3 + $0x1168] sm:$0xff]
  %v1944 = vld [vmem:[#allocation3 + $0x1170] sm:$0xff]
  %v1945 = vld [vmem:[#allocation3 + $0x1178] sm:$0xff]
  %v1946 = vld [vmem:[#allocation3 + $0x1180] sm:$0xff]
  %v1947 = vld [vmem:[#allocation3 + $0x1188] sm:$0xff]
  %v1948 = vld [vmem:[#allocation3 + $0x1190] sm:$0xff]
  %v1949 = vld [vmem:[#allocation3 + $0x1198] sm:$0xff]
  %v1950 = vld [vmem:[#allocation3 + $0x11a0] sm:$0xff]
  %v1951 = vld [vmem:[#allocation3 + $0x11a8] sm:$0xff]
  %v1952 = vld [vmem:[#allocation3 + $0x11b0] sm:$0xff]
  %v1953 = vld [vmem:[#allocation3 + $0x11b8] sm:$0xff]
  %v1954 = vld [vmem:[#allocation3 + $0x11c0] sm:$0xff]
  %v1955 = vld [vmem:[#allocation3 + $0x11c8] sm:$0xff]
  %v1956 = vld [vmem:[#allocation3 + $0x11d0] sm:$0xff]
  %v1957 = vld [vmem:[#allocation3 + $0x11d8] sm:$0xff]
  %v1958 = vld [vmem:[#allocation3 + $0x11e0] sm:$0xff]
  %v1959 = vld [vmem:[#allocation3 + $0x11e8] sm:$0xff]
  %v1960 = vld [vmem:[#allocation3 + $0x11f0] sm:$0xff]
  %v1961 = vld [vmem:[#allocation3 + $0x11f8] sm:$0xff]
  %v1962 = vld [vmem:[%s3] sm:$0xff]
  %v1963 = vld [vmem:[%s3 + $0x8] sm:$0xff]
  %v1964 = vld [vmem:[%s3 + $0x10] sm:$0xff]
  %v1965 = vld [vmem:[%s3 + $0x18] sm:$0xff]
  %v1966 = vld [vmem:[%s3 + $0x20] sm:$0xff]
  %v1967 = vld [vmem:[%s3 + $0x28] sm:$0xff]
  %v1968 = vld [vmem:[%s3 + $0x30] sm:$0xff]
  %v1969 = vld [vmem:[%s3 + $0x38] sm:$0xff]
  %v1970 = vld [vmem:[%s3 + $0x40] sm:$0xff]
  %v1971 = vld [vmem:[%s3 + $0x48] sm:$0xff]
  %v1972 = vld [vmem:[%s3 + $0x50] sm:$0xff]
  %v1973 = vld [vmem:[%s3 + $0x58] sm:$0xff]
  %v1974 = vld [vmem:[%s3 + $0x60] sm:$0xff]
  %v1975 = vld [vmem:[%s3 + $0x68] sm:$0xff]
  %v1976 = vld [vmem:[%s3 + $0x70] sm:$0xff]
  %v1977 = vld [vmem:[%s3 + $0x78] sm:$0xff]
  %v1978 = vld [vmem:[%s3 + $0x80] sm:$0xff]
  %v1979 = vld [vmem:[%s3 + $0x88] sm:$0xff]
  %v1980 = vld [vmem:[%s3 + $0x90] sm:$0xff]
  %v1981 = vld [vmem:[%s3 + $0x98] sm:$0xff]
  %v1982 = vld [vmem:[%s3 + $0xa0] sm:$0xff]
  %v1983 = vld [vmem:[%s3 + $0xa8] sm:$0xff]
  %v1984 = vld [vmem:[%s3 + $0xb0] sm:$0xff]
  %v1985 = vld [vmem:[%s3 + $0xb8] sm:$0xff]
  %v1986 = vld [vmem:[%s3 + $0xc0] sm:$0xff]
  %v1987 = vld [vmem:[%s3 + $0xc8] sm:$0xff]
  %v1988 = vld [vmem:[%s3 + $0xd0] sm:$0xff]
  %v1989 = vld [vmem:[%s3 + $0xd8] sm:$0xff]
  %v1990 = vld [vmem:[%s3 + $0xe0] sm:$0xff]
  %v1991 = vld [vmem:[%s3 + $0xe8] sm:$0xff]
  %v1992 = vld [vmem:[%s3 + $0xf0] sm:$0xff]
  %v1993 = vld [vmem:[%s3 + $0xf8] sm:$0xff]
  %v1994 = vld [vmem:[%s3 + $0x100] sm:$0xff]
  %v1995 = vld [vmem:[%s3 + $0x108] sm:$0xff]
  %v1996 = vld [vmem:[%s3 + $0x110] sm:$0xff]
  %v1997 = vld [vmem:[%s3 + $0x118] sm:$0xff]
  %v1998 = vld [vmem:[%s3 + $0x120] sm:$0xff]
  %v1999 = vld [vmem:[%s3 + $0x128] sm:$0xff]
  %v2000 = vld [vmem:[%s3 + $0x130] sm:$0xff]
  %v2001 = vld [vmem:[%s3 + $0x138] sm:$0xff]
  %v2002 = vld [vmem:[%s3 + $0x140] sm:$0xff]
  %v2003 = vld [vmem:[%s3 + $0x148] sm:$0xff]
  %v2004 = vld [vmem:[%s3 + $0x150] sm:$0xff]
  %v2005 = vld [vmem:[%s3 + $0x158] sm:$0xff]
  %v2006 = vld [vmem:[%s3 + $0x160] sm:$0xff]
  %v2007 = vld [vmem:[%s3 + $0x168] sm:$0xff]
  %v2008 = vld [vmem:[%s3 + $0x170] sm:$0xff]
  %v2009 = vld [vmem:[%s3 + $0x178] sm:$0xff]
  %v2010 = vld [vmem:[%s3 + $0x180] sm:$0xff]
  %v2011 = vld [vmem:[%s3 + $0x188] sm:$0xff]
  %v2012 = vld [vmem:[%s3 + $0x190] sm:$0xff]
  %v2013 = vld [vmem:[%s3 + $0x198] sm:$0xff]
  %v2014 = vld [vmem:[%s3 + $0x1a0] sm:$0xff]
  %v2015 = vld [vmem:[%s3 + $0x1a8] sm:$0xff]
  %v2016 = vld [vmem:[%s3 + $0x1b0] sm:$0xff]
  %v2017 = vld [vmem:[%s3 + $0x1b8] sm:$0xff]
  %v2018 = vld [vmem:[%s3 + $0x1c0] sm:$0xff]
  %v2019 = vld [vmem:[%s3 + $0x1c8] sm:$0xff]
  %v2020 = vld [vmem:[%s3 + $0x1d0] sm:$0xff]
  %v2021 = vld [vmem:[%s3 + $0x1d8] sm:$0xff]
  %v2022 = vld [vmem:[%s3 + $0x1e0] sm:$0xff]
  %v2023 = vld [vmem:[%s3 + $0x1e8] sm:$0xff]
  %v2024 = vld [vmem:[%s3 + $0x1f0] sm:$0xff]
  %v2025 = vld [vmem:[%s3 + $0x1f8] sm:$0xff]
  %v2026 = vld [vmem:[%s3 + $0x200] sm:$0xff]
  %v2027 = vld [vmem:[%s3 + $0x208] sm:$0xff]
  %v2028 = vld [vmem:[%s3 + $0x210] sm:$0xff]
  %v2029 = vld [vmem:[%s3 + $0x218] sm:$0xff]
  %v2030 = vld [vmem:[%s3 + $0x220] sm:$0xff]
  %v2031 = vld [vmem:[%s3 + $0x228] sm:$0xff]
  %v2032 = vld [vmem:[%s3 + $0x230] sm:$0xff]
  %v2033 = vld [vmem:[%s3 + $0x238] sm:$0xff]
  %v2034 = vld [vmem:[%s3 + $0x240] sm:$0xff]
  %v2035 = vld [vmem:[%s3 + $0x248] sm:$0xff]
  %v2036 = vld [vmem:[%s3 + $0x250] sm:$0xff]
  %v2037 = vld [vmem:[%s3 + $0x258] sm:$0xff]
  %v2038 = vld [vmem:[%s3 + $0x260] sm:$0xff]
  %v2039 = vld [vmem:[%s3 + $0x268] sm:$0xff]
  %v2040 = vld [vmem:[%s3 + $0x270] sm:$0xff]
  %v2041 = vld [vmem:[%s3 + $0x278] sm:$0xff]
  %v2042 = vld [vmem:[%s3 + $0x280] sm:$0xff]
  %v2043 = vld [vmem:[%s3 + $0x288] sm:$0xff]
  %v2044 = vld [vmem:[%s3 + $0x290] sm:$0xff]
  %v2045 = vld [vmem:[%s3 + $0x298] sm:$0xff]
  %v2046 = vld [vmem:[%s3 + $0x2a0] sm:$0xff]
  %v2047 = vld [vmem:[%s3 + $0x2a8] sm:$0xff]
  %v2048 = vld [vmem:[%s3 + $0x2b0] sm:$0xff]
  %v2049 = vld [vmem:[%s3 + $0x2b8] sm:$0xff]
  %v2050 = vld [vmem:[%s3 + $0x2c0] sm:$0xff]
  %v2051 = vld [vmem:[%s3 + $0x2c8] sm:$0xff]
  %v2052 = vld [vmem:[%s3 + $0x2d0] sm:$0xff]
  %v2053 = vld [vmem:[%s3 + $0x2d8] sm:$0xff]
  %v2054 = vld [vmem:[%s3 + $0x2e0] sm:$0xff]
  %v2055 = vld [vmem:[%s3 + $0x2e8] sm:$0xff]
  %v2056 = vld [vmem:[%s3 + $0x2f0] sm:$0xff]
  %v2057 = vld [vmem:[%s3 + $0x2f8] sm:$0xff]
  %v2058 = vld [vmem:[%s3 + $0x300] sm:$0xff]
  %v2059 = vld [vmem:[%s3 + $0x308] sm:$0xff]
  %v2060 = vld [vmem:[%s3 + $0x310] sm:$0xff]
  %v2061 = vld [vmem:[%s3 + $0x318] sm:$0xff]
  %v2062 = vld [vmem:[%s3 + $0x320] sm:$0xff]
  %v2063 = vld [vmem:[%s3 + $0x328] sm:$0xff]
  %v2064 = vld [vmem:[%s3 + $0x330] sm:$0xff]
  %v2065 = vld [vmem:[%s3 + $0x338] sm:$0xff]
  %v2066 = vld [vmem:[%s3 + $0x340] sm:$0xff]
  %v2067 = vld [vmem:[%s3 + $0x348] sm:$0xff]
  %v2068 = vld [vmem:[%s3 + $0x350] sm:$0xff]
  %v2069 = vld [vmem:[%s3 + $0x358] sm:$0xff]
  %v2070 = vld [vmem:[%s3 + $0x360] sm:$0xff]
  %v2071 = vld [vmem:[%s3 + $0x368] sm:$0xff]
  %v2072 = vld [vmem:[%s3 + $0x370] sm:$0xff]
  %v2073 = vld [vmem:[%s3 + $0x378] sm:$0xff]
  %v2074 = vld [vmem:[%s3 + $0x380] sm:$0xff]
  %v2075 = vld [vmem:[%s3 + $0x388] sm:$0xff]
  %v2076 = vld [vmem:[%s3 + $0x390] sm:$0xff]
  %v2077 = vld [vmem:[%s3 + $0x398] sm:$0xff]
  %v2078 = vld [vmem:[%s3 + $0x3a0] sm:$0xff]
  %v2079 = vld [vmem:[%s3 + $0x3a8] sm:$0xff]
  %v2080 = vld [vmem:[%s3 + $0x3b0] sm:$0xff]
  %v2081 = vld [vmem:[%s3 + $0x3b8] sm:$0xff]
  %v2082 = vld [vmem:[%s3 + $0x3c0] sm:$0xff]
  %v2083 = vld [vmem:[%s3 + $0x3c8] sm:$0xff]
  %v2084 = vld [vmem:[%s3 + $0x3d0] sm:$0xff]
  %v2085 = vld [vmem:[%s3 + $0x3d8] sm:$0xff]
  %v2086 = vld [vmem:[%s3 + $0x3e0] sm:$0xff]
  %v2087 = vld [vmem:[%s3 + $0x3e8] sm:$0xff]
  %v2088 = vld [vmem:[%s3 + $0x3f0] sm:$0xff]
  %v2089 = vld [vmem:[%s3 + $0x3f8] sm:$0xff]
  %v2090 = vld [vmem:[%s3 + $0x400] sm:$0xff]
  %v2091 = vld [vmem:[%s3 + $0x408] sm:$0xff]
  %v2092 = vld [vmem:[%s3 + $0x410] sm:$0xff]
  %v2093 = vld [vmem:[%s3 + $0x418] sm:$0xff]
  %v2094 = vld [vmem:[%s3 + $0x420] sm:$0xff]
  %v2095 = vld [vmem:[%s3 + $0x428] sm:$0xff]
  %v2096 = vld [vmem:[%s3 + $0x430] sm:$0xff]
  %v2097 = vld [vmem:[%s3 + $0x438] sm:$0xff]
  %v2098 = vld [vmem:[%s3 + $0x440] sm:$0xff]
  %v2099 = vld [vmem:[%s3 + $0x448] sm:$0xff]
  %v2100 = vld [vmem:[%s3 + $0x450] sm:$0xff]
  %v2101 = vld [vmem:[%s3 + $0x458] sm:$0xff]
  %v2102 = vld [vmem:[%s3 + $0x460] sm:$0xff]
  %v2103 = vld [vmem:[%s3 + $0x468] sm:$0xff]
  %v2104 = vld [vmem:[%s3 + $0x470] sm:$0xff]
  %v2105 = vld [vmem:[%s3 + $0x478] sm:$0xff]
  %2106 = vmatprep.subr.mxu0 0.0
  %2107 = vmatpush1.msra.mxu0 %v1977
  %2108 = vmatprep.subr.mxu0 0.0
  %2109 = vmatpush1.msra.mxu0 %v1976
  %2110 = vmatprep.subr.mxu0 0.0
  %2111 = vmatpush1.msra.mxu0 %v1975
  %2112 = vmatprep.subr.mxu0 0.0
  %2113 = vmatpush1.msra.mxu0 %v1974
  %2114 = vmatprep.subr.mxu0 0.0
  %2115 = vmatpush1.msra.mxu0 %v1973
  %2116 = vmatprep.subr.mxu0 0.0
  %2117 = vmatpush1.msra.mxu0 %v1972
  %2118 = vmatprep.subr.mxu0 0.0
  %2119 = vmatpush1.msra.mxu0 %v1971
  %2120 = vmatprep.subr.mxu0 0.0
  %2121 = vmatpush1.msra.mxu0 %v1970
  %2122 = vmatprep.subr.mxu0 0.0
  %2123 = vmatpush1.msra.mxu0 %v1969
  %2124 = vmatprep.subr.mxu0 0.0
  %2125 = vmatpush1.msra.mxu0 %v1968
  %2126 = vmatprep.subr.mxu0 0.0
  %2127 = vmatpush1.msra.mxu0 %v1967
  %2128 = vmatprep.subr.mxu0 0.0
  %2129 = vmatpush1.msra.mxu0 %v1966
  %2130 = vmatprep.subr.mxu0 0.0
  %2131 = vmatpush1.msra.mxu0 %v1965
  %2132 = vmatprep.subr.mxu0 0.0
  %2133 = vmatpush1.msra.mxu0 %v1964
  %2134 = vmatprep.subr.mxu0 0.0
  %2135 = vmatpush1.msra.mxu0 %v1963
  %2136 = vmatprep.subr.mxu0 0.0
  %2137 = vmatpush1.msra.mxu0 %v1962
  %2138 = vmatprep.subr.mxu0 0.0
  %2139 = vmatpush2.msra.mxu0 %v1993
  %2140 = vmatprep.subr.mxu0 0.0
  %2141 = vmatpush2.msra.mxu0 %v1992
  %2142 = vmatprep.subr.mxu0 0.0
  %2143 = vmatpush2.msra.mxu0 %v1991
  %2144 = vmatprep.subr.mxu0 0.0
  %2145 = vmatpush2.msra.mxu0 %v1990
  %2146 = vmatprep.subr.mxu0 0.0
  %2147 = vmatpush2.msra.mxu0 %v1989
  %2148 = vmatprep.subr.mxu0 0.0
  %2149 = vmatpush2.msra.mxu0 %v1988
  %2150 = vmatprep.subr.mxu0 0.0
  %2151 = vmatpush2.msra.mxu0 %v1987
  %2152 = vmatprep.subr.mxu0 0.0
  %2153 = vmatpush2.msra.mxu0 %v1986
  %2154 = vmatprep.subr.mxu0 0.0
  %2155 = vmatpush2.msra.mxu0 %v1985
  %2156 = vmatprep.subr.mxu0 0.0
  %2157 = vmatpush2.msra.mxu0 %v1984
  %2158 = vmatprep.subr.mxu0 0.0
  %2159 = vmatpush2.msra.mxu0 %v1983
  %2160 = vmatprep.subr.mxu0 0.0
  %2161 = vmatpush2.msra.mxu0 %v1982
  %2162 = vmatprep.subr.mxu0 0.0
  %2163 = vmatpush2.msra.mxu0 %v1981
  %2164 = vmatprep.subr.mxu0 0.0
  %2165 = vmatpush2.msra.mxu0 %v1980
  %2166 = vmatprep.subr.mxu0 0.0
  %2167 = vmatpush2.msra.mxu0 %v1979
  %2168 = vmatprep.subr.mxu0 0.0
  %2169 = vmatpush2.msra.mxu0 %v1978
  %2170 = vmatprep.mubr.f32.mxu0 %v1387
  %2171 = vmatmul.mubr.f32.gmra.mxu0 %v1386
  %v2172 = vpop.f32.mrf.mxu0
  %v2173 = vadd.f32 0.0, %v2172
  %v2174 = vpop.f32.mrf.mxu0
  %2175 = vmatprep.mubr.f32.mxu0 %v1396
  %2176 = vmatmul.mubr.f32.gmra.mxu0 %v1395
  %v2177 = vpop.f32.mrf.mxu0
  %v2178 = vadd.f32 0.0, %v2177
  %v2179 = vpop.f32.mrf.mxu0
  %2180 = vmatprep.mubr.f32.mxu0 %v1405
  %2181 = vmatmul.mubr.f32.gmra.mxu0 %v1404
  %v2182 = vpop.f32.mrf.mxu0
  %v2183 = vadd.f32 0.0, %v2182
  %v2184 = vpop.f32.mrf.mxu0
  %2185 = vmatprep.mubr.f32.mxu0 %v1414
  %2186 = vmatmul.mubr.f32.gmra.mxu0 %v1413
  %v2187 = vpop.f32.mrf.mxu0
  %v2188 = vadd.f32 0.0, %v2187
  %v2189 = vpop.f32.mrf.mxu0
  %2190 = vmatprep.mubr.f32.mxu0 %v1423
  %2191 = vmatmul.mubr.f32.gmra.mxu0 %v1422
  %v2192 = vpop.f32.mrf.mxu0
  %v2193 = vadd.f32 0.0, %v2192
  %v2194 = vpop.f32.mrf.mxu0
  %2195 = vmatprep.mubr.f32.mxu0 %v1432
  %2196 = vmatmul.mubr.f32.gmra.mxu0 %v1431
  %v2197 = vpop.f32.mrf.mxu0
  %v2198 = vadd.f32 0.0, %v2197
  %v2199 = vpop.f32.mrf.mxu0
  %2200 = vmatprep.mubr.f32.mxu0 %v1441
  %2201 = vmatmul.mubr.f32.gmra.mxu0 %v1440
  %v2202 = vpop.f32.mrf.mxu0
  %v2203 = vadd.f32 0.0, %v2202
  %v2204 = vpop.f32.mrf.mxu0
  %2205 = vmatprep.mubr.f32.mxu0 %v1450
  %2206 = vmatmul.mubr.f32.gmra.mxu0 %v1449
  %v2207 = vpop.f32.mrf.mxu0
  %v2208 = vadd.f32 0.0, %v2207
  %v2209 = vpop.f32.mrf.mxu0
  %2210 = vmatprep.mubr.f32.mxu0 %v1459
  %2211 = vmatmul.mubr.f32.gmra.mxu0 %v1458
  %v2212 = vpop.f32.mrf.mxu0
  %v2213 = vadd.f32 0.0, %v2212
  %v2214 = vpop.f32.mrf.mxu0
  %2215 = vmatprep.mubr.f32.mxu0 %v1468
  %2216 = vmatmul.mubr.f32.gmra.mxu0 %v1467
  %v2217 = vpop.f32.mrf.mxu0
  %v2218 = vadd.f32 0.0, %v2217
  %v2219 = vpop.f32.mrf.mxu0
  %2220 = vmatprep.mubr.f32.mxu0 %v1477
  %2221 = vmatmul.mubr.f32.gmra.mxu0 %v1476
  %v2222 = vpop.f32.mrf.mxu0
  %v2223 = vadd.f32 0.0, %v2222
  %v2224 = vpop.f32.mrf.mxu0
  %2225 = vmatprep.mubr.f32.mxu0 %v1486
  %2226 = vmatmul.mubr.f32.gmra.mxu0 %v1485
  %v2227 = vpop.f32.mrf.mxu0
  %v2228 = vadd.f32 0.0, %v2227
  %v2229 = vpop.f32.mrf.mxu0
  %2230 = vmatprep.mubr.f32.mxu0 %v1495
  %2231 = vmatmul.mubr.f32.gmra.mxu0 %v1494
  %v2232 = vpop.f32.mrf.mxu0
  %v2233 = vadd.f32 0.0, %v2232
  %v2234 = vpop.f32.mrf.mxu0
  %2235 = vmatprep.mubr.f32.mxu0 %v1504
  %2236 = vmatmul.mubr.f32.gmra.mxu0 %v1503
  %v2237 = vpop.f32.mrf.mxu0
  %v2238 = vadd.f32 0.0, %v2237
  %v2239 = vpop.f32.mrf.mxu0
  %2240 = vmatprep.mubr.f32.mxu0 %v1513
  %2241 = vmatmul.mubr.f32.gmra.mxu0 %v1512
  %v2242 = vpop.f32.mrf.mxu0
  %v2243 = vadd.f32 0.0, %v2242
  %v2244 = vpop.f32.mrf.mxu0
  %2245 = vmatprep.mubr.f32.mxu0 %v1522
  %2246 = vmatmul.mubr.f32.gmra.mxu0 %v1521
  %v2247 = vpop.f32.mrf.mxu0
  %v2248 = vadd.f32 0.0, %v2247
  %v2249 = vpop.f32.mrf.mxu0
  %2250 = vmatprep.mubr.f32.mxu0 %v1531
  %2251 = vmatmul.mubr.f32.gmra.mxu0 %v1530
  %v2252 = vpop.f32.mrf.mxu0
  %v2253 = vadd.f32 0.0, %v2252
  %v2254 = vpop.f32.mrf.mxu0
  %2255 = vmatprep.mubr.f32.mxu0 %v1540
  %2256 = vmatmul.mubr.f32.gmra.mxu0 %v1539
  %v2257 = vpop.f32.mrf.mxu0
  %v2258 = vadd.f32 0.0, %v2257
  %v2259 = vpop.f32.mrf.mxu0
  %2260 = vmatprep.mubr.f32.mxu0 %v1549
  %2261 = vmatmul.mubr.f32.gmra.mxu0 %v1548
  %v2262 = vpop.f32.mrf.mxu0
  %v2263 = vadd.f32 0.0, %v2262
  %v2264 = vpop.f32.mrf.mxu0
  %2265 = vmatprep.mubr.f32.mxu0 %v1558
  %2266 = vmatmul.mubr.f32.gmra.mxu0 %v1557
  %v2267 = vpop.f32.mrf.mxu0
  %v2268 = vadd.f32 0.0, %v2267
  %v2269 = vpop.f32.mrf.mxu0
  %2270 = vmatprep.mubr.f32.mxu0 %v1567
  %2271 = vmatmul.mubr.f32.gmra.mxu0 %v1566
  %v2272 = vpop.f32.mrf.mxu0
  %v2273 = vadd.f32 0.0, %v2272
  %v2274 = vpop.f32.mrf.mxu0
  %2275 = vmatprep.mubr.f32.mxu0 %v1576
  %2276 = vmatmul.mubr.f32.gmra.mxu0 %v1575
  %v2277 = vpop.f32.mrf.mxu0
  %v2278 = vadd.f32 0.0, %v2277
  %v2279 = vpop.f32.mrf.mxu0
  %2280 = vmatprep.mubr.f32.mxu0 %v1585
  %2281 = vmatmul.mubr.f32.gmra.mxu0 %v1584
  %v2282 = vpop.f32.mrf.mxu0
  %v2283 = vadd.f32 0.0, %v2282
  %v2284 = vpop.f32.mrf.mxu0
  %2285 = vmatprep.mubr.f32.mxu0 %v1594
  %2286 = vmatmul.mubr.f32.gmra.mxu0 %v1593
  %v2287 = vpop.f32.mrf.mxu0
  %v2288 = vadd.f32 0.0, %v2287
  %v2289 = vpop.f32.mrf.mxu0
  %2290 = vmatprep.mubr.f32.mxu0 %v1603
  %2291 = vmatmul.mubr.f32.gmra.mxu0 %v1602
  %v2292 = vpop.f32.mrf.mxu0
  %v2293 = vadd.f32 0.0, %v2292
  %v2294 = vpop.f32.mrf.mxu0
  %2295 = vmatprep.mubr.f32.mxu0 %v1612
  %2296 = vmatmul.mubr.f32.gmra.mxu0 %v1611
  %v2297 = vpop.f32.mrf.mxu0
  %v2298 = vadd.f32 0.0, %v2297
  %v2299 = vpop.f32.mrf.mxu0
  %2300 = vmatprep.mubr.f32.mxu0 %v1621
  %2301 = vmatmul.mubr.f32.gmra.mxu0 %v1620
  %v2302 = vpop.f32.mrf.mxu0
  %v2303 = vadd.f32 0.0, %v2302
  %v2304 = vpop.f32.mrf.mxu0
  %2305 = vmatprep.mubr.f32.mxu0 %v1630
  %2306 = vmatmul.mubr.f32.gmra.mxu0 %v1629
  %v2307 = vpop.f32.mrf.mxu0
  %v2308 = vadd.f32 0.0, %v2307
  %v2309 = vpop.f32.mrf.mxu0
  %2310 = vmatprep.mubr.f32.mxu0 %v1639
  %2311 = vmatmul.mubr.f32.gmra.mxu0 %v1638
  %v2312 = vpop.f32.mrf.mxu0
  %v2313 = vadd.f32 0.0, %v2312
  %v2314 = vpop.f32.mrf.mxu0
  %2315 = vmatprep.mubr.f32.mxu0 %v1648
  %2316 = vmatmul.mubr.f32.gmra.mxu0 %v1647
  %v2317 = vpop.f32.mrf.mxu0
  %v2318 = vadd.f32 0.0, %v2317
  %v2319 = vpop.f32.mrf.mxu0
  %2320 = vmatprep.mubr.f32.mxu0 %v1657
  %2321 = vmatmul.mubr.f32.gmra.mxu0 %v1656
  %v2322 = vpop.f32.mrf.mxu0
  %v2323 = vadd.f32 0.0, %v2322
  %v2324 = vpop.f32.mrf.mxu0
  %2325 = vmatprep.mubr.f32.mxu0 %v1666
  %2326 = vmatmul.mubr.f32.gmra.mxu0 %v1665
  %v2327 = vpop.f32.mrf.mxu0
  %v2328 = vadd.f32 0.0, %v2327
  %v2329 = vpop.f32.mrf.mxu0
  %2330 = vmatprep.mubr.f32.mxu0 %v1675
  %2331 = vmatmul.mubr.f32.gmra.mxu0 %v1674
  %v2332 = vpop.f32.mrf.mxu0
  %v2333 = vadd.f32 0.0, %v2332
  %v2334 = vpop.f32.mrf.mxu0
  %2335 = vmatprep.mubr.f32.mxu0 %v1684
  %2336 = vmatmul.mubr.f32.gmra.mxu0 %v1683
  %v2337 = vpop.f32.mrf.mxu0
  %v2338 = vadd.f32 0.0, %v2337
  %v2339 = vpop.f32.mrf.mxu0
  %2340 = vmatprep.mubr.f32.mxu0 %v1693
  %2341 = vmatmul.mubr.f32.gmra.mxu0 %v1692
  %v2342 = vpop.f32.mrf.mxu0
  %v2343 = vadd.f32 0.0, %v2342
  %v2344 = vpop.f32.mrf.mxu0
  %2345 = vmatprep.mubr.f32.mxu0 %v1702
  %2346 = vmatmul.mubr.f32.gmra.mxu0 %v1701
  %v2347 = vpop.f32.mrf.mxu0
  %v2348 = vadd.f32 0.0, %v2347
  %v2349 = vpop.f32.mrf.mxu0
  %2350 = vmatprep.mubr.f32.mxu0 %v1711
  %2351 = vmatmul.mubr.f32.gmra.mxu0 %v1710
  %v2352 = vpop.f32.mrf.mxu0
  %v2353 = vadd.f32 0.0, %v2352
  %v2354 = vpop.f32.mrf.mxu0
  %2355 = vmatprep.mubr.f32.mxu0 %v1720
  %2356 = vmatmul.mubr.f32.gmra.mxu0 %v1719
  %v2357 = vpop.f32.mrf.mxu0
  %v2358 = vadd.f32 0.0, %v2357
  %v2359 = vpop.f32.mrf.mxu0
  %2360 = vmatprep.mubr.f32.mxu0 %v1729
  %2361 = vmatmul.mubr.f32.gmra.mxu0 %v1728
  %v2362 = vpop.f32.mrf.mxu0
  %v2363 = vadd.f32 0.0, %v2362
  %v2364 = vpop.f32.mrf.mxu0
  %2365 = vmatprep.mubr.f32.mxu0 %v1738
  %2366 = vmatmul.mubr.f32.gmra.mxu0 %v1737
  %v2367 = vpop.f32.mrf.mxu0
  %v2368 = vadd.f32 0.0, %v2367
  %v2369 = vpop.f32.mrf.mxu0
  %2370 = vmatprep.mubr.f32.mxu0 %v1747
  %2371 = vmatmul.mubr.f32.gmra.mxu0 %v1746
  %v2372 = vpop.f32.mrf.mxu0
  %v2373 = vadd.f32 0.0, %v2372
  %v2374 = vpop.f32.mrf.mxu0
  %2375 = vmatprep.mubr.f32.mxu0 %v1756
  %2376 = vmatmul.mubr.f32.gmra.mxu0 %v1755
  %v2377 = vpop.f32.mrf.mxu0
  %v2378 = vadd.f32 0.0, %v2377
  %v2379 = vpop.f32.mrf.mxu0
  %2380 = vmatprep.mubr.f32.mxu0 %v1765
  %2381 = vmatmul.mubr.f32.gmra.mxu0 %v1764
  %v2382 = vpop.f32.mrf.mxu0
  %v2383 = vadd.f32 0.0, %v2382
  %v2384 = vpop.f32.mrf.mxu0
  %2385 = vmatprep.mubr.f32.mxu0 %v1774
  %2386 = vmatmul.mubr.f32.gmra.mxu0 %v1773
  %v2387 = vpop.f32.mrf.mxu0
  %v2388 = vadd.f32 0.0, %v2387
  %v2389 = vpop.f32.mrf.mxu0
  %2390 = vmatprep.mubr.f32.mxu0 %v1783
  %2391 = vmatmul.mubr.f32.gmra.mxu0 %v1782
  %v2392 = vpop.f32.mrf.mxu0
  %v2393 = vadd.f32 0.0, %v2392
  %v2394 = vpop.f32.mrf.mxu0
  %2395 = vmatprep.mubr.f32.mxu0 %v1792
  %2396 = vmatmul.mubr.f32.gmra.mxu0 %v1791
  %v2397 = vpop.f32.mrf.mxu0
  %v2398 = vadd.f32 0.0, %v2397
  %v2399 = vpop.f32.mrf.mxu0
  %2400 = vmatprep.mubr.f32.mxu0 %v1801
  %2401 = vmatmul.mubr.f32.gmra.mxu0 %v1800
  %v2402 = vpop.f32.mrf.mxu0
  %v2403 = vadd.f32 0.0, %v2402
  %v2404 = vpop.f32.mrf.mxu0
  %2405 = vmatprep.mubr.f32.mxu0 %v1810
  %2406 = vmatmul.mubr.f32.gmra.mxu0 %v1809
  %v2407 = vpop.f32.mrf.mxu0
  %v2408 = vadd.f32 0.0, %v2407
  %v2409 = vpop.f32.mrf.mxu0
  %2410 = vmatprep.mubr.f32.mxu0 %v1819
  %2411 = vmatmul.mubr.f32.gmra.mxu0 %v1818
  %v2412 = vpop.f32.mrf.mxu0
  %v2413 = vadd.f32 0.0, %v2412
  %v2414 = vpop.f32.mrf.mxu0
  %2415 = vmatprep.mubr.f32.mxu0 %v1828
  %2416 = vmatmul.mubr.f32.gmra.mxu0 %v1827
  %v2417 = vpop.f32.mrf.mxu0
  %v2418 = vadd.f32 0.0, %v2417
  %v2419 = vpop.f32.mrf.mxu0
  %2420 = vmatprep.mubr.f32.mxu0 %v1837
  %2421 = vmatmul.mubr.f32.gmra.mxu0 %v1836
  %v2422 = vpop.f32.mrf.mxu0
  %v2423 = vadd.f32 0.0, %v2422
  %v2424 = vpop.f32.mrf.mxu0
  %2425 = vmatprep.mubr.f32.mxu0 %v1846
  %2426 = vmatmul.mubr.f32.gmra.mxu0 %v1845
  %v2427 = vpop.f32.mrf.mxu0
  %v2428 = vadd.f32 0.0, %v2427
  %v2429 = vpop.f32.mrf.mxu0
  %2430 = vmatprep.mubr.f32.mxu0 %v1855
  %2431 = vmatmul.mubr.f32.gmra.mxu0 %v1854
  %v2432 = vpop.f32.mrf.mxu0
  %v2433 = vadd.f32 0.0, %v2432
  %v2434 = vpop.f32.mrf.mxu0
  %2435 = vmatprep.mubr.f32.mxu0 %v1864
  %2436 = vmatmul.mubr.f32.gmra.mxu0 %v1863
  %v2437 = vpop.f32.mrf.mxu0
  %v2438 = vadd.f32 0.0, %v2437
  %v2439 = vpop.f32.mrf.mxu0
  %2440 = vmatprep.mubr.f32.mxu0 %v1873
  %2441 = vmatmul.mubr.f32.gmra.mxu0 %v1872
  %v2442 = vpop.f32.mrf.mxu0
  %v2443 = vadd.f32 0.0, %v2442
  %v2444 = vpop.f32.mrf.mxu0
  %2445 = vmatprep.mubr.f32.mxu0 %v1882
  %2446 = vmatmul.mubr.f32.gmra.mxu0 %v1881
  %v2447 = vpop.f32.mrf.mxu0
  %v2448 = vadd.f32 0.0, %v2447
  %v2449 = vpop.f32.mrf.mxu0
  %2450 = vmatprep.mubr.f32.mxu0 %v1891
  %2451 = vmatmul.mubr.f32.gmra.mxu0 %v1890
  %v2452 = vpop.f32.mrf.mxu0
  %v2453 = vadd.f32 0.0, %v2452
  %v2454 = vpop.f32.mrf.mxu0
  %2455 = vmatprep.mubr.f32.mxu0 %v1900
  %2456 = vmatmul.mubr.f32.gmra.mxu0 %v1899
  %v2457 = vpop.f32.mrf.mxu0
  %v2458 = vadd.f32 0.0, %v2457
  %v2459 = vpop.f32.mrf.mxu0
  %2460 = vmatprep.mubr.f32.mxu0 %v1909
  %2461 = vmatmul.mubr.f32.gmra.mxu0 %v1908
  %v2462 = vpop.f32.mrf.mxu0
  %v2463 = vadd.f32 0.0, %v2462
  %v2464 = vpop.f32.mrf.mxu0
  %2465 = vmatprep.mubr.f32.mxu0 %v1918
  %2466 = vmatmul.mubr.f32.gmra.mxu0 %v1917
  %v2467 = vpop.f32.mrf.mxu0
  %v2468 = vadd.f32 0.0, %v2467
  %v2469 = vpop.f32.mrf.mxu0
  %2470 = vmatprep.mubr.f32.mxu0 %v1927
  %2471 = vmatmul.mubr.f32.gmra.mxu0 %v1926
  %v2472 = vpop.f32.mrf.mxu0
  %v2473 = vadd.f32 0.0, %v2472
  %v2474 = vpop.f32.mrf.mxu0
  %2475 = vmatprep.mubr.f32.mxu0 %v1936
  %2476 = vmatmul.mubr.f32.gmra.mxu0 %v1935
  %v2477 = vpop.f32.mrf.mxu0
  %v2478 = vadd.f32 0.0, %v2477
  %v2479 = vpop.f32.mrf.mxu0
  %2480 = vmatprep.mubr.f32.mxu0 %v1945
  %2481 = vmatmul.mubr.f32.gmra.mxu0 %v1944
  %v2482 = vpop.f32.mrf.mxu0
  %v2483 = vadd.f32 0.0, %v2482
  %v2484 = vpop.f32.mrf.mxu0
  %2485 = vmatprep.mubr.f32.mxu0 %v1954
  %2486 = vmatmul.mubr.f32.gmra.mxu0 %v1953
  %v2487 = vpop.f32.mrf.mxu0
  %v2488 = vadd.f32 0.0, %v2487
  %v2489 = vpop.f32.mrf.mxu0
  %2490 = vdwg.mxu0
  %2491 = vmatprep.subr.mxu0 0.0
  %2492 = vmatpush1.msra.mxu0 %v2009
  %2493 = vmatprep.subr.mxu0 0.0
  %2494 = vmatpush1.msra.mxu0 %v2008
  %2495 = vmatprep.subr.mxu0 0.0
  %2496 = vmatpush1.msra.mxu0 %v2007
  %2497 = vmatprep.subr.mxu0 0.0
  %2498 = vmatpush1.msra.mxu0 %v2006
  %2499 = vmatprep.subr.mxu0 0.0
  %2500 = vmatpush1.msra.mxu0 %v2005
  %2501 = vmatprep.subr.mxu0 0.0
  %2502 = vmatpush1.msra.mxu0 %v2004
  %2503 = vmatprep.subr.mxu0 0.0
  %2504 = vmatpush1.msra.mxu0 %v2003
  %2505 = vmatprep.subr.mxu0 0.0
  %2506 = vmatpush1.msra.mxu0 %v2002
  %2507 = vmatprep.subr.mxu0 0.0
  %2508 = vmatpush1.msra.mxu0 %v2001
  %2509 = vmatprep.subr.mxu0 0.0
  %2510 = vmatpush1.msra.mxu0 %v2000
  %2511 = vmatprep.subr.mxu0 0.0
  %2512 = vmatpush1.msra.mxu0 %v1999
  %2513 = vmatprep.subr.mxu0 0.0
  %2514 = vmatpush1.msra.mxu0 %v1998
  %2515 = vmatprep.subr.mxu0 0.0
  %2516 = vmatpush1.msra.mxu0 %v1997
  %2517 = vmatprep.subr.mxu0 0.0
  %2518 = vmatpush1.msra.mxu0 %v1996
  %2519 = vmatprep.subr.mxu0 0.0
  %2520 = vmatpush1.msra.mxu0 %v1995
  %2521 = vmatprep.subr.mxu0 0.0
  %2522 = vmatpush1.msra.mxu0 %v1994
  %2523 = vmatprep.subr.mxu0 0.0
  %2524 = vmatpush2.msra.mxu0 %v2025
  %2525 = vmatprep.subr.mxu0 0.0
  %2526 = vmatpush2.msra.mxu0 %v2024
  %2527 = vmatprep.subr.mxu0 0.0
  %2528 = vmatpush2.msra.mxu0 %v2023
  %2529 = vmatprep.subr.mxu0 0.0
  %2530 = vmatpush2.msra.mxu0 %v2022
  %2531 = vmatprep.subr.mxu0 0.0
  %2532 = vmatpush2.msra.mxu0 %v2021
  %2533 = vmatprep.subr.mxu0 0.0
  %2534 = vmatpush2.msra.mxu0 %v2020
  %2535 = vmatprep.subr.mxu0 0.0
  %2536 = vmatpush2.msra.mxu0 %v2019
  %2537 = vmatprep.subr.mxu0 0.0
  %2538 = vmatpush2.msra.mxu0 %v2018
  %2539 = vmatprep.subr.mxu0 0.0
  %2540 = vmatpush2.msra.mxu0 %v2017
  %2541 = vmatprep.subr.mxu0 0.0
  %2542 = vmatpush2.msra.mxu0 %v2016
  %2543 = vmatprep.subr.mxu0 0.0
  %2544 = vmatpush2.msra.mxu0 %v2015
  %2545 = vmatprep.subr.mxu0 0.0
  %2546 = vmatpush2.msra.mxu0 %v2014
  %2547 = vmatprep.subr.mxu0 0.0
  %2548 = vmatpush2.msra.mxu0 %v2013
  %2549 = vmatprep.subr.mxu0 0.0
  %2550 = vmatpush2.msra.mxu0 %v2012
  %2551 = vmatprep.subr.mxu0 0.0
  %2552 = vmatpush2.msra.mxu0 %v2011
  %2553 = vmatprep.subr.mxu0 0.0
  %2554 = vmatpush2.msra.mxu0 %v2010
  %2555 = vmatprep.mubr.f32.mxu0 %v1389
  %2556 = vmatmul.mubr.f32.gmra.mxu0 %v1388
  %v2557 = vpop.f32.mrf.mxu0
  %v2558 = vadd.f32 %v2173, %v2557
  %v2559 = vpop.f32.mrf.mxu0
  %2560 = vmatprep.mubr.f32.mxu0 %v1398
  %2561 = vmatmul.mubr.f32.gmra.mxu0 %v1397
  %v2562 = vpop.f32.mrf.mxu0
  %v2563 = vadd.f32 %v2178, %v2562
  %v2564 = vpop.f32.mrf.mxu0
  %2565 = vmatprep.mubr.f32.mxu0 %v1407
  %2566 = vmatmul.mubr.f32.gmra.mxu0 %v1406
  %v2567 = vpop.f32.mrf.mxu0
  %v2568 = vadd.f32 %v2183, %v2567
  %v2569 = vpop.f32.mrf.mxu0
  %2570 = vmatprep.mubr.f32.mxu0 %v1416
  %2571 = vmatmul.mubr.f32.gmra.mxu0 %v1415
  %v2572 = vpop.f32.mrf.mxu0
  %v2573 = vadd.f32 %v2188, %v2572
  %v2574 = vpop.f32.mrf.mxu0
  %2575 = vmatprep.mubr.f32.mxu0 %v1425
  %2576 = vmatmul.mubr.f32.gmra.mxu0 %v1424
  %v2577 = vpop.f32.mrf.mxu0
  %v2578 = vadd.f32 %v2193, %v2577
  %v2579 = vpop.f32.mrf.mxu0
  %2580 = vmatprep.mubr.f32.mxu0 %v1434
  %2581 = vmatmul.mubr.f32.gmra.mxu0 %v1433
  %v2582 = vpop.f32.mrf.mxu0
  %v2583 = vadd.f32 %v2198, %v2582
  %v2584 = vpop.f32.mrf.mxu0
  %2585 = vmatprep.mubr.f32.mxu0 %v1443
  %2586 = vmatmul.mubr.f32.gmra.mxu0 %v1442
  %v2587 = vpop.f32.mrf.mxu0
  %v2588 = vadd.f32 %v2203, %v2587
  %v2589 = vpop.f32.mrf.mxu0
  %2590 = vmatprep.mubr.f32.mxu0 %v1452
  %2591 = vmatmul.mubr.f32.gmra.mxu0 %v1451
  %v2592 = vpop.f32.mrf.mxu0
  %v2593 = vadd.f32 %v2208, %v2592
  %v2594 = vpop.f32.mrf.mxu0
  %2595 = vmatprep.mubr.f32.mxu0 %v1461
  %2596 = vmatmul.mubr.f32.gmra.mxu0 %v1460
  %v2597 = vpop.f32.mrf.mxu0
  %v2598 = vadd.f32 %v2213, %v2597
  %v2599 = vpop.f32.mrf.mxu0
  %2600 = vmatprep.mubr.f32.mxu0 %v1470
  %2601 = vmatmul.mubr.f32.gmra.mxu0 %v1469
  %v2602 = vpop.f32.mrf.mxu0
  %v2603 = vadd.f32 %v2218, %v2602
  %v2604 = vpop.f32.mrf.mxu0
  %2605 = vmatprep.mubr.f32.mxu0 %v1479
  %2606 = vmatmul.mubr.f32.gmra.mxu0 %v1478
  %v2607 = vpop.f32.mrf.mxu0
  %v2608 = vadd.f32 %v2223, %v2607
  %v2609 = vpop.f32.mrf.mxu0
  %2610 = vmatprep.mubr.f32.mxu0 %v1488
  %2611 = vmatmul.mubr.f32.gmra.mxu0 %v1487
  %v2612 = vpop.f32.mrf.mxu0
  %v2613 = vadd.f32 %v2228, %v2612
  %v2614 = vpop.f32.mrf.mxu0
  %2615 = vmatprep.mubr.f32.mxu0 %v1497
  %2616 = vmatmul.mubr.f32.gmra.mxu0 %v1496
  %v2617 = vpop.f32.mrf.mxu0
  %v2618 = vadd.f32 %v2233, %v2617
  %v2619 = vpop.f32.mrf.mxu0
  %2620 = vmatprep.mubr.f32.mxu0 %v1506
  %2621 = vmatmul.mubr.f32.gmra.mxu0 %v1505
  %v2622 = vpop.f32.mrf.mxu0
  %v2623 = vadd.f32 %v2238, %v2622
  %v2624 = vpop.f32.mrf.mxu0
  %2625 = vmatprep.mubr.f32.mxu0 %v1515
  %2626 = vmatmul.mubr.f32.gmra.mxu0 %v1514
  %v2627 = vpop.f32.mrf.mxu0
  %v2628 = vadd.f32 %v2243, %v2627
  %v2629 = vpop.f32.mrf.mxu0
  %2630 = vmatprep.mubr.f32.mxu0 %v1524
  %2631 = vmatmul.mubr.f32.gmra.mxu0 %v1523
  %v2632 = vpop.f32.mrf.mxu0
  %v2633 = vadd.f32 %v2248, %v2632
  %v2634 = vpop.f32.mrf.mxu0
  %2635 = vmatprep.mubr.f32.mxu0 %v1533
  %2636 = vmatmul.mubr.f32.gmra.mxu0 %v1532
  %v2637 = vpop.f32.mrf.mxu0
  %v2638 = vadd.f32 %v2253, %v2637
  %v2639 = vpop.f32.mrf.mxu0
  %2640 = vmatprep.mubr.f32.mxu0 %v1542
  %2641 = vmatmul.mubr.f32.gmra.mxu0 %v1541
  %v2642 = vpop.f32.mrf.mxu0
  %v2643 = vadd.f32 %v2258, %v2642
  %v2644 = vpop.f32.mrf.mxu0
  %2645 = vmatprep.mubr.f32.mxu0 %v1551
  %2646 = vmatmul.mubr.f32.gmra.mxu0 %v1550
  %v2647 = vpop.f32.mrf.mxu0
  %v2648 = vadd.f32 %v2263, %v2647
  %v2649 = vpop.f32.mrf.mxu0
  %2650 = vmatprep.mubr.f32.mxu0 %v1560
  %2651 = vmatmul.mubr.f32.gmra.mxu0 %v1559
  %v2652 = vpop.f32.mrf.mxu0
  %v2653 = vadd.f32 %v2268, %v2652
  %v2654 = vpop.f32.mrf.mxu0
  %2655 = vmatprep.mubr.f32.mxu0 %v1569
  %2656 = vmatmul.mubr.f32.gmra.mxu0 %v1568
  %v2657 = vpop.f32.mrf.mxu0
  %v2658 = vadd.f32 %v2273, %v2657
  %v2659 = vpop.f32.mrf.mxu0
  %2660 = vmatprep.mubr.f32.mxu0 %v1578
  %2661 = vmatmul.mubr.f32.gmra.mxu0 %v1577
  %v2662 = vpop.f32.mrf.mxu0
  %v2663 = vadd.f32 %v2278, %v2662
  %v2664 = vpop.f32.mrf.mxu0
  %2665 = vmatprep.mubr.f32.mxu0 %v1587
  %2666 = vmatmul.mubr.f32.gmra.mxu0 %v1586
  %v2667 = vpop.f32.mrf.mxu0
  %v2668 = vadd.f32 %v2283, %v2667
  %v2669 = vpop.f32.mrf.mxu0
  %2670 = vmatprep.mubr.f32.mxu0 %v1596
  %2671 = vmatmul.mubr.f32.gmra.mxu0 %v1595
  %v2672 = vpop.f32.mrf.mxu0
  %v2673 = vadd.f32 %v2288, %v2672
  %v2674 = vpop.f32.mrf.mxu0
  %2675 = vmatprep.mubr.f32.mxu0 %v1605
  %2676 = vmatmul.mubr.f32.gmra.mxu0 %v1604
  %v2677 = vpop.f32.mrf.mxu0
  %v2678 = vadd.f32 %v2293, %v2677
  %v2679 = vpop.f32.mrf.mxu0
  %2680 = vmatprep.mubr.f32.mxu0 %v1614
  %2681 = vmatmul.mubr.f32.gmra.mxu0 %v1613
  %v2682 = vpop.f32.mrf.mxu0
  %v2683 = vadd.f32 %v2298, %v2682
  %v2684 = vpop.f32.mrf.mxu0
  %2685 = vmatprep.mubr.f32.mxu0 %v1623
  %2686 = vmatmul.mubr.f32.gmra.mxu0 %v1622
  %v2687 = vpop.f32.mrf.mxu0
  %v2688 = vadd.f32 %v2303, %v2687
  %v2689 = vpop.f32.mrf.mxu0
  %2690 = vmatprep.mubr.f32.mxu0 %v1632
  %2691 = vmatmul.mubr.f32.gmra.mxu0 %v1631
  %v2692 = vpop.f32.mrf.mxu0
  %v2693 = vadd.f32 %v2308, %v2692
  %v2694 = vpop.f32.mrf.mxu0
  %2695 = vmatprep.mubr.f32.mxu0 %v1641
  %2696 = vmatmul.mubr.f32.gmra.mxu0 %v1640
  %v2697 = vpop.f32.mrf.mxu0
  %v2698 = vadd.f32 %v2313, %v2697
  %v2699 = vpop.f32.mrf.mxu0
  %2700 = vmatprep.mubr.f32.mxu0 %v1650
  %2701 = vmatmul.mubr.f32.gmra.mxu0 %v1649
  %v2702 = vpop.f32.mrf.mxu0
  %v2703 = vadd.f32 %v2318, %v2702
  %v2704 = vpop.f32.mrf.mxu0
  %2705 = vmatprep.mubr.f32.mxu0 %v1659
  %2706 = vmatmul.mubr.f32.gmra.mxu0 %v1658
  %v2707 = vpop.f32.mrf.mxu0
  %v2708 = vadd.f32 %v2323, %v2707
  %v2709 = vpop.f32.mrf.mxu0
  %2710 = vmatprep.mubr.f32.mxu0 %v1668
  %2711 = vmatmul.mubr.f32.gmra.mxu0 %v1667
  %v2712 = vpop.f32.mrf.mxu0
  %v2713 = vadd.f32 %v2328, %v2712
  %v2714 = vpop.f32.mrf.mxu0
  %2715 = vmatprep.mubr.f32.mxu0 %v1677
  %2716 = vmatmul.mubr.f32.gmra.mxu0 %v1676
  %v2717 = vpop.f32.mrf.mxu0
  %v2718 = vadd.f32 %v2333, %v2717
  %v2719 = vpop.f32.mrf.mxu0
  %2720 = vmatprep.mubr.f32.mxu0 %v1686
  %2721 = vmatmul.mubr.f32.gmra.mxu0 %v1685
  %v2722 = vpop.f32.mrf.mxu0
  %v2723 = vadd.f32 %v2338, %v2722
  %v2724 = vpop.f32.mrf.mxu0
  %2725 = vmatprep.mubr.f32.mxu0 %v1695
  %2726 = vmatmul.mubr.f32.gmra.mxu0 %v1694
  %v2727 = vpop.f32.mrf.mxu0
  %v2728 = vadd.f32 %v2343, %v2727
  %v2729 = vpop.f32.mrf.mxu0
  %2730 = vmatprep.mubr.f32.mxu0 %v1704
  %2731 = vmatmul.mubr.f32.gmra.mxu0 %v1703
  %v2732 = vpop.f32.mrf.mxu0
  %v2733 = vadd.f32 %v2348, %v2732
  %v2734 = vpop.f32.mrf.mxu0
  %2735 = vmatprep.mubr.f32.mxu0 %v1713
  %2736 = vmatmul.mubr.f32.gmra.mxu0 %v1712
  %v2737 = vpop.f32.mrf.mxu0
  %v2738 = vadd.f32 %v2353, %v2737
  %v2739 = vpop.f32.mrf.mxu0
  %2740 = vmatprep.mubr.f32.mxu0 %v1722
  %2741 = vmatmul.mubr.f32.gmra.mxu0 %v1721
  %v2742 = vpop.f32.mrf.mxu0
  %v2743 = vadd.f32 %v2358, %v2742
  %v2744 = vpop.f32.mrf.mxu0
  %2745 = vmatprep.mubr.f32.mxu0 %v1731
  %2746 = vmatmul.mubr.f32.gmra.mxu0 %v1730
  %v2747 = vpop.f32.mrf.mxu0
  %v2748 = vadd.f32 %v2363, %v2747
  %v2749 = vpop.f32.mrf.mxu0
  %2750 = vmatprep.mubr.f32.mxu0 %v1740
  %2751 = vmatmul.mubr.f32.gmra.mxu0 %v1739
  %v2752 = vpop.f32.mrf.mxu0
  %v2753 = vadd.f32 %v2368, %v2752
  %v2754 = vpop.f32.mrf.mxu0
  %2755 = vmatprep.mubr.f32.mxu0 %v1749
  %2756 = vmatmul.mubr.f32.gmra.mxu0 %v1748
  %v2757 = vpop.f32.mrf.mxu0
  %v2758 = vadd.f32 %v2373, %v2757
  %v2759 = vpop.f32.mrf.mxu0
  %2760 = vmatprep.mubr.f32.mxu0 %v1758
  %2761 = vmatmul.mubr.f32.gmra.mxu0 %v1757
  %v2762 = vpop.f32.mrf.mxu0
  %v2763 = vadd.f32 %v2378, %v2762
  %v2764 = vpop.f32.mrf.mxu0
  %2765 = vmatprep.mubr.f32.mxu0 %v1767
  %2766 = vmatmul.mubr.f32.gmra.mxu0 %v1766
  %v2767 = vpop.f32.mrf.mxu0
  %v2768 = vadd.f32 %v2383, %v2767
  %v2769 = vpop.f32.mrf.mxu0
  %2770 = vmatprep.mubr.f32.mxu0 %v1776
  %2771 = vmatmul.mubr.f32.gmra.mxu0 %v1775
  %v2772 = vpop.f32.mrf.mxu0
  %v2773 = vadd.f32 %v2388, %v2772
  %v2774 = vpop.f32.mrf.mxu0
  %2775 = vmatprep.mubr.f32.mxu0 %v1785
  %2776 = vmatmul.mubr.f32.gmra.mxu0 %v1784
  %v2777 = vpop.f32.mrf.mxu0
  %v2778 = vadd.f32 %v2393, %v2777
  %v2779 = vpop.f32.mrf.mxu0
  %2780 = vmatprep.mubr.f32.mxu0 %v1794
  %2781 = vmatmul.mubr.f32.gmra.mxu0 %v1793
  %v2782 = vpop.f32.mrf.mxu0
  %v2783 = vadd.f32 %v2398, %v2782
  %v2784 = vpop.f32.mrf.mxu0
  %2785 = vmatprep.mubr.f32.mxu0 %v1803
  %2786 = vmatmul.mubr.f32.gmra.mxu0 %v1802
  %v2787 = vpop.f32.mrf.mxu0
  %v2788 = vadd.f32 %v2403, %v2787
  %v2789 = vpop.f32.mrf.mxu0
  %2790 = vmatprep.mubr.f32.mxu0 %v1812
  %2791 = vmatmul.mubr.f32.gmra.mxu0 %v1811
  %v2792 = vpop.f32.mrf.mxu0
  %v2793 = vadd.f32 %v2408, %v2792
  %v2794 = vpop.f32.mrf.mxu0
  %2795 = vmatprep.mubr.f32.mxu0 %v1821
  %2796 = vmatmul.mubr.f32.gmra.mxu0 %v1820
  %v2797 = vpop.f32.mrf.mxu0
  %v2798 = vadd.f32 %v2413, %v2797
  %v2799 = vpop.f32.mrf.mxu0
  %2800 = vmatprep.mubr.f32.mxu0 %v1830
  %2801 = vmatmul.mubr.f32.gmra.mxu0 %v1829
  %v2802 = vpop.f32.mrf.mxu0
  %v2803 = vadd.f32 %v2418, %v2802
  %v2804 = vpop.f32.mrf.mxu0
  %2805 = vmatprep.mubr.f32.mxu0 %v1839
  %2806 = vmatmul.mubr.f32.gmra.mxu0 %v1838
  %v2807 = vpop.f32.mrf.mxu0
  %v2808 = vadd.f32 %v2423, %v2807
  %v2809 = vpop.f32.mrf.mxu0
  %2810 = vmatprep.mubr.f32.mxu0 %v1848
  %2811 = vmatmul.mubr.f32.gmra.mxu0 %v1847
  %v2812 = vpop.f32.mrf.mxu0
  %v2813 = vadd.f32 %v2428, %v2812
  %v2814 = vpop.f32.mrf.mxu0
  %2815 = vmatprep.mubr.f32.mxu0 %v1857
  %2816 = vmatmul.mubr.f32.gmra.mxu0 %v1856
  %v2817 = vpop.f32.mrf.mxu0
  %v2818 = vadd.f32 %v2433, %v2817
  %v2819 = vpop.f32.mrf.mxu0
  %2820 = vmatprep.mubr.f32.mxu0 %v1866
  %2821 = vmatmul.mubr.f32.gmra.mxu0 %v1865
  %v2822 = vpop.f32.mrf.mxu0
  %v2823 = vadd.f32 %v2438, %v2822
  %v2824 = vpop.f32.mrf.mxu0
  %2825 = vmatprep.mubr.f32.mxu0 %v1875
  %2826 = vmatmul.mubr.f32.gmra.mxu0 %v1874
  %v2827 = vpop.f32.mrf.mxu0
  %v2828 = vadd.f32 %v2443, %v2827
  %v2829 = vpop.f32.mrf.mxu0
  %2830 = vmatprep.mubr.f32.mxu0 %v1884
  %2831 = vmatmul.mubr.f32.gmra.mxu0 %v1883
  %v2832 = vpop.f32.mrf.mxu0
  %v2833 = vadd.f32 %v2448, %v2832
  %v2834 = vpop.f32.mrf.mxu0
  %2835 = vmatprep.mubr.f32.mxu0 %v1893
  %2836 = vmatmul.mubr.f32.gmra.mxu0 %v1892
  %v2837 = vpop.f32.mrf.mxu0
  %v2838 = vadd.f32 %v2453, %v2837
  %v2839 = vpop.f32.mrf.mxu0
  %2840 = vmatprep.mubr.f32.mxu0 %v1902
  %2841 = vmatmul.mubr.f32.gmra.mxu0 %v1901
  %v2842 = vpop.f32.mrf.mxu0
  %v2843 = vadd.f32 %v2458, %v2842
  %v2844 = vpop.f32.mrf.mxu0
  %2845 = vmatprep.mubr.f32.mxu0 %v1911
  %2846 = vmatmul.mubr.f32.gmra.mxu0 %v1910
  %v2847 = vpop.f32.mrf.mxu0
  %v2848 = vadd.f32 %v2463, %v2847
  %v2849 = vpop.f32.mrf.mxu0
  %2850 = vmatprep.mubr.f32.mxu0 %v1920
  %2851 = vmatmul.mubr.f32.gmra.mxu0 %v1919
  %v2852 = vpop.f32.mrf.mxu0
  %v2853 = vadd.f32 %v2468, %v2852
  %v2854 = vpop.f32.mrf.mxu0
  %2855 = vmatprep.mubr.f32.mxu0 %v1929
  %2856 = vmatmul.mubr.f32.gmra.mxu0 %v1928
  %v2857 = vpop.f32.mrf.mxu0
  %v2858 = vadd.f32 %v2473, %v2857
  %v2859 = vpop.f32.mrf.mxu0
  %2860 = vmatprep.mubr.f32.mxu0 %v1938
  %2861 = vmatmul.mubr.f32.gmra.mxu0 %v1937
  %v2862 = vpop.f32.mrf.mxu0
  %v2863 = vadd.f32 %v2478, %v2862
  %v2864 = vpop.f32.mrf.mxu0
  %2865 = vmatprep.mubr.f32.mxu0 %v1947
  %2866 = vmatmul.mubr.f32.gmra.mxu0 %v1946
  %v2867 = vpop.f32.mrf.mxu0
  %v2868 = vadd.f32 %v2483, %v2867
  %v2869 = vpop.f32.mrf.mxu0
  %2870 = vmatprep.mubr.f32.mxu0 %v1956
  %2871 = vmatmul.mubr.f32.gmra.mxu0 %v1955
  %v2872 = vpop.f32.mrf.mxu0
  %v2873 = vadd.f32 %v2488, %v2872
  %v2874 = vpop.f32.mrf.mxu0
  %2875 = vdwg.mxu0
  %2876 = vmatprep.subr.mxu0 0.0
  %2877 = vmatpush1.msra.mxu0 %v2041
  %2878 = vmatprep.subr.mxu0 0.0
  %2879 = vmatpush1.msra.mxu0 %v2040
  %2880 = vmatprep.subr.mxu0 0.0
  %2881 = vmatpush1.msra.mxu0 %v2039
  %2882 = vmatprep.subr.mxu0 0.0
  %2883 = vmatpush1.msra.mxu0 %v2038
  %2884 = vmatprep.subr.mxu0 0.0
  %2885 = vmatpush1.msra.mxu0 %v2037
  %2886 = vmatprep.subr.mxu0 0.0
  %2887 = vmatpush1.msra.mxu0 %v2036
  %2888 = vmatprep.subr.mxu0 0.0
  %2889 = vmatpush1.msra.mxu0 %v2035
  %2890 = vmatprep.subr.mxu0 0.0
  %2891 = vmatpush1.msra.mxu0 %v2034
  %2892 = vmatprep.subr.mxu0 0.0
  %2893 = vmatpush1.msra.mxu0 %v2033
  %2894 = vmatprep.subr.mxu0 0.0
  %2895 = vmatpush1.msra.mxu0 %v2032
  %2896 = vmatprep.subr.mxu0 0.0
  %2897 = vmatpush1.msra.mxu0 %v2031
  %2898 = vmatprep.subr.mxu0 0.0
  %2899 = vmatpush1.msra.mxu0 %v2030
  %2900 = vmatprep.subr.mxu0 0.0
  %2901 = vmatpush1.msra.mxu0 %v2029
  %2902 = vmatprep.subr.mxu0 0.0
  %2903 = vmatpush1.msra.mxu0 %v2028
  %2904 = vmatprep.subr.mxu0 0.0
  %2905 = vmatpush1.msra.mxu0 %v2027
  %2906 = vmatprep.subr.mxu0 0.0
  %2907 = vmatpush1.msra.mxu0 %v2026
  %2908 = vmatprep.subr.mxu0 0.0
  %2909 = vmatpush2.msra.mxu0 %v2057
  %2910 = vmatprep.subr.mxu0 0.0
  %2911 = vmatpush2.msra.mxu0 %v2056
  %2912 = vmatprep.subr.mxu0 0.0
  %2913 = vmatpush2.msra.mxu0 %v2055
  %2914 = vmatprep.subr.mxu0 0.0
  %2915 = vmatpush2.msra.mxu0 %v2054
  %2916 = vmatprep.subr.mxu0 0.0
  %2917 = vmatpush2.msra.mxu0 %v2053
  %2918 = vmatprep.subr.mxu0 0.0
  %2919 = vmatpush2.msra.mxu0 %v2052
  %2920 = vmatprep.subr.mxu0 0.0
  %2921 = vmatpush2.msra.mxu0 %v2051
  %2922 = vmatprep.subr.mxu0 0.0
  %2923 = vmatpush2.msra.mxu0 %v2050
  %2924 = vmatprep.subr.mxu0 0.0
  %2925 = vmatpush2.msra.mxu0 %v2049
  %2926 = vmatprep.subr.mxu0 0.0
  %2927 = vmatpush2.msra.mxu0 %v2048
  %2928 = vmatprep.subr.mxu0 0.0
  %2929 = vmatpush2.msra.mxu0 %v2047
  %2930 = vmatprep.subr.mxu0 0.0
  %2931 = vmatpush2.msra.mxu0 %v2046
  %2932 = vmatprep.subr.mxu0 0.0
  %2933 = vmatpush2.msra.mxu0 %v2045
  %2934 = vmatprep.subr.mxu0 0.0
  %2935 = vmatpush2.msra.mxu0 %v2044
  %2936 = vmatprep.subr.mxu0 0.0
  %2937 = vmatpush2.msra.mxu0 %v2043
  %2938 = vmatprep.subr.mxu0 0.0
  %2939 = vmatpush2.msra.mxu0 %v2042
  %2940 = vmatprep.mubr.f32.mxu0 %v1391
  %2941 = vmatmul.mubr.f32.gmra.mxu0 %v1390
  %v2942 = vpop.f32.mrf.mxu0
  %v2943 = vadd.f32 %v2558, %v2942
  %v2944 = vpop.f32.mrf.mxu0
  %2945 = vmatprep.mubr.f32.mxu0 %v1400
  %2946 = vmatmul.mubr.f32.gmra.mxu0 %v1399
  %v2947 = vpop.f32.mrf.mxu0
  %v2948 = vadd.f32 %v2563, %v2947
  %v2949 = vpop.f32.mrf.mxu0
  %2950 = vmatprep.mubr.f32.mxu0 %v1409
  %2951 = vmatmul.mubr.f32.gmra.mxu0 %v1408
  %v2952 = vpop.f32.mrf.mxu0
  %v2953 = vadd.f32 %v2568, %v2952
  %v2954 = vpop.f32.mrf.mxu0
  %2955 = vmatprep.mubr.f32.mxu0 %v1418
  %2956 = vmatmul.mubr.f32.gmra.mxu0 %v1417
  %v2957 = vpop.f32.mrf.mxu0
  %v2958 = vadd.f32 %v2573, %v2957
  %v2959 = vpop.f32.mrf.mxu0
  %2960 = vmatprep.mubr.f32.mxu0 %v1427
  %2961 = vmatmul.mubr.f32.gmra.mxu0 %v1426
  %v2962 = vpop.f32.mrf.mxu0
  %v2963 = vadd.f32 %v2578, %v2962
  %v2964 = vpop.f32.mrf.mxu0
  %2965 = vmatprep.mubr.f32.mxu0 %v1436
  %2966 = vmatmul.mubr.f32.gmra.mxu0 %v1435
  %v2967 = vpop.f32.mrf.mxu0
  %v2968 = vadd.f32 %v2583, %v2967
  %v2969 = vpop.f32.mrf.mxu0
  %2970 = vmatprep.mubr.f32.mxu0 %v1445
  %2971 = vmatmul.mubr.f32.gmra.mxu0 %v1444
  %v2972 = vpop.f32.mrf.mxu0
  %v2973 = vadd.f32 %v2588, %v2972
  %v2974 = vpop.f32.mrf.mxu0
  %2975 = vmatprep.mubr.f32.mxu0 %v1454
  %2976 = vmatmul.mubr.f32.gmra.mxu0 %v1453
  %v2977 = vpop.f32.mrf.mxu0
  %v2978 = vadd.f32 %v2593, %v2977
  %v2979 = vpop.f32.mrf.mxu0
  %2980 = vmatprep.mubr.f32.mxu0 %v1463
  %2981 = vmatmul.mubr.f32.gmra.mxu0 %v1462
  %v2982 = vpop.f32.mrf.mxu0
  %v2983 = vadd.f32 %v2598, %v2982
  %v2984 = vpop.f32.mrf.mxu0
  %2985 = vmatprep.mubr.f32.mxu0 %v1472
  %2986 = vmatmul.mubr.f32.gmra.mxu0 %v1471
  %v2987 = vpop.f32.mrf.mxu0
  %v2988 = vadd.f32 %v2603, %v2987
  %v2989 = vpop.f32.mrf.mxu0
  %2990 = vmatprep.mubr.f32.mxu0 %v1481
  %2991 = vmatmul.mubr.f32.gmra.mxu0 %v1480
  %v2992 = vpop.f32.mrf.mxu0
  %v2993 = vadd.f32 %v2608, %v2992
  %v2994 = vpop.f32.mrf.mxu0
  %2995 = vmatprep.mubr.f32.mxu0 %v1490
  %2996 = vmatmul.mubr.f32.gmra.mxu0 %v1489
  %v2997 = vpop.f32.mrf.mxu0
  %v2998 = vadd.f32 %v2613, %v2997
  %v2999 = vpop.f32.mrf.mxu0
  %3000 = vmatprep.mubr.f32.mxu0 %v1499
  %3001 = vmatmul.mubr.f32.gmra.mxu0 %v1498
  %v3002 = vpop.f32.mrf.mxu0
  %v3003 = vadd.f32 %v2618, %v3002
  %v3004 = vpop.f32.mrf.mxu0
  %3005 = vmatprep.mubr.f32.mxu0 %v1508
  %3006 = vmatmul.mubr.f32.gmra.mxu0 %v1507
  %v3007 = vpop.f32.mrf.mxu0
  %v3008 = vadd.f32 %v2623, %v3007
  %v3009 = vpop.f32.mrf.mxu0
  %3010 = vmatprep.mubr.f32.mxu0 %v1517
  %3011 = vmatmul.mubr.f32.gmra.mxu0 %v1516
  %v3012 = vpop.f32.mrf.mxu0
  %v3013 = vadd.f32 %v2628, %v3012
  %v3014 = vpop.f32.mrf.mxu0
  %3015 = vmatprep.mubr.f32.mxu0 %v1526
  %3016 = vmatmul.mubr.f32.gmra.mxu0 %v1525
  %v3017 = vpop.f32.mrf.mxu0
  %v3018 = vadd.f32 %v2633, %v3017
  %v3019 = vpop.f32.mrf.mxu0
  %3020 = vmatprep.mubr.f32.mxu0 %v1535
  %3021 = vmatmul.mubr.f32.gmra.mxu0 %v1534
  %v3022 = vpop.f32.mrf.mxu0
  %v3023 = vadd.f32 %v2638, %v3022
  %v3024 = vpop.f32.mrf.mxu0
  %3025 = vmatprep.mubr.f32.mxu0 %v1544
  %3026 = vmatmul.mubr.f32.gmra.mxu0 %v1543
  %v3027 = vpop.f32.mrf.mxu0
  %v3028 = vadd.f32 %v2643, %v3027
  %v3029 = vpop.f32.mrf.mxu0
  %3030 = vmatprep.mubr.f32.mxu0 %v1553
  %3031 = vmatmul.mubr.f32.gmra.mxu0 %v1552
  %v3032 = vpop.f32.mrf.mxu0
  %v3033 = vadd.f32 %v2648, %v3032
  %v3034 = vpop.f32.mrf.mxu0
  %3035 = vmatprep.mubr.f32.mxu0 %v1562
  %3036 = vmatmul.mubr.f32.gmra.mxu0 %v1561
  %v3037 = vpop.f32.mrf.mxu0
  %v3038 = vadd.f32 %v2653, %v3037
  %v3039 = vpop.f32.mrf.mxu0
  %3040 = vmatprep.mubr.f32.mxu0 %v1571
  %3041 = vmatmul.mubr.f32.gmra.mxu0 %v1570
  %v3042 = vpop.f32.mrf.mxu0
  %v3043 = vadd.f32 %v2658, %v3042
  %v3044 = vpop.f32.mrf.mxu0
  %3045 = vmatprep.mubr.f32.mxu0 %v1580
  %3046 = vmatmul.mubr.f32.gmra.mxu0 %v1579
  %v3047 = vpop.f32.mrf.mxu0
  %v3048 = vadd.f32 %v2663, %v3047
  %v3049 = vpop.f32.mrf.mxu0
  %3050 = vmatprep.mubr.f32.mxu0 %v1589
  %3051 = vmatmul.mubr.f32.gmra.mxu0 %v1588
  %v3052 = vpop.f32.mrf.mxu0
  %v3053 = vadd.f32 %v2668, %v3052
  %v3054 = vpop.f32.mrf.mxu0
  %3055 = vmatprep.mubr.f32.mxu0 %v1598
  %3056 = vmatmul.mubr.f32.gmra.mxu0 %v1597
  %v3057 = vpop.f32.mrf.mxu0
  %v3058 = vadd.f32 %v2673, %v3057
  %v3059 = vpop.f32.mrf.mxu0
  %3060 = vmatprep.mubr.f32.mxu0 %v1607
  %3061 = vmatmul.mubr.f32.gmra.mxu0 %v1606
  %v3062 = vpop.f32.mrf.mxu0
  %v3063 = vadd.f32 %v2678, %v3062
  %v3064 = vpop.f32.mrf.mxu0
  %3065 = vmatprep.mubr.f32.mxu0 %v1616
  %3066 = vmatmul.mubr.f32.gmra.mxu0 %v1615
  %v3067 = vpop.f32.mrf.mxu0
  %v3068 = vadd.f32 %v2683, %v3067
  %v3069 = vpop.f32.mrf.mxu0
  %3070 = vmatprep.mubr.f32.mxu0 %v1625
  %3071 = vmatmul.mubr.f32.gmra.mxu0 %v1624
  %v3072 = vpop.f32.mrf.mxu0
  %v3073 = vadd.f32 %v2688, %v3072
  %v3074 = vpop.f32.mrf.mxu0
  %3075 = vmatprep.mubr.f32.mxu0 %v1634
  %3076 = vmatmul.mubr.f32.gmra.mxu0 %v1633
  %v3077 = vpop.f32.mrf.mxu0
  %v3078 = vadd.f32 %v2693, %v3077
  %v3079 = vpop.f32.mrf.mxu0
  %3080 = vmatprep.mubr.f32.mxu0 %v1643
  %3081 = vmatmul.mubr.f32.gmra.mxu0 %v1642
  %v3082 = vpop.f32.mrf.mxu0
  %v3083 = vadd.f32 %v2698, %v3082
  %v3084 = vpop.f32.mrf.mxu0
  %3085 = vmatprep.mubr.f32.mxu0 %v1652
  %3086 = vmatmul.mubr.f32.gmra.mxu0 %v1651
  %v3087 = vpop.f32.mrf.mxu0
  %v3088 = vadd.f32 %v2703, %v3087
  %v3089 = vpop.f32.mrf.mxu0
  %3090 = vmatprep.mubr.f32.mxu0 %v1661
  %3091 = vmatmul.mubr.f32.gmra.mxu0 %v1660
  %v3092 = vpop.f32.mrf.mxu0
  %v3093 = vadd.f32 %v2708, %v3092
  %v3094 = vpop.f32.mrf.mxu0
  %3095 = vmatprep.mubr.f32.mxu0 %v1670
  %3096 = vmatmul.mubr.f32.gmra.mxu0 %v1669
  %v3097 = vpop.f32.mrf.mxu0
  %v3098 = vadd.f32 %v2713, %v3097
  %v3099 = vpop.f32.mrf.mxu0
  %3100 = vmatprep.mubr.f32.mxu0 %v1679
  %3101 = vmatmul.mubr.f32.gmra.mxu0 %v1678
  %v3102 = vpop.f32.mrf.mxu0
  %v3103 = vadd.f32 %v2718, %v3102
  %v3104 = vpop.f32.mrf.mxu0
  %3105 = vmatprep.mubr.f32.mxu0 %v1688
  %3106 = vmatmul.mubr.f32.gmra.mxu0 %v1687
  %v3107 = vpop.f32.mrf.mxu0
  %v3108 = vadd.f32 %v2723, %v3107
  %v3109 = vpop.f32.mrf.mxu0
  %3110 = vmatprep.mubr.f32.mxu0 %v1697
  %3111 = vmatmul.mubr.f32.gmra.mxu0 %v1696
  %v3112 = vpop.f32.mrf.mxu0
  %v3113 = vadd.f32 %v2728, %v3112
  %v3114 = vpop.f32.mrf.mxu0
  %3115 = vmatprep.mubr.f32.mxu0 %v1706
  %3116 = vmatmul.mubr.f32.gmra.mxu0 %v1705
  %v3117 = vpop.f32.mrf.mxu0
  %v3118 = vadd.f32 %v2733, %v3117
  %v3119 = vpop.f32.mrf.mxu0
  %3120 = vmatprep.mubr.f32.mxu0 %v1715
  %3121 = vmatmul.mubr.f32.gmra.mxu0 %v1714
  %v3122 = vpop.f32.mrf.mxu0
  %v3123 = vadd.f32 %v2738, %v3122
  %v3124 = vpop.f32.mrf.mxu0
  %3125 = vmatprep.mubr.f32.mxu0 %v1724
  %3126 = vmatmul.mubr.f32.gmra.mxu0 %v1723
  %v3127 = vpop.f32.mrf.mxu0
  %v3128 = vadd.f32 %v2743, %v3127
  %v3129 = vpop.f32.mrf.mxu0
  %3130 = vmatprep.mubr.f32.mxu0 %v1733
  %3131 = vmatmul.mubr.f32.gmra.mxu0 %v1732
  %v3132 = vpop.f32.mrf.mxu0
  %v3133 = vadd.f32 %v2748, %v3132
  %v3134 = vpop.f32.mrf.mxu0
  %3135 = vmatprep.mubr.f32.mxu0 %v1742
  %3136 = vmatmul.mubr.f32.gmra.mxu0 %v1741
  %v3137 = vpop.f32.mrf.mxu0
  %v3138 = vadd.f32 %v2753, %v3137
  %v3139 = vpop.f32.mrf.mxu0
  %3140 = vmatprep.mubr.f32.mxu0 %v1751
  %3141 = vmatmul.mubr.f32.gmra.mxu0 %v1750
  %v3142 = vpop.f32.mrf.mxu0
  %v3143 = vadd.f32 %v2758, %v3142
  %v3144 = vpop.f32.mrf.mxu0
  %3145 = vmatprep.mubr.f32.mxu0 %v1760
  %3146 = vmatmul.mubr.f32.gmra.mxu0 %v1759
  %v3147 = vpop.f32.mrf.mxu0
  %v3148 = vadd.f32 %v2763, %v3147
  %v3149 = vpop.f32.mrf.mxu0
  %3150 = vmatprep.mubr.f32.mxu0 %v1769
  %3151 = vmatmul.mubr.f32.gmra.mxu0 %v1768
  %v3152 = vpop.f32.mrf.mxu0
  %v3153 = vadd.f32 %v2768, %v3152
  %v3154 = vpop.f32.mrf.mxu0
  %3155 = vmatprep.mubr.f32.mxu0 %v1778
  %3156 = vmatmul.mubr.f32.gmra.mxu0 %v1777
  %v3157 = vpop.f32.mrf.mxu0
  %v3158 = vadd.f32 %v2773, %v3157
  %v3159 = vpop.f32.mrf.mxu0
  %3160 = vmatprep.mubr.f32.mxu0 %v1787
  %3161 = vmatmul.mubr.f32.gmra.mxu0 %v1786
  %v3162 = vpop.f32.mrf.mxu0
  %v3163 = vadd.f32 %v2778, %v3162
  %v3164 = vpop.f32.mrf.mxu0
  %3165 = vmatprep.mubr.f32.mxu0 %v1796
  %3166 = vmatmul.mubr.f32.gmra.mxu0 %v1795
  %v3167 = vpop.f32.mrf.mxu0
  %v3168 = vadd.f32 %v2783, %v3167
  %v3169 = vpop.f32.mrf.mxu0
  %3170 = vmatprep.mubr.f32.mxu0 %v1805
  %3171 = vmatmul.mubr.f32.gmra.mxu0 %v1804
  %v3172 = vpop.f32.mrf.mxu0
  %v3173 = vadd.f32 %v2788, %v3172
  %v3174 = vpop.f32.mrf.mxu0
  %3175 = vmatprep.mubr.f32.mxu0 %v1814
  %3176 = vmatmul.mubr.f32.gmra.mxu0 %v1813
  %v3177 = vpop.f32.mrf.mxu0
  %v3178 = vadd.f32 %v2793, %v3177
  %v3179 = vpop.f32.mrf.mxu0
  %3180 = vmatprep.mubr.f32.mxu0 %v1823
  %3181 = vmatmul.mubr.f32.gmra.mxu0 %v1822
  %v3182 = vpop.f32.mrf.mxu0
  %v3183 = vadd.f32 %v2798, %v3182
  %v3184 = vpop.f32.mrf.mxu0
  %3185 = vmatprep.mubr.f32.mxu0 %v1832
  %3186 = vmatmul.mubr.f32.gmra.mxu0 %v1831
  %v3187 = vpop.f32.mrf.mxu0
  %v3188 = vadd.f32 %v2803, %v3187
  %v3189 = vpop.f32.mrf.mxu0
  %3190 = vmatprep.mubr.f32.mxu0 %v1841
  %3191 = vmatmul.mubr.f32.gmra.mxu0 %v1840
  %v3192 = vpop.f32.mrf.mxu0
  %v3193 = vadd.f32 %v2808, %v3192
  %v3194 = vpop.f32.mrf.mxu0
  %3195 = vmatprep.mubr.f32.mxu0 %v1850
  %3196 = vmatmul.mubr.f32.gmra.mxu0 %v1849
  %v3197 = vpop.f32.mrf.mxu0
  %v3198 = vadd.f32 %v2813, %v3197
  %v3199 = vpop.f32.mrf.mxu0
  %3200 = vmatprep.mubr.f32.mxu0 %v1859
  %3201 = vmatmul.mubr.f32.gmra.mxu0 %v1858
  %v3202 = vpop.f32.mrf.mxu0
  %v3203 = vadd.f32 %v2818, %v3202
  %v3204 = vpop.f32.mrf.mxu0
  %3205 = vmatprep.mubr.f32.mxu0 %v1868
  %3206 = vmatmul.mubr.f32.gmra.mxu0 %v1867
  %v3207 = vpop.f32.mrf.mxu0
  %v3208 = vadd.f32 %v2823, %v3207
  %v3209 = vpop.f32.mrf.mxu0
  %3210 = vmatprep.mubr.f32.mxu0 %v1877
  %3211 = vmatmul.mubr.f32.gmra.mxu0 %v1876
  %v3212 = vpop.f32.mrf.mxu0
  %v3213 = vadd.f32 %v2828, %v3212
  %v3214 = vpop.f32.mrf.mxu0
  %3215 = vmatprep.mubr.f32.mxu0 %v1886
  %3216 = vmatmul.mubr.f32.gmra.mxu0 %v1885
  %v3217 = vpop.f32.mrf.mxu0
  %v3218 = vadd.f32 %v2833, %v3217
  %v3219 = vpop.f32.mrf.mxu0
  %3220 = vmatprep.mubr.f32.mxu0 %v1895
  %3221 = vmatmul.mubr.f32.gmra.mxu0 %v1894
  %v3222 = vpop.f32.mrf.mxu0
  %v3223 = vadd.f32 %v2838, %v3222
  %v3224 = vpop.f32.mrf.mxu0
  %3225 = vmatprep.mubr.f32.mxu0 %v1904
  %3226 = vmatmul.mubr.f32.gmra.mxu0 %v1903
  %v3227 = vpop.f32.mrf.mxu0
  %v3228 = vadd.f32 %v2843, %v3227
  %v3229 = vpop.f32.mrf.mxu0
  %3230 = vmatprep.mubr.f32.mxu0 %v1913
  %3231 = vmatmul.mubr.f32.gmra.mxu0 %v1912
  %v3232 = vpop.f32.mrf.mxu0
  %v3233 = vadd.f32 %v2848, %v3232
  %v3234 = vpop.f32.mrf.mxu0
  %3235 = vmatprep.mubr.f32.mxu0 %v1922
  %3236 = vmatmul.mubr.f32.gmra.mxu0 %v1921
  %v3237 = vpop.f32.mrf.mxu0
  %v3238 = vadd.f32 %v2853, %v3237
  %v3239 = vpop.f32.mrf.mxu0
  %3240 = vmatprep.mubr.f32.mxu0 %v1931
  %3241 = vmatmul.mubr.f32.gmra.mxu0 %v1930
  %v3242 = vpop.f32.mrf.mxu0
  %v3243 = vadd.f32 %v2858, %v3242
  %v3244 = vpop.f32.mrf.mxu0
  %3245 = vmatprep.mubr.f32.mxu0 %v1940
  %3246 = vmatmul.mubr.f32.gmra.mxu0 %v1939
  %v3247 = vpop.f32.mrf.mxu0
  %v3248 = vadd.f32 %v2863, %v3247
  %v3249 = vpop.f32.mrf.mxu0
  %3250 = vmatprep.mubr.f32.mxu0 %v1949
  %3251 = vmatmul.mubr.f32.gmra.mxu0 %v1948
  %v3252 = vpop.f32.mrf.mxu0
  %v3253 = vadd.f32 %v2868, %v3252
  %v3254 = vpop.f32.mrf.mxu0
  %3255 = vmatprep.mubr.f32.mxu0 %v1958
  %3256 = vmatmul.mubr.f32.gmra.mxu0 %v1957
  %v3257 = vpop.f32.mrf.mxu0
  %v3258 = vadd.f32 %v2873, %v3257
  %v3259 = vpop.f32.mrf.mxu0
  %3260 = vdwg.mxu0
  %3261 = vmatprep.subr.mxu0 0.0
  %3262 = vmatpush1.msra.mxu0 %v2073
  %3263 = vmatprep.subr.mxu0 0.0
  %3264 = vmatpush1.msra.mxu0 %v2072
  %3265 = vmatprep.subr.mxu0 0.0
  %3266 = vmatpush1.msra.mxu0 %v2071
  %3267 = vmatprep.subr.mxu0 0.0
  %3268 = vmatpush1.msra.mxu0 %v2070
  %3269 = vmatprep.subr.mxu0 0.0
  %3270 = vmatpush1.msra.mxu0 %v2069
  %3271 = vmatprep.subr.mxu0 0.0
  %3272 = vmatpush1.msra.mxu0 %v2068
  %3273 = vmatprep.subr.mxu0 0.0
  %3274 = vmatpush1.msra.mxu0 %v2067
  %3275 = vmatprep.subr.mxu0 0.0
  %3276 = vmatpush1.msra.mxu0 %v2066
  %3277 = vmatprep.subr.mxu0 0.0
  %3278 = vmatpush1.msra.mxu0 %v2065
  %3279 = vmatprep.subr.mxu0 0.0
  %3280 = vmatpush1.msra.mxu0 %v2064
  %3281 = vmatprep.subr.mxu0 0.0
  %3282 = vmatpush1.msra.mxu0 %v2063
  %3283 = vmatprep.subr.mxu0 0.0
  %3284 = vmatpush1.msra.mxu0 %v2062
  %3285 = vmatprep.subr.mxu0 0.0
  %3286 = vmatpush1.msra.mxu0 %v2061
  %3287 = vmatprep.subr.mxu0 0.0
  %3288 = vmatpush1.msra.mxu0 %v2060
  %3289 = vmatprep.subr.mxu0 0.0
  %3290 = vmatpush1.msra.mxu0 %v2059
  %3291 = vmatprep.subr.mxu0 0.0
  %3292 = vmatpush1.msra.mxu0 %v2058
  %3293 = vmatprep.subr.mxu0 0.0
  %3294 = vmatpush2.msra.mxu0 %v2089
  %3295 = vmatprep.subr.mxu0 0.0
  %3296 = vmatpush2.msra.mxu0 %v2088
  %3297 = vmatprep.subr.mxu0 0.0
  %3298 = vmatpush2.msra.mxu0 %v2087
  %3299 = vmatprep.subr.mxu0 0.0
  %3300 = vmatpush2.msra.mxu0 %v2086
  %3301 = vmatprep.subr.mxu0 0.0
  %3302 = vmatpush2.msra.mxu0 %v2085
  %3303 = vmatprep.subr.mxu0 0.0
  %3304 = vmatpush2.msra.mxu0 %v2084
  %3305 = vmatprep.subr.mxu0 0.0
  %3306 = vmatpush2.msra.mxu0 %v2083
  %3307 = vmatprep.subr.mxu0 0.0
  %3308 = vmatpush2.msra.mxu0 %v2082
  %3309 = vmatprep.subr.mxu0 0.0
  %3310 = vmatpush2.msra.mxu0 %v2081
  %3311 = vmatprep.subr.mxu0 0.0
  %3312 = vmatpush2.msra.mxu0 %v2080
  %3313 = vmatprep.subr.mxu0 0.0
  %3314 = vmatpush2.msra.mxu0 %v2079
  %3315 = vmatprep.subr.mxu0 0.0
  %3316 = vmatpush2.msra.mxu0 %v2078
  %3317 = vmatprep.subr.mxu0 0.0
  %3318 = vmatpush2.msra.mxu0 %v2077
  %3319 = vmatprep.subr.mxu0 0.0
  %3320 = vmatpush2.msra.mxu0 %v2076
  %3321 = vmatprep.subr.mxu0 0.0
  %3322 = vmatpush2.msra.mxu0 %v2075
  %3323 = vmatprep.subr.mxu0 0.0
  %3324 = vmatpush2.msra.mxu0 %v2074
  %3325 = vmatprep.mubr.f32.mxu0 %v1393
  %3326 = vmatmul.mubr.f32.gmra.mxu0 %v1392
  %v3327 = vpop.f32.mrf.mxu0
  %v3328 = vadd.f32 %v2943, %v3327
  %v3329 = vpop.f32.mrf.mxu0
  %3330 = vmatprep.mubr.f32.mxu0 %v1402
  %3331 = vmatmul.mubr.f32.gmra.mxu0 %v1401
  %v3332 = vpop.f32.mrf.mxu0
  %v3333 = vadd.f32 %v2948, %v3332
  %v3334 = vpop.f32.mrf.mxu0
  %3335 = vmatprep.mubr.f32.mxu0 %v1411
  %3336 = vmatmul.mubr.f32.gmra.mxu0 %v1410
  %v3337 = vpop.f32.mrf.mxu0
  %v3338 = vadd.f32 %v2953, %v3337
  %v3339 = vpop.f32.mrf.mxu0
  %3340 = vmatprep.mubr.f32.mxu0 %v1420
  %3341 = vmatmul.mubr.f32.gmra.mxu0 %v1419
  %v3342 = vpop.f32.mrf.mxu0
  %v3343 = vadd.f32 %v2958, %v3342
  %v3344 = vpop.f32.mrf.mxu0
  %3345 = vmatprep.mubr.f32.mxu0 %v1429
  %3346 = vmatmul.mubr.f32.gmra.mxu0 %v1428
  %v3347 = vpop.f32.mrf.mxu0
  %v3348 = vadd.f32 %v2963, %v3347
  %v3349 = vpop.f32.mrf.mxu0
  %3350 = vmatprep.mubr.f32.mxu0 %v1438
  %3351 = vmatmul.mubr.f32.gmra.mxu0 %v1437
  %v3352 = vpop.f32.mrf.mxu0
  %v3353 = vadd.f32 %v2968, %v3352
  %v3354 = vpop.f32.mrf.mxu0
  %3355 = vmatprep.mubr.f32.mxu0 %v1447
  %3356 = vmatmul.mubr.f32.gmra.mxu0 %v1446
  %v3357 = vpop.f32.mrf.mxu0
  %v3358 = vadd.f32 %v2973, %v3357
  %v3359 = vpop.f32.mrf.mxu0
  %3360 = vmatprep.mubr.f32.mxu0 %v1456
  %3361 = vmatmul.mubr.f32.gmra.mxu0 %v1455
  %v3362 = vpop.f32.mrf.mxu0
  %v3363 = vadd.f32 %v2978, %v3362
  %v3364 = vpop.f32.mrf.mxu0
  %3365 = vmatprep.mubr.f32.mxu0 %v1465
  %3366 = vmatmul.mubr.f32.gmra.mxu0 %v1464
  %v3367 = vpop.f32.mrf.mxu0
  %v3368 = vadd.f32 %v2983, %v3367
  %v3369 = vpop.f32.mrf.mxu0
  %3370 = vmatprep.mubr.f32.mxu0 %v1474
  %3371 = vmatmul.mubr.f32.gmra.mxu0 %v1473
  %v3372 = vpop.f32.mrf.mxu0
  %v3373 = vadd.f32 %v2988, %v3372
  %v3374 = vpop.f32.mrf.mxu0
  %3375 = vmatprep.mubr.f32.mxu0 %v1483
  %3376 = vmatmul.mubr.f32.gmra.mxu0 %v1482
  %v3377 = vpop.f32.mrf.mxu0
  %v3378 = vadd.f32 %v2993, %v3377
  %v3379 = vpop.f32.mrf.mxu0
  %3380 = vmatprep.mubr.f32.mxu0 %v1492
  %3381 = vmatmul.mubr.f32.gmra.mxu0 %v1491
  %v3382 = vpop.f32.mrf.mxu0
  %v3383 = vadd.f32 %v2998, %v3382
  %v3384 = vpop.f32.mrf.mxu0
  %3385 = vmatprep.mubr.f32.mxu0 %v1501
  %3386 = vmatmul.mubr.f32.gmra.mxu0 %v1500
  %v3387 = vpop.f32.mrf.mxu0
  %v3388 = vadd.f32 %v3003, %v3387
  %v3389 = vpop.f32.mrf.mxu0
  %3390 = vmatprep.mubr.f32.mxu0 %v1510
  %3391 = vmatmul.mubr.f32.gmra.mxu0 %v1509
  %v3392 = vpop.f32.mrf.mxu0
  %v3393 = vadd.f32 %v3008, %v3392
  %v3394 = vpop.f32.mrf.mxu0
  %3395 = vmatprep.mubr.f32.mxu0 %v1519
  %3396 = vmatmul.mubr.f32.gmra.mxu0 %v1518
  %v3397 = vpop.f32.mrf.mxu0
  %v3398 = vadd.f32 %v3013, %v3397
  %v3399 = vpop.f32.mrf.mxu0
  %3400 = vmatprep.mubr.f32.mxu0 %v1528
  %3401 = vmatmul.mubr.f32.gmra.mxu0 %v1527
  %v3402 = vpop.f32.mrf.mxu0
  %v3403 = vadd.f32 %v3018, %v3402
  %v3404 = vpop.f32.mrf.mxu0
  %3405 = vmatprep.mubr.f32.mxu0 %v1537
  %3406 = vmatmul.mubr.f32.gmra.mxu0 %v1536
  %v3407 = vpop.f32.mrf.mxu0
  %v3408 = vadd.f32 %v3023, %v3407
  %v3409 = vpop.f32.mrf.mxu0
  %3410 = vmatprep.mubr.f32.mxu0 %v1546
  %3411 = vmatmul.mubr.f32.gmra.mxu0 %v1545
  %v3412 = vpop.f32.mrf.mxu0
  %v3413 = vadd.f32 %v3028, %v3412
  %v3414 = vpop.f32.mrf.mxu0
  %3415 = vmatprep.mubr.f32.mxu0 %v1555
  %3416 = vmatmul.mubr.f32.gmra.mxu0 %v1554
  %v3417 = vpop.f32.mrf.mxu0
  %v3418 = vadd.f32 %v3033, %v3417
  %v3419 = vpop.f32.mrf.mxu0
  %3420 = vmatprep.mubr.f32.mxu0 %v1564
  %3421 = vmatmul.mubr.f32.gmra.mxu0 %v1563
  %v3422 = vpop.f32.mrf.mxu0
  %v3423 = vadd.f32 %v3038, %v3422
  %v3424 = vpop.f32.mrf.mxu0
  %3425 = vmatprep.mubr.f32.mxu0 %v1573
  %3426 = vmatmul.mubr.f32.gmra.mxu0 %v1572
  %v3427 = vpop.f32.mrf.mxu0
  %v3428 = vadd.f32 %v3043, %v3427
  %v3429 = vpop.f32.mrf.mxu0
  %3430 = vmatprep.mubr.f32.mxu0 %v1582
  %3431 = vmatmul.mubr.f32.gmra.mxu0 %v1581
  %v3432 = vpop.f32.mrf.mxu0
  %v3433 = vadd.f32 %v3048, %v3432
  %v3434 = vpop.f32.mrf.mxu0
  %3435 = vmatprep.mubr.f32.mxu0 %v1591
  %3436 = vmatmul.mubr.f32.gmra.mxu0 %v1590
  %v3437 = vpop.f32.mrf.mxu0
  %v3438 = vadd.f32 %v3053, %v3437
  %v3439 = vpop.f32.mrf.mxu0
  %3440 = vmatprep.mubr.f32.mxu0 %v1600
  %3441 = vmatmul.mubr.f32.gmra.mxu0 %v1599
  %v3442 = vpop.f32.mrf.mxu0
  %v3443 = vadd.f32 %v3058, %v3442
  %v3444 = vpop.f32.mrf.mxu0
  %3445 = vmatprep.mubr.f32.mxu0 %v1609
  %3446 = vmatmul.mubr.f32.gmra.mxu0 %v1608
  %v3447 = vpop.f32.mrf.mxu0
  %v3448 = vadd.f32 %v3063, %v3447
  %v3449 = vpop.f32.mrf.mxu0
  %3450 = vmatprep.mubr.f32.mxu0 %v1618
  %3451 = vmatmul.mubr.f32.gmra.mxu0 %v1617
  %v3452 = vpop.f32.mrf.mxu0
  %v3453 = vadd.f32 %v3068, %v3452
  %v3454 = vpop.f32.mrf.mxu0
  %3455 = vmatprep.mubr.f32.mxu0 %v1627
  %3456 = vmatmul.mubr.f32.gmra.mxu0 %v1626
  %v3457 = vpop.f32.mrf.mxu0
  %v3458 = vadd.f32 %v3073, %v3457
  %v3459 = vpop.f32.mrf.mxu0
  %3460 = vmatprep.mubr.f32.mxu0 %v1636
  %3461 = vmatmul.mubr.f32.gmra.mxu0 %v1635
  %v3462 = vpop.f32.mrf.mxu0
  %v3463 = vadd.f32 %v3078, %v3462
  %v3464 = vpop.f32.mrf.mxu0
  %3465 = vmatprep.mubr.f32.mxu0 %v1645
  %3466 = vmatmul.mubr.f32.gmra.mxu0 %v1644
  %v3467 = vpop.f32.mrf.mxu0
  %v3468 = vadd.f32 %v3083, %v3467
  %v3469 = vpop.f32.mrf.mxu0
  %3470 = vmatprep.mubr.f32.mxu0 %v1654
  %3471 = vmatmul.mubr.f32.gmra.mxu0 %v1653
  %v3472 = vpop.f32.mrf.mxu0
  %v3473 = vadd.f32 %v3088, %v3472
  %v3474 = vpop.f32.mrf.mxu0
  %3475 = vmatprep.mubr.f32.mxu0 %v1663
  %3476 = vmatmul.mubr.f32.gmra.mxu0 %v1662
  %v3477 = vpop.f32.mrf.mxu0
  %v3478 = vadd.f32 %v3093, %v3477
  %v3479 = vpop.f32.mrf.mxu0
  %3480 = vmatprep.mubr.f32.mxu0 %v1672
  %3481 = vmatmul.mubr.f32.gmra.mxu0 %v1671
  %v3482 = vpop.f32.mrf.mxu0
  %v3483 = vadd.f32 %v3098, %v3482
  %v3484 = vpop.f32.mrf.mxu0
  %3485 = vmatprep.mubr.f32.mxu0 %v1681
  %3486 = vmatmul.mubr.f32.gmra.mxu0 %v1680
  %v3487 = vpop.f32.mrf.mxu0
  %v3488 = vadd.f32 %v3103, %v3487
  %v3489 = vpop.f32.mrf.mxu0
  %3490 = vmatprep.mubr.f32.mxu0 %v1690
  %3491 = vmatmul.mubr.f32.gmra.mxu0 %v1689
  %v3492 = vpop.f32.mrf.mxu0
  %v3493 = vadd.f32 %v3108, %v3492
  %v3494 = vpop.f32.mrf.mxu0
  %3495 = vmatprep.mubr.f32.mxu0 %v1699
  %3496 = vmatmul.mubr.f32.gmra.mxu0 %v1698
  %v3497 = vpop.f32.mrf.mxu0
  %v3498 = vadd.f32 %v3113, %v3497
  %v3499 = vpop.f32.mrf.mxu0
  %3500 = vmatprep.mubr.f32.mxu0 %v1708
  %3501 = vmatmul.mubr.f32.gmra.mxu0 %v1707
  %v3502 = vpop.f32.mrf.mxu0
  %v3503 = vadd.f32 %v3118, %v3502
  %v3504 = vpop.f32.mrf.mxu0
  %3505 = vmatprep.mubr.f32.mxu0 %v1717
  %3506 = vmatmul.mubr.f32.gmra.mxu0 %v1716
  %v3507 = vpop.f32.mrf.mxu0
  %v3508 = vadd.f32 %v3123, %v3507
  %v3509 = vpop.f32.mrf.mxu0
  %3510 = vmatprep.mubr.f32.mxu0 %v1726
  %3511 = vmatmul.mubr.f32.gmra.mxu0 %v1725
  %v3512 = vpop.f32.mrf.mxu0
  %v3513 = vadd.f32 %v3128, %v3512
  %v3514 = vpop.f32.mrf.mxu0
  %3515 = vmatprep.mubr.f32.mxu0 %v1735
  %3516 = vmatmul.mubr.f32.gmra.mxu0 %v1734
  %v3517 = vpop.f32.mrf.mxu0
  %v3518 = vadd.f32 %v3133, %v3517
  %v3519 = vpop.f32.mrf.mxu0
  %3520 = vmatprep.mubr.f32.mxu0 %v1744
  %3521 = vmatmul.mubr.f32.gmra.mxu0 %v1743
  %v3522 = vpop.f32.mrf.mxu0
  %v3523 = vadd.f32 %v3138, %v3522
  %v3524 = vpop.f32.mrf.mxu0
  %3525 = vmatprep.mubr.f32.mxu0 %v1753
  %3526 = vmatmul.mubr.f32.gmra.mxu0 %v1752
  %v3527 = vpop.f32.mrf.mxu0
  %v3528 = vadd.f32 %v3143, %v3527
  %v3529 = vpop.f32.mrf.mxu0
  %3530 = vmatprep.mubr.f32.mxu0 %v1762
  %3531 = vmatmul.mubr.f32.gmra.mxu0 %v1761
  %v3532 = vpop.f32.mrf.mxu0
  %v3533 = vadd.f32 %v3148, %v3532
  %v3534 = vpop.f32.mrf.mxu0
  %3535 = vmatprep.mubr.f32.mxu0 %v1771
  %3536 = vmatmul.mubr.f32.gmra.mxu0 %v1770
  %v3537 = vpop.f32.mrf.mxu0
  %v3538 = vadd.f32 %v3153, %v3537
  %v3539 = vpop.f32.mrf.mxu0
  %3540 = vmatprep.mubr.f32.mxu0 %v1780
  %3541 = vmatmul.mubr.f32.gmra.mxu0 %v1779
  %v3542 = vpop.f32.mrf.mxu0
  %v3543 = vadd.f32 %v3158, %v3542
  %v3544 = vpop.f32.mrf.mxu0
  %3545 = vmatprep.mubr.f32.mxu0 %v1789
  %3546 = vmatmul.mubr.f32.gmra.mxu0 %v1788
  %v3547 = vpop.f32.mrf.mxu0
  %v3548 = vadd.f32 %v3163, %v3547
  %v3549 = vpop.f32.mrf.mxu0
  %3550 = vmatprep.mubr.f32.mxu0 %v1798
  %3551 = vmatmul.mubr.f32.gmra.mxu0 %v1797
  %v3552 = vpop.f32.mrf.mxu0
  %v3553 = vadd.f32 %v3168, %v3552
  %v3554 = vpop.f32.mrf.mxu0
  %3555 = vmatprep.mubr.f32.mxu0 %v1807
  %3556 = vmatmul.mubr.f32.gmra.mxu0 %v1806
  %v3557 = vpop.f32.mrf.mxu0
  %v3558 = vadd.f32 %v3173, %v3557
  %v3559 = vpop.f32.mrf.mxu0
  %3560 = vmatprep.mubr.f32.mxu0 %v1816
  %3561 = vmatmul.mubr.f32.gmra.mxu0 %v1815
  %v3562 = vpop.f32.mrf.mxu0
  %v3563 = vadd.f32 %v3178, %v3562
  %v3564 = vpop.f32.mrf.mxu0
  %3565 = vmatprep.mubr.f32.mxu0 %v1825
  %3566 = vmatmul.mubr.f32.gmra.mxu0 %v1824
  %v3567 = vpop.f32.mrf.mxu0
  %v3568 = vadd.f32 %v3183, %v3567
  %v3569 = vpop.f32.mrf.mxu0
  %3570 = vmatprep.mubr.f32.mxu0 %v1834
  %3571 = vmatmul.mubr.f32.gmra.mxu0 %v1833
  %v3572 = vpop.f32.mrf.mxu0
  %v3573 = vadd.f32 %v3188, %v3572
  %v3574 = vpop.f32.mrf.mxu0
  %3575 = vmatprep.mubr.f32.mxu0 %v1843
  %3576 = vmatmul.mubr.f32.gmra.mxu0 %v1842
  %v3577 = vpop.f32.mrf.mxu0
  %v3578 = vadd.f32 %v3193, %v3577
  %v3579 = vpop.f32.mrf.mxu0
  %3580 = vmatprep.mubr.f32.mxu0 %v1852
  %3581 = vmatmul.mubr.f32.gmra.mxu0 %v1851
  %v3582 = vpop.f32.mrf.mxu0
  %v3583 = vadd.f32 %v3198, %v3582
  %v3584 = vpop.f32.mrf.mxu0
  %3585 = vmatprep.mubr.f32.mxu0 %v1861
  %3586 = vmatmul.mubr.f32.gmra.mxu0 %v1860
  %v3587 = vpop.f32.mrf.mxu0
  %v3588 = vadd.f32 %v3203, %v3587
  %v3589 = vpop.f32.mrf.mxu0
  %3590 = vmatprep.mubr.f32.mxu0 %v1870
  %3591 = vmatmul.mubr.f32.gmra.mxu0 %v1869
  %v3592 = vpop.f32.mrf.mxu0
  %v3593 = vadd.f32 %v3208, %v3592
  %v3594 = vpop.f32.mrf.mxu0
  %3595 = vmatprep.mubr.f32.mxu0 %v1879
  %3596 = vmatmul.mubr.f32.gmra.mxu0 %v1878
  %v3597 = vpop.f32.mrf.mxu0
  %v3598 = vadd.f32 %v3213, %v3597
  %v3599 = vpop.f32.mrf.mxu0
  %3600 = vmatprep.mubr.f32.mxu0 %v1888
  %3601 = vmatmul.mubr.f32.gmra.mxu0 %v1887
  %v3602 = vpop.f32.mrf.mxu0
  %v3603 = vadd.f32 %v3218, %v3602
  %v3604 = vpop.f32.mrf.mxu0
  %3605 = vmatprep.mubr.f32.mxu0 %v1897
  %3606 = vmatmul.mubr.f32.gmra.mxu0 %v1896
  %v3607 = vpop.f32.mrf.mxu0
  %v3608 = vadd.f32 %v3223, %v3607
  %v3609 = vpop.f32.mrf.mxu0
  %3610 = vmatprep.mubr.f32.mxu0 %v1906
  %3611 = vmatmul.mubr.f32.gmra.mxu0 %v1905
  %v3612 = vpop.f32.mrf.mxu0
  %v3613 = vadd.f32 %v3228, %v3612
  %v3614 = vpop.f32.mrf.mxu0
  %3615 = vmatprep.mubr.f32.mxu0 %v1915
  %3616 = vmatmul.mubr.f32.gmra.mxu0 %v1914
  %v3617 = vpop.f32.mrf.mxu0
  %v3618 = vadd.f32 %v3233, %v3617
  %v3619 = vpop.f32.mrf.mxu0
  %3620 = vmatprep.mubr.f32.mxu0 %v1924
  %3621 = vmatmul.mubr.f32.gmra.mxu0 %v1923
  %v3622 = vpop.f32.mrf.mxu0
  %v3623 = vadd.f32 %v3238, %v3622
  %v3624 = vpop.f32.mrf.mxu0
  %3625 = vmatprep.mubr.f32.mxu0 %v1933
  %3626 = vmatmul.mubr.f32.gmra.mxu0 %v1932
  %v3627 = vpop.f32.mrf.mxu0
  %v3628 = vadd.f32 %v3243, %v3627
  %v3629 = vpop.f32.mrf.mxu0
  %3630 = vmatprep.mubr.f32.mxu0 %v1942
  %3631 = vmatmul.mubr.f32.gmra.mxu0 %v1941
  %v3632 = vpop.f32.mrf.mxu0
  %v3633 = vadd.f32 %v3248, %v3632
  %v3634 = vpop.f32.mrf.mxu0
  %3635 = vmatprep.mubr.f32.mxu0 %v1951
  %3636 = vmatmul.mubr.f32.gmra.mxu0 %v1950
  %v3637 = vpop.f32.mrf.mxu0
  %v3638 = vadd.f32 %v3253, %v3637
  %v3639 = vpop.f32.mrf.mxu0
  %3640 = vmatprep.mubr.f32.mxu0 %v1960
  %3641 = vmatmul.mubr.f32.gmra.mxu0 %v1959
  %v3642 = vpop.f32.mrf.mxu0
  %v3643 = vadd.f32 %v3258, %v3642
  %v3644 = vpop.f32.mrf.mxu0
  %3645 = vdwg.mxu0
  %3646 = vmatprep.subr.mxu0 0.0
  %3647 = vmatpush1.msra.mxu0 %v2105
  %3648 = vmatprep.subr.mxu0 0.0
  %3649 = vmatpush1.msra.mxu0 %v2104
  %3650 = vmatprep.subr.mxu0 0.0
  %3651 = vmatpush1.msra.mxu0 %v2103
  %3652 = vmatprep.subr.mxu0 0.0
  %3653 = vmatpush1.msra.mxu0 %v2102
  %3654 = vmatprep.subr.mxu0 0.0
  %3655 = vmatpush1.msra.mxu0 %v2101
  %3656 = vmatprep.subr.mxu0 0.0
  %3657 = vmatpush1.msra.mxu0 %v2100
  %3658 = vmatprep.subr.mxu0 0.0
  %3659 = vmatpush1.msra.mxu0 %v2099
  %3660 = vmatprep.subr.mxu0 0.0
  %3661 = vmatpush1.msra.mxu0 %v2098
  %3662 = vmatprep.subr.mxu0 0.0
  %3663 = vmatpush1.msra.mxu0 %v2097
  %3664 = vmatprep.subr.mxu0 0.0
  %3665 = vmatpush1.msra.mxu0 %v2096
  %3666 = vmatprep.subr.mxu0 0.0
  %3667 = vmatpush1.msra.mxu0 %v2095
  %3668 = vmatprep.subr.mxu0 0.0
  %3669 = vmatpush1.msra.mxu0 %v2094
  %3670 = vmatprep.subr.mxu0 0.0
  %3671 = vmatpush1.msra.mxu0 %v2093
  %3672 = vmatprep.subr.mxu0 0.0
  %3673 = vmatpush1.msra.mxu0 %v2092
  %3674 = vmatprep.subr.mxu0 0.0
  %3675 = vmatpush1.msra.mxu0 %v2091
  %3676 = vmatprep.subr.mxu0 0.0
  %3677 = vmatpush1.msra.mxu0 %v2090
  %3678 = vmatprep.subr.mxu0 0.0
  %3679 = vmatpush2.msra.mxu0 0.0
  %3680 = vmatprep.subr.mxu0 0.0
  %3681 = vmatpush2.msra.mxu0 0.0
  %3682 = vmatprep.subr.mxu0 0.0
  %3683 = vmatpush2.msra.mxu0 0.0
  %3684 = vmatprep.subr.mxu0 0.0
  %3685 = vmatpush2.msra.mxu0 0.0
  %3686 = vmatprep.subr.mxu0 0.0
  %3687 = vmatpush2.msra.mxu0 0.0
  %3688 = vmatprep.subr.mxu0 0.0
  %3689 = vmatpush2.msra.mxu0 0.0
  %3690 = vmatprep.subr.mxu0 0.0
  %3691 = vmatpush2.msra.mxu0 0.0
  %3692 = vmatprep.subr.mxu0 0.0
  %3693 = vmatpush2.msra.mxu0 0.0
  %3694 = vmatprep.subr.mxu0 0.0
  %3695 = vmatpush2.msra.mxu0 0.0
  %3696 = vmatprep.subr.mxu0 0.0
  %3697 = vmatpush2.msra.mxu0 0.0
  %3698 = vmatprep.subr.mxu0 0.0
  %3699 = vmatpush2.msra.mxu0 0.0
  %3700 = vmatprep.subr.mxu0 0.0
  %3701 = vmatpush2.msra.mxu0 0.0
  %3702 = vmatprep.subr.mxu0 0.0
  %3703 = vmatpush2.msra.mxu0 0.0
  %3704 = vmatprep.subr.mxu0 0.0
  %3705 = vmatpush2.msra.mxu0 0.0
  %3706 = vmatprep.subr.mxu0 0.0
  %3707 = vmatpush2.msra.mxu0 0.0
  %3708 = vmatprep.subr.mxu0 0.0
  %3709 = vmatpush2.msra.mxu0 0.0
  %3710 = vmatprep.mubr.f32.mxu0 0.0
  %3711 = vmatmul.mubr.f32.gmra.mxu0 %v1394
  %v3712 = vpop.f32.mrf.mxu0
  %v3713 = vadd.f32 %v3328, %v3712
  %v3714 = vpop.f32.mrf.mxu0
  %3715 = vmatprep.mubr.f32.mxu0 0.0
  %3716 = vmatmul.mubr.f32.gmra.mxu0 %v1403
  %v3717 = vpop.f32.mrf.mxu0
  %v3718 = vadd.f32 %v3333, %v3717
  %v3719 = vpop.f32.mrf.mxu0
  %3720 = vmatprep.mubr.f32.mxu0 0.0
  %3721 = vmatmul.mubr.f32.gmra.mxu0 %v1412
  %v3722 = vpop.f32.mrf.mxu0
  %v3723 = vadd.f32 %v3338, %v3722
  %v3724 = vpop.f32.mrf.mxu0
  %3725 = vmatprep.mubr.f32.mxu0 0.0
  %3726 = vmatmul.mubr.f32.gmra.mxu0 %v1421
  %v3727 = vpop.f32.mrf.mxu0
  %v3728 = vadd.f32 %v3343, %v3727
  %v3729 = vpop.f32.mrf.mxu0
  %3730 = vmatprep.mubr.f32.mxu0 0.0
  %3731 = vmatmul.mubr.f32.gmra.mxu0 %v1430
  %v3732 = vpop.f32.mrf.mxu0
  %v3733 = vadd.f32 %v3348, %v3732
  %v3734 = vpop.f32.mrf.mxu0
  %3735 = vmatprep.mubr.f32.mxu0 0.0
  %3736 = vmatmul.mubr.f32.gmra.mxu0 %v1439
  %v3737 = vpop.f32.mrf.mxu0
  %v3738 = vadd.f32 %v3353, %v3737
  %v3739 = vpop.f32.mrf.mxu0
  %3740 = vmatprep.mubr.f32.mxu0 0.0
  %3741 = vmatmul.mubr.f32.gmra.mxu0 %v1448
  %v3742 = vpop.f32.mrf.mxu0
  %v3743 = vadd.f32 %v3358, %v3742
  %v3744 = vpop.f32.mrf.mxu0
  %3745 = vmatprep.mubr.f32.mxu0 0.0
  %3746 = vmatmul.mubr.f32.gmra.mxu0 %v1457
  %v3747 = vpop.f32.mrf.mxu0
  %v3748 = vadd.f32 %v3363, %v3747
  %v3749 = vpop.f32.mrf.mxu0
  %3750 = vmatprep.mubr.f32.mxu0 0.0
  %3751 = vmatmul.mubr.f32.gmra.mxu0 %v1466
  %v3752 = vpop.f32.mrf.mxu0
  %v3753 = vadd.f32 %v3368, %v3752
  %v3754 = vpop.f32.mrf.mxu0
  %3755 = vmatprep.mubr.f32.mxu0 0.0
  %3756 = vmatmul.mubr.f32.gmra.mxu0 %v1475
  %v3757 = vpop.f32.mrf.mxu0
  %v3758 = vadd.f32 %v3373, %v3757
  %v3759 = vpop.f32.mrf.mxu0
  %3760 = vmatprep.mubr.f32.mxu0 0.0
  %3761 = vmatmul.mubr.f32.gmra.mxu0 %v1484
  %v3762 = vpop.f32.mrf.mxu0
  %v3763 = vadd.f32 %v3378, %v3762
  %v3764 = vpop.f32.mrf.mxu0
  %3765 = vmatprep.mubr.f32.mxu0 0.0
  %3766 = vmatmul.mubr.f32.gmra.mxu0 %v1493
  %v3767 = vpop.f32.mrf.mxu0
  %v3768 = vadd.f32 %v3383, %v3767
  %v3769 = vpop.f32.mrf.mxu0
  %3770 = vmatprep.mubr.f32.mxu0 0.0
  %3771 = vmatmul.mubr.f32.gmra.mxu0 %v1502
  %v3772 = vpop.f32.mrf.mxu0
  %v3773 = vadd.f32 %v3388, %v3772
  %v3774 = vpop.f32.mrf.mxu0
  %3775 = vmatprep.mubr.f32.mxu0 0.0
  %3776 = vmatmul.mubr.f32.gmra.mxu0 %v1511
  %v3777 = vpop.f32.mrf.mxu0
  %v3778 = vadd.f32 %v3393, %v3777
  %v3779 = vpop.f32.mrf.mxu0
  %3780 = vmatprep.mubr.f32.mxu0 0.0
  %3781 = vmatmul.mubr.f32.gmra.mxu0 %v1520
  %v3782 = vpop.f32.mrf.mxu0
  %v3783 = vadd.f32 %v3398, %v3782
  %v3784 = vpop.f32.mrf.mxu0
  %3785 = vmatprep.mubr.f32.mxu0 0.0
  %3786 = vmatmul.mubr.f32.gmra.mxu0 %v1529
  %v3787 = vpop.f32.mrf.mxu0
  %v3788 = vadd.f32 %v3403, %v3787
  %v3789 = vpop.f32.mrf.mxu0
  %3790 = vmatprep.mubr.f32.mxu0 0.0
  %3791 = vmatmul.mubr.f32.gmra.mxu0 %v1538
  %v3792 = vpop.f32.mrf.mxu0
  %v3793 = vadd.f32 %v3408, %v3792
  %v3794 = vpop.f32.mrf.mxu0
  %3795 = vmatprep.mubr.f32.mxu0 0.0
  %3796 = vmatmul.mubr.f32.gmra.mxu0 %v1547
  %v3797 = vpop.f32.mrf.mxu0
  %v3798 = vadd.f32 %v3413, %v3797
  %v3799 = vpop.f32.mrf.mxu0
  %3800 = vmatprep.mubr.f32.mxu0 0.0
  %3801 = vmatmul.mubr.f32.gmra.mxu0 %v1556
  %v3802 = vpop.f32.mrf.mxu0
  %v3803 = vadd.f32 %v3418, %v3802
  %v3804 = vpop.f32.mrf.mxu0
  %3805 = vmatprep.mubr.f32.mxu0 0.0
  %3806 = vmatmul.mubr.f32.gmra.mxu0 %v1565
  %v3807 = vpop.f32.mrf.mxu0
  %v3808 = vadd.f32 %v3423, %v3807
  %v3809 = vpop.f32.mrf.mxu0
  %3810 = vmatprep.mubr.f32.mxu0 0.0
  %3811 = vmatmul.mubr.f32.gmra.mxu0 %v1574
  %v3812 = vpop.f32.mrf.mxu0
  %v3813 = vadd.f32 %v3428, %v3812
  %v3814 = vpop.f32.mrf.mxu0
  %3815 = vmatprep.mubr.f32.mxu0 0.0
  %3816 = vmatmul.mubr.f32.gmra.mxu0 %v1583
  %v3817 = vpop.f32.mrf.mxu0
  %v3818 = vadd.f32 %v3433, %v3817
  %v3819 = vpop.f32.mrf.mxu0
  %3820 = vmatprep.mubr.f32.mxu0 0.0
  %3821 = vmatmul.mubr.f32.gmra.mxu0 %v1592
  %v3822 = vpop.f32.mrf.mxu0
  %v3823 = vadd.f32 %v3438, %v3822
  %v3824 = vpop.f32.mrf.mxu0
  %3825 = vmatprep.mubr.f32.mxu0 0.0
  %3826 = vmatmul.mubr.f32.gmra.mxu0 %v1601
  %v3827 = vpop.f32.mrf.mxu0
  %v3828 = vadd.f32 %v3443, %v3827
  %v3829 = vpop.f32.mrf.mxu0
  %3830 = vmatprep.mubr.f32.mxu0 0.0
  %3831 = vmatmul.mubr.f32.gmra.mxu0 %v1610
  %v3832 = vpop.f32.mrf.mxu0
  %v3833 = vadd.f32 %v3448, %v3832
  %v3834 = vpop.f32.mrf.mxu0
  %3835 = vmatprep.mubr.f32.mxu0 0.0
  %3836 = vmatmul.mubr.f32.gmra.mxu0 %v1619
  %v3837 = vpop.f32.mrf.mxu0
  %v3838 = vadd.f32 %v3453, %v3837
  %v3839 = vpop.f32.mrf.mxu0
  %3840 = vmatprep.mubr.f32.mxu0 0.0
  %3841 = vmatmul.mubr.f32.gmra.mxu0 %v1628
  %v3842 = vpop.f32.mrf.mxu0
  %v3843 = vadd.f32 %v3458, %v3842
  %v3844 = vpop.f32.mrf.mxu0
  %3845 = vmatprep.mubr.f32.mxu0 0.0
  %3846 = vmatmul.mubr.f32.gmra.mxu0 %v1637
  %v3847 = vpop.f32.mrf.mxu0
  %v3848 = vadd.f32 %v3463, %v3847
  %v3849 = vpop.f32.mrf.mxu0
  %3850 = vmatprep.mubr.f32.mxu0 0.0
  %3851 = vmatmul.mubr.f32.gmra.mxu0 %v1646
  %v3852 = vpop.f32.mrf.mxu0
  %v3853 = vadd.f32 %v3468, %v3852
  %v3854 = vpop.f32.mrf.mxu0
  %3855 = vmatprep.mubr.f32.mxu0 0.0
  %3856 = vmatmul.mubr.f32.gmra.mxu0 %v1655
  %v3857 = vpop.f32.mrf.mxu0
  %v3858 = vadd.f32 %v3473, %v3857
  %v3859 = vpop.f32.mrf.mxu0
  %3860 = vmatprep.mubr.f32.mxu0 0.0
  %3861 = vmatmul.mubr.f32.gmra.mxu0 %v1664
  %v3862 = vpop.f32.mrf.mxu0
  %v3863 = vadd.f32 %v3478, %v3862
  %v3864 = vpop.f32.mrf.mxu0
  %3865 = vmatprep.mubr.f32.mxu0 0.0
  %3866 = vmatmul.mubr.f32.gmra.mxu0 %v1673
  %v3867 = vpop.f32.mrf.mxu0
  %v3868 = vadd.f32 %v3483, %v3867
  %v3869 = vpop.f32.mrf.mxu0
  %3870 = vmatprep.mubr.f32.mxu0 0.0
  %3871 = vmatmul.mubr.f32.gmra.mxu0 %v1682
  %v3872 = vpop.f32.mrf.mxu0
  %v3873 = vadd.f32 %v3488, %v3872
  %v3874 = vpop.f32.mrf.mxu0
  %3875 = vmatprep.mubr.f32.mxu0 0.0
  %3876 = vmatmul.mubr.f32.gmra.mxu0 %v1691
  %v3877 = vpop.f32.mrf.mxu0
  %v3878 = vadd.f32 %v3493, %v3877
  %v3879 = vpop.f32.mrf.mxu0
  %3880 = vmatprep.mubr.f32.mxu0 0.0
  %3881 = vmatmul.mubr.f32.gmra.mxu0 %v1700
  %v3882 = vpop.f32.mrf.mxu0
  %v3883 = vadd.f32 %v3498, %v3882
  %v3884 = vpop.f32.mrf.mxu0
  %3885 = vmatprep.mubr.f32.mxu0 0.0
  %3886 = vmatmul.mubr.f32.gmra.mxu0 %v1709
  %v3887 = vpop.f32.mrf.mxu0
  %v3888 = vadd.f32 %v3503, %v3887
  %v3889 = vpop.f32.mrf.mxu0
  %3890 = vmatprep.mubr.f32.mxu0 0.0
  %3891 = vmatmul.mubr.f32.gmra.mxu0 %v1718
  %v3892 = vpop.f32.mrf.mxu0
  %v3893 = vadd.f32 %v3508, %v3892
  %v3894 = vpop.f32.mrf.mxu0
  %3895 = vmatprep.mubr.f32.mxu0 0.0
  %3896 = vmatmul.mubr.f32.gmra.mxu0 %v1727
  %v3897 = vpop.f32.mrf.mxu0
  %v3898 = vadd.f32 %v3513, %v3897
  %v3899 = vpop.f32.mrf.mxu0
  %3900 = vmatprep.mubr.f32.mxu0 0.0
  %3901 = vmatmul.mubr.f32.gmra.mxu0 %v1736
  %v3902 = vpop.f32.mrf.mxu0
  %v3903 = vadd.f32 %v3518, %v3902
  %v3904 = vpop.f32.mrf.mxu0
  %3905 = vmatprep.mubr.f32.mxu0 0.0
  %3906 = vmatmul.mubr.f32.gmra.mxu0 %v1745
  %v3907 = vpop.f32.mrf.mxu0
  %v3908 = vadd.f32 %v3523, %v3907
  %v3909 = vpop.f32.mrf.mxu0
  %3910 = vmatprep.mubr.f32.mxu0 0.0
  %3911 = vmatmul.mubr.f32.gmra.mxu0 %v1754
  %v3912 = vpop.f32.mrf.mxu0
  %v3913 = vadd.f32 %v3528, %v3912
  %v3914 = vpop.f32.mrf.mxu0
  %3915 = vmatprep.mubr.f32.mxu0 0.0
  %3916 = vmatmul.mubr.f32.gmra.mxu0 %v1763
  %v3917 = vpop.f32.mrf.mxu0
  %v3918 = vadd.f32 %v3533, %v3917
  %v3919 = vpop.f32.mrf.mxu0
  %3920 = vmatprep.mubr.f32.mxu0 0.0
  %3921 = vmatmul.mubr.f32.gmra.mxu0 %v1772
  %v3922 = vpop.f32.mrf.mxu0
  %v3923 = vadd.f32 %v3538, %v3922
  %v3924 = vpop.f32.mrf.mxu0
  %3925 = vmatprep.mubr.f32.mxu0 0.0
  %3926 = vmatmul.mubr.f32.gmra.mxu0 %v1781
  %v3927 = vpop.f32.mrf.mxu0
  %v3928 = vadd.f32 %v3543, %v3927
  %v3929 = vpop.f32.mrf.mxu0
  %3930 = vmatprep.mubr.f32.mxu0 0.0
  %3931 = vmatmul.mubr.f32.gmra.mxu0 %v1790
  %v3932 = vpop.f32.mrf.mxu0
  %v3933 = vadd.f32 %v3548, %v3932
  %v3934 = vpop.f32.mrf.mxu0
  %3935 = vmatprep.mubr.f32.mxu0 0.0
  %3936 = vmatmul.mubr.f32.gmra.mxu0 %v1799
  %v3937 = vpop.f32.mrf.mxu0
  %v3938 = vadd.f32 %v3553, %v3937
  %v3939 = vpop.f32.mrf.mxu0
  %3940 = vmatprep.mubr.f32.mxu0 0.0
  %3941 = vmatmul.mubr.f32.gmra.mxu0 %v1808
  %v3942 = vpop.f32.mrf.mxu0
  %v3943 = vadd.f32 %v3558, %v3942
  %v3944 = vpop.f32.mrf.mxu0
  %3945 = vmatprep.mubr.f32.mxu0 0.0
  %3946 = vmatmul.mubr.f32.gmra.mxu0 %v1817
  %v3947 = vpop.f32.mrf.mxu0
  %v3948 = vadd.f32 %v3563, %v3947
  %v3949 = vpop.f32.mrf.mxu0
  %3950 = vmatprep.mubr.f32.mxu0 0.0
  %3951 = vmatmul.mubr.f32.gmra.mxu0 %v1826
  %v3952 = vpop.f32.mrf.mxu0
  %v3953 = vadd.f32 %v3568, %v3952
  %v3954 = vpop.f32.mrf.mxu0
  %3955 = vmatprep.mubr.f32.mxu0 0.0
  %3956 = vmatmul.mubr.f32.gmra.mxu0 %v1835
  %v3957 = vpop.f32.mrf.mxu0
  %v3958 = vadd.f32 %v3573, %v3957
  %v3959 = vpop.f32.mrf.mxu0
  %3960 = vmatprep.mubr.f32.mxu0 0.0
  %3961 = vmatmul.mubr.f32.gmra.mxu0 %v1844
  %v3962 = vpop.f32.mrf.mxu0
  %v3963 = vadd.f32 %v3578, %v3962
  %v3964 = vpop.f32.mrf.mxu0
  %3965 = vmatprep.mubr.f32.mxu0 0.0
  %3966 = vmatmul.mubr.f32.gmra.mxu0 %v1853
  %v3967 = vpop.f32.mrf.mxu0
  %v3968 = vadd.f32 %v3583, %v3967
  %v3969 = vpop.f32.mrf.mxu0
  %3970 = vmatprep.mubr.f32.mxu0 0.0
  %3971 = vmatmul.mubr.f32.gmra.mxu0 %v1862
  %v3972 = vpop.f32.mrf.mxu0
  %v3973 = vadd.f32 %v3588, %v3972
  %v3974 = vpop.f32.mrf.mxu0
  %3975 = vmatprep.mubr.f32.mxu0 0.0
  %3976 = vmatmul.mubr.f32.gmra.mxu0 %v1871
  %v3977 = vpop.f32.mrf.mxu0
  %v3978 = vadd.f32 %v3593, %v3977
  %v3979 = vpop.f32.mrf.mxu0
  %3980 = vmatprep.mubr.f32.mxu0 0.0
  %3981 = vmatmul.mubr.f32.gmra.mxu0 %v1880
  %v3982 = vpop.f32.mrf.mxu0
  %v3983 = vadd.f32 %v3598, %v3982
  %v3984 = vpop.f32.mrf.mxu0
  %3985 = vmatprep.mubr.f32.mxu0 0.0
  %3986 = vmatmul.mubr.f32.gmra.mxu0 %v1889
  %v3987 = vpop.f32.mrf.mxu0
  %v3988 = vadd.f32 %v3603, %v3987
  %v3989 = vpop.f32.mrf.mxu0
  %3990 = vmatprep.mubr.f32.mxu0 0.0
  %3991 = vmatmul.mubr.f32.gmra.mxu0 %v1898
  %v3992 = vpop.f32.mrf.mxu0
  %v3993 = vadd.f32 %v3608, %v3992
  %v3994 = vpop.f32.mrf.mxu0
  %3995 = vmatprep.mubr.f32.mxu0 0.0
  %3996 = vmatmul.mubr.f32.gmra.mxu0 %v1907
  %v3997 = vpop.f32.mrf.mxu0
  %v3998 = vadd.f32 %v3613, %v3997
  %v3999 = vpop.f32.mrf.mxu0
  %4000 = vmatprep.mubr.f32.mxu0 0.0
  %4001 = vmatmul.mubr.f32.gmra.mxu0 %v1916
  %v4002 = vpop.f32.mrf.mxu0
  %v4003 = vadd.f32 %v3618, %v4002
  %v4004 = vpop.f32.mrf.mxu0
  %4005 = vmatprep.mubr.f32.mxu0 0.0
  %4006 = vmatmul.mubr.f32.gmra.mxu0 %v1925
  %v4007 = vpop.f32.mrf.mxu0
  %v4008 = vadd.f32 %v3623, %v4007
  %v4009 = vpop.f32.mrf.mxu0
  %4010 = vmatprep.mubr.f32.mxu0 0.0
  %4011 = vmatmul.mubr.f32.gmra.mxu0 %v1934
  %v4012 = vpop.f32.mrf.mxu0
  %v4013 = vadd.f32 %v3628, %v4012
  %v4014 = vpop.f32.mrf.mxu0
  %4015 = vmatprep.mubr.f32.mxu0 0.0
  %4016 = vmatmul.mubr.f32.gmra.mxu0 %v1943
  %v4017 = vpop.f32.mrf.mxu0
  %v4018 = vadd.f32 %v3633, %v4017
  %v4019 = vpop.f32.mrf.mxu0
  %4020 = vmatprep.mubr.f32.mxu0 0.0
  %4021 = vmatmul.mubr.f32.gmra.mxu0 %v1952
  %v4022 = vpop.f32.mrf.mxu0
  %v4023 = vadd.f32 %v3638, %v4022
  %v4024 = vpop.f32.mrf.mxu0
  %4025 = vmatprep.mubr.f32.mxu0 0.0
  %4026 = vmatmul.mubr.f32.gmra.mxu0 %v1961
  %v4027 = vpop.f32.mrf.mxu0
  %v4028 = vadd.f32 %v3643, %v4027
  %v4029 = vpop.f32.mrf.mxu0
  %4030 = vdwg.mxu0
  %4031 = vst [vmem:[%s4] sm:$0xff] %v3713
  %4032 = vst [vmem:[%s4 + $0x8] sm:$0xff] %v3718
  %4033 = vst [vmem:[%s4 + $0x10] sm:$0xff] %v3723
  %4034 = vst [vmem:[%s4 + $0x18] sm:$0xff] %v3728
  %4035 = vst [vmem:[%s4 + $0x20] sm:$0xff] %v3733
  %4036 = vst [vmem:[%s4 + $0x28] sm:$0xff] %v3738
  %4037 = vst [vmem:[%s4 + $0x30] sm:$0xff] %v3743
  %4038 = vst [vmem:[%s4 + $0x38] sm:$0xff] %v3748
  %4039 = vst [vmem:[%s4 + $0x40] sm:$0xff] %v3753
  %4040 = vst [vmem:[%s4 + $0x48] sm:$0xff] %v3758
  %4041 = vst [vmem:[%s4 + $0x50] sm:$0xff] %v3763
  %4042 = vst [vmem:[%s4 + $0x58] sm:$0xff] %v3768
  %4043 = vst [vmem:[%s4 + $0x60] sm:$0xff] %v3773
  %4044 = vst [vmem:[%s4 + $0x68] sm:$0xff] %v3778
  %4045 = vst [vmem:[%s4 + $0x70] sm:$0xff] %v3783
  %4046 = vst [vmem:[%s4 + $0x78] sm:$0xff] %v3788
  %4047 = vst [vmem:[%s4 + $0x80] sm:$0xff] %v3793
  %4048 = vst [vmem:[%s4 + $0x88] sm:$0xff] %v3798
  %4049 = vst [vmem:[%s4 + $0x90] sm:$0xff] %v3803
  %4050 = vst [vmem:[%s4 + $0x98] sm:$0xff] %v3808
  %4051 = vst [vmem:[%s4 + $0xa0] sm:$0xff] %v3813
  %4052 = vst [vmem:[%s4 + $0xa8] sm:$0xff] %v3818
  %4053 = vst [vmem:[%s4 + $0xb0] sm:$0xff] %v3823
  %4054 = vst [vmem:[%s4 + $0xb8] sm:$0xff] %v3828
  %4055 = vst [vmem:[%s4 + $0xc0] sm:$0xff] %v3833
  %4056 = vst [vmem:[%s4 + $0xc8] sm:$0xff] %v3838
  %4057 = vst [vmem:[%s4 + $0xd0] sm:$0xff] %v3843
  %4058 = vst [vmem:[%s4 + $0xd8] sm:$0xff] %v3848
  %4059 = vst [vmem:[%s4 + $0xe0] sm:$0xff] %v3853
  %4060 = vst [vmem:[%s4 + $0xe8] sm:$0xff] %v3858
  %4061 = vst [vmem:[%s4 + $0xf0] sm:$0xff] %v3863
  %4062 = vst [vmem:[%s4 + $0xf8] sm:$0xff] %v3868
  %4063 = vst [vmem:[%s4 + $0x100] sm:$0xff] %v3873
  %4064 = vst [vmem:[%s4 + $0x108] sm:$0xff] %v3878
  %4065 = vst [vmem:[%s4 + $0x110] sm:$0xff] %v3883
  %4066 = vst [vmem:[%s4 + $0x118] sm:$0xff] %v3888
  %4067 = vst [vmem:[%s4 + $0x120] sm:$0xff] %v3893
  %4068 = vst [vmem:[%s4 + $0x128] sm:$0xff] %v3898
  %4069 = vst [vmem:[%s4 + $0x130] sm:$0xff] %v3903
  %4070 = vst [vmem:[%s4 + $0x138] sm:$0xff] %v3908
  %4071 = vst [vmem:[%s4 + $0x140] sm:$0xff] %v3913
  %4072 = vst [vmem:[%s4 + $0x148] sm:$0xff] %v3918
  %4073 = vst [vmem:[%s4 + $0x150] sm:$0xff] %v3923
  %4074 = vst [vmem:[%s4 + $0x158] sm:$0xff] %v3928
  %4075 = vst [vmem:[%s4 + $0x160] sm:$0xff] %v3933
  %4076 = vst [vmem:[%s4 + $0x168] sm:$0xff] %v3938
  %4077 = vst [vmem:[%s4 + $0x170] sm:$0xff] %v3943
  %4078 = vst [vmem:[%s4 + $0x178] sm:$0xff] %v3948
  %4079 = vst [vmem:[%s4 + $0x180] sm:$0xff] %v3953
  %4080 = vst [vmem:[%s4 + $0x188] sm:$0xff] %v3958
  %4081 = vst [vmem:[%s4 + $0x190] sm:$0xff] %v3963
  %4082 = vst [vmem:[%s4 + $0x198] sm:$0xff] %v3968
  %4083 = vst [vmem:[%s4 + $0x1a0] sm:$0xff] %v3973
  %4084 = vst [vmem:[%s4 + $0x1a8] sm:$0xff] %v3978
  %4085 = vst [vmem:[%s4 + $0x1b0] sm:$0xff] %v3983
  %4086 = vst [vmem:[%s4 + $0x1b8] sm:$0xff] %v3988
  %4087 = vst [vmem:[%s4 + $0x1c0] sm:$0xff] %v3993
  %4088 = vst [vmem:[%s4 + $0x1c8] sm:$0xff] %v3998
  %4089 = vst [vmem:[%s4 + $0x1d0] sm:$0xff] %v4003
  %4090 = vst [vmem:[%s4 + $0x1d8] sm:$0xff] %v4008
  %4091 = vst [vmem:[%s4 + $0x1e0] sm:$0xff] %v4013
  %4092 = vst [vmem:[%s4 + $0x1e8] sm:$0xff] %v4018
  %4093 = vst [vmem:[%s4 + $0x1f0] sm:$0xff] %v4023
  %4094 = vst [vmem:[%s4 + $0x1f8] sm:$0xff] %v4028
  %v4095 = vadd.f32 %v3713, %v3718
  %v4096 = vadd.f32 %v4095, %v3723
  %v4097 = vadd.f32 %v4096, %v3728
  %v4098 = vadd.f32 %v4097, %v3733
  %v4099 = vadd.f32 %v4098, %v3738
  %v4100 = vadd.f32 %v4099, %v3743
  %v4101 = vadd.f32 %v4100, %v3748
  %v4102 = vadd.f32 %v4101, %v3753
  %v4103 = vadd.f32 %v4102, %v3758
  %v4104 = vadd.f32 %v4103, %v3763
  %v4105 = vadd.f32 %v4104, %v3768
  %v4106 = vadd.f32 %v4105, %v3773
  %v4107 = vadd.f32 %v4106, %v3778
  %v4108 = vadd.f32 %v4107, %v3783
  %v4109 = vadd.f32 %v4108, %v3788
  %v4110 = vadd.f32 %v4109, %v3793
  %v4111 = vadd.f32 %v4110, %v3798
  %v4112 = vadd.f32 %v4111, %v3803
  %v4113 = vadd.f32 %v4112, %v3808
  %v4114 = vadd.f32 %v4113, %v3813
  %v4115 = vadd.f32 %v4114, %v3818
  %v4116 = vadd.f32 %v4115, %v3823
  %v4117 = vadd.f32 %v4116, %v3828
  %v4118 = vadd.f32 %v4117, %v3833
  %v4119 = vadd.f32 %v4118, %v3838
  %v4120 = vadd.f32 %v4119, %v3843
  %v4121 = vadd.f32 %v4120, %v3848
  %v4122 = vadd.f32 %v4121, %v3853
  %v4123 = vadd.f32 %v4122, %v3858
  %v4124 = vadd.f32 %v4123, %v3863
  %v4125 = vadd.f32 %v4124, %v3868
  %v4126 = vadd.f32 %v4125, %v3873
  %v4127 = vadd.f32 %v4126, %v3878
  %v4128 = vadd.f32 %v4127, %v3883
  %v4129 = vadd.f32 %v4128, %v3888
  %v4130 = vadd.f32 %v4129, %v3893
  %v4131 = vadd.f32 %v4130, %v3898
  %v4132 = vadd.f32 %v4131, %v3903
  %v4133 = vadd.f32 %v4132, %v3908
  %v4134 = vadd.f32 %v4133, %v3913
  %v4135 = vadd.f32 %v4134, %v3918
  %v4136 = vadd.f32 %v4135, %v3923
  %v4137 = vadd.f32 %v4136, %v3928
  %v4138 = vadd.f32 %v4137, %v3933
  %v4139 = vadd.f32 %v4138, %v3938
  %v4140 = vadd.f32 %v4139, %v3943
  %v4141 = vadd.f32 %v4140, %v3948
  %v4142 = vadd.f32 %v4141, %v3953
  %v4143 = vadd.f32 %v4142, %v3958
  %v4144 = vadd.f32 %v4143, %v3963
  %v4145 = vadd.f32 %v4144, %v3968
  %v4146 = vadd.f32 %v4145, %v3973
  %v4147 = vadd.f32 %v4146, %v3978
  %v4148 = vadd.f32 %v4147, %v3983
  %v4149 = vadd.f32 %v4148, %v3988
  %v4150 = vadd.f32 %v4149, %v3993
  %v4151 = vadd.f32 %v4150, %v3998
  %v4152 = vadd.f32 %v4151, %v4003
  %v4153 = vadd.f32 %v4152, %v4008
  %v4154 = vadd.f32 %v4153, %v4013
  %v4155 = vadd.f32 %v4154, %v4018
  %v4156 = vadd.f32 %v4155, %v4023
  %v4157 = vadd.f32 %v4156, %v4028
  %v4158 = vrot.slane %v4157, 4
  %v4159 = vadd.f32 %v4157, %v4158
  %v4160 = vrot.slane %v4159, 2
  %v4161 = vadd.f32 %v4159, %v4160
  %v4162 = vrot.slane %v4161, 1
  %v4163 = vadd.f32 %v4161, %v4162
  %v4164 = vmul.f32 %v3713, %v3713
  %v4165 = vmul.f32 %v3718, %v3718
  %v4166 = vmul.f32 %v3723, %v3723
  %v4167 = vmul.f32 %v3728, %v3728
  %v4168 = vmul.f32 %v3733, %v3733
  %v4169 = vmul.f32 %v3738, %v3738
  %v4170 = vmul.f32 %v3743, %v3743
  %v4171 = vmul.f32 %v3748, %v3748
  %v4172 = vmul.f32 %v3753, %v3753
  %v4173 = vmul.f32 %v3758, %v3758
  %v4174 = vmul.f32 %v3763, %v3763
  %v4175 = vmul.f32 %v3768, %v3768
  %v4176 = vmul.f32 %v3773, %v3773
  %v4177 = vmul.f32 %v3778, %v3778
  %v4178 = vmul.f32 %v3783, %v3783
  %v4179 = vmul.f32 %v3788, %v3788
  %v4180 = vmul.f32 %v3793, %v3793
  %v4181 = vmul.f32 %v3798, %v3798
  %v4182 = vmul.f32 %v3803, %v3803
  %v4183 = vmul.f32 %v3808, %v3808
  %v4184 = vmul.f32 %v3813, %v3813
  %v4185 = vmul.f32 %v3818, %v3818
  %v4186 = vmul.f32 %v3823, %v3823
  %v4187 = vmul.f32 %v3828, %v3828
  %v4188 = vmul.f32 %v3833, %v3833
  %v4189 = vmul.f32 %v3838, %v3838
  %v4190 = vmul.f32 %v3843, %v3843
  %v4191 = vmul.f32 %v3848, %v3848
  %v4192 = vmul.f32 %v3853, %v3853
  %v4193 = vmul.f32 %v3858, %v3858
  %v4194 = vmul.f32 %v3863, %v3863
  %v4195 = vmul.f32 %v3868, %v3868
  %v4196 = vmul.f32 %v3873, %v3873
  %v4197 = vmul.f32 %v3878, %v3878
  %v4198 = vmul.f32 %v3883, %v3883
  %v4199 = vmul.f32 %v3888, %v3888
  %v4200 = vmul.f32 %v3893, %v3893
  %v4201 = vmul.f32 %v3898, %v3898
  %v4202 = vmul.f32 %v3903, %v3903
  %v4203 = vmul.f32 %v3908, %v3908
  %v4204 = vmul.f32 %v3913, %v3913
  %v4205 = vmul.f32 %v3918, %v3918
  %v4206 = vmul.f32 %v3923, %v3923
  %v4207 = vmul.f32 %v3928, %v3928
  %v4208 = vmul.f32 %v3933, %v3933
  %v4209 = vmul.f32 %v3938, %v3938
  %v4210 = vmul.f32 %v3943, %v3943
  %v4211 = vmul.f32 %v3948, %v3948
  %v4212 = vmul.f32 %v3953, %v3953
  %v4213 = vmul.f32 %v3958, %v3958
  %v4214 = vmul.f32 %v3963, %v3963
  %v4215 = vmul.f32 %v3968, %v3968
  %v4216 = vmul.f32 %v3973, %v3973
  %v4217 = vmul.f32 %v3978, %v3978
  %v4218 = vmul.f32 %v3983, %v3983
  %v4219 = vmul.f32 %v3988, %v3988
  %v4220 = vmul.f32 %v3993, %v3993
  %v4221 = vmul.f32 %v3998, %v3998
  %v4222 = vmul.f32 %v4003, %v4003
  %v4223 = vmul.f32 %v4008, %v4008
  %v4224 = vmul.f32 %v4013, %v4013
  %v4225 = vmul.f32 %v4018, %v4018
  %v4226 = vmul.f32 %v4023, %v4023
  %v4227 = vmul.f32 %v4028, %v4028
  %v4228 = vadd.f32 %v4164, %v4165
  %v4229 = vadd.f32 %v4228, %v4166
  %v4230 = vadd.f32 %v4229, %v4167
  %v4231 = vadd.f32 %v4230, %v4168
  %v4232 = vadd.f32 %v4231, %v4169
  %v4233 = vadd.f32 %v4232, %v4170
  %v4234 = vadd.f32 %v4233, %v4171
  %v4235 = vadd.f32 %v4234, %v4172
  %v4236 = vadd.f32 %v4235, %v4173
  %v4237 = vadd.f32 %v4236, %v4174
  %v4238 = vadd.f32 %v4237, %v4175
  %v4239 = vadd.f32 %v4238, %v4176
  %v4240 = vadd.f32 %v4239, %v4177
  %v4241 = vadd.f32 %v4240, %v4178
  %v4242 = vadd.f32 %v4241, %v4179
  %v4243 = vadd.f32 %v4242, %v4180
  %v4244 = vadd.f32 %v4243, %v4181
  %v4245 = vadd.f32 %v4244, %v4182
  %v4246 = vadd.f32 %v4245, %v4183
  %v4247 = vadd.f32 %v4246, %v4184
  %v4248 = vadd.f32 %v4247, %v4185
  %v4249 = vadd.f32 %v4248, %v4186
  %v4250 = vadd.f32 %v4249, %v4187
  %v4251 = vadd.f32 %v4250, %v4188
  %v4252 = vadd.f32 %v4251, %v4189
  %v4253 = vadd.f32 %v4252, %v4190
  %v4254 = vadd.f32 %v4253, %v4191
  %v4255 = vadd.f32 %v4254, %v4192
  %v4256 = vadd.f32 %v4255, %v4193
  %v4257 = vadd.f32 %v4256, %v4194
  %v4258 = vadd.f32 %v4257, %v4195
  %v4259 = vadd.f32 %v4258, %v4196
  %v4260 = vadd.f32 %v4259, %v4197
  %v4261 = vadd.f32 %v4260, %v4198
  %v4262 = vadd.f32 %v4261, %v4199
  %v4263 = vadd.f32 %v4262, %v4200
  %v4264 = vadd.f32 %v4263, %v4201
  %v4265 = vadd.f32 %v4264, %v4202
  %v4266 = vadd.f32 %v4265, %v4203
  %v4267 = vadd.f32 %v4266, %v4204
  %v4268 = vadd.f32 %v4267, %v4205
  %v4269 = vadd.f32 %v4268, %v4206
  %v4270 = vadd.f32 %v4269, %v4207
  %v4271 = vadd.f32 %v4270, %v4208
  %v4272 = vadd.f32 %v4271, %v4209
  %v4273 = vadd.f32 %v4272, %v4210
  %v4274 = vadd.f32 %v4273, %v4211
  %v4275 = vadd.f32 %v4274, %v4212
  %v4276 = vadd.f32 %v4275, %v4213
  %v4277 = vadd.f32 %v4276, %v4214
  %v4278 = vadd.f32 %v4277, %v4215
  %v4279 = vadd.f32 %v4278, %v4216
  %v4280 = vadd.f32 %v4279, %v4217
  %v4281 = vadd.f32 %v4280, %v4218
  %v4282 = vadd.f32 %v4281, %v4219
  %v4283 = vadd.f32 %v4282, %v4220
  %v4284 = vadd.f32 %v4283, %v4221
  %v4285 = vadd.f32 %v4284, %v4222
  %v4286 = vadd.f32 %v4285, %v4223
  %v4287 = vadd.f32 %v4286, %v4224
  %v4288 = vadd.f32 %v4287, %v4225
  %v4289 = vadd.f32 %v4288, %v4226
  %v4290 = vadd.f32 %v4289, %v4227
  %v4291 = vrot.slane %v4290, 4
  %v4292 = vadd.f32 %v4290, %v4291
  %v4293 = vrot.slane %v4292, 2
  %v4294 = vadd.f32 %v4292, %v4293
  %v4295 = vrot.slane %v4294, 1
  %v4296 = vadd.f32 %v4294, %v4295
  %vm4297 = vcmask 1040384
  %v4298 = vsel %vm4297, %v4163, %v4296
  %4299 = vst [vmem:[%s5] sm:$0x3] %v4298
  // Predicated region
  $region18: #{basic_block_forward.3} parent=0 // pred_check
    _
  $region19: #{basic_block_forward.3} parent=0 // pred_check_branch
    %4301 = sbr.rel (0) target = $region21
  $region20: #{basic_block_forward.3} parent=0 // pred_region
    _
  $region21: #{basic_block_forward.3} parent=0 // pred_fallthru
    _
  // Predicated region
  $region22: #{basic_block_forward.3} parent=0 // pred_check
    _
  $region23: #{basic_block_forward.3} parent=0 // pred_check_branch
    %4303 = sbr.rel (0) target = $region25
  $region24: #{basic_block_forward.3} parent=0 // pred_region
    _
  $region25: #{basic_block_forward.3} parent=0 // pred_fallthru
    _
  // Predicated region
  $region26: #{basic_block_forward.3} parent=0 // pred_check
    _
  $region27: #{basic_block_forward.3} parent=0 // pred_check_branch
    %4305 = sbr.rel (0) target = $region29
  $region28: #{basic_block_forward.3} parent=0 // pred_region
    _
  $region29: #{basic_block_forward.3} parent=0 // pred_fallthru
    _
  // Predicated region
  $region30: #{basic_block_forward.3} parent=0 // pred_check
    _
  $region31: #{basic_block_forward.3} parent=0 // pred_check_branch
    %4307 = sbr.rel (0) target = $region33
  $region32: #{basic_block_forward.3} parent=0 // pred_region
    _
  $region33: #{basic_block_forward.3} parent=0 // pred_fallthru
    _

// kernel: basic_block_forward.4
$region0: #{basic_block_forward.4}
  #allocation0 [shape = 'u32[]', space=smem, size = 0x4, offset = 0x4, fixed_abs, tag = 'smem constant byte address 0x4 - core index']
  #allocation1 [shape = 'u32[144,128]{1,0:T(1,128)}', space=vmem, size = 0x12000, scoped, tag = 'internal scratch']
  #allocation2 [shape = 'f32[2,18,18,128]{3,2,1,0:T(8,128)}', space=vmem, size = 0x6c000, scoped, tag = 'scratch operand']
  #allocation3 [shape = 'f32[512,1152]{1,0:T(8,128)}', space=vmem, size = 0x240000, scoped, tag = 'scratch operand']
  %s0 = inlined_call_operand.vmem [shape: f32[2,16,16,128], index: 0, kind: input, shape index: {}]
  %s1 = inlined_call_operand.vmem [shape: f32[1,128], index: 1, kind: input, shape index: {}]
  %s2 = inlined_call_operand.vmem [shape: f32[1,128], index: 2, kind: input, shape index: {}]
  %s3 = inlined_call_operand.vmem [shape: f32[1152,128], index: 3, kind: input, shape index: {}]
  %s4 = inlined_call_operand.vmem [shape: f32[2,16,16,128], index: 4, kind: output, shape index: {0}]
  %s5 = inlined_call_operand.vmem [shape: f32[1,2,128], index: 5, kind: output, shape index: {1}]
  %6 = xla_tuple %s4, %s5
  %s7 = sld [smem:[#allocation0]]
  $region34: #{basic_block_forward.4} parent=0
    _
  %s9 = ssub.s32 1, %s7
  %s10 = scalar_select 0, %s9, %s7
  // Predicated region
  $region2: #{basic_block_forward.4} parent=0 // pred_check
    _
  $region3: #{basic_block_forward.4} parent=0 // pred_check_branch
    %12 = sbr.rel (0) target = $region5
  $region4: #{basic_block_forward.4} parent=0 // pred_region
    _
  $region5: #{basic_block_forward.4} parent=0 // pred_fallthru
    _
  // Predicated region
  $region6: #{basic_block_forward.4} parent=0 // pred_check
    _
  $region7: #{basic_block_forward.4} parent=0 // pred_check_branch
    %14 = sbr.rel (0) target = $region9
  $region8: #{basic_block_forward.4} parent=0 // pred_region
    _
  $region9: #{basic_block_forward.4} parent=0 // pred_fallthru
    _
  // Predicated region
  $region10: #{basic_block_forward.4} parent=0 // pred_check
    _
  $region11: #{basic_block_forward.4} parent=0 // pred_check_branch
    %16 = sbr.rel (0) target = $region13
  $region12: #{basic_block_forward.4} parent=0 // pred_region
    _
  $region13: #{basic_block_forward.4} parent=0 // pred_fallthru
    _
  // Predicated region
  $region14: #{basic_block_forward.4} parent=0 // pred_check
    _
  $region15: #{basic_block_forward.4} parent=0 // pred_check_branch
    %18 = sbr.rel (0) target = $region17
  $region16: #{basic_block_forward.4} parent=0 // pred_region
    _
  $region17: #{basic_block_forward.4} parent=0 // pred_fallthru
    _
  %v19 = vld [vmem:[%s0] sm:$0xff]
  %v20 = vld [vmem:[%s0 + $0x8] sm:$0xff]
  %v21 = vld [vmem:[%s0 + $0x10] sm:$0xff]
  %v22 = vld [vmem:[%s0 + $0x18] sm:$0xff]
  %v23 = vld [vmem:[%s0 + $0x20] sm:$0xff]
  %v24 = vld [vmem:[%s0 + $0x28] sm:$0xff]
  %v25 = vld [vmem:[%s0 + $0x30] sm:$0xff]
  %v26 = vld [vmem:[%s0 + $0x38] sm:$0xff]
  %v27 = vld [vmem:[%s0 + $0x40] sm:$0xff]
  %v28 = vld [vmem:[%s0 + $0x48] sm:$0xff]
  %v29 = vld [vmem:[%s0 + $0x50] sm:$0xff]
  %v30 = vld [vmem:[%s0 + $0x58] sm:$0xff]
  %v31 = vld [vmem:[%s0 + $0x60] sm:$0xff]
  %v32 = vld [vmem:[%s0 + $0x68] sm:$0xff]
  %v33 = vld [vmem:[%s0 + $0x70] sm:$0xff]
  %v34 = vld [vmem:[%s0 + $0x78] sm:$0xff]
  %v35 = vld [vmem:[%s0 + $0x80] sm:$0xff]
  %v36 = vld [vmem:[%s0 + $0x88] sm:$0xff]
  %v37 = vld [vmem:[%s0 + $0x90] sm:$0xff]
  %v38 = vld [vmem:[%s0 + $0x98] sm:$0xff]
  %v39 = vld [vmem:[%s0 + $0xa0] sm:$0xff]
  %v40 = vld [vmem:[%s0 + $0xa8] sm:$0xff]
  %v41 = vld [vmem:[%s0 + $0xb0] sm:$0xff]
  %v42 = vld [vmem:[%s0 + $0xb8] sm:$0xff]
  %v43 = vld [vmem:[%s0 + $0xc0] sm:$0xff]
  %v44 = vld [vmem:[%s0 + $0xc8] sm:$0xff]
  %v45 = vld [vmem:[%s0 + $0xd0] sm:$0xff]
  %v46 = vld [vmem:[%s0 + $0xd8] sm:$0xff]
  %v47 = vld [vmem:[%s0 + $0xe0] sm:$0xff]
  %v48 = vld [vmem:[%s0 + $0xe8] sm:$0xff]
  %v49 = vld [vmem:[%s0 + $0xf0] sm:$0xff]
  %v50 = vld [vmem:[%s0 + $0xf8] sm:$0xff]
  %v51 = vld [vmem:[%s0 + $0x100] sm:$0xff]
  %v52 = vld [vmem:[%s0 + $0x108] sm:$0xff]
  %v53 = vld [vmem:[%s0 + $0x110] sm:$0xff]
  %v54 = vld [vmem:[%s0 + $0x118] sm:$0xff]
  %v55 = vld [vmem:[%s0 + $0x120] sm:$0xff]
  %v56 = vld [vmem:[%s0 + $0x128] sm:$0xff]
  %v57 = vld [vmem:[%s0 + $0x130] sm:$0xff]
  %v58 = vld [vmem:[%s0 + $0x138] sm:$0xff]
  %v59 = vld [vmem:[%s0 + $0x140] sm:$0xff]
  %v60 = vld [vmem:[%s0 + $0x148] sm:$0xff]
  %v61 = vld [vmem:[%s0 + $0x150] sm:$0xff]
  %v62 = vld [vmem:[%s0 + $0x158] sm:$0xff]
  %v63 = vld [vmem:[%s0 + $0x160] sm:$0xff]
  %v64 = vld [vmem:[%s0 + $0x168] sm:$0xff]
  %v65 = vld [vmem:[%s0 + $0x170] sm:$0xff]
  %v66 = vld [vmem:[%s0 + $0x178] sm:$0xff]
  %v67 = vld [vmem:[%s0 + $0x180] sm:$0xff]
  %v68 = vld [vmem:[%s0 + $0x188] sm:$0xff]
  %v69 = vld [vmem:[%s0 + $0x190] sm:$0xff]
  %v70 = vld [vmem:[%s0 + $0x198] sm:$0xff]
  %v71 = vld [vmem:[%s0 + $0x1a0] sm:$0xff]
  %v72 = vld [vmem:[%s0 + $0x1a8] sm:$0xff]
  %v73 = vld [vmem:[%s0 + $0x1b0] sm:$0xff]
  %v74 = vld [vmem:[%s0 + $0x1b8] sm:$0xff]
  %v75 = vld [vmem:[%s0 + $0x1c0] sm:$0xff]
  %v76 = vld [vmem:[%s0 + $0x1c8] sm:$0xff]
  %v77 = vld [vmem:[%s0 + $0x1d0] sm:$0xff]
  %v78 = vld [vmem:[%s0 + $0x1d8] sm:$0xff]
  %v79 = vld [vmem:[%s0 + $0x1e0] sm:$0xff]
  %v80 = vld [vmem:[%s0 + $0x1e8] sm:$0xff]
  %v81 = vld [vmem:[%s0 + $0x1f0] sm:$0xff]
  %v82 = vld [vmem:[%s0 + $0x1f8] sm:$0xff]
  %v83 = vld [vmem:[%s1] sm:$0x1]
  %v85 = vlaneseq
  %v86 = vshrl.u32 %v85, 7
  %v87 = vsub.s32 0, %v86
  %v88 = vrot.slane %v83, %v87
  %v90 = vmul.f32 %v19, %v88
  %v91 = vmul.f32 %v20, %v88
  %v92 = vmul.f32 %v21, %v88
  %v93 = vmul.f32 %v22, %v88
  %v94 = vmul.f32 %v23, %v88
  %v95 = vmul.f32 %v24, %v88
  %v96 = vmul.f32 %v25, %v88
  %v97 = vmul.f32 %v26, %v88
  %v98 = vmul.f32 %v27, %v88
  %v99 = vmul.f32 %v28, %v88
  %v100 = vmul.f32 %v29, %v88
  %v101 = vmul.f32 %v30, %v88
  %v102 = vmul.f32 %v31, %v88
  %v103 = vmul.f32 %v32, %v88
  %v104 = vmul.f32 %v33, %v88
  %v105 = vmul.f32 %v34, %v88
  %v106 = vmul.f32 %v35, %v88
  %v107 = vmul.f32 %v36, %v88
  %v108 = vmul.f32 %v37, %v88
  %v109 = vmul.f32 %v38, %v88
  %v110 = vmul.f32 %v39, %v88
  %v111 = vmul.f32 %v40, %v88
  %v112 = vmul.f32 %v41, %v88
  %v113 = vmul.f32 %v42, %v88
  %v114 = vmul.f32 %v43, %v88
  %v115 = vmul.f32 %v44, %v88
  %v116 = vmul.f32 %v45, %v88
  %v117 = vmul.f32 %v46, %v88
  %v118 = vmul.f32 %v47, %v88
  %v119 = vmul.f32 %v48, %v88
  %v120 = vmul.f32 %v49, %v88
  %v121 = vmul.f32 %v50, %v88
  %v122 = vmul.f32 %v51, %v88
  %v123 = vmul.f32 %v52, %v88
  %v124 = vmul.f32 %v53, %v88
  %v125 = vmul.f32 %v54, %v88
  %v126 = vmul.f32 %v55, %v88
  %v127 = vmul.f32 %v56, %v88
  %v128 = vmul.f32 %v57, %v88
  %v129 = vmul.f32 %v58, %v88
  %v130 = vmul.f32 %v59, %v88
  %v131 = vmul.f32 %v60, %v88
  %v132 = vmul.f32 %v61, %v88
  %v133 = vmul.f32 %v62, %v88
  %v134 = vmul.f32 %v63, %v88
  %v135 = vmul.f32 %v64, %v88
  %v136 = vmul.f32 %v65, %v88
  %v137 = vmul.f32 %v66, %v88
  %v138 = vmul.f32 %v67, %v88
  %v139 = vmul.f32 %v68, %v88
  %v140 = vmul.f32 %v69, %v88
  %v141 = vmul.f32 %v70, %v88
  %v142 = vmul.f32 %v71, %v88
  %v143 = vmul.f32 %v72, %v88
  %v144 = vmul.f32 %v73, %v88
  %v145 = vmul.f32 %v74, %v88
  %v146 = vmul.f32 %v75, %v88
  %v147 = vmul.f32 %v76, %v88
  %v148 = vmul.f32 %v77, %v88
  %v149 = vmul.f32 %v78, %v88
  %v150 = vmul.f32 %v79, %v88
  %v151 = vmul.f32 %v80, %v88
  %v152 = vmul.f32 %v81, %v88
  %v153 = vmul.f32 %v82, %v88
  %v154 = vld [vmem:[%s2] sm:$0x1]
  %v156 = vlaneseq
  %v157 = vshrl.u32 %v156, 7
  %v158 = vsub.s32 0, %v157
  %v159 = vrot.slane %v154, %v158
  %v161 = vadd.f32 %v90, %v159
  %v162 = vadd.f32 %v91, %v159
  %v163 = vadd.f32 %v92, %v159
  %v164 = vadd.f32 %v93, %v159
  %v165 = vadd.f32 %v94, %v159
  %v166 = vadd.f32 %v95, %v159
  %v167 = vadd.f32 %v96, %v159
  %v168 = vadd.f32 %v97, %v159
  %v169 = vadd.f32 %v98, %v159
  %v170 = vadd.f32 %v99, %v159
  %v171 = vadd.f32 %v100, %v159
  %v172 = vadd.f32 %v101, %v159
  %v173 = vadd.f32 %v102, %v159
  %v174 = vadd.f32 %v103, %v159
  %v175 = vadd.f32 %v104, %v159
  %v176 = vadd.f32 %v105, %v159
  %v177 = vadd.f32 %v106, %v159
  %v178 = vadd.f32 %v107, %v159
  %v179 = vadd.f32 %v108, %v159
  %v180 = vadd.f32 %v109, %v159
  %v181 = vadd.f32 %v110, %v159
  %v182 = vadd.f32 %v111, %v159
  %v183 = vadd.f32 %v112, %v159
  %v184 = vadd.f32 %v113, %v159
  %v185 = vadd.f32 %v114, %v159
  %v186 = vadd.f32 %v115, %v159
  %v187 = vadd.f32 %v116, %v159
  %v188 = vadd.f32 %v117, %v159
  %v189 = vadd.f32 %v118, %v159
  %v190 = vadd.f32 %v119, %v159
  %v191 = vadd.f32 %v120, %v159
  %v192 = vadd.f32 %v121, %v159
  %v193 = vadd.f32 %v122, %v159
  %v194 = vadd.f32 %v123, %v159
  %v195 = vadd.f32 %v124, %v159
  %v196 = vadd.f32 %v125, %v159
  %v197 = vadd.f32 %v126, %v159
  %v198 = vadd.f32 %v127, %v159
  %v199 = vadd.f32 %v128, %v159
  %v200 = vadd.f32 %v129, %v159
  %v201 = vadd.f32 %v130, %v159
  %v202 = vadd.f32 %v131, %v159
  %v203 = vadd.f32 %v132, %v159
  %v204 = vadd.f32 %v133, %v159
  %v205 = vadd.f32 %v134, %v159
  %v206 = vadd.f32 %v135, %v159
  %v207 = vadd.f32 %v136, %v159
  %v208 = vadd.f32 %v137, %v159
  %v209 = vadd.f32 %v138, %v159
  %v210 = vadd.f32 %v139, %v159
  %v211 = vadd.f32 %v140, %v159
  %v212 = vadd.f32 %v141, %v159
  %v213 = vadd.f32 %v142, %v159
  %v214 = vadd.f32 %v143, %v159
  %v215 = vadd.f32 %v144, %v159
  %v216 = vadd.f32 %v145, %v159
  %v217 = vadd.f32 %v146, %v159
  %v218 = vadd.f32 %v147, %v159
  %v219 = vadd.f32 %v148, %v159
  %v220 = vadd.f32 %v149, %v159
  %v221 = vadd.f32 %v150, %v159
  %v222 = vadd.f32 %v151, %v159
  %v223 = vadd.f32 %v152, %v159
  %v224 = vadd.f32 %v153, %v159
  %v225 = vmax.f32 %v161, 0.0
  %v226 = vmax.f32 %v162, 0.0
  %v227 = vmax.f32 %v163, 0.0
  %v228 = vmax.f32 %v164, 0.0
  %v229 = vmax.f32 %v165, 0.0
  %v230 = vmax.f32 %v166, 0.0
  %v231 = vmax.f32 %v167, 0.0
  %v232 = vmax.f32 %v168, 0.0
  %v233 = vmax.f32 %v169, 0.0
  %v234 = vmax.f32 %v170, 0.0
  %v235 = vmax.f32 %v171, 0.0
  %v236 = vmax.f32 %v172, 0.0
  %v237 = vmax.f32 %v173, 0.0
  %v238 = vmax.f32 %v174, 0.0
  %v239 = vmax.f32 %v175, 0.0
  %v240 = vmax.f32 %v176, 0.0
  %v241 = vmax.f32 %v177, 0.0
  %v242 = vmax.f32 %v178, 0.0
  %v243 = vmax.f32 %v179, 0.0
  %v244 = vmax.f32 %v180, 0.0
  %v245 = vmax.f32 %v181, 0.0
  %v246 = vmax.f32 %v182, 0.0
  %v247 = vmax.f32 %v183, 0.0
  %v248 = vmax.f32 %v184, 0.0
  %v249 = vmax.f32 %v185, 0.0
  %v250 = vmax.f32 %v186, 0.0
  %v251 = vmax.f32 %v187, 0.0
  %v252 = vmax.f32 %v188, 0.0
  %v253 = vmax.f32 %v189, 0.0
  %v254 = vmax.f32 %v190, 0.0
  %v255 = vmax.f32 %v191, 0.0
  %v256 = vmax.f32 %v192, 0.0
  %v257 = vmax.f32 %v193, 0.0
  %v258 = vmax.f32 %v194, 0.0
  %v259 = vmax.f32 %v195, 0.0
  %v260 = vmax.f32 %v196, 0.0
  %v261 = vmax.f32 %v197, 0.0
  %v262 = vmax.f32 %v198, 0.0
  %v263 = vmax.f32 %v199, 0.0
  %v264 = vmax.f32 %v200, 0.0
  %v265 = vmax.f32 %v201, 0.0
  %v266 = vmax.f32 %v202, 0.0
  %v267 = vmax.f32 %v203, 0.0
  %v268 = vmax.f32 %v204, 0.0
  %v269 = vmax.f32 %v205, 0.0
  %v270 = vmax.f32 %v206, 0.0
  %v271 = vmax.f32 %v207, 0.0
  %v272 = vmax.f32 %v208, 0.0
  %v273 = vmax.f32 %v209, 0.0
  %v274 = vmax.f32 %v210, 0.0
  %v275 = vmax.f32 %v211, 0.0
  %v276 = vmax.f32 %v212, 0.0
  %v277 = vmax.f32 %v213, 0.0
  %v278 = vmax.f32 %v214, 0.0
  %v279 = vmax.f32 %v215, 0.0
  %v280 = vmax.f32 %v216, 0.0
  %v281 = vmax.f32 %v217, 0.0
  %v282 = vmax.f32 %v218, 0.0
  %v283 = vmax.f32 %v219, 0.0
  %v284 = vmax.f32 %v220, 0.0
  %v285 = vmax.f32 %v221, 0.0
  %v286 = vmax.f32 %v222, 0.0
  %v287 = vmax.f32 %v223, 0.0
  %v288 = vmax.f32 %v224, 0.0
  %289 = vst [vmem:[#allocation2] sm:$0xff] 0.0
  %290 = vst [vmem:[#allocation2 + $0x8] sm:$0xff] 0.0
  %291 = vst [vmem:[#allocation2 + $0x10] sm:$0x3] 0.0
  %292 = vst [vmem:[#allocation2 + $0x1b0] sm:$0xff] 0.0
  %293 = vst [vmem:[#allocation2 + $0x1b8] sm:$0xff] 0.0
  %294 = vst [vmem:[#allocation2 + $0x1c0] sm:$0x3] 0.0
  %s295 = scalar_lea.vmem [#allocation2], 408
  %296 = vst [vmem:[%s295] sm:$0xff] 0.0
  %297 = vst [vmem:[%s295 + $0x8] sm:$0xff] 0.0
  %298 = vst [vmem:[%s295 + $0x10] sm:$0x3] 0.0
  %299 = vst [vmem:[%s295 + $0x1b0] sm:$0xff] 0.0
  %300 = vst [vmem:[%s295 + $0x1b8] sm:$0xff] 0.0
  %301 = vst [vmem:[%s295 + $0x1c0] sm:$0x3] 0.0
  %302 = vst [vmem:[#allocation2] sm:$0x1] 0.0
  %303 = vst [vmem:[#allocation2 + $0x18] sm:$0x1] 0.0
  %304 = vst [vmem:[#allocation2 + $0x30] sm:$0x1] 0.0
  %305 = vst [vmem:[#allocation2 + $0x48] sm:$0x1] 0.0
  %306 = vst [vmem:[#allocation2 + $0x60] sm:$0x1] 0.0
  %307 = vst [vmem:[#allocation2 + $0x78] sm:$0x1] 0.0
  %308 = vst [vmem:[#allocation2 + $0x90] sm:$0x1] 0.0
  %309 = vst [vmem:[#allocation2 + $0xa8] sm:$0x1] 0.0
  %310 = vst [vmem:[#allocation2 + $0xc0] sm:$0x1] 0.0
  %311 = vst [vmem:[#allocation2 + $0xd8] sm:$0x1] 0.0
  %312 = vst [vmem:[#allocation2 + $0xf0] sm:$0x1] 0.0
  %313 = vst [vmem:[#allocation2 + $0x108] sm:$0x1] 0.0
  %314 = vst [vmem:[#allocation2 + $0x120] sm:$0x1] 0.0
  %315 = vst [vmem:[#allocation2 + $0x138] sm:$0x1] 0.0
  %316 = vst [vmem:[#allocation2 + $0x150] sm:$0x1] 0.0
  %317 = vst [vmem:[#allocation2 + $0x168] sm:$0x1] 0.0
  %318 = vst [vmem:[#allocation2 + $0x180] sm:$0x1] 0.0
  %319 = vst [vmem:[#allocation2 + $0x198] sm:$0x1] 0.0
  %320 = vst [vmem:[#allocation2 + $0x1b0] sm:$0x1] 0.0
  %321 = vst [vmem:[#allocation2 + $0x1c8] sm:$0x1] 0.0
  %322 = vst [vmem:[#allocation2 + $0x1e0] sm:$0x1] 0.0
  %323 = vst [vmem:[#allocation2 + $0x1f8] sm:$0x1] 0.0
  %324 = vst [vmem:[#allocation2 + $0x210] sm:$0x1] 0.0
  %325 = vst [vmem:[#allocation2 + $0x228] sm:$0x1] 0.0
  %326 = vst [vmem:[#allocation2 + $0x240] sm:$0x1] 0.0
  %327 = vst [vmem:[#allocation2 + $0x258] sm:$0x1] 0.0
  %328 = vst [vmem:[#allocation2 + $0x270] sm:$0x1] 0.0
  %329 = vst [vmem:[#allocation2 + $0x288] sm:$0x1] 0.0
  %330 = vst [vmem:[#allocation2 + $0x2a0] sm:$0x1] 0.0
  %331 = vst [vmem:[#allocation2 + $0x2b8] sm:$0x1] 0.0
  %332 = vst [vmem:[#allocation2 + $0x2d0] sm:$0x1] 0.0
  %333 = vst [vmem:[#allocation2 + $0x2e8] sm:$0x1] 0.0
  %334 = vst [vmem:[#allocation2 + $0x300] sm:$0x1] 0.0
  %335 = vst [vmem:[#allocation2 + $0x318] sm:$0x1] 0.0
  %336 = vst [vmem:[#allocation2 + $0x330] sm:$0x1] 0.0
  %337 = vst [vmem:[#allocation2 + $0x348] sm:$0x1] 0.0
  %338 = vst [vmem:[#allocation2 + $0x11] sm:$0x1] 0.0
  %339 = vst [vmem:[#allocation2 + $0x29] sm:$0x1] 0.0
  %340 = vst [vmem:[#allocation2 + $0x41] sm:$0x1] 0.0
  %341 = vst [vmem:[#allocation2 + $0x59] sm:$0x1] 0.0
  %342 = vst [vmem:[#allocation2 + $0x71] sm:$0x1] 0.0
  %343 = vst [vmem:[#allocation2 + $0x89] sm:$0x1] 0.0
  %344 = vst [vmem:[#allocation2 + $0xa1] sm:$0x1] 0.0
  %345 = vst [vmem:[#allocation2 + $0xb9] sm:$0x1] 0.0
  %346 = vst [vmem:[#allocation2 + $0xd1] sm:$0x1] 0.0
  %347 = vst [vmem:[#allocation2 + $0xe9] sm:$0x1] 0.0
  %348 = vst [vmem:[#allocation2 + $0x101] sm:$0x1] 0.0
  %349 = vst [vmem:[#allocation2 + $0x119] sm:$0x1] 0.0
  %350 = vst [vmem:[#allocation2 + $0x131] sm:$0x1] 0.0
  %351 = vst [vmem:[#allocation2 + $0x149] sm:$0x1] 0.0
  %352 = vst [vmem:[#allocation2 + $0x161] sm:$0x1] 0.0
  %353 = vst [vmem:[#allocation2 + $0x179] sm:$0x1] 0.0
  %354 = vst [vmem:[#allocation2 + $0x191] sm:$0x1] 0.0
  %355 = vst [vmem:[#allocation2 + $0x1a9] sm:$0x1] 0.0
  %356 = vst [vmem:[#allocation2 + $0x1c1] sm:$0x1] 0.0
  %357 = vst [vmem:[#allocation2 + $0x1d9] sm:$0x1] 0.0
  %358 = vst [vmem:[#allocation2 + $0x1f1] sm:$0x1] 0.0
  %359 = vst [vmem:[#allocation2 + $0x209] sm:$0x1] 0.0
  %360 = vst [vmem:[#allocation2 + $0x221] sm:$0x1] 0.0
  %361 = vst [vmem:[#allocation2 + $0x239] sm:$0x1] 0.0
  %362 = vst [vmem:[#allocation2 + $0x251] sm:$0x1] 0.0
  %363 = vst [vmem:[#allocation2 + $0x269] sm:$0x1] 0.0
  %364 = vst [vmem:[#allocation2 + $0x281] sm:$0x1] 0.0
  %365 = vst [vmem:[#allocation2 + $0x299] sm:$0x1] 0.0
  %366 = vst [vmem:[#allocation2 + $0x2b1] sm:$0x1] 0.0
  %367 = vst [vmem:[#allocation2 + $0x2c9] sm:$0x1] 0.0
  %368 = vst [vmem:[#allocation2 + $0x2e1] sm:$0x1] 0.0
  %369 = vst [vmem:[#allocation2 + $0x2f9] sm:$0x1] 0.0
  %370 = vst [vmem:[#allocation2 + $0x311] sm:$0x1] 0.0
  %371 = vst [vmem:[#allocation2 + $0x329] sm:$0x1] 0.0
  %372 = vst [vmem:[#allocation2 + $0x341] sm:$0x1] 0.0
  %373 = vst [vmem:[#allocation2 + $0x359] sm:$0x1] 0.0
  %s374 = scalar_lea.vmem [#allocation2], 24
  %375 = vst [vmem:[%s374 + $0x1] sm:$0xff] %v225
  %376 = vst [vmem:[%s374 + $0x9] sm:$0xff] %v226
  %377 = vst [vmem:[%s374 + $0x19] sm:$0xff] %v227
  %378 = vst [vmem:[%s374 + $0x21] sm:$0xff] %v228
  %379 = vst [vmem:[%s374 + $0x31] sm:$0xff] %v229
  %380 = vst [vmem:[%s374 + $0x39] sm:$0xff] %v230
  %381 = vst [vmem:[%s374 + $0x49] sm:$0xff] %v231
  %382 = vst [vmem:[%s374 + $0x51] sm:$0xff] %v232
  %383 = vst [vmem:[%s374 + $0x61] sm:$0xff] %v233
  %384 = vst [vmem:[%s374 + $0x69] sm:$0xff] %v234
  %385 = vst [vmem:[%s374 + $0x79] sm:$0xff] %v235
  %386 = vst [vmem:[%s374 + $0x81] sm:$0xff] %v236
  %387 = vst [vmem:[%s374 + $0x91] sm:$0xff] %v237
  %388 = vst [vmem:[%s374 + $0x99] sm:$0xff] %v238
  %389 = vst [vmem:[%s374 + $0xa9] sm:$0xff] %v239
  %390 = vst [vmem:[%s374 + $0xb1] sm:$0xff] %v240
  %391 = vst [vmem:[%s374 + $0xc1] sm:$0xff] %v241
  %392 = vst [vmem:[%s374 + $0xc9] sm:$0xff] %v242
  %393 = vst [vmem:[%s374 + $0xd9] sm:$0xff] %v243
  %394 = vst [vmem:[%s374 + $0xe1] sm:$0xff] %v244
  %395 = vst [vmem:[%s374 + $0xf1] sm:$0xff] %v245
  %396 = vst [vmem:[%s374 + $0xf9] sm:$0xff] %v246
  %397 = vst [vmem:[%s374 + $0x109] sm:$0xff] %v247
  %398 = vst [vmem:[%s374 + $0x111] sm:$0xff] %v248
  %399 = vst [vmem:[%s374 + $0x121] sm:$0xff] %v249
  %400 = vst [vmem:[%s374 + $0x129] sm:$0xff] %v250
  %401 = vst [vmem:[%s374 + $0x139] sm:$0xff] %v251
  %402 = vst [vmem:[%s374 + $0x141] sm:$0xff] %v252
  %403 = vst [vmem:[%s374 + $0x151] sm:$0xff] %v253
  %404 = vst [vmem:[%s374 + $0x159] sm:$0xff] %v254
  %405 = vst [vmem:[%s374 + $0x169] sm:$0xff] %v255
  %406 = vst [vmem:[%s374 + $0x171] sm:$0xff] %v256
  %407 = vst [vmem:[%s374 + $0x1b1] sm:$0xff] %v257
  %408 = vst [vmem:[%s374 + $0x1b9] sm:$0xff] %v258
  %409 = vst [vmem:[%s374 + $0x1c9] sm:$0xff] %v259
  %410 = vst [vmem:[%s374 + $0x1d1] sm:$0xff] %v260
  %411 = vst [vmem:[%s374 + $0x1e1] sm:$0xff] %v261
  %412 = vst [vmem:[%s374 + $0x1e9] sm:$0xff] %v262
  %413 = vst [vmem:[%s374 + $0x1f9] sm:$0xff] %v263
  %414 = vst [vmem:[%s374 + $0x201] sm:$0xff] %v264
  %415 = vst [vmem:[%s374 + $0x211] sm:$0xff] %v265
  %416 = vst [vmem:[%s374 + $0x219] sm:$0xff] %v266
  %417 = vst [vmem:[%s374 + $0x229] sm:$0xff] %v267
  %418 = vst [vmem:[%s374 + $0x231] sm:$0xff] %v268
  %419 = vst [vmem:[%s374 + $0x241] sm:$0xff] %v269
  %420 = vst [vmem:[%s374 + $0x249] sm:$0xff] %v270
  %421 = vst [vmem:[%s374 + $0x259] sm:$0xff] %v271
  %422 = vst [vmem:[%s374 + $0x261] sm:$0xff] %v272
  %423 = vst [vmem:[%s374 + $0x271] sm:$0xff] %v273
  %424 = vst [vmem:[%s374 + $0x279] sm:$0xff] %v274
  %425 = vst [vmem:[%s374 + $0x289] sm:$0xff] %v275
  %426 = vst [vmem:[%s374 + $0x291] sm:$0xff] %v276
  %427 = vst [vmem:[%s374 + $0x2a1] sm:$0xff] %v277
  %428 = vst [vmem:[%s374 + $0x2a9] sm:$0xff] %v278
  %429 = vst [vmem:[%s374 + $0x2b9] sm:$0xff] %v279
  %430 = vst [vmem:[%s374 + $0x2c1] sm:$0xff] %v280
  %431 = vst [vmem:[%s374 + $0x2d1] sm:$0xff] %v281
  %432 = vst [vmem:[%s374 + $0x2d9] sm:$0xff] %v282
  %433 = vst [vmem:[%s374 + $0x2e9] sm:$0xff] %v283
  %434 = vst [vmem:[%s374 + $0x2f1] sm:$0xff] %v284
  %435 = vst [vmem:[%s374 + $0x301] sm:$0xff] %v285
  %436 = vst [vmem:[%s374 + $0x309] sm:$0xff] %v286
  %437 = vst [vmem:[%s374 + $0x319] sm:$0xff] %v287
  %438 = vst [vmem:[%s374 + $0x321] sm:$0xff] %v288
  %v439 = vld [vmem:[#allocation2] sm:$0xff]
  %v440 = vld [vmem:[#allocation2 + $0x8] sm:$0xff]
  %v441 = vld [vmem:[#allocation2 + $0x18] sm:$0xff]
  %v442 = vld [vmem:[#allocation2 + $0x20] sm:$0xff]
  %v443 = vld [vmem:[#allocation2 + $0x30] sm:$0xff]
  %v444 = vld [vmem:[#allocation2 + $0x38] sm:$0xff]
  %v445 = vld [vmem:[#allocation2 + $0x48] sm:$0xff]
  %v446 = vld [vmem:[#allocation2 + $0x50] sm:$0xff]
  %v447 = vld [vmem:[#allocation2 + $0x60] sm:$0xff]
  %v448 = vld [vmem:[#allocation2 + $0x68] sm:$0xff]
  %v449 = vld [vmem:[#allocation2 + $0x78] sm:$0xff]
  %v450 = vld [vmem:[#allocation2 + $0x80] sm:$0xff]
  %v451 = vld [vmem:[#allocation2 + $0x90] sm:$0xff]
  %v452 = vld [vmem:[#allocation2 + $0x98] sm:$0xff]
  %v453 = vld [vmem:[#allocation2 + $0xa8] sm:$0xff]
  %v454 = vld [vmem:[#allocation2 + $0xb0] sm:$0xff]
  %v455 = vld [vmem:[#allocation2 + $0xc0] sm:$0xff]
  %v456 = vld [vmem:[#allocation2 + $0xc8] sm:$0xff]
  %v457 = vld [vmem:[#allocation2 + $0xd8] sm:$0xff]
  %v458 = vld [vmem:[#allocation2 + $0xe0] sm:$0xff]
  %v459 = vld [vmem:[#allocation2 + $0xf0] sm:$0xff]
  %v460 = vld [vmem:[#allocation2 + $0xf8] sm:$0xff]
  %v461 = vld [vmem:[#allocation2 + $0x108] sm:$0xff]
  %v462 = vld [vmem:[#allocation2 + $0x110] sm:$0xff]
  %v463 = vld [vmem:[#allocation2 + $0x120] sm:$0xff]
  %v464 = vld [vmem:[#allocation2 + $0x128] sm:$0xff]
  %v465 = vld [vmem:[#allocation2 + $0x138] sm:$0xff]
  %v466 = vld [vmem:[#allocation2 + $0x140] sm:$0xff]
  %v467 = vld [vmem:[#allocation2 + $0x150] sm:$0xff]
  %v468 = vld [vmem:[#allocation2 + $0x158] sm:$0xff]
  %v469 = vld [vmem:[#allocation2 + $0x168] sm:$0xff]
  %v470 = vld [vmem:[#allocation2 + $0x170] sm:$0xff]
  %v471 = vld [vmem:[#allocation2 + $0x1b0] sm:$0xff]
  %v472 = vld [vmem:[#allocation2 + $0x1b8] sm:$0xff]
  %v473 = vld [vmem:[#allocation2 + $0x1c8] sm:$0xff]
  %v474 = vld [vmem:[#allocation2 + $0x1d0] sm:$0xff]
  %v475 = vld [vmem:[#allocation2 + $0x1e0] sm:$0xff]
  %v476 = vld [vmem:[#allocation2 + $0x1e8] sm:$0xff]
  %v477 = vld [vmem:[#allocation2 + $0x1f8] sm:$0xff]
  %v478 = vld [vmem:[#allocation2 + $0x200] sm:$0xff]
  %v479 = vld [vmem:[#allocation2 + $0x210] sm:$0xff]
  %v480 = vld [vmem:[#allocation2 + $0x218] sm:$0xff]
  %v481 = vld [vmem:[#allocation2 + $0x228] sm:$0xff]
  %v482 = vld [vmem:[#allocation2 + $0x230] sm:$0xff]
  %v483 = vld [vmem:[#allocation2 + $0x240] sm:$0xff]
  %v484 = vld [vmem:[#allocation2 + $0x248] sm:$0xff]
  %v485 = vld [vmem:[#allocation2 + $0x258] sm:$0xff]
  %v486 = vld [vmem:[#allocation2 + $0x260] sm:$0xff]
  %v487 = vld [vmem:[#allocation2 + $0x270] sm:$0xff]
  %v488 = vld [vmem:[#allocation2 + $0x278] sm:$0xff]
  %v489 = vld [vmem:[#allocation2 + $0x288] sm:$0xff]
  %v490 = vld [vmem:[#allocation2 + $0x290] sm:$0xff]
  %v491 = vld [vmem:[#allocation2 + $0x2a0] sm:$0xff]
  %v492 = vld [vmem:[#allocation2 + $0x2a8] sm:$0xff]
  %v493 = vld [vmem:[#allocation2 + $0x2b8] sm:$0xff]
  %v494 = vld [vmem:[#allocation2 + $0x2c0] sm:$0xff]
  %v495 = vld [vmem:[#allocation2 + $0x2d0] sm:$0xff]
  %v496 = vld [vmem:[#allocation2 + $0x2d8] sm:$0xff]
  %v497 = vld [vmem:[#allocation2 + $0x2e8] sm:$0xff]
  %v498 = vld [vmem:[#allocation2 + $0x2f0] sm:$0xff]
  %v499 = vld [vmem:[#allocation2 + $0x300] sm:$0xff]
  %v500 = vld [vmem:[#allocation2 + $0x308] sm:$0xff]
  %v501 = vld [vmem:[#allocation2 + $0x318] sm:$0xff]
  %v502 = vld [vmem:[#allocation2 + $0x320] sm:$0xff]
  %503 = vst [vmem:[#allocation3] sm:$0xff] %v439
  %504 = vst [vmem:[#allocation3 + $0x48] sm:$0xff] %v440
  %505 = vst [vmem:[#allocation3 + $0x90] sm:$0xff] %v441
  %506 = vst [vmem:[#allocation3 + $0xd8] sm:$0xff] %v442
  %507 = vst [vmem:[#allocation3 + $0x120] sm:$0xff] %v443
  %508 = vst [vmem:[#allocation3 + $0x168] sm:$0xff] %v444
  %509 = vst [vmem:[#allocation3 + $0x1b0] sm:$0xff] %v445
  %510 = vst [vmem:[#allocation3 + $0x1f8] sm:$0xff] %v446
  %511 = vst [vmem:[#allocation3 + $0x240] sm:$0xff] %v447
  %512 = vst [vmem:[#allocation3 + $0x288] sm:$0xff] %v448
  %513 = vst [vmem:[#allocation3 + $0x2d0] sm:$0xff] %v449
  %514 = vst [vmem:[#allocation3 + $0x318] sm:$0xff] %v450
  %515 = vst [vmem:[#allocation3 + $0x360] sm:$0xff] %v451
  %516 = vst [vmem:[#allocation3 + $0x3a8] sm:$0xff] %v452
  %517 = vst [vmem:[#allocation3 + $0x3f0] sm:$0xff] %v453
  %518 = vst [vmem:[#allocation3 + $0x438] sm:$0xff] %v454
  %519 = vst [vmem:[#allocation3 + $0x480] sm:$0xff] %v455
  %520 = vst [vmem:[#allocation3 + $0x4c8] sm:$0xff] %v456
  %521 = vst [vmem:[#allocation3 + $0x510] sm:$0xff] %v457
  %522 = vst [vmem:[#allocation3 + $0x558] sm:$0xff] %v458
  %523 = vst [vmem:[#allocation3 + $0x5a0] sm:$0xff] %v459
  %524 = vst [vmem:[#allocation3 + $0x5e8] sm:$0xff] %v460
  %525 = vst [vmem:[#allocation3 + $0x630] sm:$0xff] %v461
  %526 = vst [vmem:[#allocation3 + $0x678] sm:$0xff] %v462
  %527 = vst [vmem:[#allocation3 + $0x6c0] sm:$0xff] %v463
  %528 = vst [vmem:[#allocation3 + $0x708] sm:$0xff] %v464
  %529 = vst [vmem:[#allocation3 + $0x750] sm:$0xff] %v465
  %530 = vst [vmem:[#allocation3 + $0x798] sm:$0xff] %v466
  %531 = vst [vmem:[#allocation3 + $0x7e0] sm:$0xff] %v467
  %532 = vst [vmem:[#allocation3 + $0x828] sm:$0xff] %v468
  %533 = vst [vmem:[#allocation3 + $0x870] sm:$0xff] %v469
  %534 = vst [vmem:[#allocation3 + $0x8b8] sm:$0xff] %v470
  %535 = vst [vmem:[#allocation3 + $0x900] sm:$0xff] %v471
  %536 = vst [vmem:[#allocation3 + $0x948] sm:$0xff] %v472
  %537 = vst [vmem:[#allocation3 + $0x990] sm:$0xff] %v473
  %538 = vst [vmem:[#allocation3 + $0x9d8] sm:$0xff] %v474
  %539 = vst [vmem:[#allocation3 + $0xa20] sm:$0xff] %v475
  %540 = vst [vmem:[#allocation3 + $0xa68] sm:$0xff] %v476
  %541 = vst [vmem:[#allocation3 + $0xab0] sm:$0xff] %v477
  %542 = vst [vmem:[#allocation3 + $0xaf8] sm:$0xff] %v478
  %543 = vst [vmem:[#allocation3 + $0xb40] sm:$0xff] %v479
  %544 = vst [vmem:[#allocation3 + $0xb88] sm:$0xff] %v480
  %545 = vst [vmem:[#allocation3 + $0xbd0] sm:$0xff] %v481
  %546 = vst [vmem:[#allocation3 + $0xc18] sm:$0xff] %v482
  %547 = vst [vmem:[#allocation3 + $0xc60] sm:$0xff] %v483
  %548 = vst [vmem:[#allocation3 + $0xca8] sm:$0xff] %v484
  %549 = vst [vmem:[#allocation3 + $0xcf0] sm:$0xff] %v485
  %550 = vst [vmem:[#allocation3 + $0xd38] sm:$0xff] %v486
  %551 = vst [vmem:[#allocation3 + $0xd80] sm:$0xff] %v487
  %552 = vst [vmem:[#allocation3 + $0xdc8] sm:$0xff] %v488
  %553 = vst [vmem:[#allocation3 + $0xe10] sm:$0xff] %v489
  %554 = vst [vmem:[#allocation3 + $0xe58] sm:$0xff] %v490
  %555 = vst [vmem:[#allocation3 + $0xea0] sm:$0xff] %v491
  %556 = vst [vmem:[#allocation3 + $0xee8] sm:$0xff] %v492
  %557 = vst [vmem:[#allocation3 + $0xf30] sm:$0xff] %v493
  %558 = vst [vmem:[#allocation3 + $0xf78] sm:$0xff] %v494
  %559 = vst [vmem:[#allocation3 + $0xfc0] sm:$0xff] %v495
  %560 = vst [vmem:[#allocation3 + $0x1008] sm:$0xff] %v496
  %561 = vst [vmem:[#allocation3 + $0x1050] sm:$0xff] %v497
  %562 = vst [vmem:[#allocation3 + $0x1098] sm:$0xff] %v498
  %563 = vst [vmem:[#allocation3 + $0x10e0] sm:$0xff] %v499
  %564 = vst [vmem:[#allocation3 + $0x1128] sm:$0xff] %v500
  %565 = vst [vmem:[#allocation3 + $0x1170] sm:$0xff] %v501
  %566 = vst [vmem:[#allocation3 + $0x11b8] sm:$0xff] %v502
  %v567 = vld [vmem:[#allocation2 + $0x1] sm:$0xff]
  %v568 = vld [vmem:[#allocation2 + $0x9] sm:$0xff]
  %v569 = vld [vmem:[#allocation2 + $0x19] sm:$0xff]
  %v570 = vld [vmem:[#allocation2 + $0x21] sm:$0xff]
  %v571 = vld [vmem:[#allocation2 + $0x31] sm:$0xff]
  %v572 = vld [vmem:[#allocation2 + $0x39] sm:$0xff]
  %v573 = vld [vmem:[#allocation2 + $0x49] sm:$0xff]
  %v574 = vld [vmem:[#allocation2 + $0x51] sm:$0xff]
  %v575 = vld [vmem:[#allocation2 + $0x61] sm:$0xff]
  %v576 = vld [vmem:[#allocation2 + $0x69] sm:$0xff]
  %v577 = vld [vmem:[#allocation2 + $0x79] sm:$0xff]
  %v578 = vld [vmem:[#allocation2 + $0x81] sm:$0xff]
  %v579 = vld [vmem:[#allocation2 + $0x91] sm:$0xff]
  %v580 = vld [vmem:[#allocation2 + $0x99] sm:$0xff]
  %v581 = vld [vmem:[#allocation2 + $0xa9] sm:$0xff]
  %v582 = vld [vmem:[#allocation2 + $0xb1] sm:$0xff]
  %v583 = vld [vmem:[#allocation2 + $0xc1] sm:$0xff]
  %v584 = vld [vmem:[#allocation2 + $0xc9] sm:$0xff]
  %v585 = vld [vmem:[#allocation2 + $0xd9] sm:$0xff]
  %v586 = vld [vmem:[#allocation2 + $0xe1] sm:$0xff]
  %v587 = vld [vmem:[#allocation2 + $0xf1] sm:$0xff]
  %v588 = vld [vmem:[#allocation2 + $0xf9] sm:$0xff]
  %v589 = vld [vmem:[#allocation2 + $0x109] sm:$0xff]
  %v590 = vld [vmem:[#allocation2 + $0x111] sm:$0xff]
  %v591 = vld [vmem:[#allocation2 + $0x121] sm:$0xff]
  %v592 = vld [vmem:[#allocation2 + $0x129] sm:$0xff]
  %v593 = vld [vmem:[#allocation2 + $0x139] sm:$0xff]
  %v594 = vld [vmem:[#allocation2 + $0x141] sm:$0xff]
  %v595 = vld [vmem:[#allocation2 + $0x151] sm:$0xff]
  %v596 = vld [vmem:[#allocation2 + $0x159] sm:$0xff]
  %v597 = vld [vmem:[#allocation2 + $0x169] sm:$0xff]
  %v598 = vld [vmem:[#allocation2 + $0x171] sm:$0xff]
  %v599 = vld [vmem:[#allocation2 + $0x1b1] sm:$0xff]
  %v600 = vld [vmem:[#allocation2 + $0x1b9] sm:$0xff]
  %v601 = vld [vmem:[#allocation2 + $0x1c9] sm:$0xff]
  %v602 = vld [vmem:[#allocation2 + $0x1d1] sm:$0xff]
  %v603 = vld [vmem:[#allocation2 + $0x1e1] sm:$0xff]
  %v604 = vld [vmem:[#allocation2 + $0x1e9] sm:$0xff]
  %v605 = vld [vmem:[#allocation2 + $0x1f9] sm:$0xff]
  %v606 = vld [vmem:[#allocation2 + $0x201] sm:$0xff]
  %v607 = vld [vmem:[#allocation2 + $0x211] sm:$0xff]
  %v608 = vld [vmem:[#allocation2 + $0x219] sm:$0xff]
  %v609 = vld [vmem:[#allocation2 + $0x229] sm:$0xff]
  %v610 = vld [vmem:[#allocation2 + $0x231] sm:$0xff]
  %v611 = vld [vmem:[#allocation2 + $0x241] sm:$0xff]
  %v612 = vld [vmem:[#allocation2 + $0x249] sm:$0xff]
  %v613 = vld [vmem:[#allocation2 + $0x259] sm:$0xff]
  %v614 = vld [vmem:[#allocation2 + $0x261] sm:$0xff]
  %v615 = vld [vmem:[#allocation2 + $0x271] sm:$0xff]
  %v616 = vld [vmem:[#allocation2 + $0x279] sm:$0xff]
  %v617 = vld [vmem:[#allocation2 + $0x289] sm:$0xff]
  %v618 = vld [vmem:[#allocation2 + $0x291] sm:$0xff]
  %v619 = vld [vmem:[#allocation2 + $0x2a1] sm:$0xff]
  %v620 = vld [vmem:[#allocation2 + $0x2a9] sm:$0xff]
  %v621 = vld [vmem:[#allocation2 + $0x2b9] sm:$0xff]
  %v622 = vld [vmem:[#allocation2 + $0x2c1] sm:$0xff]
  %v623 = vld [vmem:[#allocation2 + $0x2d1] sm:$0xff]
  %v624 = vld [vmem:[#allocation2 + $0x2d9] sm:$0xff]
  %v625 = vld [vmem:[#allocation2 + $0x2e9] sm:$0xff]
  %v626 = vld [vmem:[#allocation2 + $0x2f1] sm:$0xff]
  %v627 = vld [vmem:[#allocation2 + $0x301] sm:$0xff]
  %v628 = vld [vmem:[#allocation2 + $0x309] sm:$0xff]
  %v629 = vld [vmem:[#allocation2 + $0x319] sm:$0xff]
  %v630 = vld [vmem:[#allocation2 + $0x321] sm:$0xff]
  %631 = vst [vmem:[#allocation3 + $0x8] sm:$0xff] %v567
  %632 = vst [vmem:[#allocation3 + $0x50] sm:$0xff] %v568
  %633 = vst [vmem:[#allocation3 + $0x98] sm:$0xff] %v569
  %634 = vst [vmem:[#allocation3 + $0xe0] sm:$0xff] %v570
  %635 = vst [vmem:[#allocation3 + $0x128] sm:$0xff] %v571
  %636 = vst [vmem:[#allocation3 + $0x170] sm:$0xff] %v572
  %637 = vst [vmem:[#allocation3 + $0x1b8] sm:$0xff] %v573
  %638 = vst [vmem:[#allocation3 + $0x200] sm:$0xff] %v574
  %639 = vst [vmem:[#allocation3 + $0x248] sm:$0xff] %v575
  %640 = vst [vmem:[#allocation3 + $0x290] sm:$0xff] %v576
  %641 = vst [vmem:[#allocation3 + $0x2d8] sm:$0xff] %v577
  %642 = vst [vmem:[#allocation3 + $0x320] sm:$0xff] %v578
  %643 = vst [vmem:[#allocation3 + $0x368] sm:$0xff] %v579
  %644 = vst [vmem:[#allocation3 + $0x3b0] sm:$0xff] %v580
  %645 = vst [vmem:[#allocation3 + $0x3f8] sm:$0xff] %v581
  %646 = vst [vmem:[#allocation3 + $0x440] sm:$0xff] %v582
  %647 = vst [vmem:[#allocation3 + $0x488] sm:$0xff] %v583
  %648 = vst [vmem:[#allocation3 + $0x4d0] sm:$0xff] %v584
  %649 = vst [vmem:[#allocation3 + $0x518] sm:$0xff] %v585
  %650 = vst [vmem:[#allocation3 + $0x560] sm:$0xff] %v586
  %651 = vst [vmem:[#allocation3 + $0x5a8] sm:$0xff] %v587
  %652 = vst [vmem:[#allocation3 + $0x5f0] sm:$0xff] %v588
  %653 = vst [vmem:[#allocation3 + $0x638] sm:$0xff] %v589
  %654 = vst [vmem:[#allocation3 + $0x680] sm:$0xff] %v590
  %655 = vst [vmem:[#allocation3 + $0x6c8] sm:$0xff] %v591
  %656 = vst [vmem:[#allocation3 + $0x710] sm:$0xff] %v592
  %657 = vst [vmem:[#allocation3 + $0x758] sm:$0xff] %v593
  %658 = vst [vmem:[#allocation3 + $0x7a0] sm:$0xff] %v594
  %659 = vst [vmem:[#allocation3 + $0x7e8] sm:$0xff] %v595
  %660 = vst [vmem:[#allocation3 + $0x830] sm:$0xff] %v596
  %661 = vst [vmem:[#allocation3 + $0x878] sm:$0xff] %v597
  %662 = vst [vmem:[#allocation3 + $0x8c0] sm:$0xff] %v598
  %663 = vst [vmem:[#allocation3 + $0x908] sm:$0xff] %v599
  %664 = vst [vmem:[#allocation3 + $0x950] sm:$0xff] %v600
  %665 = vst [vmem:[#allocation3 + $0x998] sm:$0xff] %v601
  %666 = vst [vmem:[#allocation3 + $0x9e0] sm:$0xff] %v602
  %667 = vst [vmem:[#allocation3 + $0xa28] sm:$0xff] %v603
  %668 = vst [vmem:[#allocation3 + $0xa70] sm:$0xff] %v604
  %669 = vst [vmem:[#allocation3 + $0xab8] sm:$0xff] %v605
  %670 = vst [vmem:[#allocation3 + $0xb00] sm:$0xff] %v606
  %671 = vst [vmem:[#allocation3 + $0xb48] sm:$0xff] %v607
  %672 = vst [vmem:[#allocation3 + $0xb90] sm:$0xff] %v608
  %673 = vst [vmem:[#allocation3 + $0xbd8] sm:$0xff] %v609
  %674 = vst [vmem:[#allocation3 + $0xc20] sm:$0xff] %v610
  %675 = vst [vmem:[#allocation3 + $0xc68] sm:$0xff] %v611
  %676 = vst [vmem:[#allocation3 + $0xcb0] sm:$0xff] %v612
  %677 = vst [vmem:[#allocation3 + $0xcf8] sm:$0xff] %v613
  %678 = vst [vmem:[#allocation3 + $0xd40] sm:$0xff] %v614
  %679 = vst [vmem:[#allocation3 + $0xd88] sm:$0xff] %v615
  %680 = vst [vmem:[#allocation3 + $0xdd0] sm:$0xff] %v616
  %681 = vst [vmem:[#allocation3 + $0xe18] sm:$0xff] %v617
  %682 = vst [vmem:[#allocation3 + $0xe60] sm:$0xff] %v618
  %683 = vst [vmem:[#allocation3 + $0xea8] sm:$0xff] %v619
  %684 = vst [vmem:[#allocation3 + $0xef0] sm:$0xff] %v620
  %685 = vst [vmem:[#allocation3 + $0xf38] sm:$0xff] %v621
  %686 = vst [vmem:[#allocation3 + $0xf80] sm:$0xff] %v622
  %687 = vst [vmem:[#allocation3 + $0xfc8] sm:$0xff] %v623
  %688 = vst [vmem:[#allocation3 + $0x1010] sm:$0xff] %v624
  %689 = vst [vmem:[#allocation3 + $0x1058] sm:$0xff] %v625
  %690 = vst [vmem:[#allocation3 + $0x10a0] sm:$0xff] %v626
  %691 = vst [vmem:[#allocation3 + $0x10e8] sm:$0xff] %v627
  %692 = vst [vmem:[#allocation3 + $0x1130] sm:$0xff] %v628
  %693 = vst [vmem:[#allocation3 + $0x1178] sm:$0xff] %v629
  %694 = vst [vmem:[#allocation3 + $0x11c0] sm:$0xff] %v630
  %v695 = vld [vmem:[#allocation2 + $0x2] sm:$0xff]
  %v696 = vld [vmem:[#allocation2 + $0xa] sm:$0xff]
  %v697 = vld [vmem:[#allocation2 + $0x1a] sm:$0xff]
  %v698 = vld [vmem:[#allocation2 + $0x22] sm:$0xff]
  %v699 = vld [vmem:[#allocation2 + $0x32] sm:$0xff]
  %v700 = vld [vmem:[#allocation2 + $0x3a] sm:$0xff]
  %v701 = vld [vmem:[#allocation2 + $0x4a] sm:$0xff]
  %v702 = vld [vmem:[#allocation2 + $0x52] sm:$0xff]
  %v703 = vld [vmem:[#allocation2 + $0x62] sm:$0xff]
  %v704 = vld [vmem:[#allocation2 + $0x6a] sm:$0xff]
  %v705 = vld [vmem:[#allocation2 + $0x7a] sm:$0xff]
  %v706 = vld [vmem:[#allocation2 + $0x82] sm:$0xff]
  %v707 = vld [vmem:[#allocation2 + $0x92] sm:$0xff]
  %v708 = vld [vmem:[#allocation2 + $0x9a] sm:$0xff]
  %v709 = vld [vmem:[#allocation2 + $0xaa] sm:$0xff]
  %v710 = vld [vmem:[#allocation2 + $0xb2] sm:$0xff]
  %v711 = vld [vmem:[#allocation2 + $0xc2] sm:$0xff]
  %v712 = vld [vmem:[#allocation2 + $0xca] sm:$0xff]
  %v713 = vld [vmem:[#allocation2 + $0xda] sm:$0xff]
  %v714 = vld [vmem:[#allocation2 + $0xe2] sm:$0xff]
  %v715 = vld [vmem:[#allocation2 + $0xf2] sm:$0xff]
  %v716 = vld [vmem:[#allocation2 + $0xfa] sm:$0xff]
  %v717 = vld [vmem:[#allocation2 + $0x10a] sm:$0xff]
  %v718 = vld [vmem:[#allocation2 + $0x112] sm:$0xff]
  %v719 = vld [vmem:[#allocation2 + $0x122] sm:$0xff]
  %v720 = vld [vmem:[#allocation2 + $0x12a] sm:$0xff]
  %v721 = vld [vmem:[#allocation2 + $0x13a] sm:$0xff]
  %v722 = vld [vmem:[#allocation2 + $0x142] sm:$0xff]
  %v723 = vld [vmem:[#allocation2 + $0x152] sm:$0xff]
  %v724 = vld [vmem:[#allocation2 + $0x15a] sm:$0xff]
  %v725 = vld [vmem:[#allocation2 + $0x16a] sm:$0xff]
  %v726 = vld [vmem:[#allocation2 + $0x172] sm:$0xff]
  %v727 = vld [vmem:[#allocation2 + $0x1b2] sm:$0xff]
  %v728 = vld [vmem:[#allocation2 + $0x1ba] sm:$0xff]
  %v729 = vld [vmem:[#allocation2 + $0x1ca] sm:$0xff]
  %v730 = vld [vmem:[#allocation2 + $0x1d2] sm:$0xff]
  %v731 = vld [vmem:[#allocation2 + $0x1e2] sm:$0xff]
  %v732 = vld [vmem:[#allocation2 + $0x1ea] sm:$0xff]
  %v733 = vld [vmem:[#allocation2 + $0x1fa] sm:$0xff]
  %v734 = vld [vmem:[#allocation2 + $0x202] sm:$0xff]
  %v735 = vld [vmem:[#allocation2 + $0x212] sm:$0xff]
  %v736 = vld [vmem:[#allocation2 + $0x21a] sm:$0xff]
  %v737 = vld [vmem:[#allocation2 + $0x22a] sm:$0xff]
  %v738 = vld [vmem:[#allocation2 + $0x232] sm:$0xff]
  %v739 = vld [vmem:[#allocation2 + $0x242] sm:$0xff]
  %v740 = vld [vmem:[#allocation2 + $0x24a] sm:$0xff]
  %v741 = vld [vmem:[#allocation2 + $0x25a] sm:$0xff]
  %v742 = vld [vmem:[#allocation2 + $0x262] sm:$0xff]
  %v743 = vld [vmem:[#allocation2 + $0x272] sm:$0xff]
  %v744 = vld [vmem:[#allocation2 + $0x27a] sm:$0xff]
  %v745 = vld [vmem:[#allocation2 + $0x28a] sm:$0xff]
  %v746 = vld [vmem:[#allocation2 + $0x292] sm:$0xff]
  %v747 = vld [vmem:[#allocation2 + $0x2a2] sm:$0xff]
  %v748 = vld [vmem:[#allocation2 + $0x2aa] sm:$0xff]
  %v749 = vld [vmem:[#allocation2 + $0x2ba] sm:$0xff]
  %v750 = vld [vmem:[#allocation2 + $0x2c2] sm:$0xff]
  %v751 = vld [vmem:[#allocation2 + $0x2d2] sm:$0xff]
  %v752 = vld [vmem:[#allocation2 + $0x2da] sm:$0xff]
  %v753 = vld [vmem:[#allocation2 + $0x2ea] sm:$0xff]
  %v754 = vld [vmem:[#allocation2 + $0x2f2] sm:$0xff]
  %v755 = vld [vmem:[#allocation2 + $0x302] sm:$0xff]
  %v756 = vld [vmem:[#allocation2 + $0x30a] sm:$0xff]
  %v757 = vld [vmem:[#allocation2 + $0x31a] sm:$0xff]
  %v758 = vld [vmem:[#allocation2 + $0x322] sm:$0xff]
  %759 = vst [vmem:[#allocation3 + $0x10] sm:$0xff] %v695
  %760 = vst [vmem:[#allocation3 + $0x58] sm:$0xff] %v696
  %761 = vst [vmem:[#allocation3 + $0xa0] sm:$0xff] %v697
  %762 = vst [vmem:[#allocation3 + $0xe8] sm:$0xff] %v698
  %763 = vst [vmem:[#allocation3 + $0x130] sm:$0xff] %v699
  %764 = vst [vmem:[#allocation3 + $0x178] sm:$0xff] %v700
  %765 = vst [vmem:[#allocation3 + $0x1c0] sm:$0xff] %v701
  %766 = vst [vmem:[#allocation3 + $0x208] sm:$0xff] %v702
  %767 = vst [vmem:[#allocation3 + $0x250] sm:$0xff] %v703
  %768 = vst [vmem:[#allocation3 + $0x298] sm:$0xff] %v704
  %769 = vst [vmem:[#allocation3 + $0x2e0] sm:$0xff] %v705
  %770 = vst [vmem:[#allocation3 + $0x328] sm:$0xff] %v706
  %771 = vst [vmem:[#allocation3 + $0x370] sm:$0xff] %v707
  %772 = vst [vmem:[#allocation3 + $0x3b8] sm:$0xff] %v708
  %773 = vst [vmem:[#allocation3 + $0x400] sm:$0xff] %v709
  %774 = vst [vmem:[#allocation3 + $0x448] sm:$0xff] %v710
  %775 = vst [vmem:[#allocation3 + $0x490] sm:$0xff] %v711
  %776 = vst [vmem:[#allocation3 + $0x4d8] sm:$0xff] %v712
  %777 = vst [vmem:[#allocation3 + $0x520] sm:$0xff] %v713
  %778 = vst [vmem:[#allocation3 + $0x568] sm:$0xff] %v714
  %779 = vst [vmem:[#allocation3 + $0x5b0] sm:$0xff] %v715
  %780 = vst [vmem:[#allocation3 + $0x5f8] sm:$0xff] %v716
  %781 = vst [vmem:[#allocation3 + $0x640] sm:$0xff] %v717
  %782 = vst [vmem:[#allocation3 + $0x688] sm:$0xff] %v718
  %783 = vst [vmem:[#allocation3 + $0x6d0] sm:$0xff] %v719
  %784 = vst [vmem:[#allocation3 + $0x718] sm:$0xff] %v720
  %785 = vst [vmem:[#allocation3 + $0x760] sm:$0xff] %v721
  %786 = vst [vmem:[#allocation3 + $0x7a8] sm:$0xff] %v722
  %787 = vst [vmem:[#allocation3 + $0x7f0] sm:$0xff] %v723
  %788 = vst [vmem:[#allocation3 + $0x838] sm:$0xff] %v724
  %789 = vst [vmem:[#allocation3 + $0x880] sm:$0xff] %v725
  %790 = vst [vmem:[#allocation3 + $0x8c8] sm:$0xff] %v726
  %791 = vst [vmem:[#allocation3 + $0x910] sm:$0xff] %v727
  %792 = vst [vmem:[#allocation3 + $0x958] sm:$0xff] %v728
  %793 = vst [vmem:[#allocation3 + $0x9a0] sm:$0xff] %v729
  %794 = vst [vmem:[#allocation3 + $0x9e8] sm:$0xff] %v730
  %795 = vst [vmem:[#allocation3 + $0xa30] sm:$0xff] %v731
  %796 = vst [vmem:[#allocation3 + $0xa78] sm:$0xff] %v732
  %797 = vst [vmem:[#allocation3 + $0xac0] sm:$0xff] %v733
  %798 = vst [vmem:[#allocation3 + $0xb08] sm:$0xff] %v734
  %799 = vst [vmem:[#allocation3 + $0xb50] sm:$0xff] %v735
  %800 = vst [vmem:[#allocation3 + $0xb98] sm:$0xff] %v736
  %801 = vst [vmem:[#allocation3 + $0xbe0] sm:$0xff] %v737
  %802 = vst [vmem:[#allocation3 + $0xc28] sm:$0xff] %v738
  %803 = vst [vmem:[#allocation3 + $0xc70] sm:$0xff] %v739
  %804 = vst [vmem:[#allocation3 + $0xcb8] sm:$0xff] %v740
  %805 = vst [vmem:[#allocation3 + $0xd00] sm:$0xff] %v741
  %806 = vst [vmem:[#allocation3 + $0xd48] sm:$0xff] %v742
  %807 = vst [vmem:[#allocation3 + $0xd90] sm:$0xff] %v743
  %808 = vst [vmem:[#allocation3 + $0xdd8] sm:$0xff] %v744
  %809 = vst [vmem:[#allocation3 + $0xe20] sm:$0xff] %v745
  %810 = vst [vmem:[#allocation3 + $0xe68] sm:$0xff] %v746
  %811 = vst [vmem:[#allocation3 + $0xeb0] sm:$0xff] %v747
  %812 = vst [vmem:[#allocation3 + $0xef8] sm:$0xff] %v748
  %813 = vst [vmem:[#allocation3 + $0xf40] sm:$0xff] %v749
  %814 = vst [vmem:[#allocation3 + $0xf88] sm:$0xff] %v750
  %815 = vst [vmem:[#allocation3 + $0xfd0] sm:$0xff] %v751
  %816 = vst [vmem:[#allocation3 + $0x1018] sm:$0xff] %v752
  %817 = vst [vmem:[#allocation3 + $0x1060] sm:$0xff] %v753
  %818 = vst [vmem:[#allocation3 + $0x10a8] sm:$0xff] %v754
  %819 = vst [vmem:[#allocation3 + $0x10f0] sm:$0xff] %v755
  %820 = vst [vmem:[#allocation3 + $0x1138] sm:$0xff] %v756
  %821 = vst [vmem:[#allocation3 + $0x1180] sm:$0xff] %v757
  %822 = vst [vmem:[#allocation3 + $0x11c8] sm:$0xff] %v758
  %v823 = vld [vmem:[%s374] sm:$0xff]
  %v824 = vld [vmem:[%s374 + $0x8] sm:$0xff]
  %v825 = vld [vmem:[%s374 + $0x18] sm:$0xff]
  %v826 = vld [vmem:[%s374 + $0x20] sm:$0xff]
  %v827 = vld [vmem:[%s374 + $0x30] sm:$0xff]
  %v828 = vld [vmem:[%s374 + $0x38] sm:$0xff]
  %v829 = vld [vmem:[%s374 + $0x48] sm:$0xff]
  %v830 = vld [vmem:[%s374 + $0x50] sm:$0xff]
  %v831 = vld [vmem:[%s374 + $0x60] sm:$0xff]
  %v832 = vld [vmem:[%s374 + $0x68] sm:$0xff]
  %v833 = vld [vmem:[%s374 + $0x78] sm:$0xff]
  %v834 = vld [vmem:[%s374 + $0x80] sm:$0xff]
  %v835 = vld [vmem:[%s374 + $0x90] sm:$0xff]
  %v836 = vld [vmem:[%s374 + $0x98] sm:$0xff]
  %v837 = vld [vmem:[%s374 + $0xa8] sm:$0xff]
  %v838 = vld [vmem:[%s374 + $0xb0] sm:$0xff]
  %v839 = vld [vmem:[%s374 + $0xc0] sm:$0xff]
  %v840 = vld [vmem:[%s374 + $0xc8] sm:$0xff]
  %v841 = vld [vmem:[%s374 + $0xd8] sm:$0xff]
  %v842 = vld [vmem:[%s374 + $0xe0] sm:$0xff]
  %v843 = vld [vmem:[%s374 + $0xf0] sm:$0xff]
  %v844 = vld [vmem:[%s374 + $0xf8] sm:$0xff]
  %v845 = vld [vmem:[%s374 + $0x108] sm:$0xff]
  %v846 = vld [vmem:[%s374 + $0x110] sm:$0xff]
  %v847 = vld [vmem:[%s374 + $0x120] sm:$0xff]
  %v848 = vld [vmem:[%s374 + $0x128] sm:$0xff]
  %v849 = vld [vmem:[%s374 + $0x138] sm:$0xff]
  %v850 = vld [vmem:[%s374 + $0x140] sm:$0xff]
  %v851 = vld [vmem:[%s374 + $0x150] sm:$0xff]
  %v852 = vld [vmem:[%s374 + $0x158] sm:$0xff]
  %v853 = vld [vmem:[%s374 + $0x168] sm:$0xff]
  %v854 = vld [vmem:[%s374 + $0x170] sm:$0xff]
  %v855 = vld [vmem:[%s374 + $0x1b0] sm:$0xff]
  %v856 = vld [vmem:[%s374 + $0x1b8] sm:$0xff]
  %v857 = vld [vmem:[%s374 + $0x1c8] sm:$0xff]
  %v858 = vld [vmem:[%s374 + $0x1d0] sm:$0xff]
  %v859 = vld [vmem:[%s374 + $0x1e0] sm:$0xff]
  %v860 = vld [vmem:[%s374 + $0x1e8] sm:$0xff]
  %v861 = vld [vmem:[%s374 + $0x1f8] sm:$0xff]
  %v862 = vld [vmem:[%s374 + $0x200] sm:$0xff]
  %v863 = vld [vmem:[%s374 + $0x210] sm:$0xff]
  %v864 = vld [vmem:[%s374 + $0x218] sm:$0xff]
  %v865 = vld [vmem:[%s374 + $0x228] sm:$0xff]
  %v866 = vld [vmem:[%s374 + $0x230] sm:$0xff]
  %v867 = vld [vmem:[%s374 + $0x240] sm:$0xff]
  %v868 = vld [vmem:[%s374 + $0x248] sm:$0xff]
  %v869 = vld [vmem:[%s374 + $0x258] sm:$0xff]
  %v870 = vld [vmem:[%s374 + $0x260] sm:$0xff]
  %v871 = vld [vmem:[%s374 + $0x270] sm:$0xff]
  %v872 = vld [vmem:[%s374 + $0x278] sm:$0xff]
  %v873 = vld [vmem:[%s374 + $0x288] sm:$0xff]
  %v874 = vld [vmem:[%s374 + $0x290] sm:$0xff]
  %v875 = vld [vmem:[%s374 + $0x2a0] sm:$0xff]
  %v876 = vld [vmem:[%s374 + $0x2a8] sm:$0xff]
  %v877 = vld [vmem:[%s374 + $0x2b8] sm:$0xff]
  %v878 = vld [vmem:[%s374 + $0x2c0] sm:$0xff]
  %v879 = vld [vmem:[%s374 + $0x2d0] sm:$0xff]
  %v880 = vld [vmem:[%s374 + $0x2d8] sm:$0xff]
  %v881 = vld [vmem:[%s374 + $0x2e8] sm:$0xff]
  %v882 = vld [vmem:[%s374 + $0x2f0] sm:$0xff]
  %v883 = vld [vmem:[%s374 + $0x300] sm:$0xff]
  %v884 = vld [vmem:[%s374 + $0x308] sm:$0xff]
  %v885 = vld [vmem:[%s374 + $0x318] sm:$0xff]
  %v886 = vld [vmem:[%s374 + $0x320] sm:$0xff]
  %887 = vst [vmem:[#allocation3 + $0x18] sm:$0xff] %v823
  %888 = vst [vmem:[#allocation3 + $0x60] sm:$0xff] %v824
  %889 = vst [vmem:[#allocation3 + $0xa8] sm:$0xff] %v825
  %890 = vst [vmem:[#allocation3 + $0xf0] sm:$0xff] %v826
  %891 = vst [vmem:[#allocation3 + $0x138] sm:$0xff] %v827
  %892 = vst [vmem:[#allocation3 + $0x180] sm:$0xff] %v828
  %893 = vst [vmem:[#allocation3 + $0x1c8] sm:$0xff] %v829
  %894 = vst [vmem:[#allocation3 + $0x210] sm:$0xff] %v830
  %895 = vst [vmem:[#allocation3 + $0x258] sm:$0xff] %v831
  %896 = vst [vmem:[#allocation3 + $0x2a0] sm:$0xff] %v832
  %897 = vst [vmem:[#allocation3 + $0x2e8] sm:$0xff] %v833
  %898 = vst [vmem:[#allocation3 + $0x330] sm:$0xff] %v834
  %899 = vst [vmem:[#allocation3 + $0x378] sm:$0xff] %v835
  %900 = vst [vmem:[#allocation3 + $0x3c0] sm:$0xff] %v836
  %901 = vst [vmem:[#allocation3 + $0x408] sm:$0xff] %v837
  %902 = vst [vmem:[#allocation3 + $0x450] sm:$0xff] %v838
  %903 = vst [vmem:[#allocation3 + $0x498] sm:$0xff] %v839
  %904 = vst [vmem:[#allocation3 + $0x4e0] sm:$0xff] %v840
  %905 = vst [vmem:[#allocation3 + $0x528] sm:$0xff] %v841
  %906 = vst [vmem:[#allocation3 + $0x570] sm:$0xff] %v842
  %907 = vst [vmem:[#allocation3 + $0x5b8] sm:$0xff] %v843
  %908 = vst [vmem:[#allocation3 + $0x600] sm:$0xff] %v844
  %909 = vst [vmem:[#allocation3 + $0x648] sm:$0xff] %v845
  %910 = vst [vmem:[#allocation3 + $0x690] sm:$0xff] %v846
  %911 = vst [vmem:[#allocation3 + $0x6d8] sm:$0xff] %v847
  %912 = vst [vmem:[#allocation3 + $0x720] sm:$0xff] %v848
  %913 = vst [vmem:[#allocation3 + $0x768] sm:$0xff] %v849
  %914 = vst [vmem:[#allocation3 + $0x7b0] sm:$0xff] %v850
  %915 = vst [vmem:[#allocation3 + $0x7f8] sm:$0xff] %v851
  %916 = vst [vmem:[#allocation3 + $0x840] sm:$0xff] %v852
  %917 = vst [vmem:[#allocation3 + $0x888] sm:$0xff] %v853
  %918 = vst [vmem:[#allocation3 + $0x8d0] sm:$0xff] %v854
  %919 = vst [vmem:[#allocation3 + $0x918] sm:$0xff] %v855
  %920 = vst [vmem:[#allocation3 + $0x960] sm:$0xff] %v856
  %921 = vst [vmem:[#allocation3 + $0x9a8] sm:$0xff] %v857
  %922 = vst [vmem:[#allocation3 + $0x9f0] sm:$0xff] %v858
  %923 = vst [vmem:[#allocation3 + $0xa38] sm:$0xff] %v859
  %924 = vst [vmem:[#allocation3 + $0xa80] sm:$0xff] %v860
  %925 = vst [vmem:[#allocation3 + $0xac8] sm:$0xff] %v861
  %926 = vst [vmem:[#allocation3 + $0xb10] sm:$0xff] %v862
  %927 = vst [vmem:[#allocation3 + $0xb58] sm:$0xff] %v863
  %928 = vst [vmem:[#allocation3 + $0xba0] sm:$0xff] %v864
  %929 = vst [vmem:[#allocation3 + $0xbe8] sm:$0xff] %v865
  %930 = vst [vmem:[#allocation3 + $0xc30] sm:$0xff] %v866
  %931 = vst [vmem:[#allocation3 + $0xc78] sm:$0xff] %v867
  %932 = vst [vmem:[#allocation3 + $0xcc0] sm:$0xff] %v868
  %933 = vst [vmem:[#allocation3 + $0xd08] sm:$0xff] %v869
  %934 = vst [vmem:[#allocation3 + $0xd50] sm:$0xff] %v870
  %935 = vst [vmem:[#allocation3 + $0xd98] sm:$0xff] %v871
  %936 = vst [vmem:[#allocation3 + $0xde0] sm:$0xff] %v872
  %937 = vst [vmem:[#allocation3 + $0xe28] sm:$0xff] %v873
  %938 = vst [vmem:[#allocation3 + $0xe70] sm:$0xff] %v874
  %939 = vst [vmem:[#allocation3 + $0xeb8] sm:$0xff] %v875
  %940 = vst [vmem:[#allocation3 + $0xf00] sm:$0xff] %v876
  %941 = vst [vmem:[#allocation3 + $0xf48] sm:$0xff] %v877
  %942 = vst [vmem:[#allocation3 + $0xf90] sm:$0xff] %v878
  %943 = vst [vmem:[#allocation3 + $0xfd8] sm:$0xff] %v879
  %944 = vst [vmem:[#allocation3 + $0x1020] sm:$0xff] %v880
  %945 = vst [vmem:[#allocation3 + $0x1068] sm:$0xff] %v881
  %946 = vst [vmem:[#allocation3 + $0x10b0] sm:$0xff] %v882
  %947 = vst [vmem:[#allocation3 + $0x10f8] sm:$0xff] %v883
  %948 = vst [vmem:[#allocation3 + $0x1140] sm:$0xff] %v884
  %949 = vst [vmem:[#allocation3 + $0x1188] sm:$0xff] %v885
  %950 = vst [vmem:[#allocation3 + $0x11d0] sm:$0xff] %v886
  %v951 = vld [vmem:[%s374 + $0x1] sm:$0xff]
  %v952 = vld [vmem:[%s374 + $0x9] sm:$0xff]
  %v953 = vld [vmem:[%s374 + $0x19] sm:$0xff]
  %v954 = vld [vmem:[%s374 + $0x21] sm:$0xff]
  %v955 = vld [vmem:[%s374 + $0x31] sm:$0xff]
  %v956 = vld [vmem:[%s374 + $0x39] sm:$0xff]
  %v957 = vld [vmem:[%s374 + $0x49] sm:$0xff]
  %v958 = vld [vmem:[%s374 + $0x51] sm:$0xff]
  %v959 = vld [vmem:[%s374 + $0x61] sm:$0xff]
  %v960 = vld [vmem:[%s374 + $0x69] sm:$0xff]
  %v961 = vld [vmem:[%s374 + $0x79] sm:$0xff]
  %v962 = vld [vmem:[%s374 + $0x81] sm:$0xff]
  %v963 = vld [vmem:[%s374 + $0x91] sm:$0xff]
  %v964 = vld [vmem:[%s374 + $0x99] sm:$0xff]
  %v965 = vld [vmem:[%s374 + $0xa9] sm:$0xff]
  %v966 = vld [vmem:[%s374 + $0xb1] sm:$0xff]
  %v967 = vld [vmem:[%s374 + $0xc1] sm:$0xff]
  %v968 = vld [vmem:[%s374 + $0xc9] sm:$0xff]
  %v969 = vld [vmem:[%s374 + $0xd9] sm:$0xff]
  %v970 = vld [vmem:[%s374 + $0xe1] sm:$0xff]
  %v971 = vld [vmem:[%s374 + $0xf1] sm:$0xff]
  %v972 = vld [vmem:[%s374 + $0xf9] sm:$0xff]
  %v973 = vld [vmem:[%s374 + $0x109] sm:$0xff]
  %v974 = vld [vmem:[%s374 + $0x111] sm:$0xff]
  %v975 = vld [vmem:[%s374 + $0x121] sm:$0xff]
  %v976 = vld [vmem:[%s374 + $0x129] sm:$0xff]
  %v977 = vld [vmem:[%s374 + $0x139] sm:$0xff]
  %v978 = vld [vmem:[%s374 + $0x141] sm:$0xff]
  %v979 = vld [vmem:[%s374 + $0x151] sm:$0xff]
  %v980 = vld [vmem:[%s374 + $0x159] sm:$0xff]
  %v981 = vld [vmem:[%s374 + $0x169] sm:$0xff]
  %v982 = vld [vmem:[%s374 + $0x171] sm:$0xff]
  %v983 = vld [vmem:[%s374 + $0x1b1] sm:$0xff]
  %v984 = vld [vmem:[%s374 + $0x1b9] sm:$0xff]
  %v985 = vld [vmem:[%s374 + $0x1c9] sm:$0xff]
  %v986 = vld [vmem:[%s374 + $0x1d1] sm:$0xff]
  %v987 = vld [vmem:[%s374 + $0x1e1] sm:$0xff]
  %v988 = vld [vmem:[%s374 + $0x1e9] sm:$0xff]
  %v989 = vld [vmem:[%s374 + $0x1f9] sm:$0xff]
  %v990 = vld [vmem:[%s374 + $0x201] sm:$0xff]
  %v991 = vld [vmem:[%s374 + $0x211] sm:$0xff]
  %v992 = vld [vmem:[%s374 + $0x219] sm:$0xff]
  %v993 = vld [vmem:[%s374 + $0x229] sm:$0xff]
  %v994 = vld [vmem:[%s374 + $0x231] sm:$0xff]
  %v995 = vld [vmem:[%s374 + $0x241] sm:$0xff]
  %v996 = vld [vmem:[%s374 + $0x249] sm:$0xff]
  %v997 = vld [vmem:[%s374 + $0x259] sm:$0xff]
  %v998 = vld [vmem:[%s374 + $0x261] sm:$0xff]
  %v999 = vld [vmem:[%s374 + $0x271] sm:$0xff]
  %v1000 = vld [vmem:[%s374 + $0x279] sm:$0xff]
  %v1001 = vld [vmem:[%s374 + $0x289] sm:$0xff]
  %v1002 = vld [vmem:[%s374 + $0x291] sm:$0xff]
  %v1003 = vld [vmem:[%s374 + $0x2a1] sm:$0xff]
  %v1004 = vld [vmem:[%s374 + $0x2a9] sm:$0xff]
  %v1005 = vld [vmem:[%s374 + $0x2b9] sm:$0xff]
  %v1006 = vld [vmem:[%s374 + $0x2c1] sm:$0xff]
  %v1007 = vld [vmem:[%s374 + $0x2d1] sm:$0xff]
  %v1008 = vld [vmem:[%s374 + $0x2d9] sm:$0xff]
  %v1009 = vld [vmem:[%s374 + $0x2e9] sm:$0xff]
  %v1010 = vld [vmem:[%s374 + $0x2f1] sm:$0xff]
  %v1011 = vld [vmem:[%s374 + $0x301] sm:$0xff]
  %v1012 = vld [vmem:[%s374 + $0x309] sm:$0xff]
  %v1013 = vld [vmem:[%s374 + $0x319] sm:$0xff]
  %v1014 = vld [vmem:[%s374 + $0x321] sm:$0xff]
  %1015 = vst [vmem:[#allocation3 + $0x20] sm:$0xff] %v951
  %1016 = vst [vmem:[#allocation3 + $0x68] sm:$0xff] %v952
  %1017 = vst [vmem:[#allocation3 + $0xb0] sm:$0xff] %v953
  %1018 = vst [vmem:[#allocation3 + $0xf8] sm:$0xff] %v954
  %1019 = vst [vmem:[#allocation3 + $0x140] sm:$0xff] %v955
  %1020 = vst [vmem:[#allocation3 + $0x188] sm:$0xff] %v956
  %1021 = vst [vmem:[#allocation3 + $0x1d0] sm:$0xff] %v957
  %1022 = vst [vmem:[#allocation3 + $0x218] sm:$0xff] %v958
  %1023 = vst [vmem:[#allocation3 + $0x260] sm:$0xff] %v959
  %1024 = vst [vmem:[#allocation3 + $0x2a8] sm:$0xff] %v960
  %1025 = vst [vmem:[#allocation3 + $0x2f0] sm:$0xff] %v961
  %1026 = vst [vmem:[#allocation3 + $0x338] sm:$0xff] %v962
  %1027 = vst [vmem:[#allocation3 + $0x380] sm:$0xff] %v963
  %1028 = vst [vmem:[#allocation3 + $0x3c8] sm:$0xff] %v964
  %1029 = vst [vmem:[#allocation3 + $0x410] sm:$0xff] %v965
  %1030 = vst [vmem:[#allocation3 + $0x458] sm:$0xff] %v966
  %1031 = vst [vmem:[#allocation3 + $0x4a0] sm:$0xff] %v967
  %1032 = vst [vmem:[#allocation3 + $0x4e8] sm:$0xff] %v968
  %1033 = vst [vmem:[#allocation3 + $0x530] sm:$0xff] %v969
  %1034 = vst [vmem:[#allocation3 + $0x578] sm:$0xff] %v970
  %1035 = vst [vmem:[#allocation3 + $0x5c0] sm:$0xff] %v971
  %1036 = vst [vmem:[#allocation3 + $0x608] sm:$0xff] %v972
  %1037 = vst [vmem:[#allocation3 + $0x650] sm:$0xff] %v973
  %1038 = vst [vmem:[#allocation3 + $0x698] sm:$0xff] %v974
  %1039 = vst [vmem:[#allocation3 + $0x6e0] sm:$0xff] %v975
  %1040 = vst [vmem:[#allocation3 + $0x728] sm:$0xff] %v976
  %1041 = vst [vmem:[#allocation3 + $0x770] sm:$0xff] %v977
  %1042 = vst [vmem:[#allocation3 + $0x7b8] sm:$0xff] %v978
  %1043 = vst [vmem:[#allocation3 + $0x800] sm:$0xff] %v979
  %1044 = vst [vmem:[#allocation3 + $0x848] sm:$0xff] %v980
  %1045 = vst [vmem:[#allocation3 + $0x890] sm:$0xff] %v981
  %1046 = vst [vmem:[#allocation3 + $0x8d8] sm:$0xff] %v982
  %1047 = vst [vmem:[#allocation3 + $0x920] sm:$0xff] %v983
  %1048 = vst [vmem:[#allocation3 + $0x968] sm:$0xff] %v984
  %1049 = vst [vmem:[#allocation3 + $0x9b0] sm:$0xff] %v985
  %1050 = vst [vmem:[#allocation3 + $0x9f8] sm:$0xff] %v986
  %1051 = vst [vmem:[#allocation3 + $0xa40] sm:$0xff] %v987
  %1052 = vst [vmem:[#allocation3 + $0xa88] sm:$0xff] %v988
  %1053 = vst [vmem:[#allocation3 + $0xad0] sm:$0xff] %v989
  %1054 = vst [vmem:[#allocation3 + $0xb18] sm:$0xff] %v990
  %1055 = vst [vmem:[#allocation3 + $0xb60] sm:$0xff] %v991
  %1056 = vst [vmem:[#allocation3 + $0xba8] sm:$0xff] %v992
  %1057 = vst [vmem:[#allocation3 + $0xbf0] sm:$0xff] %v993
  %1058 = vst [vmem:[#allocation3 + $0xc38] sm:$0xff] %v994
  %1059 = vst [vmem:[#allocation3 + $0xc80] sm:$0xff] %v995
  %1060 = vst [vmem:[#allocation3 + $0xcc8] sm:$0xff] %v996
  %1061 = vst [vmem:[#allocation3 + $0xd10] sm:$0xff] %v997
  %1062 = vst [vmem:[#allocation3 + $0xd58] sm:$0xff] %v998
  %1063 = vst [vmem:[#allocation3 + $0xda0] sm:$0xff] %v999
  %1064 = vst [vmem:[#allocation3 + $0xde8] sm:$0xff] %v1000
  %1065 = vst [vmem:[#allocation3 + $0xe30] sm:$0xff] %v1001
  %1066 = vst [vmem:[#allocation3 + $0xe78] sm:$0xff] %v1002
  %1067 = vst [vmem:[#allocation3 + $0xec0] sm:$0xff] %v1003
  %1068 = vst [vmem:[#allocation3 + $0xf08] sm:$0xff] %v1004
  %1069 = vst [vmem:[#allocation3 + $0xf50] sm:$0xff] %v1005
  %1070 = vst [vmem:[#allocation3 + $0xf98] sm:$0xff] %v1006
  %1071 = vst [vmem:[#allocation3 + $0xfe0] sm:$0xff] %v1007
  %1072 = vst [vmem:[#allocation3 + $0x1028] sm:$0xff] %v1008
  %1073 = vst [vmem:[#allocation3 + $0x1070] sm:$0xff] %v1009
  %1074 = vst [vmem:[#allocation3 + $0x10b8] sm:$0xff] %v1010
  %1075 = vst [vmem:[#allocation3 + $0x1100] sm:$0xff] %v1011
  %1076 = vst [vmem:[#allocation3 + $0x1148] sm:$0xff] %v1012
  %1077 = vst [vmem:[#allocation3 + $0x1190] sm:$0xff] %v1013
  %1078 = vst [vmem:[#allocation3 + $0x11d8] sm:$0xff] %v1014
  %v1079 = vld [vmem:[%s374 + $0x2] sm:$0xff]
  %v1080 = vld [vmem:[%s374 + $0xa] sm:$0xff]
  %v1081 = vld [vmem:[%s374 + $0x1a] sm:$0xff]
  %v1082 = vld [vmem:[%s374 + $0x22] sm:$0xff]
  %v1083 = vld [vmem:[%s374 + $0x32] sm:$0xff]
  %v1084 = vld [vmem:[%s374 + $0x3a] sm:$0xff]
  %v1085 = vld [vmem:[%s374 + $0x4a] sm:$0xff]
  %v1086 = vld [vmem:[%s374 + $0x52] sm:$0xff]
  %v1087 = vld [vmem:[%s374 + $0x62] sm:$0xff]
  %v1088 = vld [vmem:[%s374 + $0x6a] sm:$0xff]
  %v1089 = vld [vmem:[%s374 + $0x7a] sm:$0xff]
  %v1090 = vld [vmem:[%s374 + $0x82] sm:$0xff]
  %v1091 = vld [vmem:[%s374 + $0x92] sm:$0xff]
  %v1092 = vld [vmem:[%s374 + $0x9a] sm:$0xff]
  %v1093 = vld [vmem:[%s374 + $0xaa] sm:$0xff]
  %v1094 = vld [vmem:[%s374 + $0xb2] sm:$0xff]
  %v1095 = vld [vmem:[%s374 + $0xc2] sm:$0xff]
  %v1096 = vld [vmem:[%s374 + $0xca] sm:$0xff]
  %v1097 = vld [vmem:[%s374 + $0xda] sm:$0xff]
  %v1098 = vld [vmem:[%s374 + $0xe2] sm:$0xff]
  %v1099 = vld [vmem:[%s374 + $0xf2] sm:$0xff]
  %v1100 = vld [vmem:[%s374 + $0xfa] sm:$0xff]
  %v1101 = vld [vmem:[%s374 + $0x10a] sm:$0xff]
  %v1102 = vld [vmem:[%s374 + $0x112] sm:$0xff]
  %v1103 = vld [vmem:[%s374 + $0x122] sm:$0xff]
  %v1104 = vld [vmem:[%s374 + $0x12a] sm:$0xff]
  %v1105 = vld [vmem:[%s374 + $0x13a] sm:$0xff]
  %v1106 = vld [vmem:[%s374 + $0x142] sm:$0xff]
  %v1107 = vld [vmem:[%s374 + $0x152] sm:$0xff]
  %v1108 = vld [vmem:[%s374 + $0x15a] sm:$0xff]
  %v1109 = vld [vmem:[%s374 + $0x16a] sm:$0xff]
  %v1110 = vld [vmem:[%s374 + $0x172] sm:$0xff]
  %v1111 = vld [vmem:[%s374 + $0x1b2] sm:$0xff]
  %v1112 = vld [vmem:[%s374 + $0x1ba] sm:$0xff]
  %v1113 = vld [vmem:[%s374 + $0x1ca] sm:$0xff]
  %v1114 = vld [vmem:[%s374 + $0x1d2] sm:$0xff]
  %v1115 = vld [vmem:[%s374 + $0x1e2] sm:$0xff]
  %v1116 = vld [vmem:[%s374 + $0x1ea] sm:$0xff]
  %v1117 = vld [vmem:[%s374 + $0x1fa] sm:$0xff]
  %v1118 = vld [vmem:[%s374 + $0x202] sm:$0xff]
  %v1119 = vld [vmem:[%s374 + $0x212] sm:$0xff]
  %v1120 = vld [vmem:[%s374 + $0x21a] sm:$0xff]
  %v1121 = vld [vmem:[%s374 + $0x22a] sm:$0xff]
  %v1122 = vld [vmem:[%s374 + $0x232] sm:$0xff]
  %v1123 = vld [vmem:[%s374 + $0x242] sm:$0xff]
  %v1124 = vld [vmem:[%s374 + $0x24a] sm:$0xff]
  %v1125 = vld [vmem:[%s374 + $0x25a] sm:$0xff]
  %v1126 = vld [vmem:[%s374 + $0x262] sm:$0xff]
  %v1127 = vld [vmem:[%s374 + $0x272] sm:$0xff]
  %v1128 = vld [vmem:[%s374 + $0x27a] sm:$0xff]
  %v1129 = vld [vmem:[%s374 + $0x28a] sm:$0xff]
  %v1130 = vld [vmem:[%s374 + $0x292] sm:$0xff]
  %v1131 = vld [vmem:[%s374 + $0x2a2] sm:$0xff]
  %v1132 = vld [vmem:[%s374 + $0x2aa] sm:$0xff]
  %v1133 = vld [vmem:[%s374 + $0x2ba] sm:$0xff]
  %v1134 = vld [vmem:[%s374 + $0x2c2] sm:$0xff]
  %v1135 = vld [vmem:[%s374 + $0x2d2] sm:$0xff]
  %v1136 = vld [vmem:[%s374 + $0x2da] sm:$0xff]
  %v1137 = vld [vmem:[%s374 + $0x2ea] sm:$0xff]
  %v1138 = vld [vmem:[%s374 + $0x2f2] sm:$0xff]
  %v1139 = vld [vmem:[%s374 + $0x302] sm:$0xff]
  %v1140 = vld [vmem:[%s374 + $0x30a] sm:$0xff]
  %v1141 = vld [vmem:[%s374 + $0x31a] sm:$0xff]
  %v1142 = vld [vmem:[%s374 + $0x322] sm:$0xff]
  %1143 = vst [vmem:[#allocation3 + $0x28] sm:$0xff] %v1079
  %1144 = vst [vmem:[#allocation3 + $0x70] sm:$0xff] %v1080
  %1145 = vst [vmem:[#allocation3 + $0xb8] sm:$0xff] %v1081
  %1146 = vst [vmem:[#allocation3 + $0x100] sm:$0xff] %v1082
  %1147 = vst [vmem:[#allocation3 + $0x148] sm:$0xff] %v1083
  %1148 = vst [vmem:[#allocation3 + $0x190] sm:$0xff] %v1084
  %1149 = vst [vmem:[#allocation3 + $0x1d8] sm:$0xff] %v1085
  %1150 = vst [vmem:[#allocation3 + $0x220] sm:$0xff] %v1086
  %1151 = vst [vmem:[#allocation3 + $0x268] sm:$0xff] %v1087
  %1152 = vst [vmem:[#allocation3 + $0x2b0] sm:$0xff] %v1088
  %1153 = vst [vmem:[#allocation3 + $0x2f8] sm:$0xff] %v1089
  %1154 = vst [vmem:[#allocation3 + $0x340] sm:$0xff] %v1090
  %1155 = vst [vmem:[#allocation3 + $0x388] sm:$0xff] %v1091
  %1156 = vst [vmem:[#allocation3 + $0x3d0] sm:$0xff] %v1092
  %1157 = vst [vmem:[#allocation3 + $0x418] sm:$0xff] %v1093
  %1158 = vst [vmem:[#allocation3 + $0x460] sm:$0xff] %v1094
  %1159 = vst [vmem:[#allocation3 + $0x4a8] sm:$0xff] %v1095
  %1160 = vst [vmem:[#allocation3 + $0x4f0] sm:$0xff] %v1096
  %1161 = vst [vmem:[#allocation3 + $0x538] sm:$0xff] %v1097
  %1162 = vst [vmem:[#allocation3 + $0x580] sm:$0xff] %v1098
  %1163 = vst [vmem:[#allocation3 + $0x5c8] sm:$0xff] %v1099
  %1164 = vst [vmem:[#allocation3 + $0x610] sm:$0xff] %v1100
  %1165 = vst [vmem:[#allocation3 + $0x658] sm:$0xff] %v1101
  %1166 = vst [vmem:[#allocation3 + $0x6a0] sm:$0xff] %v1102
  %1167 = vst [vmem:[#allocation3 + $0x6e8] sm:$0xff] %v1103
  %1168 = vst [vmem:[#allocation3 + $0x730] sm:$0xff] %v1104
  %1169 = vst [vmem:[#allocation3 + $0x778] sm:$0xff] %v1105
  %1170 = vst [vmem:[#allocation3 + $0x7c0] sm:$0xff] %v1106
  %1171 = vst [vmem:[#allocation3 + $0x808] sm:$0xff] %v1107
  %1172 = vst [vmem:[#allocation3 + $0x850] sm:$0xff] %v1108
  %1173 = vst [vmem:[#allocation3 + $0x898] sm:$0xff] %v1109
  %1174 = vst [vmem:[#allocation3 + $0x8e0] sm:$0xff] %v1110
  %1175 = vst [vmem:[#allocation3 + $0x928] sm:$0xff] %v1111
  %1176 = vst [vmem:[#allocation3 + $0x970] sm:$0xff] %v1112
  %1177 = vst [vmem:[#allocation3 + $0x9b8] sm:$0xff] %v1113
  %1178 = vst [vmem:[#allocation3 + $0xa00] sm:$0xff] %v1114
  %1179 = vst [vmem:[#allocation3 + $0xa48] sm:$0xff] %v1115
  %1180 = vst [vmem:[#allocation3 + $0xa90] sm:$0xff] %v1116
  %1181 = vst [vmem:[#allocation3 + $0xad8] sm:$0xff] %v1117
  %1182 = vst [vmem:[#allocation3 + $0xb20] sm:$0xff] %v1118
  %1183 = vst [vmem:[#allocation3 + $0xb68] sm:$0xff] %v1119
  %1184 = vst [vmem:[#allocation3 + $0xbb0] sm:$0xff] %v1120
  %1185 = vst [vmem:[#allocation3 + $0xbf8] sm:$0xff] %v1121
  %1186 = vst [vmem:[#allocation3 + $0xc40] sm:$0xff] %v1122
  %1187 = vst [vmem:[#allocation3 + $0xc88] sm:$0xff] %v1123
  %1188 = vst [vmem:[#allocation3 + $0xcd0] sm:$0xff] %v1124
  %1189 = vst [vmem:[#allocation3 + $0xd18] sm:$0xff] %v1125
  %1190 = vst [vmem:[#allocation3 + $0xd60] sm:$0xff] %v1126
  %1191 = vst [vmem:[#allocation3 + $0xda8] sm:$0xff] %v1127
  %1192 = vst [vmem:[#allocation3 + $0xdf0] sm:$0xff] %v1128
  %1193 = vst [vmem:[#allocation3 + $0xe38] sm:$0xff] %v1129
  %1194 = vst [vmem:[#allocation3 + $0xe80] sm:$0xff] %v1130
  %1195 = vst [vmem:[#allocation3 + $0xec8] sm:$0xff] %v1131
  %1196 = vst [vmem:[#allocation3 + $0xf10] sm:$0xff] %v1132
  %1197 = vst [vmem:[#allocation3 + $0xf58] sm:$0xff] %v1133
  %1198 = vst [vmem:[#allocation3 + $0xfa0] sm:$0xff] %v1134
  %1199 = vst [vmem:[#allocation3 + $0xfe8] sm:$0xff] %v1135
  %1200 = vst [vmem:[#allocation3 + $0x1030] sm:$0xff] %v1136
  %1201 = vst [vmem:[#allocation3 + $0x1078] sm:$0xff] %v1137
  %1202 = vst [vmem:[#allocation3 + $0x10c0] sm:$0xff] %v1138
  %1203 = vst [vmem:[#allocation3 + $0x1108] sm:$0xff] %v1139
  %1204 = vst [vmem:[#allocation3 + $0x1150] sm:$0xff] %v1140
  %1205 = vst [vmem:[#allocation3 + $0x1198] sm:$0xff] %v1141
  %1206 = vst [vmem:[#allocation3 + $0x11e0] sm:$0xff] %v1142
  %s1207 = scalar_lea.vmem [#allocation2], 48
  %v1208 = vld [vmem:[%s1207] sm:$0xff]
  %v1209 = vld [vmem:[%s1207 + $0x8] sm:$0xff]
  %v1210 = vld [vmem:[%s1207 + $0x18] sm:$0xff]
  %v1211 = vld [vmem:[%s1207 + $0x20] sm:$0xff]
  %v1212 = vld [vmem:[%s1207 + $0x30] sm:$0xff]
  %v1213 = vld [vmem:[%s1207 + $0x38] sm:$0xff]
  %v1214 = vld [vmem:[%s1207 + $0x48] sm:$0xff]
  %v1215 = vld [vmem:[%s1207 + $0x50] sm:$0xff]
  %v1216 = vld [vmem:[%s1207 + $0x60] sm:$0xff]
  %v1217 = vld [vmem:[%s1207 + $0x68] sm:$0xff]
  %v1218 = vld [vmem:[%s1207 + $0x78] sm:$0xff]
  %v1219 = vld [vmem:[%s1207 + $0x80] sm:$0xff]
  %v1220 = vld [vmem:[%s1207 + $0x90] sm:$0xff]
  %v1221 = vld [vmem:[%s1207 + $0x98] sm:$0xff]
  %v1222 = vld [vmem:[%s1207 + $0xa8] sm:$0xff]
  %v1223 = vld [vmem:[%s1207 + $0xb0] sm:$0xff]
  %v1224 = vld [vmem:[%s1207 + $0xc0] sm:$0xff]
  %v1225 = vld [vmem:[%s1207 + $0xc8] sm:$0xff]
  %v1226 = vld [vmem:[%s1207 + $0xd8] sm:$0xff]
  %v1227 = vld [vmem:[%s1207 + $0xe0] sm:$0xff]
  %v1228 = vld [vmem:[%s1207 + $0xf0] sm:$0xff]
  %v1229 = vld [vmem:[%s1207 + $0xf8] sm:$0xff]
  %v1230 = vld [vmem:[%s1207 + $0x108] sm:$0xff]
  %v1231 = vld [vmem:[%s1207 + $0x110] sm:$0xff]
  %v1232 = vld [vmem:[%s1207 + $0x120] sm:$0xff]
  %v1233 = vld [vmem:[%s1207 + $0x128] sm:$0xff]
  %v1234 = vld [vmem:[%s1207 + $0x138] sm:$0xff]
  %v1235 = vld [vmem:[%s1207 + $0x140] sm:$0xff]
  %v1236 = vld [vmem:[%s1207 + $0x150] sm:$0xff]
  %v1237 = vld [vmem:[%s1207 + $0x158] sm:$0xff]
  %v1238 = vld [vmem:[%s1207 + $0x168] sm:$0xff]
  %v1239 = vld [vmem:[%s1207 + $0x170] sm:$0xff]
  %v1240 = vld [vmem:[%s1207 + $0x1b0] sm:$0xff]
  %v1241 = vld [vmem:[%s1207 + $0x1b8] sm:$0xff]
  %v1242 = vld [vmem:[%s1207 + $0x1c8] sm:$0xff]
  %v1243 = vld [vmem:[%s1207 + $0x1d0] sm:$0xff]
  %v1244 = vld [vmem:[%s1207 + $0x1e0] sm:$0xff]
  %v1245 = vld [vmem:[%s1207 + $0x1e8] sm:$0xff]
  %v1246 = vld [vmem:[%s1207 + $0x1f8] sm:$0xff]
  %v1247 = vld [vmem:[%s1207 + $0x200] sm:$0xff]
  %v1248 = vld [vmem:[%s1207 + $0x210] sm:$0xff]
  %v1249 = vld [vmem:[%s1207 + $0x218] sm:$0xff]
  %v1250 = vld [vmem:[%s1207 + $0x228] sm:$0xff]
  %v1251 = vld [vmem:[%s1207 + $0x230] sm:$0xff]
  %v1252 = vld [vmem:[%s1207 + $0x240] sm:$0xff]
  %v1253 = vld [vmem:[%s1207 + $0x248] sm:$0xff]
  %v1254 = vld [vmem:[%s1207 + $0x258] sm:$0xff]
  %v1255 = vld [vmem:[%s1207 + $0x260] sm:$0xff]
  %v1256 = vld [vmem:[%s1207 + $0x270] sm:$0xff]
  %v1257 = vld [vmem:[%s1207 + $0x278] sm:$0xff]
  %v1258 = vld [vmem:[%s1207 + $0x288] sm:$0xff]
  %v1259 = vld [vmem:[%s1207 + $0x290] sm:$0xff]
  %v1260 = vld [vmem:[%s1207 + $0x2a0] sm:$0xff]
  %v1261 = vld [vmem:[%s1207 + $0x2a8] sm:$0xff]
  %v1262 = vld [vmem:[%s1207 + $0x2b8] sm:$0xff]
  %v1263 = vld [vmem:[%s1207 + $0x2c0] sm:$0xff]
  %v1264 = vld [vmem:[%s1207 + $0x2d0] sm:$0xff]
  %v1265 = vld [vmem:[%s1207 + $0x2d8] sm:$0xff]
  %v1266 = vld [vmem:[%s1207 + $0x2e8] sm:$0xff]
  %v1267 = vld [vmem:[%s1207 + $0x2f0] sm:$0xff]
  %v1268 = vld [vmem:[%s1207 + $0x300] sm:$0xff]
  %v1269 = vld [vmem:[%s1207 + $0x308] sm:$0xff]
  %v1270 = vld [vmem:[%s1207 + $0x318] sm:$0xff]
  %v1271 = vld [vmem:[%s1207 + $0x320] sm:$0xff]
  %1272 = vst [vmem:[#allocation3 + $0x30] sm:$0xff] %v1208
  %1273 = vst [vmem:[#allocation3 + $0x78] sm:$0xff] %v1209
  %1274 = vst [vmem:[#allocation3 + $0xc0] sm:$0xff] %v1210
  %1275 = vst [vmem:[#allocation3 + $0x108] sm:$0xff] %v1211
  %1276 = vst [vmem:[#allocation3 + $0x150] sm:$0xff] %v1212
  %1277 = vst [vmem:[#allocation3 + $0x198] sm:$0xff] %v1213
  %1278 = vst [vmem:[#allocation3 + $0x1e0] sm:$0xff] %v1214
  %1279 = vst [vmem:[#allocation3 + $0x228] sm:$0xff] %v1215
  %1280 = vst [vmem:[#allocation3 + $0x270] sm:$0xff] %v1216
  %1281 = vst [vmem:[#allocation3 + $0x2b8] sm:$0xff] %v1217
  %1282 = vst [vmem:[#allocation3 + $0x300] sm:$0xff] %v1218
  %1283 = vst [vmem:[#allocation3 + $0x348] sm:$0xff] %v1219
  %1284 = vst [vmem:[#allocation3 + $0x390] sm:$0xff] %v1220
  %1285 = vst [vmem:[#allocation3 + $0x3d8] sm:$0xff] %v1221
  %1286 = vst [vmem:[#allocation3 + $0x420] sm:$0xff] %v1222
  %1287 = vst [vmem:[#allocation3 + $0x468] sm:$0xff] %v1223
  %1288 = vst [vmem:[#allocation3 + $0x4b0] sm:$0xff] %v1224
  %1289 = vst [vmem:[#allocation3 + $0x4f8] sm:$0xff] %v1225
  %1290 = vst [vmem:[#allocation3 + $0x540] sm:$0xff] %v1226
  %1291 = vst [vmem:[#allocation3 + $0x588] sm:$0xff] %v1227
  %1292 = vst [vmem:[#allocation3 + $0x5d0] sm:$0xff] %v1228
  %1293 = vst [vmem:[#allocation3 + $0x618] sm:$0xff] %v1229
  %1294 = vst [vmem:[#allocation3 + $0x660] sm:$0xff] %v1230
  %1295 = vst [vmem:[#allocation3 + $0x6a8] sm:$0xff] %v1231
  %1296 = vst [vmem:[#allocation3 + $0x6f0] sm:$0xff] %v1232
  %1297 = vst [vmem:[#allocation3 + $0x738] sm:$0xff] %v1233
  %1298 = vst [vmem:[#allocation3 + $0x780] sm:$0xff] %v1234
  %1299 = vst [vmem:[#allocation3 + $0x7c8] sm:$0xff] %v1235
  %1300 = vst [vmem:[#allocation3 + $0x810] sm:$0xff] %v1236
  %1301 = vst [vmem:[#allocation3 + $0x858] sm:$0xff] %v1237
  %1302 = vst [vmem:[#allocation3 + $0x8a0] sm:$0xff] %v1238
  %1303 = vst [vmem:[#allocation3 + $0x8e8] sm:$0xff] %v1239
  %1304 = vst [vmem:[#allocation3 + $0x930] sm:$0xff] %v1240
  %1305 = vst [vmem:[#allocation3 + $0x978] sm:$0xff] %v1241
  %1306 = vst [vmem:[#allocation3 + $0x9c0] sm:$0xff] %v1242
  %1307 = vst [vmem:[#allocation3 + $0xa08] sm:$0xff] %v1243
  %1308 = vst [vmem:[#allocation3 + $0xa50] sm:$0xff] %v1244
  %1309 = vst [vmem:[#allocation3 + $0xa98] sm:$0xff] %v1245
  %1310 = vst [vmem:[#allocation3 + $0xae0] sm:$0xff] %v1246
  %1311 = vst [vmem:[#allocation3 + $0xb28] sm:$0xff] %v1247
  %1312 = vst [vmem:[#allocation3 + $0xb70] sm:$0xff] %v1248
  %1313 = vst [vmem:[#allocation3 + $0xbb8] sm:$0xff] %v1249
  %1314 = vst [vmem:[#allocation3 + $0xc00] sm:$0xff] %v1250
  %1315 = vst [vmem:[#allocation3 + $0xc48] sm:$0xff] %v1251
  %1316 = vst [vmem:[#allocation3 + $0xc90] sm:$0xff] %v1252
  %1317 = vst [vmem:[#allocation3 + $0xcd8] sm:$0xff] %v1253
  %1318 = vst [vmem:[#allocation3 + $0xd20] sm:$0xff] %v1254
  %1319 = vst [vmem:[#allocation3 + $0xd68] sm:$0xff] %v1255
  %1320 = vst [vmem:[#allocation3 + $0xdb0] sm:$0xff] %v1256
  %1321 = vst [vmem:[#allocation3 + $0xdf8] sm:$0xff] %v1257
  %1322 = vst [vmem:[#allocation3 + $0xe40] sm:$0xff] %v1258
  %1323 = vst [vmem:[#allocation3 + $0xe88] sm:$0xff] %v1259
  %1324 = vst [vmem:[#allocation3 + $0xed0] sm:$0xff] %v1260
  %1325 = vst [vmem:[#allocation3 + $0xf18] sm:$0xff] %v1261
  %1326 = vst [vmem:[#allocation3 + $0xf60] sm:$0xff] %v1262
  %1327 = vst [vmem:[#allocation3 + $0xfa8] sm:$0xff] %v1263
  %1328 = vst [vmem:[#allocation3 + $0xff0] sm:$0xff] %v1264
  %1329 = vst [vmem:[#allocation3 + $0x1038] sm:$0xff] %v1265
  %1330 = vst [vmem:[#allocation3 + $0x1080] sm:$0xff] %v1266
  %1331 = vst [vmem:[#allocation3 + $0x10c8] sm:$0xff] %v1267
  %1332 = vst [vmem:[#allocation3 + $0x1110] sm:$0xff] %v1268
  %1333 = vst [vmem:[#allocation3 + $0x1158] sm:$0xff] %v1269
  %1334 = vst [vmem:[#allocation3 + $0x11a0] sm:$0xff] %v1270
  %1335 = vst [vmem:[#allocation3 + $0x11e8] sm:$0xff] %v1271
  %v1336 = vld [vmem:[%s1207 + $0x1] sm:$0xff]
  %v1337 = vld [vmem:[%s1207 + $0x9] sm:$0xff]
  %v1338 = vld [vmem:[%s1207 + $0x19] sm:$0xff]
  %v1339 = vld [vmem:[%s1207 + $0x21] sm:$0xff]
  %v1340 = vld [vmem:[%s1207 + $0x31] sm:$0xff]
  %v1341 = vld [vmem:[%s1207 + $0x39] sm:$0xff]
  %v1342 = vld [vmem:[%s1207 + $0x49] sm:$0xff]
  %v1343 = vld [vmem:[%s1207 + $0x51] sm:$0xff]
  %v1344 = vld [vmem:[%s1207 + $0x61] sm:$0xff]
  %v1345 = vld [vmem:[%s1207 + $0x69] sm:$0xff]
  %v1346 = vld [vmem:[%s1207 + $0x79] sm:$0xff]
  %v1347 = vld [vmem:[%s1207 + $0x81] sm:$0xff]
  %v1348 = vld [vmem:[%s1207 + $0x91] sm:$0xff]
  %v1349 = vld [vmem:[%s1207 + $0x99] sm:$0xff]
  %v1350 = vld [vmem:[%s1207 + $0xa9] sm:$0xff]
  %v1351 = vld [vmem:[%s1207 + $0xb1] sm:$0xff]
  %v1352 = vld [vmem:[%s1207 + $0xc1] sm:$0xff]
  %v1353 = vld [vmem:[%s1207 + $0xc9] sm:$0xff]
  %v1354 = vld [vmem:[%s1207 + $0xd9] sm:$0xff]
  %v1355 = vld [vmem:[%s1207 + $0xe1] sm:$0xff]
  %v1356 = vld [vmem:[%s1207 + $0xf1] sm:$0xff]
  %v1357 = vld [vmem:[%s1207 + $0xf9] sm:$0xff]
  %v1358 = vld [vmem:[%s1207 + $0x109] sm:$0xff]
  %v1359 = vld [vmem:[%s1207 + $0x111] sm:$0xff]
  %v1360 = vld [vmem:[%s1207 + $0x121] sm:$0xff]
  %v1361 = vld [vmem:[%s1207 + $0x129] sm:$0xff]
  %v1362 = vld [vmem:[%s1207 + $0x139] sm:$0xff]
  %v1363 = vld [vmem:[%s1207 + $0x141] sm:$0xff]
  %v1364 = vld [vmem:[%s1207 + $0x151] sm:$0xff]
  %v1365 = vld [vmem:[%s1207 + $0x159] sm:$0xff]
  %v1366 = vld [vmem:[%s1207 + $0x169] sm:$0xff]
  %v1367 = vld [vmem:[%s1207 + $0x171] sm:$0xff]
  %v1368 = vld [vmem:[%s1207 + $0x1b1] sm:$0xff]
  %v1369 = vld [vmem:[%s1207 + $0x1b9] sm:$0xff]
  %v1370 = vld [vmem:[%s1207 + $0x1c9] sm:$0xff]
  %v1371 = vld [vmem:[%s1207 + $0x1d1] sm:$0xff]
  %v1372 = vld [vmem:[%s1207 + $0x1e1] sm:$0xff]
  %v1373 = vld [vmem:[%s1207 + $0x1e9] sm:$0xff]
  %v1374 = vld [vmem:[%s1207 + $0x1f9] sm:$0xff]
  %v1375 = vld [vmem:[%s1207 + $0x201] sm:$0xff]
  %v1376 = vld [vmem:[%s1207 + $0x211] sm:$0xff]
  %v1377 = vld [vmem:[%s1207 + $0x219] sm:$0xff]
  %v1378 = vld [vmem:[%s1207 + $0x229] sm:$0xff]
  %v1379 = vld [vmem:[%s1207 + $0x231] sm:$0xff]
  %v1380 = vld [vmem:[%s1207 + $0x241] sm:$0xff]
  %v1381 = vld [vmem:[%s1207 + $0x249] sm:$0xff]
  %v1382 = vld [vmem:[%s1207 + $0x259] sm:$0xff]
  %v1383 = vld [vmem:[%s1207 + $0x261] sm:$0xff]
  %v1384 = vld [vmem:[%s1207 + $0x271] sm:$0xff]
  %v1385 = vld [vmem:[%s1207 + $0x279] sm:$0xff]
  %v1386 = vld [vmem:[%s1207 + $0x289] sm:$0xff]
  %v1387 = vld [vmem:[%s1207 + $0x291] sm:$0xff]
  %v1388 = vld [vmem:[%s1207 + $0x2a1] sm:$0xff]
  %v1389 = vld [vmem:[%s1207 + $0x2a9] sm:$0xff]
  %v1390 = vld [vmem:[%s1207 + $0x2b9] sm:$0xff]
  %v1391 = vld [vmem:[%s1207 + $0x2c1] sm:$0xff]
  %v1392 = vld [vmem:[%s1207 + $0x2d1] sm:$0xff]
  %v1393 = vld [vmem:[%s1207 + $0x2d9] sm:$0xff]
  %v1394 = vld [vmem:[%s1207 + $0x2e9] sm:$0xff]
  %v1395 = vld [vmem:[%s1207 + $0x2f1] sm:$0xff]
  %v1396 = vld [vmem:[%s1207 + $0x301] sm:$0xff]
  %v1397 = vld [vmem:[%s1207 + $0x309] sm:$0xff]
  %v1398 = vld [vmem:[%s1207 + $0x319] sm:$0xff]
  %v1399 = vld [vmem:[%s1207 + $0x321] sm:$0xff]
  %1400 = vst [vmem:[#allocation3 + $0x38] sm:$0xff] %v1336
  %1401 = vst [vmem:[#allocation3 + $0x80] sm:$0xff] %v1337
  %1402 = vst [vmem:[#allocation3 + $0xc8] sm:$0xff] %v1338
  %1403 = vst [vmem:[#allocation3 + $0x110] sm:$0xff] %v1339
  %1404 = vst [vmem:[#allocation3 + $0x158] sm:$0xff] %v1340
  %1405 = vst [vmem:[#allocation3 + $0x1a0] sm:$0xff] %v1341
  %1406 = vst [vmem:[#allocation3 + $0x1e8] sm:$0xff] %v1342
  %1407 = vst [vmem:[#allocation3 + $0x230] sm:$0xff] %v1343
  %1408 = vst [vmem:[#allocation3 + $0x278] sm:$0xff] %v1344
  %1409 = vst [vmem:[#allocation3 + $0x2c0] sm:$0xff] %v1345
  %1410 = vst [vmem:[#allocation3 + $0x308] sm:$0xff] %v1346
  %1411 = vst [vmem:[#allocation3 + $0x350] sm:$0xff] %v1347
  %1412 = vst [vmem:[#allocation3 + $0x398] sm:$0xff] %v1348
  %1413 = vst [vmem:[#allocation3 + $0x3e0] sm:$0xff] %v1349
  %1414 = vst [vmem:[#allocation3 + $0x428] sm:$0xff] %v1350
  %1415 = vst [vmem:[#allocation3 + $0x470] sm:$0xff] %v1351
  %1416 = vst [vmem:[#allocation3 + $0x4b8] sm:$0xff] %v1352
  %1417 = vst [vmem:[#allocation3 + $0x500] sm:$0xff] %v1353
  %1418 = vst [vmem:[#allocation3 + $0x548] sm:$0xff] %v1354
  %1419 = vst [vmem:[#allocation3 + $0x590] sm:$0xff] %v1355
  %1420 = vst [vmem:[#allocation3 + $0x5d8] sm:$0xff] %v1356
  %1421 = vst [vmem:[#allocation3 + $0x620] sm:$0xff] %v1357
  %1422 = vst [vmem:[#allocation3 + $0x668] sm:$0xff] %v1358
  %1423 = vst [vmem:[#allocation3 + $0x6b0] sm:$0xff] %v1359
  %1424 = vst [vmem:[#allocation3 + $0x6f8] sm:$0xff] %v1360
  %1425 = vst [vmem:[#allocation3 + $0x740] sm:$0xff] %v1361
  %1426 = vst [vmem:[#allocation3 + $0x788] sm:$0xff] %v1362
  %1427 = vst [vmem:[#allocation3 + $0x7d0] sm:$0xff] %v1363
  %1428 = vst [vmem:[#allocation3 + $0x818] sm:$0xff] %v1364
  %1429 = vst [vmem:[#allocation3 + $0x860] sm:$0xff] %v1365
  %1430 = vst [vmem:[#allocation3 + $0x8a8] sm:$0xff] %v1366
  %1431 = vst [vmem:[#allocation3 + $0x8f0] sm:$0xff] %v1367
  %1432 = vst [vmem:[#allocation3 + $0x938] sm:$0xff] %v1368
  %1433 = vst [vmem:[#allocation3 + $0x980] sm:$0xff] %v1369
  %1434 = vst [vmem:[#allocation3 + $0x9c8] sm:$0xff] %v1370
  %1435 = vst [vmem:[#allocation3 + $0xa10] sm:$0xff] %v1371
  %1436 = vst [vmem:[#allocation3 + $0xa58] sm:$0xff] %v1372
  %1437 = vst [vmem:[#allocation3 + $0xaa0] sm:$0xff] %v1373
  %1438 = vst [vmem:[#allocation3 + $0xae8] sm:$0xff] %v1374
  %1439 = vst [vmem:[#allocation3 + $0xb30] sm:$0xff] %v1375
  %1440 = vst [vmem:[#allocation3 + $0xb78] sm:$0xff] %v1376
  %1441 = vst [vmem:[#allocation3 + $0xbc0] sm:$0xff] %v1377
  %1442 = vst [vmem:[#allocation3 + $0xc08] sm:$0xff] %v1378
  %1443 = vst [vmem:[#allocation3 + $0xc50] sm:$0xff] %v1379
  %1444 = vst [vmem:[#allocation3 + $0xc98] sm:$0xff] %v1380
  %1445 = vst [vmem:[#allocation3 + $0xce0] sm:$0xff] %v1381
  %1446 = vst [vmem:[#allocation3 + $0xd28] sm:$0xff] %v1382
  %1447 = vst [vmem:[#allocation3 + $0xd70] sm:$0xff] %v1383
  %1448 = vst [vmem:[#allocation3 + $0xdb8] sm:$0xff] %v1384
  %1449 = vst [vmem:[#allocation3 + $0xe00] sm:$0xff] %v1385
  %1450 = vst [vmem:[#allocation3 + $0xe48] sm:$0xff] %v1386
  %1451 = vst [vmem:[#allocation3 + $0xe90] sm:$0xff] %v1387
  %1452 = vst [vmem:[#allocation3 + $0xed8] sm:$0xff] %v1388
  %1453 = vst [vmem:[#allocation3 + $0xf20] sm:$0xff] %v1389
  %1454 = vst [vmem:[#allocation3 + $0xf68] sm:$0xff] %v1390
  %1455 = vst [vmem:[#allocation3 + $0xfb0] sm:$0xff] %v1391
  %1456 = vst [vmem:[#allocation3 + $0xff8] sm:$0xff] %v1392
  %1457 = vst [vmem:[#allocation3 + $0x1040] sm:$0xff] %v1393
  %1458 = vst [vmem:[#allocation3 + $0x1088] sm:$0xff] %v1394
  %1459 = vst [vmem:[#allocation3 + $0x10d0] sm:$0xff] %v1395
  %1460 = vst [vmem:[#allocation3 + $0x1118] sm:$0xff] %v1396
  %1461 = vst [vmem:[#allocation3 + $0x1160] sm:$0xff] %v1397
  %1462 = vst [vmem:[#allocation3 + $0x11a8] sm:$0xff] %v1398
  %1463 = vst [vmem:[#allocation3 + $0x11f0] sm:$0xff] %v1399
  %v1464 = vld [vmem:[%s1207 + $0x2] sm:$0xff]
  %v1465 = vld [vmem:[%s1207 + $0xa] sm:$0xff]
  %v1466 = vld [vmem:[%s1207 + $0x1a] sm:$0xff]
  %v1467 = vld [vmem:[%s1207 + $0x22] sm:$0xff]
  %v1468 = vld [vmem:[%s1207 + $0x32] sm:$0xff]
  %v1469 = vld [vmem:[%s1207 + $0x3a] sm:$0xff]
  %v1470 = vld [vmem:[%s1207 + $0x4a] sm:$0xff]
  %v1471 = vld [vmem:[%s1207 + $0x52] sm:$0xff]
  %v1472 = vld [vmem:[%s1207 + $0x62] sm:$0xff]
  %v1473 = vld [vmem:[%s1207 + $0x6a] sm:$0xff]
  %v1474 = vld [vmem:[%s1207 + $0x7a] sm:$0xff]
  %v1475 = vld [vmem:[%s1207 + $0x82] sm:$0xff]
  %v1476 = vld [vmem:[%s1207 + $0x92] sm:$0xff]
  %v1477 = vld [vmem:[%s1207 + $0x9a] sm:$0xff]
  %v1478 = vld [vmem:[%s1207 + $0xaa] sm:$0xff]
  %v1479 = vld [vmem:[%s1207 + $0xb2] sm:$0xff]
  %v1480 = vld [vmem:[%s1207 + $0xc2] sm:$0xff]
  %v1481 = vld [vmem:[%s1207 + $0xca] sm:$0xff]
  %v1482 = vld [vmem:[%s1207 + $0xda] sm:$0xff]
  %v1483 = vld [vmem:[%s1207 + $0xe2] sm:$0xff]
  %v1484 = vld [vmem:[%s1207 + $0xf2] sm:$0xff]
  %v1485 = vld [vmem:[%s1207 + $0xfa] sm:$0xff]
  %v1486 = vld [vmem:[%s1207 + $0x10a] sm:$0xff]
  %v1487 = vld [vmem:[%s1207 + $0x112] sm:$0xff]
  %v1488 = vld [vmem:[%s1207 + $0x122] sm:$0xff]
  %v1489 = vld [vmem:[%s1207 + $0x12a] sm:$0xff]
  %v1490 = vld [vmem:[%s1207 + $0x13a] sm:$0xff]
  %v1491 = vld [vmem:[%s1207 + $0x142] sm:$0xff]
  %v1492 = vld [vmem:[%s1207 + $0x152] sm:$0xff]
  %v1493 = vld [vmem:[%s1207 + $0x15a] sm:$0xff]
  %v1494 = vld [vmem:[%s1207 + $0x16a] sm:$0xff]
  %v1495 = vld [vmem:[%s1207 + $0x172] sm:$0xff]
  %v1496 = vld [vmem:[%s1207 + $0x1b2] sm:$0xff]
  %v1497 = vld [vmem:[%s1207 + $0x1ba] sm:$0xff]
  %v1498 = vld [vmem:[%s1207 + $0x1ca] sm:$0xff]
  %v1499 = vld [vmem:[%s1207 + $0x1d2] sm:$0xff]
  %v1500 = vld [vmem:[%s1207 + $0x1e2] sm:$0xff]
  %v1501 = vld [vmem:[%s1207 + $0x1ea] sm:$0xff]
  %v1502 = vld [vmem:[%s1207 + $0x1fa] sm:$0xff]
  %v1503 = vld [vmem:[%s1207 + $0x202] sm:$0xff]
  %v1504 = vld [vmem:[%s1207 + $0x212] sm:$0xff]
  %v1505 = vld [vmem:[%s1207 + $0x21a] sm:$0xff]
  %v1506 = vld [vmem:[%s1207 + $0x22a] sm:$0xff]
  %v1507 = vld [vmem:[%s1207 + $0x232] sm:$0xff]
  %v1508 = vld [vmem:[%s1207 + $0x242] sm:$0xff]
  %v1509 = vld [vmem:[%s1207 + $0x24a] sm:$0xff]
  %v1510 = vld [vmem:[%s1207 + $0x25a] sm:$0xff]
  %v1511 = vld [vmem:[%s1207 + $0x262] sm:$0xff]
  %v1512 = vld [vmem:[%s1207 + $0x272] sm:$0xff]
  %v1513 = vld [vmem:[%s1207 + $0x27a] sm:$0xff]
  %v1514 = vld [vmem:[%s1207 + $0x28a] sm:$0xff]
  %v1515 = vld [vmem:[%s1207 + $0x292] sm:$0xff]
  %v1516 = vld [vmem:[%s1207 + $0x2a2] sm:$0xff]
  %v1517 = vld [vmem:[%s1207 + $0x2aa] sm:$0xff]
  %v1518 = vld [vmem:[%s1207 + $0x2ba] sm:$0xff]
  %v1519 = vld [vmem:[%s1207 + $0x2c2] sm:$0xff]
  %v1520 = vld [vmem:[%s1207 + $0x2d2] sm:$0xff]
  %v1521 = vld [vmem:[%s1207 + $0x2da] sm:$0xff]
  %v1522 = vld [vmem:[%s1207 + $0x2ea] sm:$0xff]
  %v1523 = vld [vmem:[%s1207 + $0x2f2] sm:$0xff]
  %v1524 = vld [vmem:[%s1207 + $0x302] sm:$0xff]
  %v1525 = vld [vmem:[%s1207 + $0x30a] sm:$0xff]
  %v1526 = vld [vmem:[%s1207 + $0x31a] sm:$0xff]
  %v1527 = vld [vmem:[%s1207 + $0x322] sm:$0xff]
  %1528 = vst [vmem:[#allocation3 + $0x40] sm:$0xff] %v1464
  %1529 = vst [vmem:[#allocation3 + $0x88] sm:$0xff] %v1465
  %1530 = vst [vmem:[#allocation3 + $0xd0] sm:$0xff] %v1466
  %1531 = vst [vmem:[#allocation3 + $0x118] sm:$0xff] %v1467
  %1532 = vst [vmem:[#allocation3 + $0x160] sm:$0xff] %v1468
  %1533 = vst [vmem:[#allocation3 + $0x1a8] sm:$0xff] %v1469
  %1534 = vst [vmem:[#allocation3 + $0x1f0] sm:$0xff] %v1470
  %1535 = vst [vmem:[#allocation3 + $0x238] sm:$0xff] %v1471
  %1536 = vst [vmem:[#allocation3 + $0x280] sm:$0xff] %v1472
  %1537 = vst [vmem:[#allocation3 + $0x2c8] sm:$0xff] %v1473
  %1538 = vst [vmem:[#allocation3 + $0x310] sm:$0xff] %v1474
  %1539 = vst [vmem:[#allocation3 + $0x358] sm:$0xff] %v1475
  %1540 = vst [vmem:[#allocation3 + $0x3a0] sm:$0xff] %v1476
  %1541 = vst [vmem:[#allocation3 + $0x3e8] sm:$0xff] %v1477
  %1542 = vst [vmem:[#allocation3 + $0x430] sm:$0xff] %v1478
  %1543 = vst [vmem:[#allocation3 + $0x478] sm:$0xff] %v1479
  %1544 = vst [vmem:[#allocation3 + $0x4c0] sm:$0xff] %v1480
  %1545 = vst [vmem:[#allocation3 + $0x508] sm:$0xff] %v1481
  %1546 = vst [vmem:[#allocation3 + $0x550] sm:$0xff] %v1482
  %1547 = vst [vmem:[#allocation3 + $0x598] sm:$0xff] %v1483
  %1548 = vst [vmem:[#allocation3 + $0x5e0] sm:$0xff] %v1484
  %1549 = vst [vmem:[#allocation3 + $0x628] sm:$0xff] %v1485
  %1550 = vst [vmem:[#allocation3 + $0x670] sm:$0xff] %v1486
  %1551 = vst [vmem:[#allocation3 + $0x6b8] sm:$0xff] %v1487
  %1552 = vst [vmem:[#allocation3 + $0x700] sm:$0xff] %v1488
  %1553 = vst [vmem:[#allocation3 + $0x748] sm:$0xff] %v1489
  %1554 = vst [vmem:[#allocation3 + $0x790] sm:$0xff] %v1490
  %1555 = vst [vmem:[#allocation3 + $0x7d8] sm:$0xff] %v1491
  %1556 = vst [vmem:[#allocation3 + $0x820] sm:$0xff] %v1492
  %1557 = vst [vmem:[#allocation3 + $0x868] sm:$0xff] %v1493
  %1558 = vst [vmem:[#allocation3 + $0x8b0] sm:$0xff] %v1494
  %1559 = vst [vmem:[#allocation3 + $0x8f8] sm:$0xff] %v1495
  %1560 = vst [vmem:[#allocation3 + $0x940] sm:$0xff] %v1496
  %1561 = vst [vmem:[#allocation3 + $0x988] sm:$0xff] %v1497
  %1562 = vst [vmem:[#allocation3 + $0x9d0] sm:$0xff] %v1498
  %1563 = vst [vmem:[#allocation3 + $0xa18] sm:$0xff] %v1499
  %1564 = vst [vmem:[#allocation3 + $0xa60] sm:$0xff] %v1500
  %1565 = vst [vmem:[#allocation3 + $0xaa8] sm:$0xff] %v1501
  %1566 = vst [vmem:[#allocation3 + $0xaf0] sm:$0xff] %v1502
  %1567 = vst [vmem:[#allocation3 + $0xb38] sm:$0xff] %v1503
  %1568 = vst [vmem:[#allocation3 + $0xb80] sm:$0xff] %v1504
  %1569 = vst [vmem:[#allocation3 + $0xbc8] sm:$0xff] %v1505
  %1570 = vst [vmem:[#allocation3 + $0xc10] sm:$0xff] %v1506
  %1571 = vst [vmem:[#allocation3 + $0xc58] sm:$0xff] %v1507
  %1572 = vst [vmem:[#allocation3 + $0xca0] sm:$0xff] %v1508
  %1573 = vst [vmem:[#allocation3 + $0xce8] sm:$0xff] %v1509
  %1574 = vst [vmem:[#allocation3 + $0xd30] sm:$0xff] %v1510
  %1575 = vst [vmem:[#allocation3 + $0xd78] sm:$0xff] %v1511
  %1576 = vst [vmem:[#allocation3 + $0xdc0] sm:$0xff] %v1512
  %1577 = vst [vmem:[#allocation3 + $0xe08] sm:$0xff] %v1513
  %1578 = vst [vmem:[#allocation3 + $0xe50] sm:$0xff] %v1514
  %1579 = vst [vmem:[#allocation3 + $0xe98] sm:$0xff] %v1515
  %1580 = vst [vmem:[#allocation3 + $0xee0] sm:$0xff] %v1516
  %1581 = vst [vmem:[#allocation3 + $0xf28] sm:$0xff] %v1517
  %1582 = vst [vmem:[#allocation3 + $0xf70] sm:$0xff] %v1518
  %1583 = vst [vmem:[#allocation3 + $0xfb8] sm:$0xff] %v1519
  %1584 = vst [vmem:[#allocation3 + $0x1000] sm:$0xff] %v1520
  %1585 = vst [vmem:[#allocation3 + $0x1048] sm:$0xff] %v1521
  %1586 = vst [vmem:[#allocation3 + $0x1090] sm:$0xff] %v1522
  %1587 = vst [vmem:[#allocation3 + $0x10d8] sm:$0xff] %v1523
  %1588 = vst [vmem:[#allocation3 + $0x1120] sm:$0xff] %v1524
  %1589 = vst [vmem:[#allocation3 + $0x1168] sm:$0xff] %v1525
  %1590 = vst [vmem:[#allocation3 + $0x11b0] sm:$0xff] %v1526
  %1591 = vst [vmem:[#allocation3 + $0x11f8] sm:$0xff] %v1527
  %v1592 = vld [vmem:[#allocation3] sm:$0xff]
  %v1593 = vld [vmem:[#allocation3 + $0x8] sm:$0xff]
  %v1594 = vld [vmem:[#allocation3 + $0x10] sm:$0xff]
  %v1595 = vld [vmem:[#allocation3 + $0x18] sm:$0xff]
  %v1596 = vld [vmem:[#allocation3 + $0x20] sm:$0xff]
  %v1597 = vld [vmem:[#allocation3 + $0x28] sm:$0xff]
  %v1598 = vld [vmem:[#allocation3 + $0x30] sm:$0xff]
  %v1599 = vld [vmem:[#allocation3 + $0x38] sm:$0xff]
  %v1600 = vld [vmem:[#allocation3 + $0x40] sm:$0xff]
  %v1601 = vld [vmem:[#allocation3 + $0x48] sm:$0xff]
  %v1602 = vld [vmem:[#allocation3 + $0x50] sm:$0xff]
  %v1603 = vld [vmem:[#allocation3 + $0x58] sm:$0xff]
  %v1604 = vld [vmem:[#allocation3 + $0x60] sm:$0xff]
  %v1605 = vld [vmem:[#allocation3 + $0x68] sm:$0xff]
  %v1606 = vld [vmem:[#allocation3 + $0x70] sm:$0xff]
  %v1607 = vld [vmem:[#allocation3 + $0x78] sm:$0xff]
  %v1608 = vld [vmem:[#allocation3 + $0x80] sm:$0xff]
  %v1609 = vld [vmem:[#allocation3 + $0x88] sm:$0xff]
  %v1610 = vld [vmem:[#allocation3 + $0x90] sm:$0xff]
  %v1611 = vld [vmem:[#allocation3 + $0x98] sm:$0xff]
  %v1612 = vld [vmem:[#allocation3 + $0xa0] sm:$0xff]
  %v1613 = vld [vmem:[#allocation3 + $0xa8] sm:$0xff]
  %v1614 = vld [vmem:[#allocation3 + $0xb0] sm:$0xff]
  %v1615 = vld [vmem:[#allocation3 + $0xb8] sm:$0xff]
  %v1616 = vld [vmem:[#allocation3 + $0xc0] sm:$0xff]
  %v1617 = vld [vmem:[#allocation3 + $0xc8] sm:$0xff]
  %v1618 = vld [vmem:[#allocation3 + $0xd0] sm:$0xff]
  %v1619 = vld [vmem:[#allocation3 + $0xd8] sm:$0xff]
  %v1620 = vld [vmem:[#allocation3 + $0xe0] sm:$0xff]
  %v1621 = vld [vmem:[#allocation3 + $0xe8] sm:$0xff]
  %v1622 = vld [vmem:[#allocation3 + $0xf0] sm:$0xff]
  %v1623 = vld [vmem:[#allocation3 + $0xf8] sm:$0xff]
  %v1624 = vld [vmem:[#allocation3 + $0x100] sm:$0xff]
  %v1625 = vld [vmem:[#allocation3 + $0x108] sm:$0xff]
  %v1626 = vld [vmem:[#allocation3 + $0x110] sm:$0xff]
  %v1627 = vld [vmem:[#allocation3 + $0x118] sm:$0xff]
  %v1628 = vld [vmem:[#allocation3 + $0x120] sm:$0xff]
  %v1629 = vld [vmem:[#allocation3 + $0x128] sm:$0xff]
  %v1630 = vld [vmem:[#allocation3 + $0x130] sm:$0xff]
  %v1631 = vld [vmem:[#allocation3 + $0x138] sm:$0xff]
  %v1632 = vld [vmem:[#allocation3 + $0x140] sm:$0xff]
  %v1633 = vld [vmem:[#allocation3 + $0x148] sm:$0xff]
  %v1634 = vld [vmem:[#allocation3 + $0x150] sm:$0xff]
  %v1635 = vld [vmem:[#allocation3 + $0x158] sm:$0xff]
  %v1636 = vld [vmem:[#allocation3 + $0x160] sm:$0xff]
  %v1637 = vld [vmem:[#allocation3 + $0x168] sm:$0xff]
  %v1638 = vld [vmem:[#allocation3 + $0x170] sm:$0xff]
  %v1639 = vld [vmem:[#allocation3 + $0x178] sm:$0xff]
  %v1640 = vld [vmem:[#allocation3 + $0x180] sm:$0xff]
  %v1641 = vld [vmem:[#allocation3 + $0x188] sm:$0xff]
  %v1642 = vld [vmem:[#allocation3 + $0x190] sm:$0xff]
  %v1643 = vld [vmem:[#allocation3 + $0x198] sm:$0xff]
  %v1644 = vld [vmem:[#allocation3 + $0x1a0] sm:$0xff]
  %v1645 = vld [vmem:[#allocation3 + $0x1a8] sm:$0xff]
  %v1646 = vld [vmem:[#allocation3 + $0x1b0] sm:$0xff]
  %v1647 = vld [vmem:[#allocation3 + $0x1b8] sm:$0xff]
  %v1648 = vld [vmem:[#allocation3 + $0x1c0] sm:$0xff]
  %v1649 = vld [vmem:[#allocation3 + $0x1c8] sm:$0xff]
  %v1650 = vld [vmem:[#allocation3 + $0x1d0] sm:$0xff]
  %v1651 = vld [vmem:[#allocation3 + $0x1d8] sm:$0xff]
  %v1652 = vld [vmem:[#allocation3 + $0x1e0] sm:$0xff]
  %v1653 = vld [vmem:[#allocation3 + $0x1e8] sm:$0xff]
  %v1654 = vld [vmem:[#allocation3 + $0x1f0] sm:$0xff]
  %v1655 = vld [vmem:[#allocation3 + $0x1f8] sm:$0xff]
  %v1656 = vld [vmem:[#allocation3 + $0x200] sm:$0xff]
  %v1657 = vld [vmem:[#allocation3 + $0x208] sm:$0xff]
  %v1658 = vld [vmem:[#allocation3 + $0x210] sm:$0xff]
  %v1659 = vld [vmem:[#allocation3 + $0x218] sm:$0xff]
  %v1660 = vld [vmem:[#allocation3 + $0x220] sm:$0xff]
  %v1661 = vld [vmem:[#allocation3 + $0x228] sm:$0xff]
  %v1662 = vld [vmem:[#allocation3 + $0x230] sm:$0xff]
  %v1663 = vld [vmem:[#allocation3 + $0x238] sm:$0xff]
  %v1664 = vld [vmem:[#allocation3 + $0x240] sm:$0xff]
  %v1665 = vld [vmem:[#allocation3 + $0x248] sm:$0xff]
  %v1666 = vld [vmem:[#allocation3 + $0x250] sm:$0xff]
  %v1667 = vld [vmem:[#allocation3 + $0x258] sm:$0xff]
  %v1668 = vld [vmem:[#allocation3 + $0x260] sm:$0xff]
  %v1669 = vld [vmem:[#allocation3 + $0x268] sm:$0xff]
  %v1670 = vld [vmem:[#allocation3 + $0x270] sm:$0xff]
  %v1671 = vld [vmem:[#allocation3 + $0x278] sm:$0xff]
  %v1672 = vld [vmem:[#allocation3 + $0x280] sm:$0xff]
  %v1673 = vld [vmem:[#allocation3 + $0x288] sm:$0xff]
  %v1674 = vld [vmem:[#allocation3 + $0x290] sm:$0xff]
  %v1675 = vld [vmem:[#allocation3 + $0x298] sm:$0xff]
  %v1676 = vld [vmem:[#allocation3 + $0x2a0] sm:$0xff]
  %v1677 = vld [vmem:[#allocation3 + $0x2a8] sm:$0xff]
  %v1678 = vld [vmem:[#allocation3 + $0x2b0] sm:$0xff]
  %v1679 = vld [vmem:[#allocation3 + $0x2b8] sm:$0xff]
  %v1680 = vld [vmem:[#allocation3 + $0x2c0] sm:$0xff]
  %v1681 = vld [vmem:[#allocation3 + $0x2c8] sm:$0xff]
  %v1682 = vld [vmem:[#allocation3 + $0x2d0] sm:$0xff]
  %v1683 = vld [vmem:[#allocation3 + $0x2d8] sm:$0xff]
  %v1684 = vld [vmem:[#allocation3 + $0x2e0] sm:$0xff]
  %v1685 = vld [vmem:[#allocation3 + $0x2e8] sm:$0xff]
  %v1686 = vld [vmem:[#allocation3 + $0x2f0] sm:$0xff]
  %v1687 = vld [vmem:[#allocation3 + $0x2f8] sm:$0xff]
  %v1688 = vld [vmem:[#allocation3 + $0x300] sm:$0xff]
  %v1689 = vld [vmem:[#allocation3 + $0x308] sm:$0xff]
  %v1690 = vld [vmem:[#allocation3 + $0x310] sm:$0xff]
  %v1691 = vld [vmem:[#allocation3 + $0x318] sm:$0xff]
  %v1692 = vld [vmem:[#allocation3 + $0x320] sm:$0xff]
  %v1693 = vld [vmem:[#allocation3 + $0x328] sm:$0xff]
  %v1694 = vld [vmem:[#allocation3 + $0x330] sm:$0xff]
  %v1695 = vld [vmem:[#allocation3 + $0x338] sm:$0xff]
  %v1696 = vld [vmem:[#allocation3 + $0x340] sm:$0xff]
  %v1697 = vld [vmem:[#allocation3 + $0x348] sm:$0xff]
  %v1698 = vld [vmem:[#allocation3 + $0x350] sm:$0xff]
  %v1699 = vld [vmem:[#allocation3 + $0x358] sm:$0xff]
  %v1700 = vld [vmem:[#allocation3 + $0x360] sm:$0xff]
  %v1701 = vld [vmem:[#allocation3 + $0x368] sm:$0xff]
  %v1702 = vld [vmem:[#allocation3 + $0x370] sm:$0xff]
  %v1703 = vld [vmem:[#allocation3 + $0x378] sm:$0xff]
  %v1704 = vld [vmem:[#allocation3 + $0x380] sm:$0xff]
  %v1705 = vld [vmem:[#allocation3 + $0x388] sm:$0xff]
  %v1706 = vld [vmem:[#allocation3 + $0x390] sm:$0xff]
  %v1707 = vld [vmem:[#allocation3 + $0x398] sm:$0xff]
  %v1708 = vld [vmem:[#allocation3 + $0x3a0] sm:$0xff]
  %v1709 = vld [vmem:[#allocation3 + $0x3a8] sm:$0xff]
  %v1710 = vld [vmem:[#allocation3 + $0x3b0] sm:$0xff]
  %v1711 = vld [vmem:[#allocation3 + $0x3b8] sm:$0xff]
  %v1712 = vld [vmem:[#allocation3 + $0x3c0] sm:$0xff]
  %v1713 = vld [vmem:[#allocation3 + $0x3c8] sm:$0xff]
  %v1714 = vld [vmem:[#allocation3 + $0x3d0] sm:$0xff]
  %v1715 = vld [vmem:[#allocation3 + $0x3d8] sm:$0xff]
  %v1716 = vld [vmem:[#allocation3 + $0x3e0] sm:$0xff]
  %v1717 = vld [vmem:[#allocation3 + $0x3e8] sm:$0xff]
  %v1718 = vld [vmem:[#allocation3 + $0x3f0] sm:$0xff]
  %v1719 = vld [vmem:[#allocation3 + $0x3f8] sm:$0xff]
  %v1720 = vld [vmem:[#allocation3 + $0x400] sm:$0xff]
  %v1721 = vld [vmem:[#allocation3 + $0x408] sm:$0xff]
  %v1722 = vld [vmem:[#allocation3 + $0x410] sm:$0xff]
  %v1723 = vld [vmem:[#allocation3 + $0x418] sm:$0xff]
  %v1724 = vld [vmem:[#allocation3 + $0x420] sm:$0xff]
  %v1725 = vld [vmem:[#allocation3 + $0x428] sm:$0xff]
  %v1726 = vld [vmem:[#allocation3 + $0x430] sm:$0xff]
  %v1727 = vld [vmem:[#allocation3 + $0x438] sm:$0xff]
  %v1728 = vld [vmem:[#allocation3 + $0x440] sm:$0xff]
  %v1729 = vld [vmem:[#allocation3 + $0x448] sm:$0xff]
  %v1730 = vld [vmem:[#allocation3 + $0x450] sm:$0xff]
  %v1731 = vld [vmem:[#allocation3 + $0x458] sm:$0xff]
  %v1732 = vld [vmem:[#allocation3 + $0x460] sm:$0xff]
  %v1733 = vld [vmem:[#allocation3 + $0x468] sm:$0xff]
  %v1734 = vld [vmem:[#allocation3 + $0x470] sm:$0xff]
  %v1735 = vld [vmem:[#allocation3 + $0x478] sm:$0xff]
  %v1736 = vld [vmem:[#allocation3 + $0x480] sm:$0xff]
  %v1737 = vld [vmem:[#allocation3 + $0x488] sm:$0xff]
  %v1738 = vld [vmem:[#allocation3 + $0x490] sm:$0xff]
  %v1739 = vld [vmem:[#allocation3 + $0x498] sm:$0xff]
  %v1740 = vld [vmem:[#allocation3 + $0x4a0] sm:$0xff]
  %v1741 = vld [vmem:[#allocation3 + $0x4a8] sm:$0xff]
  %v1742 = vld [vmem:[#allocation3 + $0x4b0] sm:$0xff]
  %v1743 = vld [vmem:[#allocation3 + $0x4b8] sm:$0xff]
  %v1744 = vld [vmem:[#allocation3 + $0x4c0] sm:$0xff]
  %v1745 = vld [vmem:[#allocation3 + $0x4c8] sm:$0xff]
  %v1746 = vld [vmem:[#allocation3 + $0x4d0] sm:$0xff]
  %v1747 = vld [vmem:[#allocation3 + $0x4d8] sm:$0xff]
  %v1748 = vld [vmem:[#allocation3 + $0x4e0] sm:$0xff]
  %v1749 = vld [vmem:[#allocation3 + $0x4e8] sm:$0xff]
  %v1750 = vld [vmem:[#allocation3 + $0x4f0] sm:$0xff]
  %v1751 = vld [vmem:[#allocation3 + $0x4f8] sm:$0xff]
  %v1752 = vld [vmem:[#allocation3 + $0x500] sm:$0xff]
  %v1753 = vld [vmem:[#allocation3 + $0x508] sm:$0xff]
  %v1754 = vld [vmem:[#allocation3 + $0x510] sm:$0xff]
  %v1755 = vld [vmem:[#allocation3 + $0x518] sm:$0xff]
  %v1756 = vld [vmem:[#allocation3 + $0x520] sm:$0xff]
  %v1757 = vld [vmem:[#allocation3 + $0x528] sm:$0xff]
  %v1758 = vld [vmem:[#allocation3 + $0x530] sm:$0xff]
  %v1759 = vld [vmem:[#allocation3 + $0x538] sm:$0xff]
  %v1760 = vld [vmem:[#allocation3 + $0x540] sm:$0xff]
  %v1761 = vld [vmem:[#allocation3 + $0x548] sm:$0xff]
  %v1762 = vld [vmem:[#allocation3 + $0x550] sm:$0xff]
  %v1763 = vld [vmem:[#allocation3 + $0x558] sm:$0xff]
  %v1764 = vld [vmem:[#allocation3 + $0x560] sm:$0xff]
  %v1765 = vld [vmem:[#allocation3 + $0x568] sm:$0xff]
  %v1766 = vld [vmem:[#allocation3 + $0x570] sm:$0xff]
  %v1767 = vld [vmem:[#allocation3 + $0x578] sm:$0xff]
  %v1768 = vld [vmem:[#allocation3 + $0x580] sm:$0xff]
  %v1769 = vld [vmem:[#allocation3 + $0x588] sm:$0xff]
  %v1770 = vld [vmem:[#allocation3 + $0x590] sm:$0xff]
  %v1771 = vld [vmem:[#allocation3 + $0x598] sm:$0xff]
  %v1772 = vld [vmem:[#allocation3 + $0x5a0] sm:$0xff]
  %v1773 = vld [vmem:[#allocation3 + $0x5a8] sm:$0xff]
  %v1774 = vld [vmem:[#allocation3 + $0x5b0] sm:$0xff]
  %v1775 = vld [vmem:[#allocation3 + $0x5b8] sm:$0xff]
  %v1776 = vld [vmem:[#allocation3 + $0x5c0] sm:$0xff]
  %v1777 = vld [vmem:[#allocation3 + $0x5c8] sm:$0xff]
  %v1778 = vld [vmem:[#allocation3 + $0x5d0] sm:$0xff]
  %v1779 = vld [vmem:[#allocation3 + $0x5d8] sm:$0xff]
  %v1780 = vld [vmem:[#allocation3 + $0x5e0] sm:$0xff]
  %v1781 = vld [vmem:[#allocation3 + $0x5e8] sm:$0xff]
  %v1782 = vld [vmem:[#allocation3 + $0x5f0] sm:$0xff]
  %v1783 = vld [vmem:[#allocation3 + $0x5f8] sm:$0xff]
  %v1784 = vld [vmem:[#allocation3 + $0x600] sm:$0xff]
  %v1785 = vld [vmem:[#allocation3 + $0x608] sm:$0xff]
  %v1786 = vld [vmem:[#allocation3 + $0x610] sm:$0xff]
  %v1787 = vld [vmem:[#allocation3 + $0x618] sm:$0xff]
  %v1788 = vld [vmem:[#allocation3 + $0x620] sm:$0xff]
  %v1789 = vld [vmem:[#allocation3 + $0x628] sm:$0xff]
  %v1790 = vld [vmem:[#allocation3 + $0x630] sm:$0xff]
  %v1791 = vld [vmem:[#allocation3 + $0x638] sm:$0xff]
  %v1792 = vld [vmem:[#allocation3 + $0x640] sm:$0xff]
  %v1793 = vld [vmem:[#allocation3 + $0x648] sm:$0xff]
  %v1794 = vld [vmem:[#allocation3 + $0x650] sm:$0xff]
  %v1795 = vld [vmem:[#allocation3 + $0x658] sm:$0xff]
  %v1796 = vld [vmem:[#allocation3 + $0x660] sm:$0xff]
  %v1797 = vld [vmem:[#allocation3 + $0x668] sm:$0xff]
  %v1798 = vld [vmem:[#allocation3 + $0x670] sm:$0xff]
  %v1799 = vld [vmem:[#allocation3 + $0x678] sm:$0xff]
  %v1800 = vld [vmem:[#allocation3 + $0x680] sm:$0xff]
  %v1801 = vld [vmem:[#allocation3 + $0x688] sm:$0xff]
  %v1802 = vld [vmem:[#allocation3 + $0x690] sm:$0xff]
  %v1803 = vld [vmem:[#allocation3 + $0x698] sm:$0xff]
  %v1804 = vld [vmem:[#allocation3 + $0x6a0] sm:$0xff]
  %v1805 = vld [vmem:[#allocation3 + $0x6a8] sm:$0xff]
  %v1806 = vld [vmem:[#allocation3 + $0x6b0] sm:$0xff]
  %v1807 = vld [vmem:[#allocation3 + $0x6b8] sm:$0xff]
  %v1808 = vld [vmem:[#allocation3 + $0x6c0] sm:$0xff]
  %v1809 = vld [vmem:[#allocation3 + $0x6c8] sm:$0xff]
  %v1810 = vld [vmem:[#allocation3 + $0x6d0] sm:$0xff]
  %v1811 = vld [vmem:[#allocation3 + $0x6d8] sm:$0xff]
  %v1812 = vld [vmem:[#allocation3 + $0x6e0] sm:$0xff]
  %v1813 = vld [vmem:[#allocation3 + $0x6e8] sm:$0xff]
  %v1814 = vld [vmem:[#allocation3 + $0x6f0] sm:$0xff]
  %v1815 = vld [vmem:[#allocation3 + $0x6f8] sm:$0xff]
  %v1816 = vld [vmem:[#allocation3 + $0x700] sm:$0xff]
  %v1817 = vld [vmem:[#allocation3 + $0x708] sm:$0xff]
  %v1818 = vld [vmem:[#allocation3 + $0x710] sm:$0xff]
  %v1819 = vld [vmem:[#allocation3 + $0x718] sm:$0xff]
  %v1820 = vld [vmem:[#allocation3 + $0x720] sm:$0xff]
  %v1821 = vld [vmem:[#allocation3 + $0x728] sm:$0xff]
  %v1822 = vld [vmem:[#allocation3 + $0x730] sm:$0xff]
  %v1823 = vld [vmem:[#allocation3 + $0x738] sm:$0xff]
  %v1824 = vld [vmem:[#allocation3 + $0x740] sm:$0xff]
  %v1825 = vld [vmem:[#allocation3 + $0x748] sm:$0xff]
  %v1826 = vld [vmem:[#allocation3 + $0x750] sm:$0xff]
  %v1827 = vld [vmem:[#allocation3 + $0x758] sm:$0xff]
  %v1828 = vld [vmem:[#allocation3 + $0x760] sm:$0xff]
  %v1829 = vld [vmem:[#allocation3 + $0x768] sm:$0xff]
  %v1830 = vld [vmem:[#allocation3 + $0x770] sm:$0xff]
  %v1831 = vld [vmem:[#allocation3 + $0x778] sm:$0xff]
  %v1832 = vld [vmem:[#allocation3 + $0x780] sm:$0xff]
  %v1833 = vld [vmem:[#allocation3 + $0x788] sm:$0xff]
  %v1834 = vld [vmem:[#allocation3 + $0x790] sm:$0xff]
  %v1835 = vld [vmem:[#allocation3 + $0x798] sm:$0xff]
  %v1836 = vld [vmem:[#allocation3 + $0x7a0] sm:$0xff]
  %v1837 = vld [vmem:[#allocation3 + $0x7a8] sm:$0xff]
  %v1838 = vld [vmem:[#allocation3 + $0x7b0] sm:$0xff]
  %v1839 = vld [vmem:[#allocation3 + $0x7b8] sm:$0xff]
  %v1840 = vld [vmem:[#allocation3 + $0x7c0] sm:$0xff]
  %v1841 = vld [vmem:[#allocation3 + $0x7c8] sm:$0xff]
  %v1842 = vld [vmem:[#allocation3 + $0x7d0] sm:$0xff]
  %v1843 = vld [vmem:[#allocation3 + $0x7d8] sm:$0xff]
  %v1844 = vld [vmem:[#allocation3 + $0x7e0] sm:$0xff]
  %v1845 = vld [vmem:[#allocation3 + $0x7e8] sm:$0xff]
  %v1846 = vld [vmem:[#allocation3 + $0x7f0] sm:$0xff]
  %v1847 = vld [vmem:[#allocation3 + $0x7f8] sm:$0xff]
  %v1848 = vld [vmem:[#allocation3 + $0x800] sm:$0xff]
  %v1849 = vld [vmem:[#allocation3 + $0x808] sm:$0xff]
  %v1850 = vld [vmem:[#allocation3 + $0x810] sm:$0xff]
  %v1851 = vld [vmem:[#allocation3 + $0x818] sm:$0xff]
  %v1852 = vld [vmem:[#allocation3 + $0x820] sm:$0xff]
  %v1853 = vld [vmem:[#allocation3 + $0x828] sm:$0xff]
  %v1854 = vld [vmem:[#allocation3 + $0x830] sm:$0xff]
  %v1855 = vld [vmem:[#allocation3 + $0x838] sm:$0xff]
  %v1856 = vld [vmem:[#allocation3 + $0x840] sm:$0xff]
  %v1857 = vld [vmem:[#allocation3 + $0x848] sm:$0xff]
  %v1858 = vld [vmem:[#allocation3 + $0x850] sm:$0xff]
  %v1859 = vld [vmem:[#allocation3 + $0x858] sm:$0xff]
  %v1860 = vld [vmem:[#allocation3 + $0x860] sm:$0xff]
  %v1861 = vld [vmem:[#allocation3 + $0x868] sm:$0xff]
  %v1862 = vld [vmem:[#allocation3 + $0x870] sm:$0xff]
  %v1863 = vld [vmem:[#allocation3 + $0x878] sm:$0xff]
  %v1864 = vld [vmem:[#allocation3 + $0x880] sm:$0xff]
  %v1865 = vld [vmem:[#allocation3 + $0x888] sm:$0xff]
  %v1866 = vld [vmem:[#allocation3 + $0x890] sm:$0xff]
  %v1867 = vld [vmem:[#allocation3 + $0x898] sm:$0xff]
  %v1868 = vld [vmem:[#allocation3 + $0x8a0] sm:$0xff]
  %v1869 = vld [vmem:[#allocation3 + $0x8a8] sm:$0xff]
  %v1870 = vld [vmem:[#allocation3 + $0x8b0] sm:$0xff]
  %v1871 = vld [vmem:[#allocation3 + $0x8b8] sm:$0xff]
  %v1872 = vld [vmem:[#allocation3 + $0x8c0] sm:$0xff]
  %v1873 = vld [vmem:[#allocation3 + $0x8c8] sm:$0xff]
  %v1874 = vld [vmem:[#allocation3 + $0x8d0] sm:$0xff]
  %v1875 = vld [vmem:[#allocation3 + $0x8d8] sm:$0xff]
  %v1876 = vld [vmem:[#allocation3 + $0x8e0] sm:$0xff]
  %v1877 = vld [vmem:[#allocation3 + $0x8e8] sm:$0xff]
  %v1878 = vld [vmem:[#allocation3 + $0x8f0] sm:$0xff]
  %v1879 = vld [vmem:[#allocation3 + $0x8f8] sm:$0xff]
  %v1880 = vld [vmem:[#allocation3 + $0x900] sm:$0xff]
  %v1881 = vld [vmem:[#allocation3 + $0x908] sm:$0xff]
  %v1882 = vld [vmem:[#allocation3 + $0x910] sm:$0xff]
  %v1883 = vld [vmem:[#allocation3 + $0x918] sm:$0xff]
  %v1884 = vld [vmem:[#allocation3 + $0x920] sm:$0xff]
  %v1885 = vld [vmem:[#allocation3 + $0x928] sm:$0xff]
  %v1886 = vld [vmem:[#allocation3 + $0x930] sm:$0xff]
  %v1887 = vld [vmem:[#allocation3 + $0x938] sm:$0xff]
  %v1888 = vld [vmem:[#allocation3 + $0x940] sm:$0xff]
  %v1889 = vld [vmem:[#allocation3 + $0x948] sm:$0xff]
  %v1890 = vld [vmem:[#allocation3 + $0x950] sm:$0xff]
  %v1891 = vld [vmem:[#allocation3 + $0x958] sm:$0xff]
  %v1892 = vld [vmem:[#allocation3 + $0x960] sm:$0xff]
  %v1893 = vld [vmem:[#allocation3 + $0x968] sm:$0xff]
  %v1894 = vld [vmem:[#allocation3 + $0x970] sm:$0xff]
  %v1895 = vld [vmem:[#allocation3 + $0x978] sm:$0xff]
  %v1896 = vld [vmem:[#allocation3 + $0x980] sm:$0xff]
  %v1897 = vld [vmem:[#allocation3 + $0x988] sm:$0xff]
  %v1898 = vld [vmem:[#allocation3 + $0x990] sm:$0xff]
  %v1899 = vld [vmem:[#allocation3 + $0x998] sm:$0xff]
  %v1900 = vld [vmem:[#allocation3 + $0x9a0] sm:$0xff]
  %v1901 = vld [vmem:[#allocation3 + $0x9a8] sm:$0xff]
  %v1902 = vld [vmem:[#allocation3 + $0x9b0] sm:$0xff]
  %v1903 = vld [vmem:[#allocation3 + $0x9b8] sm:$0xff]
  %v1904 = vld [vmem:[#allocation3 + $0x9c0] sm:$0xff]
  %v1905 = vld [vmem:[#allocation3 + $0x9c8] sm:$0xff]
  %v1906 = vld [vmem:[#allocation3 + $0x9d0] sm:$0xff]
  %v1907 = vld [vmem:[#allocation3 + $0x9d8] sm:$0xff]
  %v1908 = vld [vmem:[#allocation3 + $0x9e0] sm:$0xff]
  %v1909 = vld [vmem:[#allocation3 + $0x9e8] sm:$0xff]
  %v1910 = vld [vmem:[#allocation3 + $0x9f0] sm:$0xff]
  %v1911 = vld [vmem:[#allocation3 + $0x9f8] sm:$0xff]
  %v1912 = vld [vmem:[#allocation3 + $0xa00] sm:$0xff]
  %v1913 = vld [vmem:[#allocation3 + $0xa08] sm:$0xff]
  %v1914 = vld [vmem:[#allocation3 + $0xa10] sm:$0xff]
  %v1915 = vld [vmem:[#allocation3 + $0xa18] sm:$0xff]
  %v1916 = vld [vmem:[#allocation3 + $0xa20] sm:$0xff]
  %v1917 = vld [vmem:[#allocation3 + $0xa28] sm:$0xff]
  %v1918 = vld [vmem:[#allocation3 + $0xa30] sm:$0xff]
  %v1919 = vld [vmem:[#allocation3 + $0xa38] sm:$0xff]
  %v1920 = vld [vmem:[#allocation3 + $0xa40] sm:$0xff]
  %v1921 = vld [vmem:[#allocation3 + $0xa48] sm:$0xff]
  %v1922 = vld [vmem:[#allocation3 + $0xa50] sm:$0xff]
  %v1923 = vld [vmem:[#allocation3 + $0xa58] sm:$0xff]
  %v1924 = vld [vmem:[#allocation3 + $0xa60] sm:$0xff]
  %v1925 = vld [vmem:[#allocation3 + $0xa68] sm:$0xff]
  %v1926 = vld [vmem:[#allocation3 + $0xa70] sm:$0xff]
  %v1927 = vld [vmem:[#allocation3 + $0xa78] sm:$0xff]
  %v1928 = vld [vmem:[#allocation3 + $0xa80] sm:$0xff]
  %v1929 = vld [vmem:[#allocation3 + $0xa88] sm:$0xff]
  %v1930 = vld [vmem:[#allocation3 + $0xa90] sm:$0xff]
  %v1931 = vld [vmem:[#allocation3 + $0xa98] sm:$0xff]
  %v1932 = vld [vmem:[#allocation3 + $0xaa0] sm:$0xff]
  %v1933 = vld [vmem:[#allocation3 + $0xaa8] sm:$0xff]
  %v1934 = vld [vmem:[#allocation3 + $0xab0] sm:$0xff]
  %v1935 = vld [vmem:[#allocation3 + $0xab8] sm:$0xff]
  %v1936 = vld [vmem:[#allocation3 + $0xac0] sm:$0xff]
  %v1937 = vld [vmem:[#allocation3 + $0xac8] sm:$0xff]
  %v1938 = vld [vmem:[#allocation3 + $0xad0] sm:$0xff]
  %v1939 = vld [vmem:[#allocation3 + $0xad8] sm:$0xff]
  %v1940 = vld [vmem:[#allocation3 + $0xae0] sm:$0xff]
  %v1941 = vld [vmem:[#allocation3 + $0xae8] sm:$0xff]
  %v1942 = vld [vmem:[#allocation3 + $0xaf0] sm:$0xff]
  %v1943 = vld [vmem:[#allocation3 + $0xaf8] sm:$0xff]
  %v1944 = vld [vmem:[#allocation3 + $0xb00] sm:$0xff]
  %v1945 = vld [vmem:[#allocation3 + $0xb08] sm:$0xff]
  %v1946 = vld [vmem:[#allocation3 + $0xb10] sm:$0xff]
  %v1947 = vld [vmem:[#allocation3 + $0xb18] sm:$0xff]
  %v1948 = vld [vmem:[#allocation3 + $0xb20] sm:$0xff]
  %v1949 = vld [vmem:[#allocation3 + $0xb28] sm:$0xff]
  %v1950 = vld [vmem:[#allocation3 + $0xb30] sm:$0xff]
  %v1951 = vld [vmem:[#allocation3 + $0xb38] sm:$0xff]
  %v1952 = vld [vmem:[#allocation3 + $0xb40] sm:$0xff]
  %v1953 = vld [vmem:[#allocation3 + $0xb48] sm:$0xff]
  %v1954 = vld [vmem:[#allocation3 + $0xb50] sm:$0xff]
  %v1955 = vld [vmem:[#allocation3 + $0xb58] sm:$0xff]
  %v1956 = vld [vmem:[#allocation3 + $0xb60] sm:$0xff]
  %v1957 = vld [vmem:[#allocation3 + $0xb68] sm:$0xff]
  %v1958 = vld [vmem:[#allocation3 + $0xb70] sm:$0xff]
  %v1959 = vld [vmem:[#allocation3 + $0xb78] sm:$0xff]
  %v1960 = vld [vmem:[#allocation3 + $0xb80] sm:$0xff]
  %v1961 = vld [vmem:[#allocation3 + $0xb88] sm:$0xff]
  %v1962 = vld [vmem:[#allocation3 + $0xb90] sm:$0xff]
  %v1963 = vld [vmem:[#allocation3 + $0xb98] sm:$0xff]
  %v1964 = vld [vmem:[#allocation3 + $0xba0] sm:$0xff]
  %v1965 = vld [vmem:[#allocation3 + $0xba8] sm:$0xff]
  %v1966 = vld [vmem:[#allocation3 + $0xbb0] sm:$0xff]
  %v1967 = vld [vmem:[#allocation3 + $0xbb8] sm:$0xff]
  %v1968 = vld [vmem:[#allocation3 + $0xbc0] sm:$0xff]
  %v1969 = vld [vmem:[#allocation3 + $0xbc8] sm:$0xff]
  %v1970 = vld [vmem:[#allocation3 + $0xbd0] sm:$0xff]
  %v1971 = vld [vmem:[#allocation3 + $0xbd8] sm:$0xff]
  %v1972 = vld [vmem:[#allocation3 + $0xbe0] sm:$0xff]
  %v1973 = vld [vmem:[#allocation3 + $0xbe8] sm:$0xff]
  %v1974 = vld [vmem:[#allocation3 + $0xbf0] sm:$0xff]
  %v1975 = vld [vmem:[#allocation3 + $0xbf8] sm:$0xff]
  %v1976 = vld [vmem:[#allocation3 + $0xc00] sm:$0xff]
  %v1977 = vld [vmem:[#allocation3 + $0xc08] sm:$0xff]
  %v1978 = vld [vmem:[#allocation3 + $0xc10] sm:$0xff]
  %v1979 = vld [vmem:[#allocation3 + $0xc18] sm:$0xff]
  %v1980 = vld [vmem:[#allocation3 + $0xc20] sm:$0xff]
  %v1981 = vld [vmem:[#allocation3 + $0xc28] sm:$0xff]
  %v1982 = vld [vmem:[#allocation3 + $0xc30] sm:$0xff]
  %v1983 = vld [vmem:[#allocation3 + $0xc38] sm:$0xff]
  %v1984 = vld [vmem:[#allocation3 + $0xc40] sm:$0xff]
  %v1985 = vld [vmem:[#allocation3 + $0xc48] sm:$0xff]
  %v1986 = vld [vmem:[#allocation3 + $0xc50] sm:$0xff]
  %v1987 = vld [vmem:[#allocation3 + $0xc58] sm:$0xff]
  %v1988 = vld [vmem:[#allocation3 + $0xc60] sm:$0xff]
  %v1989 = vld [vmem:[#allocation3 + $0xc68] sm:$0xff]
  %v1990 = vld [vmem:[#allocation3 + $0xc70] sm:$0xff]
  %v1991 = vld [vmem:[#allocation3 + $0xc78] sm:$0xff]
  %v1992 = vld [vmem:[#allocation3 + $0xc80] sm:$0xff]
  %v1993 = vld [vmem:[#allocation3 + $0xc88] sm:$0xff]
  %v1994 = vld [vmem:[#allocation3 + $0xc90] sm:$0xff]
  %v1995 = vld [vmem:[#allocation3 + $0xc98] sm:$0xff]
  %v1996 = vld [vmem:[#allocation3 + $0xca0] sm:$0xff]
  %v1997 = vld [vmem:[#allocation3 + $0xca8] sm:$0xff]
  %v1998 = vld [vmem:[#allocation3 + $0xcb0] sm:$0xff]
  %v1999 = vld [vmem:[#allocation3 + $0xcb8] sm:$0xff]
  %v2000 = vld [vmem:[#allocation3 + $0xcc0] sm:$0xff]
  %v2001 = vld [vmem:[#allocation3 + $0xcc8] sm:$0xff]
  %v2002 = vld [vmem:[#allocation3 + $0xcd0] sm:$0xff]
  %v2003 = vld [vmem:[#allocation3 + $0xcd8] sm:$0xff]
  %v2004 = vld [vmem:[#allocation3 + $0xce0] sm:$0xff]
  %v2005 = vld [vmem:[#allocation3 + $0xce8] sm:$0xff]
  %v2006 = vld [vmem:[#allocation3 + $0xcf0] sm:$0xff]
  %v2007 = vld [vmem:[#allocation3 + $0xcf8] sm:$0xff]
  %v2008 = vld [vmem:[#allocation3 + $0xd00] sm:$0xff]
  %v2009 = vld [vmem:[#allocation3 + $0xd08] sm:$0xff]
  %v2010 = vld [vmem:[#allocation3 + $0xd10] sm:$0xff]
  %v2011 = vld [vmem:[#allocation3 + $0xd18] sm:$0xff]
  %v2012 = vld [vmem:[#allocation3 + $0xd20] sm:$0xff]
  %v2013 = vld [vmem:[#allocation3 + $0xd28] sm:$0xff]
  %v2014 = vld [vmem:[#allocation3 + $0xd30] sm:$0xff]
  %v2015 = vld [vmem:[#allocation3 + $0xd38] sm:$0xff]
  %v2016 = vld [vmem:[#allocation3 + $0xd40] sm:$0xff]
  %v2017 = vld [vmem:[#allocation3 + $0xd48] sm:$0xff]
  %v2018 = vld [vmem:[#allocation3 + $0xd50] sm:$0xff]
  %v2019 = vld [vmem:[#allocation3 + $0xd58] sm:$0xff]
  %v2020 = vld [vmem:[#allocation3 + $0xd60] sm:$0xff]
  %v2021 = vld [vmem:[#allocation3 + $0xd68] sm:$0xff]
  %v2022 = vld [vmem:[#allocation3 + $0xd70] sm:$0xff]
  %v2023 = vld [vmem:[#allocation3 + $0xd78] sm:$0xff]
  %v2024 = vld [vmem:[#allocation3 + $0xd80] sm:$0xff]
  %v2025 = vld [vmem:[#allocation3 + $0xd88] sm:$0xff]
  %v2026 = vld [vmem:[#allocation3 + $0xd90] sm:$0xff]
  %v2027 = vld [vmem:[#allocation3 + $0xd98] sm:$0xff]
  %v2028 = vld [vmem:[#allocation3 + $0xda0] sm:$0xff]
  %v2029 = vld [vmem:[#allocation3 + $0xda8] sm:$0xff]
  %v2030 = vld [vmem:[#allocation3 + $0xdb0] sm:$0xff]
  %v2031 = vld [vmem:[#allocation3 + $0xdb8] sm:$0xff]
  %v2032 = vld [vmem:[#allocation3 + $0xdc0] sm:$0xff]
  %v2033 = vld [vmem:[#allocation3 + $0xdc8] sm:$0xff]
  %v2034 = vld [vmem:[#allocation3 + $0xdd0] sm:$0xff]
  %v2035 = vld [vmem:[#allocation3 + $0xdd8] sm:$0xff]
  %v2036 = vld [vmem:[#allocation3 + $0xde0] sm:$0xff]
  %v2037 = vld [vmem:[#allocation3 + $0xde8] sm:$0xff]
  %v2038 = vld [vmem:[#allocation3 + $0xdf0] sm:$0xff]
  %v2039 = vld [vmem:[#allocation3 + $0xdf8] sm:$0xff]
  %v2040 = vld [vmem:[#allocation3 + $0xe00] sm:$0xff]
  %v2041 = vld [vmem:[#allocation3 + $0xe08] sm:$0xff]
  %v2042 = vld [vmem:[#allocation3 + $0xe10] sm:$0xff]
  %v2043 = vld [vmem:[#allocation3 + $0xe18] sm:$0xff]
  %v2044 = vld [vmem:[#allocation3 + $0xe20] sm:$0xff]
  %v2045 = vld [vmem:[#allocation3 + $0xe28] sm:$0xff]
  %v2046 = vld [vmem:[#allocation3 + $0xe30] sm:$0xff]
  %v2047 = vld [vmem:[#allocation3 + $0xe38] sm:$0xff]
  %v2048 = vld [vmem:[#allocation3 + $0xe40] sm:$0xff]
  %v2049 = vld [vmem:[#allocation3 + $0xe48] sm:$0xff]
  %v2050 = vld [vmem:[#allocation3 + $0xe50] sm:$0xff]
  %v2051 = vld [vmem:[#allocation3 + $0xe58] sm:$0xff]
  %v2052 = vld [vmem:[#allocation3 + $0xe60] sm:$0xff]
  %v2053 = vld [vmem:[#allocation3 + $0xe68] sm:$0xff]
  %v2054 = vld [vmem:[#allocation3 + $0xe70] sm:$0xff]
  %v2055 = vld [vmem:[#allocation3 + $0xe78] sm:$0xff]
  %v2056 = vld [vmem:[#allocation3 + $0xe80] sm:$0xff]
  %v2057 = vld [vmem:[#allocation3 + $0xe88] sm:$0xff]
  %v2058 = vld [vmem:[#allocation3 + $0xe90] sm:$0xff]
  %v2059 = vld [vmem:[#allocation3 + $0xe98] sm:$0xff]
  %v2060 = vld [vmem:[#allocation3 + $0xea0] sm:$0xff]
  %v2061 = vld [vmem:[#allocation3 + $0xea8] sm:$0xff]
  %v2062 = vld [vmem:[#allocation3 + $0xeb0] sm:$0xff]
  %v2063 = vld [vmem:[#allocation3 + $0xeb8] sm:$0xff]
  %v2064 = vld [vmem:[#allocation3 + $0xec0] sm:$0xff]
  %v2065 = vld [vmem:[#allocation3 + $0xec8] sm:$0xff]
  %v2066 = vld [vmem:[#allocation3 + $0xed0] sm:$0xff]
  %v2067 = vld [vmem:[#allocation3 + $0xed8] sm:$0xff]
  %v2068 = vld [vmem:[#allocation3 + $0xee0] sm:$0xff]
  %v2069 = vld [vmem:[#allocation3 + $0xee8] sm:$0xff]
  %v2070 = vld [vmem:[#allocation3 + $0xef0] sm:$0xff]
  %v2071 = vld [vmem:[#allocation3 + $0xef8] sm:$0xff]
  %v2072 = vld [vmem:[#allocation3 + $0xf00] sm:$0xff]
  %v2073 = vld [vmem:[#allocation3 + $0xf08] sm:$0xff]
  %v2074 = vld [vmem:[#allocation3 + $0xf10] sm:$0xff]
  %v2075 = vld [vmem:[#allocation3 + $0xf18] sm:$0xff]
  %v2076 = vld [vmem:[#allocation3 + $0xf20] sm:$0xff]
  %v2077 = vld [vmem:[#allocation3 + $0xf28] sm:$0xff]
  %v2078 = vld [vmem:[#allocation3 + $0xf30] sm:$0xff]
  %v2079 = vld [vmem:[#allocation3 + $0xf38] sm:$0xff]
  %v2080 = vld [vmem:[#allocation3 + $0xf40] sm:$0xff]
  %v2081 = vld [vmem:[#allocation3 + $0xf48] sm:$0xff]
  %v2082 = vld [vmem:[#allocation3 + $0xf50] sm:$0xff]
  %v2083 = vld [vmem:[#allocation3 + $0xf58] sm:$0xff]
  %v2084 = vld [vmem:[#allocation3 + $0xf60] sm:$0xff]
  %v2085 = vld [vmem:[#allocation3 + $0xf68] sm:$0xff]
  %v2086 = vld [vmem:[#allocation3 + $0xf70] sm:$0xff]
  %v2087 = vld [vmem:[#allocation3 + $0xf78] sm:$0xff]
  %v2088 = vld [vmem:[#allocation3 + $0xf80] sm:$0xff]
  %v2089 = vld [vmem:[#allocation3 + $0xf88] sm:$0xff]
  %v2090 = vld [vmem:[#allocation3 + $0xf90] sm:$0xff]
  %v2091 = vld [vmem:[#allocation3 + $0xf98] sm:$0xff]
  %v2092 = vld [vmem:[#allocation3 + $0xfa0] sm:$0xff]
  %v2093 = vld [vmem:[#allocation3 + $0xfa8] sm:$0xff]
  %v2094 = vld [vmem:[#allocation3 + $0xfb0] sm:$0xff]
  %v2095 = vld [vmem:[#allocation3 + $0xfb8] sm:$0xff]
  %v2096 = vld [vmem:[#allocation3 + $0xfc0] sm:$0xff]
  %v2097 = vld [vmem:[#allocation3 + $0xfc8] sm:$0xff]
  %v2098 = vld [vmem:[#allocation3 + $0xfd0] sm:$0xff]
  %v2099 = vld [vmem:[#allocation3 + $0xfd8] sm:$0xff]
  %v2100 = vld [vmem:[#allocation3 + $0xfe0] sm:$0xff]
  %v2101 = vld [vmem:[#allocation3 + $0xfe8] sm:$0xff]
  %v2102 = vld [vmem:[#allocation3 + $0xff0] sm:$0xff]
  %v2103 = vld [vmem:[#allocation3 + $0xff8] sm:$0xff]
  %v2104 = vld [vmem:[#allocation3 + $0x1000] sm:$0xff]
  %v2105 = vld [vmem:[#allocation3 + $0x1008] sm:$0xff]
  %v2106 = vld [vmem:[#allocation3 + $0x1010] sm:$0xff]
  %v2107 = vld [vmem:[#allocation3 + $0x1018] sm:$0xff]
  %v2108 = vld [vmem:[#allocation3 + $0x1020] sm:$0xff]
  %v2109 = vld [vmem:[#allocation3 + $0x1028] sm:$0xff]
  %v2110 = vld [vmem:[#allocation3 + $0x1030] sm:$0xff]
  %v2111 = vld [vmem:[#allocation3 + $0x1038] sm:$0xff]
  %v2112 = vld [vmem:[#allocation3 + $0x1040] sm:$0xff]
  %v2113 = vld [vmem:[#allocation3 + $0x1048] sm:$0xff]
  %v2114 = vld [vmem:[#allocation3 + $0x1050] sm:$0xff]
  %v2115 = vld [vmem:[#allocation3 + $0x1058] sm:$0xff]
  %v2116 = vld [vmem:[#allocation3 + $0x1060] sm:$0xff]
  %v2117 = vld [vmem:[#allocation3 + $0x1068] sm:$0xff]
  %v2118 = vld [vmem:[#allocation3 + $0x1070] sm:$0xff]
  %v2119 = vld [vmem:[#allocation3 + $0x1078] sm:$0xff]
  %v2120 = vld [vmem:[#allocation3 + $0x1080] sm:$0xff]
  %v2121 = vld [vmem:[#allocation3 + $0x1088] sm:$0xff]
  %v2122 = vld [vmem:[#allocation3 + $0x1090] sm:$0xff]
  %v2123 = vld [vmem:[#allocation3 + $0x1098] sm:$0xff]
  %v2124 = vld [vmem:[#allocation3 + $0x10a0] sm:$0xff]
  %v2125 = vld [vmem:[#allocation3 + $0x10a8] sm:$0xff]
  %v2126 = vld [vmem:[#allocation3 + $0x10b0] sm:$0xff]
  %v2127 = vld [vmem:[#allocation3 + $0x10b8] sm:$0xff]
  %v2128 = vld [vmem:[#allocation3 + $0x10c0] sm:$0xff]
  %v2129 = vld [vmem:[#allocation3 + $0x10c8] sm:$0xff]
  %v2130 = vld [vmem:[#allocation3 + $0x10d0] sm:$0xff]
  %v2131 = vld [vmem:[#allocation3 + $0x10d8] sm:$0xff]
  %v2132 = vld [vmem:[#allocation3 + $0x10e0] sm:$0xff]
  %v2133 = vld [vmem:[#allocation3 + $0x10e8] sm:$0xff]
  %v2134 = vld [vmem:[#allocation3 + $0x10f0] sm:$0xff]
  %v2135 = vld [vmem:[#allocation3 + $0x10f8] sm:$0xff]
  %v2136 = vld [vmem:[#allocation3 + $0x1100] sm:$0xff]
  %v2137 = vld [vmem:[#allocation3 + $0x1108] sm:$0xff]
  %v2138 = vld [vmem:[#allocation3 + $0x1110] sm:$0xff]
  %v2139 = vld [vmem:[#allocation3 + $0x1118] sm:$0xff]
  %v2140 = vld [vmem:[#allocation3 + $0x1120] sm:$0xff]
  %v2141 = vld [vmem:[#allocation3 + $0x1128] sm:$0xff]
  %v2142 = vld [vmem:[#allocation3 + $0x1130] sm:$0xff]
  %v2143 = vld [vmem:[#allocation3 + $0x1138] sm:$0xff]
  %v2144 = vld [vmem:[#allocation3 + $0x1140] sm:$0xff]
  %v2145 = vld [vmem:[#allocation3 + $0x1148] sm:$0xff]
  %v2146 = vld [vmem:[#allocation3 + $0x1150] sm:$0xff]
  %v2147 = vld [vmem:[#allocation3 + $0x1158] sm:$0xff]
  %v2148 = vld [vmem:[#allocation3 + $0x1160] sm:$0xff]
  %v2149 = vld [vmem:[#allocation3 + $0x1168] sm:$0xff]
  %v2150 = vld [vmem:[#allocation3 + $0x1170] sm:$0xff]
  %v2151 = vld [vmem:[#allocation3 + $0x1178] sm:$0xff]
  %v2152 = vld [vmem:[#allocation3 + $0x1180] sm:$0xff]
  %v2153 = vld [vmem:[#allocation3 + $0x1188] sm:$0xff]
  %v2154 = vld [vmem:[#allocation3 + $0x1190] sm:$0xff]
  %v2155 = vld [vmem:[#allocation3 + $0x1198] sm:$0xff]
  %v2156 = vld [vmem:[#allocation3 + $0x11a0] sm:$0xff]
  %v2157 = vld [vmem:[#allocation3 + $0x11a8] sm:$0xff]
  %v2158 = vld [vmem:[#allocation3 + $0x11b0] sm:$0xff]
  %v2159 = vld [vmem:[#allocation3 + $0x11b8] sm:$0xff]
  %v2160 = vld [vmem:[#allocation3 + $0x11c0] sm:$0xff]
  %v2161 = vld [vmem:[#allocation3 + $0x11c8] sm:$0xff]
  %v2162 = vld [vmem:[#allocation3 + $0x11d0] sm:$0xff]
  %v2163 = vld [vmem:[#allocation3 + $0x11d8] sm:$0xff]
  %v2164 = vld [vmem:[#allocation3 + $0x11e0] sm:$0xff]
  %v2165 = vld [vmem:[#allocation3 + $0x11e8] sm:$0xff]
  %v2166 = vld [vmem:[#allocation3 + $0x11f0] sm:$0xff]
  %v2167 = vld [vmem:[#allocation3 + $0x11f8] sm:$0xff]
  %v2168 = vld [vmem:[%s3] sm:$0xff]
  %v2169 = vld [vmem:[%s3 + $0x8] sm:$0xff]
  %v2170 = vld [vmem:[%s3 + $0x10] sm:$0xff]
  %v2171 = vld [vmem:[%s3 + $0x18] sm:$0xff]
  %v2172 = vld [vmem:[%s3 + $0x20] sm:$0xff]
  %v2173 = vld [vmem:[%s3 + $0x28] sm:$0xff]
  %v2174 = vld [vmem:[%s3 + $0x30] sm:$0xff]
  %v2175 = vld [vmem:[%s3 + $0x38] sm:$0xff]
  %v2176 = vld [vmem:[%s3 + $0x40] sm:$0xff]
  %v2177 = vld [vmem:[%s3 + $0x48] sm:$0xff]
  %v2178 = vld [vmem:[%s3 + $0x50] sm:$0xff]
  %v2179 = vld [vmem:[%s3 + $0x58] sm:$0xff]
  %v2180 = vld [vmem:[%s3 + $0x60] sm:$0xff]
  %v2181 = vld [vmem:[%s3 + $0x68] sm:$0xff]
  %v2182 = vld [vmem:[%s3 + $0x70] sm:$0xff]
  %v2183 = vld [vmem:[%s3 + $0x78] sm:$0xff]
  %v2184 = vld [vmem:[%s3 + $0x80] sm:$0xff]
  %v2185 = vld [vmem:[%s3 + $0x88] sm:$0xff]
  %v2186 = vld [vmem:[%s3 + $0x90] sm:$0xff]
  %v2187 = vld [vmem:[%s3 + $0x98] sm:$0xff]
  %v2188 = vld [vmem:[%s3 + $0xa0] sm:$0xff]
  %v2189 = vld [vmem:[%s3 + $0xa8] sm:$0xff]
  %v2190 = vld [vmem:[%s3 + $0xb0] sm:$0xff]
  %v2191 = vld [vmem:[%s3 + $0xb8] sm:$0xff]
  %v2192 = vld [vmem:[%s3 + $0xc0] sm:$0xff]
  %v2193 = vld [vmem:[%s3 + $0xc8] sm:$0xff]
  %v2194 = vld [vmem:[%s3 + $0xd0] sm:$0xff]
  %v2195 = vld [vmem:[%s3 + $0xd8] sm:$0xff]
  %v2196 = vld [vmem:[%s3 + $0xe0] sm:$0xff]
  %v2197 = vld [vmem:[%s3 + $0xe8] sm:$0xff]
  %v2198 = vld [vmem:[%s3 + $0xf0] sm:$0xff]
  %v2199 = vld [vmem:[%s3 + $0xf8] sm:$0xff]
  %v2200 = vld [vmem:[%s3 + $0x100] sm:$0xff]
  %v2201 = vld [vmem:[%s3 + $0x108] sm:$0xff]
  %v2202 = vld [vmem:[%s3 + $0x110] sm:$0xff]
  %v2203 = vld [vmem:[%s3 + $0x118] sm:$0xff]
  %v2204 = vld [vmem:[%s3 + $0x120] sm:$0xff]
  %v2205 = vld [vmem:[%s3 + $0x128] sm:$0xff]
  %v2206 = vld [vmem:[%s3 + $0x130] sm:$0xff]
  %v2207 = vld [vmem:[%s3 + $0x138] sm:$0xff]
  %v2208 = vld [vmem:[%s3 + $0x140] sm:$0xff]
  %v2209 = vld [vmem:[%s3 + $0x148] sm:$0xff]
  %v2210 = vld [vmem:[%s3 + $0x150] sm:$0xff]
  %v2211 = vld [vmem:[%s3 + $0x158] sm:$0xff]
  %v2212 = vld [vmem:[%s3 + $0x160] sm:$0xff]
  %v2213 = vld [vmem:[%s3 + $0x168] sm:$0xff]
  %v2214 = vld [vmem:[%s3 + $0x170] sm:$0xff]
  %v2215 = vld [vmem:[%s3 + $0x178] sm:$0xff]
  %v2216 = vld [vmem:[%s3 + $0x180] sm:$0xff]
  %v2217 = vld [vmem:[%s3 + $0x188] sm:$0xff]
  %v2218 = vld [vmem:[%s3 + $0x190] sm:$0xff]
  %v2219 = vld [vmem:[%s3 + $0x198] sm:$0xff]
  %v2220 = vld [vmem:[%s3 + $0x1a0] sm:$0xff]
  %v2221 = vld [vmem:[%s3 + $0x1a8] sm:$0xff]
  %v2222 = vld [vmem:[%s3 + $0x1b0] sm:$0xff]
  %v2223 = vld [vmem:[%s3 + $0x1b8] sm:$0xff]
  %v2224 = vld [vmem:[%s3 + $0x1c0] sm:$0xff]
  %v2225 = vld [vmem:[%s3 + $0x1c8] sm:$0xff]
  %v2226 = vld [vmem:[%s3 + $0x1d0] sm:$0xff]
  %v2227 = vld [vmem:[%s3 + $0x1d8] sm:$0xff]
  %v2228 = vld [vmem:[%s3 + $0x1e0] sm:$0xff]
  %v2229 = vld [vmem:[%s3 + $0x1e8] sm:$0xff]
  %v2230 = vld [vmem:[%s3 + $0x1f0] sm:$0xff]
  %v2231 = vld [vmem:[%s3 + $0x1f8] sm:$0xff]
  %v2232 = vld [vmem:[%s3 + $0x200] sm:$0xff]
  %v2233 = vld [vmem:[%s3 + $0x208] sm:$0xff]
  %v2234 = vld [vmem:[%s3 + $0x210] sm:$0xff]
  %v2235 = vld [vmem:[%s3 + $0x218] sm:$0xff]
  %v2236 = vld [vmem:[%s3 + $0x220] sm:$0xff]
  %v2237 = vld [vmem:[%s3 + $0x228] sm:$0xff]
  %v2238 = vld [vmem:[%s3 + $0x230] sm:$0xff]
  %v2239 = vld [vmem:[%s3 + $0x238] sm:$0xff]
  %v2240 = vld [vmem:[%s3 + $0x240] sm:$0xff]
  %v2241 = vld [vmem:[%s3 + $0x248] sm:$0xff]
  %v2242 = vld [vmem:[%s3 + $0x250] sm:$0xff]
  %v2243 = vld [vmem:[%s3 + $0x258] sm:$0xff]
  %v2244 = vld [vmem:[%s3 + $0x260] sm:$0xff]
  %v2245 = vld [vmem:[%s3 + $0x268] sm:$0xff]
  %v2246 = vld [vmem:[%s3 + $0x270] sm:$0xff]
  %v2247 = vld [vmem:[%s3 + $0x278] sm:$0xff]
  %v2248 = vld [vmem:[%s3 + $0x280] sm:$0xff]
  %v2249 = vld [vmem:[%s3 + $0x288] sm:$0xff]
  %v2250 = vld [vmem:[%s3 + $0x290] sm:$0xff]
  %v2251 = vld [vmem:[%s3 + $0x298] sm:$0xff]
  %v2252 = vld [vmem:[%s3 + $0x2a0] sm:$0xff]
  %v2253 = vld [vmem:[%s3 + $0x2a8] sm:$0xff]
  %v2254 = vld [vmem:[%s3 + $0x2b0] sm:$0xff]
  %v2255 = vld [vmem:[%s3 + $0x2b8] sm:$0xff]
  %v2256 = vld [vmem:[%s3 + $0x2c0] sm:$0xff]
  %v2257 = vld [vmem:[%s3 + $0x2c8] sm:$0xff]
  %v2258 = vld [vmem:[%s3 + $0x2d0] sm:$0xff]
  %v2259 = vld [vmem:[%s3 + $0x2d8] sm:$0xff]
  %v2260 = vld [vmem:[%s3 + $0x2e0] sm:$0xff]
  %v2261 = vld [vmem:[%s3 + $0x2e8] sm:$0xff]
  %v2262 = vld [vmem:[%s3 + $0x2f0] sm:$0xff]
  %v2263 = vld [vmem:[%s3 + $0x2f8] sm:$0xff]
  %v2264 = vld [vmem:[%s3 + $0x300] sm:$0xff]
  %v2265 = vld [vmem:[%s3 + $0x308] sm:$0xff]
  %v2266 = vld [vmem:[%s3 + $0x310] sm:$0xff]
  %v2267 = vld [vmem:[%s3 + $0x318] sm:$0xff]
  %v2268 = vld [vmem:[%s3 + $0x320] sm:$0xff]
  %v2269 = vld [vmem:[%s3 + $0x328] sm:$0xff]
  %v2270 = vld [vmem:[%s3 + $0x330] sm:$0xff]
  %v2271 = vld [vmem:[%s3 + $0x338] sm:$0xff]
  %v2272 = vld [vmem:[%s3 + $0x340] sm:$0xff]
  %v2273 = vld [vmem:[%s3 + $0x348] sm:$0xff]
  %v2274 = vld [vmem:[%s3 + $0x350] sm:$0xff]
  %v2275 = vld [vmem:[%s3 + $0x358] sm:$0xff]
  %v2276 = vld [vmem:[%s3 + $0x360] sm:$0xff]
  %v2277 = vld [vmem:[%s3 + $0x368] sm:$0xff]
  %v2278 = vld [vmem:[%s3 + $0x370] sm:$0xff]
  %v2279 = vld [vmem:[%s3 + $0x378] sm:$0xff]
  %v2280 = vld [vmem:[%s3 + $0x380] sm:$0xff]
  %v2281 = vld [vmem:[%s3 + $0x388] sm:$0xff]
  %v2282 = vld [vmem:[%s3 + $0x390] sm:$0xff]
  %v2283 = vld [vmem:[%s3 + $0x398] sm:$0xff]
  %v2284 = vld [vmem:[%s3 + $0x3a0] sm:$0xff]
  %v2285 = vld [vmem:[%s3 + $0x3a8] sm:$0xff]
  %v2286 = vld [vmem:[%s3 + $0x3b0] sm:$0xff]
  %v2287 = vld [vmem:[%s3 + $0x3b8] sm:$0xff]
  %v2288 = vld [vmem:[%s3 + $0x3c0] sm:$0xff]
  %v2289 = vld [vmem:[%s3 + $0x3c8] sm:$0xff]
  %v2290 = vld [vmem:[%s3 + $0x3d0] sm:$0xff]
  %v2291 = vld [vmem:[%s3 + $0x3d8] sm:$0xff]
  %v2292 = vld [vmem:[%s3 + $0x3e0] sm:$0xff]
  %v2293 = vld [vmem:[%s3 + $0x3e8] sm:$0xff]
  %v2294 = vld [vmem:[%s3 + $0x3f0] sm:$0xff]
  %v2295 = vld [vmem:[%s3 + $0x3f8] sm:$0xff]
  %v2296 = vld [vmem:[%s3 + $0x400] sm:$0xff]
  %v2297 = vld [vmem:[%s3 + $0x408] sm:$0xff]
  %v2298 = vld [vmem:[%s3 + $0x410] sm:$0xff]
  %v2299 = vld [vmem:[%s3 + $0x418] sm:$0xff]
  %v2300 = vld [vmem:[%s3 + $0x420] sm:$0xff]
  %v2301 = vld [vmem:[%s3 + $0x428] sm:$0xff]
  %v2302 = vld [vmem:[%s3 + $0x430] sm:$0xff]
  %v2303 = vld [vmem:[%s3 + $0x438] sm:$0xff]
  %v2304 = vld [vmem:[%s3 + $0x440] sm:$0xff]
  %v2305 = vld [vmem:[%s3 + $0x448] sm:$0xff]
  %v2306 = vld [vmem:[%s3 + $0x450] sm:$0xff]
  %v2307 = vld [vmem:[%s3 + $0x458] sm:$0xff]
  %v2308 = vld [vmem:[%s3 + $0x460] sm:$0xff]
  %v2309 = vld [vmem:[%s3 + $0x468] sm:$0xff]
  %v2310 = vld [vmem:[%s3 + $0x470] sm:$0xff]
  %v2311 = vld [vmem:[%s3 + $0x478] sm:$0xff]
  %2312 = vmatprep.subr.mxu0 0.0
  %2313 = vmatpush1.msra.mxu0 %v2183
  %2314 = vmatprep.subr.mxu0 0.0
  %2315 = vmatpush1.msra.mxu0 %v2182
  %2316 = vmatprep.subr.mxu0 0.0
  %2317 = vmatpush1.msra.mxu0 %v2181
  %2318 = vmatprep.subr.mxu0 0.0
  %2319 = vmatpush1.msra.mxu0 %v2180
  %2320 = vmatprep.subr.mxu0 0.0
  %2321 = vmatpush1.msra.mxu0 %v2179
  %2322 = vmatprep.subr.mxu0 0.0
  %2323 = vmatpush1.msra.mxu0 %v2178
  %2324 = vmatprep.subr.mxu0 0.0
  %2325 = vmatpush1.msra.mxu0 %v2177
  %2326 = vmatprep.subr.mxu0 0.0
  %2327 = vmatpush1.msra.mxu0 %v2176
  %2328 = vmatprep.subr.mxu0 0.0
  %2329 = vmatpush1.msra.mxu0 %v2175
  %2330 = vmatprep.subr.mxu0 0.0
  %2331 = vmatpush1.msra.mxu0 %v2174
  %2332 = vmatprep.subr.mxu0 0.0
  %2333 = vmatpush1.msra.mxu0 %v2173
  %2334 = vmatprep.subr.mxu0 0.0
  %2335 = vmatpush1.msra.mxu0 %v2172
  %2336 = vmatprep.subr.mxu0 0.0
  %2337 = vmatpush1.msra.mxu0 %v2171
  %2338 = vmatprep.subr.mxu0 0.0
  %2339 = vmatpush1.msra.mxu0 %v2170
  %2340 = vmatprep.subr.mxu0 0.0
  %2341 = vmatpush1.msra.mxu0 %v2169
  %2342 = vmatprep.subr.mxu0 0.0
  %2343 = vmatpush1.msra.mxu0 %v2168
  %2344 = vmatprep.subr.mxu0 0.0
  %2345 = vmatpush2.msra.mxu0 %v2199
  %2346 = vmatprep.subr.mxu0 0.0
  %2347 = vmatpush2.msra.mxu0 %v2198
  %2348 = vmatprep.subr.mxu0 0.0
  %2349 = vmatpush2.msra.mxu0 %v2197
  %2350 = vmatprep.subr.mxu0 0.0
  %2351 = vmatpush2.msra.mxu0 %v2196
  %2352 = vmatprep.subr.mxu0 0.0
  %2353 = vmatpush2.msra.mxu0 %v2195
  %2354 = vmatprep.subr.mxu0 0.0
  %2355 = vmatpush2.msra.mxu0 %v2194
  %2356 = vmatprep.subr.mxu0 0.0
  %2357 = vmatpush2.msra.mxu0 %v2193
  %2358 = vmatprep.subr.mxu0 0.0
  %2359 = vmatpush2.msra.mxu0 %v2192
  %2360 = vmatprep.subr.mxu0 0.0
  %2361 = vmatpush2.msra.mxu0 %v2191
  %2362 = vmatprep.subr.mxu0 0.0
  %2363 = vmatpush2.msra.mxu0 %v2190
  %2364 = vmatprep.subr.mxu0 0.0
  %2365 = vmatpush2.msra.mxu0 %v2189
  %2366 = vmatprep.subr.mxu0 0.0
  %2367 = vmatpush2.msra.mxu0 %v2188
  %2368 = vmatprep.subr.mxu0 0.0
  %2369 = vmatpush2.msra.mxu0 %v2187
  %2370 = vmatprep.subr.mxu0 0.0
  %2371 = vmatpush2.msra.mxu0 %v2186
  %2372 = vmatprep.subr.mxu0 0.0
  %2373 = vmatpush2.msra.mxu0 %v2185
  %2374 = vmatprep.subr.mxu0 0.0
  %2375 = vmatpush2.msra.mxu0 %v2184
  %2376 = vmatprep.mubr.f32.mxu0 %v1593
  %2377 = vmatmul.mubr.f32.gmra.mxu0 %v1592
  %v2378 = vpop.f32.mrf.mxu0
  %v2379 = vadd.f32 0.0, %v2378
  %v2380 = vpop.f32.mrf.mxu0
  %2381 = vmatprep.mubr.f32.mxu0 %v1602
  %2382 = vmatmul.mubr.f32.gmra.mxu0 %v1601
  %v2383 = vpop.f32.mrf.mxu0
  %v2384 = vadd.f32 0.0, %v2383
  %v2385 = vpop.f32.mrf.mxu0
  %2386 = vmatprep.mubr.f32.mxu0 %v1611
  %2387 = vmatmul.mubr.f32.gmra.mxu0 %v1610
  %v2388 = vpop.f32.mrf.mxu0
  %v2389 = vadd.f32 0.0, %v2388
  %v2390 = vpop.f32.mrf.mxu0
  %2391 = vmatprep.mubr.f32.mxu0 %v1620
  %2392 = vmatmul.mubr.f32.gmra.mxu0 %v1619
  %v2393 = vpop.f32.mrf.mxu0
  %v2394 = vadd.f32 0.0, %v2393
  %v2395 = vpop.f32.mrf.mxu0
  %2396 = vmatprep.mubr.f32.mxu0 %v1629
  %2397 = vmatmul.mubr.f32.gmra.mxu0 %v1628
  %v2398 = vpop.f32.mrf.mxu0
  %v2399 = vadd.f32 0.0, %v2398
  %v2400 = vpop.f32.mrf.mxu0
  %2401 = vmatprep.mubr.f32.mxu0 %v1638
  %2402 = vmatmul.mubr.f32.gmra.mxu0 %v1637
  %v2403 = vpop.f32.mrf.mxu0
  %v2404 = vadd.f32 0.0, %v2403
  %v2405 = vpop.f32.mrf.mxu0
  %2406 = vmatprep.mubr.f32.mxu0 %v1647
  %2407 = vmatmul.mubr.f32.gmra.mxu0 %v1646
  %v2408 = vpop.f32.mrf.mxu0
  %v2409 = vadd.f32 0.0, %v2408
  %v2410 = vpop.f32.mrf.mxu0
  %2411 = vmatprep.mubr.f32.mxu0 %v1656
  %2412 = vmatmul.mubr.f32.gmra.mxu0 %v1655
  %v2413 = vpop.f32.mrf.mxu0
  %v2414 = vadd.f32 0.0, %v2413
  %v2415 = vpop.f32.mrf.mxu0
  %2416 = vmatprep.mubr.f32.mxu0 %v1665
  %2417 = vmatmul.mubr.f32.gmra.mxu0 %v1664
  %v2418 = vpop.f32.mrf.mxu0
  %v2419 = vadd.f32 0.0, %v2418
  %v2420 = vpop.f32.mrf.mxu0
  %2421 = vmatprep.mubr.f32.mxu0 %v1674
  %2422 = vmatmul.mubr.f32.gmra.mxu0 %v1673
  %v2423 = vpop.f32.mrf.mxu0
  %v2424 = vadd.f32 0.0, %v2423
  %v2425 = vpop.f32.mrf.mxu0
  %2426 = vmatprep.mubr.f32.mxu0 %v1683
  %2427 = vmatmul.mubr.f32.gmra.mxu0 %v1682
  %v2428 = vpop.f32.mrf.mxu0
  %v2429 = vadd.f32 0.0, %v2428
  %v2430 = vpop.f32.mrf.mxu0
  %2431 = vmatprep.mubr.f32.mxu0 %v1692
  %2432 = vmatmul.mubr.f32.gmra.mxu0 %v1691
  %v2433 = vpop.f32.mrf.mxu0
  %v2434 = vadd.f32 0.0, %v2433
  %v2435 = vpop.f32.mrf.mxu0
  %2436 = vmatprep.mubr.f32.mxu0 %v1701
  %2437 = vmatmul.mubr.f32.gmra.mxu0 %v1700
  %v2438 = vpop.f32.mrf.mxu0
  %v2439 = vadd.f32 0.0, %v2438
  %v2440 = vpop.f32.mrf.mxu0
  %2441 = vmatprep.mubr.f32.mxu0 %v1710
  %2442 = vmatmul.mubr.f32.gmra.mxu0 %v1709
  %v2443 = vpop.f32.mrf.mxu0
  %v2444 = vadd.f32 0.0, %v2443
  %v2445 = vpop.f32.mrf.mxu0
  %2446 = vmatprep.mubr.f32.mxu0 %v1719
  %2447 = vmatmul.mubr.f32.gmra.mxu0 %v1718
  %v2448 = vpop.f32.mrf.mxu0
  %v2449 = vadd.f32 0.0, %v2448
  %v2450 = vpop.f32.mrf.mxu0
  %2451 = vmatprep.mubr.f32.mxu0 %v1728
  %2452 = vmatmul.mubr.f32.gmra.mxu0 %v1727
  %v2453 = vpop.f32.mrf.mxu0
  %v2454 = vadd.f32 0.0, %v2453
  %v2455 = vpop.f32.mrf.mxu0
  %2456 = vmatprep.mubr.f32.mxu0 %v1737
  %2457 = vmatmul.mubr.f32.gmra.mxu0 %v1736
  %v2458 = vpop.f32.mrf.mxu0
  %v2459 = vadd.f32 0.0, %v2458
  %v2460 = vpop.f32.mrf.mxu0
  %2461 = vmatprep.mubr.f32.mxu0 %v1746
  %2462 = vmatmul.mubr.f32.gmra.mxu0 %v1745
  %v2463 = vpop.f32.mrf.mxu0
  %v2464 = vadd.f32 0.0, %v2463
  %v2465 = vpop.f32.mrf.mxu0
  %2466 = vmatprep.mubr.f32.mxu0 %v1755
  %2467 = vmatmul.mubr.f32.gmra.mxu0 %v1754
  %v2468 = vpop.f32.mrf.mxu0
  %v2469 = vadd.f32 0.0, %v2468
  %v2470 = vpop.f32.mrf.mxu0
  %2471 = vmatprep.mubr.f32.mxu0 %v1764
  %2472 = vmatmul.mubr.f32.gmra.mxu0 %v1763
  %v2473 = vpop.f32.mrf.mxu0
  %v2474 = vadd.f32 0.0, %v2473
  %v2475 = vpop.f32.mrf.mxu0
  %2476 = vmatprep.mubr.f32.mxu0 %v1773
  %2477 = vmatmul.mubr.f32.gmra.mxu0 %v1772
  %v2478 = vpop.f32.mrf.mxu0
  %v2479 = vadd.f32 0.0, %v2478
  %v2480 = vpop.f32.mrf.mxu0
  %2481 = vmatprep.mubr.f32.mxu0 %v1782
  %2482 = vmatmul.mubr.f32.gmra.mxu0 %v1781
  %v2483 = vpop.f32.mrf.mxu0
  %v2484 = vadd.f32 0.0, %v2483
  %v2485 = vpop.f32.mrf.mxu0
  %2486 = vmatprep.mubr.f32.mxu0 %v1791
  %2487 = vmatmul.mubr.f32.gmra.mxu0 %v1790
  %v2488 = vpop.f32.mrf.mxu0
  %v2489 = vadd.f32 0.0, %v2488
  %v2490 = vpop.f32.mrf.mxu0
  %2491 = vmatprep.mubr.f32.mxu0 %v1800
  %2492 = vmatmul.mubr.f32.gmra.mxu0 %v1799
  %v2493 = vpop.f32.mrf.mxu0
  %v2494 = vadd.f32 0.0, %v2493
  %v2495 = vpop.f32.mrf.mxu0
  %2496 = vmatprep.mubr.f32.mxu0 %v1809
  %2497 = vmatmul.mubr.f32.gmra.mxu0 %v1808
  %v2498 = vpop.f32.mrf.mxu0
  %v2499 = vadd.f32 0.0, %v2498
  %v2500 = vpop.f32.mrf.mxu0
  %2501 = vmatprep.mubr.f32.mxu0 %v1818
  %2502 = vmatmul.mubr.f32.gmra.mxu0 %v1817
  %v2503 = vpop.f32.mrf.mxu0
  %v2504 = vadd.f32 0.0, %v2503
  %v2505 = vpop.f32.mrf.mxu0
  %2506 = vmatprep.mubr.f32.mxu0 %v1827
  %2507 = vmatmul.mubr.f32.gmra.mxu0 %v1826
  %v2508 = vpop.f32.mrf.mxu0
  %v2509 = vadd.f32 0.0, %v2508
  %v2510 = vpop.f32.mrf.mxu0
  %2511 = vmatprep.mubr.f32.mxu0 %v1836
  %2512 = vmatmul.mubr.f32.gmra.mxu0 %v1835
  %v2513 = vpop.f32.mrf.mxu0
  %v2514 = vadd.f32 0.0, %v2513
  %v2515 = vpop.f32.mrf.mxu0
  %2516 = vmatprep.mubr.f32.mxu0 %v1845
  %2517 = vmatmul.mubr.f32.gmra.mxu0 %v1844
  %v2518 = vpop.f32.mrf.mxu0
  %v2519 = vadd.f32 0.0, %v2518
  %v2520 = vpop.f32.mrf.mxu0
  %2521 = vmatprep.mubr.f32.mxu0 %v1854
  %2522 = vmatmul.mubr.f32.gmra.mxu0 %v1853
  %v2523 = vpop.f32.mrf.mxu0
  %v2524 = vadd.f32 0.0, %v2523
  %v2525 = vpop.f32.mrf.mxu0
  %2526 = vmatprep.mubr.f32.mxu0 %v1863
  %2527 = vmatmul.mubr.f32.gmra.mxu0 %v1862
  %v2528 = vpop.f32.mrf.mxu0
  %v2529 = vadd.f32 0.0, %v2528
  %v2530 = vpop.f32.mrf.mxu0
  %2531 = vmatprep.mubr.f32.mxu0 %v1872
  %2532 = vmatmul.mubr.f32.gmra.mxu0 %v1871
  %v2533 = vpop.f32.mrf.mxu0
  %v2534 = vadd.f32 0.0, %v2533
  %v2535 = vpop.f32.mrf.mxu0
  %2536 = vmatprep.mubr.f32.mxu0 %v1881
  %2537 = vmatmul.mubr.f32.gmra.mxu0 %v1880
  %v2538 = vpop.f32.mrf.mxu0
  %v2539 = vadd.f32 0.0, %v2538
  %v2540 = vpop.f32.mrf.mxu0
  %2541 = vmatprep.mubr.f32.mxu0 %v1890
  %2542 = vmatmul.mubr.f32.gmra.mxu0 %v1889
  %v2543 = vpop.f32.mrf.mxu0
  %v2544 = vadd.f32 0.0, %v2543
  %v2545 = vpop.f32.mrf.mxu0
  %2546 = vmatprep.mubr.f32.mxu0 %v1899
  %2547 = vmatmul.mubr.f32.gmra.mxu0 %v1898
  %v2548 = vpop.f32.mrf.mxu0
  %v2549 = vadd.f32 0.0, %v2548
  %v2550 = vpop.f32.mrf.mxu0
  %2551 = vmatprep.mubr.f32.mxu0 %v1908
  %2552 = vmatmul.mubr.f32.gmra.mxu0 %v1907
  %v2553 = vpop.f32.mrf.mxu0
  %v2554 = vadd.f32 0.0, %v2553
  %v2555 = vpop.f32.mrf.mxu0
  %2556 = vmatprep.mubr.f32.mxu0 %v1917
  %2557 = vmatmul.mubr.f32.gmra.mxu0 %v1916
  %v2558 = vpop.f32.mrf.mxu0
  %v2559 = vadd.f32 0.0, %v2558
  %v2560 = vpop.f32.mrf.mxu0
  %2561 = vmatprep.mubr.f32.mxu0 %v1926
  %2562 = vmatmul.mubr.f32.gmra.mxu0 %v1925
  %v2563 = vpop.f32.mrf.mxu0
  %v2564 = vadd.f32 0.0, %v2563
  %v2565 = vpop.f32.mrf.mxu0
  %2566 = vmatprep.mubr.f32.mxu0 %v1935
  %2567 = vmatmul.mubr.f32.gmra.mxu0 %v1934
  %v2568 = vpop.f32.mrf.mxu0
  %v2569 = vadd.f32 0.0, %v2568
  %v2570 = vpop.f32.mrf.mxu0
  %2571 = vmatprep.mubr.f32.mxu0 %v1944
  %2572 = vmatmul.mubr.f32.gmra.mxu0 %v1943
  %v2573 = vpop.f32.mrf.mxu0
  %v2574 = vadd.f32 0.0, %v2573
  %v2575 = vpop.f32.mrf.mxu0
  %2576 = vmatprep.mubr.f32.mxu0 %v1953
  %2577 = vmatmul.mubr.f32.gmra.mxu0 %v1952
  %v2578 = vpop.f32.mrf.mxu0
  %v2579 = vadd.f32 0.0, %v2578
  %v2580 = vpop.f32.mrf.mxu0
  %2581 = vmatprep.mubr.f32.mxu0 %v1962
  %2582 = vmatmul.mubr.f32.gmra.mxu0 %v1961
  %v2583 = vpop.f32.mrf.mxu0
  %v2584 = vadd.f32 0.0, %v2583
  %v2585 = vpop.f32.mrf.mxu0
  %2586 = vmatprep.mubr.f32.mxu0 %v1971
  %2587 = vmatmul.mubr.f32.gmra.mxu0 %v1970
  %v2588 = vpop.f32.mrf.mxu0
  %v2589 = vadd.f32 0.0, %v2588
  %v2590 = vpop.f32.mrf.mxu0
  %2591 = vmatprep.mubr.f32.mxu0 %v1980
  %2592 = vmatmul.mubr.f32.gmra.mxu0 %v1979
  %v2593 = vpop.f32.mrf.mxu0
  %v2594 = vadd.f32 0.0, %v2593
  %v2595 = vpop.f32.mrf.mxu0
  %2596 = vmatprep.mubr.f32.mxu0 %v1989
  %2597 = vmatmul.mubr.f32.gmra.mxu0 %v1988
  %v2598 = vpop.f32.mrf.mxu0
  %v2599 = vadd.f32 0.0, %v2598
  %v2600 = vpop.f32.mrf.mxu0
  %2601 = vmatprep.mubr.f32.mxu0 %v1998
  %2602 = vmatmul.mubr.f32.gmra.mxu0 %v1997
  %v2603 = vpop.f32.mrf.mxu0
  %v2604 = vadd.f32 0.0, %v2603
  %v2605 = vpop.f32.mrf.mxu0
  %2606 = vmatprep.mubr.f32.mxu0 %v2007
  %2607 = vmatmul.mubr.f32.gmra.mxu0 %v2006
  %v2608 = vpop.f32.mrf.mxu0
  %v2609 = vadd.f32 0.0, %v2608
  %v2610 = vpop.f32.mrf.mxu0
  %2611 = vmatprep.mubr.f32.mxu0 %v2016
  %2612 = vmatmul.mubr.f32.gmra.mxu0 %v2015
  %v2613 = vpop.f32.mrf.mxu0
  %v2614 = vadd.f32 0.0, %v2613
  %v2615 = vpop.f32.mrf.mxu0
  %2616 = vmatprep.mubr.f32.mxu0 %v2025
  %2617 = vmatmul.mubr.f32.gmra.mxu0 %v2024
  %v2618 = vpop.f32.mrf.mxu0
  %v2619 = vadd.f32 0.0, %v2618
  %v2620 = vpop.f32.mrf.mxu0
  %2621 = vmatprep.mubr.f32.mxu0 %v2034
  %2622 = vmatmul.mubr.f32.gmra.mxu0 %v2033
  %v2623 = vpop.f32.mrf.mxu0
  %v2624 = vadd.f32 0.0, %v2623
  %v2625 = vpop.f32.mrf.mxu0
  %2626 = vmatprep.mubr.f32.mxu0 %v2043
  %2627 = vmatmul.mubr.f32.gmra.mxu0 %v2042
  %v2628 = vpop.f32.mrf.mxu0
  %v2629 = vadd.f32 0.0, %v2628
  %v2630 = vpop.f32.mrf.mxu0
  %2631 = vmatprep.mubr.f32.mxu0 %v2052
  %2632 = vmatmul.mubr.f32.gmra.mxu0 %v2051
  %v2633 = vpop.f32.mrf.mxu0
  %v2634 = vadd.f32 0.0, %v2633
  %v2635 = vpop.f32.mrf.mxu0
  %2636 = vmatprep.mubr.f32.mxu0 %v2061
  %2637 = vmatmul.mubr.f32.gmra.mxu0 %v2060
  %v2638 = vpop.f32.mrf.mxu0
  %v2639 = vadd.f32 0.0, %v2638
  %v2640 = vpop.f32.mrf.mxu0
  %2641 = vmatprep.mubr.f32.mxu0 %v2070
  %2642 = vmatmul.mubr.f32.gmra.mxu0 %v2069
  %v2643 = vpop.f32.mrf.mxu0
  %v2644 = vadd.f32 0.0, %v2643
  %v2645 = vpop.f32.mrf.mxu0
  %2646 = vmatprep.mubr.f32.mxu0 %v2079
  %2647 = vmatmul.mubr.f32.gmra.mxu0 %v2078
  %v2648 = vpop.f32.mrf.mxu0
  %v2649 = vadd.f32 0.0, %v2648
  %v2650 = vpop.f32.mrf.mxu0
  %2651 = vmatprep.mubr.f32.mxu0 %v2088
  %2652 = vmatmul.mubr.f32.gmra.mxu0 %v2087
  %v2653 = vpop.f32.mrf.mxu0
  %v2654 = vadd.f32 0.0, %v2653
  %v2655 = vpop.f32.mrf.mxu0
  %2656 = vmatprep.mubr.f32.mxu0 %v2097
  %2657 = vmatmul.mubr.f32.gmra.mxu0 %v2096
  %v2658 = vpop.f32.mrf.mxu0
  %v2659 = vadd.f32 0.0, %v2658
  %v2660 = vpop.f32.mrf.mxu0
  %2661 = vmatprep.mubr.f32.mxu0 %v2106
  %2662 = vmatmul.mubr.f32.gmra.mxu0 %v2105
  %v2663 = vpop.f32.mrf.mxu0
  %v2664 = vadd.f32 0.0, %v2663
  %v2665 = vpop.f32.mrf.mxu0
  %2666 = vmatprep.mubr.f32.mxu0 %v2115
  %2667 = vmatmul.mubr.f32.gmra.mxu0 %v2114
  %v2668 = vpop.f32.mrf.mxu0
  %v2669 = vadd.f32 0.0, %v2668
  %v2670 = vpop.f32.mrf.mxu0
  %2671 = vmatprep.mubr.f32.mxu0 %v2124
  %2672 = vmatmul.mubr.f32.gmra.mxu0 %v2123
  %v2673 = vpop.f32.mrf.mxu0
  %v2674 = vadd.f32 0.0, %v2673
  %v2675 = vpop.f32.mrf.mxu0
  %2676 = vmatprep.mubr.f32.mxu0 %v2133
  %2677 = vmatmul.mubr.f32.gmra.mxu0 %v2132
  %v2678 = vpop.f32.mrf.mxu0
  %v2679 = vadd.f32 0.0, %v2678
  %v2680 = vpop.f32.mrf.mxu0
  %2681 = vmatprep.mubr.f32.mxu0 %v2142
  %2682 = vmatmul.mubr.f32.gmra.mxu0 %v2141
  %v2683 = vpop.f32.mrf.mxu0
  %v2684 = vadd.f32 0.0, %v2683
  %v2685 = vpop.f32.mrf.mxu0
  %2686 = vmatprep.mubr.f32.mxu0 %v2151
  %2687 = vmatmul.mubr.f32.gmra.mxu0 %v2150
  %v2688 = vpop.f32.mrf.mxu0
  %v2689 = vadd.f32 0.0, %v2688
  %v2690 = vpop.f32.mrf.mxu0
  %2691 = vmatprep.mubr.f32.mxu0 %v2160
  %2692 = vmatmul.mubr.f32.gmra.mxu0 %v2159
  %v2693 = vpop.f32.mrf.mxu0
  %v2694 = vadd.f32 0.0, %v2693
  %v2695 = vpop.f32.mrf.mxu0
  %2696 = vdwg.mxu0
  %2697 = vmatprep.subr.mxu0 0.0
  %2698 = vmatpush1.msra.mxu0 %v2215
  %2699 = vmatprep.subr.mxu0 0.0
  %2700 = vmatpush1.msra.mxu0 %v2214
  %2701 = vmatprep.subr.mxu0 0.0
  %2702 = vmatpush1.msra.mxu0 %v2213
  %2703 = vmatprep.subr.mxu0 0.0
  %2704 = vmatpush1.msra.mxu0 %v2212
  %2705 = vmatprep.subr.mxu0 0.0
  %2706 = vmatpush1.msra.mxu0 %v2211
  %2707 = vmatprep.subr.mxu0 0.0
  %2708 = vmatpush1.msra.mxu0 %v2210
  %2709 = vmatprep.subr.mxu0 0.0
  %2710 = vmatpush1.msra.mxu0 %v2209
  %2711 = vmatprep.subr.mxu0 0.0
  %2712 = vmatpush1.msra.mxu0 %v2208
  %2713 = vmatprep.subr.mxu0 0.0
  %2714 = vmatpush1.msra.mxu0 %v2207
  %2715 = vmatprep.subr.mxu0 0.0
  %2716 = vmatpush1.msra.mxu0 %v2206
  %2717 = vmatprep.subr.mxu0 0.0
  %2718 = vmatpush1.msra.mxu0 %v2205
  %2719 = vmatprep.subr.mxu0 0.0
  %2720 = vmatpush1.msra.mxu0 %v2204
  %2721 = vmatprep.subr.mxu0 0.0
  %2722 = vmatpush1.msra.mxu0 %v2203
  %2723 = vmatprep.subr.mxu0 0.0
  %2724 = vmatpush1.msra.mxu0 %v2202
  %2725 = vmatprep.subr.mxu0 0.0
  %2726 = vmatpush1.msra.mxu0 %v2201
  %2727 = vmatprep.subr.mxu0 0.0
  %2728 = vmatpush1.msra.mxu0 %v2200
  %2729 = vmatprep.subr.mxu0 0.0
  %2730 = vmatpush2.msra.mxu0 %v2231
  %2731 = vmatprep.subr.mxu0 0.0
  %2732 = vmatpush2.msra.mxu0 %v2230
  %2733 = vmatprep.subr.mxu0 0.0
  %2734 = vmatpush2.msra.mxu0 %v2229
  %2735 = vmatprep.subr.mxu0 0.0
  %2736 = vmatpush2.msra.mxu0 %v2228
  %2737 = vmatprep.subr.mxu0 0.0
  %2738 = vmatpush2.msra.mxu0 %v2227
  %2739 = vmatprep.subr.mxu0 0.0
  %2740 = vmatpush2.msra.mxu0 %v2226
  %2741 = vmatprep.subr.mxu0 0.0
  %2742 = vmatpush2.msra.mxu0 %v2225
  %2743 = vmatprep.subr.mxu0 0.0
  %2744 = vmatpush2.msra.mxu0 %v2224
  %2745 = vmatprep.subr.mxu0 0.0
  %2746 = vmatpush2.msra.mxu0 %v2223
  %2747 = vmatprep.subr.mxu0 0.0
  %2748 = vmatpush2.msra.mxu0 %v2222
  %2749 = vmatprep.subr.mxu0 0.0
  %2750 = vmatpush2.msra.mxu0 %v2221
  %2751 = vmatprep.subr.mxu0 0.0
  %2752 = vmatpush2.msra.mxu0 %v2220
  %2753 = vmatprep.subr.mxu0 0.0
  %2754 = vmatpush2.msra.mxu0 %v2219
  %2755 = vmatprep.subr.mxu0 0.0
  %2756 = vmatpush2.msra.mxu0 %v2218
  %2757 = vmatprep.subr.mxu0 0.0
  %2758 = vmatpush2.msra.mxu0 %v2217
  %2759 = vmatprep.subr.mxu0 0.0
  %2760 = vmatpush2.msra.mxu0 %v2216
  %2761 = vmatprep.mubr.f32.mxu0 %v1595
  %2762 = vmatmul.mubr.f32.gmra.mxu0 %v1594
  %v2763 = vpop.f32.mrf.mxu0
  %v2764 = vadd.f32 %v2379, %v2763
  %v2765 = vpop.f32.mrf.mxu0
  %2766 = vmatprep.mubr.f32.mxu0 %v1604
  %2767 = vmatmul.mubr.f32.gmra.mxu0 %v1603
  %v2768 = vpop.f32.mrf.mxu0
  %v2769 = vadd.f32 %v2384, %v2768
  %v2770 = vpop.f32.mrf.mxu0
  %2771 = vmatprep.mubr.f32.mxu0 %v1613
  %2772 = vmatmul.mubr.f32.gmra.mxu0 %v1612
  %v2773 = vpop.f32.mrf.mxu0
  %v2774 = vadd.f32 %v2389, %v2773
  %v2775 = vpop.f32.mrf.mxu0
  %2776 = vmatprep.mubr.f32.mxu0 %v1622
  %2777 = vmatmul.mubr.f32.gmra.mxu0 %v1621
  %v2778 = vpop.f32.mrf.mxu0
  %v2779 = vadd.f32 %v2394, %v2778
  %v2780 = vpop.f32.mrf.mxu0
  %2781 = vmatprep.mubr.f32.mxu0 %v1631
  %2782 = vmatmul.mubr.f32.gmra.mxu0 %v1630
  %v2783 = vpop.f32.mrf.mxu0
  %v2784 = vadd.f32 %v2399, %v2783
  %v2785 = vpop.f32.mrf.mxu0
  %2786 = vmatprep.mubr.f32.mxu0 %v1640
  %2787 = vmatmul.mubr.f32.gmra.mxu0 %v1639
  %v2788 = vpop.f32.mrf.mxu0
  %v2789 = vadd.f32 %v2404, %v2788
  %v2790 = vpop.f32.mrf.mxu0
  %2791 = vmatprep.mubr.f32.mxu0 %v1649
  %2792 = vmatmul.mubr.f32.gmra.mxu0 %v1648
  %v2793 = vpop.f32.mrf.mxu0
  %v2794 = vadd.f32 %v2409, %v2793
  %v2795 = vpop.f32.mrf.mxu0
  %2796 = vmatprep.mubr.f32.mxu0 %v1658
  %2797 = vmatmul.mubr.f32.gmra.mxu0 %v1657
  %v2798 = vpop.f32.mrf.mxu0
  %v2799 = vadd.f32 %v2414, %v2798
  %v2800 = vpop.f32.mrf.mxu0
  %2801 = vmatprep.mubr.f32.mxu0 %v1667
  %2802 = vmatmul.mubr.f32.gmra.mxu0 %v1666
  %v2803 = vpop.f32.mrf.mxu0
  %v2804 = vadd.f32 %v2419, %v2803
  %v2805 = vpop.f32.mrf.mxu0
  %2806 = vmatprep.mubr.f32.mxu0 %v1676
  %2807 = vmatmul.mubr.f32.gmra.mxu0 %v1675
  %v2808 = vpop.f32.mrf.mxu0
  %v2809 = vadd.f32 %v2424, %v2808
  %v2810 = vpop.f32.mrf.mxu0
  %2811 = vmatprep.mubr.f32.mxu0 %v1685
  %2812 = vmatmul.mubr.f32.gmra.mxu0 %v1684
  %v2813 = vpop.f32.mrf.mxu0
  %v2814 = vadd.f32 %v2429, %v2813
  %v2815 = vpop.f32.mrf.mxu0
  %2816 = vmatprep.mubr.f32.mxu0 %v1694
  %2817 = vmatmul.mubr.f32.gmra.mxu0 %v1693
  %v2818 = vpop.f32.mrf.mxu0
  %v2819 = vadd.f32 %v2434, %v2818
  %v2820 = vpop.f32.mrf.mxu0
  %2821 = vmatprep.mubr.f32.mxu0 %v1703
  %2822 = vmatmul.mubr.f32.gmra.mxu0 %v1702
  %v2823 = vpop.f32.mrf.mxu0
  %v2824 = vadd.f32 %v2439, %v2823
  %v2825 = vpop.f32.mrf.mxu0
  %2826 = vmatprep.mubr.f32.mxu0 %v1712
  %2827 = vmatmul.mubr.f32.gmra.mxu0 %v1711
  %v2828 = vpop.f32.mrf.mxu0
  %v2829 = vadd.f32 %v2444, %v2828
  %v2830 = vpop.f32.mrf.mxu0
  %2831 = vmatprep.mubr.f32.mxu0 %v1721
  %2832 = vmatmul.mubr.f32.gmra.mxu0 %v1720
  %v2833 = vpop.f32.mrf.mxu0
  %v2834 = vadd.f32 %v2449, %v2833
  %v2835 = vpop.f32.mrf.mxu0
  %2836 = vmatprep.mubr.f32.mxu0 %v1730
  %2837 = vmatmul.mubr.f32.gmra.mxu0 %v1729
  %v2838 = vpop.f32.mrf.mxu0
  %v2839 = vadd.f32 %v2454, %v2838
  %v2840 = vpop.f32.mrf.mxu0
  %2841 = vmatprep.mubr.f32.mxu0 %v1739
  %2842 = vmatmul.mubr.f32.gmra.mxu0 %v1738
  %v2843 = vpop.f32.mrf.mxu0
  %v2844 = vadd.f32 %v2459, %v2843
  %v2845 = vpop.f32.mrf.mxu0
  %2846 = vmatprep.mubr.f32.mxu0 %v1748
  %2847 = vmatmul.mubr.f32.gmra.mxu0 %v1747
  %v2848 = vpop.f32.mrf.mxu0
  %v2849 = vadd.f32 %v2464, %v2848
  %v2850 = vpop.f32.mrf.mxu0
  %2851 = vmatprep.mubr.f32.mxu0 %v1757
  %2852 = vmatmul.mubr.f32.gmra.mxu0 %v1756
  %v2853 = vpop.f32.mrf.mxu0
  %v2854 = vadd.f32 %v2469, %v2853
  %v2855 = vpop.f32.mrf.mxu0
  %2856 = vmatprep.mubr.f32.mxu0 %v1766
  %2857 = vmatmul.mubr.f32.gmra.mxu0 %v1765
  %v2858 = vpop.f32.mrf.mxu0
  %v2859 = vadd.f32 %v2474, %v2858
  %v2860 = vpop.f32.mrf.mxu0
  %2861 = vmatprep.mubr.f32.mxu0 %v1775
  %2862 = vmatmul.mubr.f32.gmra.mxu0 %v1774
  %v2863 = vpop.f32.mrf.mxu0
  %v2864 = vadd.f32 %v2479, %v2863
  %v2865 = vpop.f32.mrf.mxu0
  %2866 = vmatprep.mubr.f32.mxu0 %v1784
  %2867 = vmatmul.mubr.f32.gmra.mxu0 %v1783
  %v2868 = vpop.f32.mrf.mxu0
  %v2869 = vadd.f32 %v2484, %v2868
  %v2870 = vpop.f32.mrf.mxu0
  %2871 = vmatprep.mubr.f32.mxu0 %v1793
  %2872 = vmatmul.mubr.f32.gmra.mxu0 %v1792
  %v2873 = vpop.f32.mrf.mxu0
  %v2874 = vadd.f32 %v2489, %v2873
  %v2875 = vpop.f32.mrf.mxu0
  %2876 = vmatprep.mubr.f32.mxu0 %v1802
  %2877 = vmatmul.mubr.f32.gmra.mxu0 %v1801
  %v2878 = vpop.f32.mrf.mxu0
  %v2879 = vadd.f32 %v2494, %v2878
  %v2880 = vpop.f32.mrf.mxu0
  %2881 = vmatprep.mubr.f32.mxu0 %v1811
  %2882 = vmatmul.mubr.f32.gmra.mxu0 %v1810
  %v2883 = vpop.f32.mrf.mxu0
  %v2884 = vadd.f32 %v2499, %v2883
  %v2885 = vpop.f32.mrf.mxu0
  %2886 = vmatprep.mubr.f32.mxu0 %v1820
  %2887 = vmatmul.mubr.f32.gmra.mxu0 %v1819
  %v2888 = vpop.f32.mrf.mxu0
  %v2889 = vadd.f32 %v2504, %v2888
  %v2890 = vpop.f32.mrf.mxu0
  %2891 = vmatprep.mubr.f32.mxu0 %v1829
  %2892 = vmatmul.mubr.f32.gmra.mxu0 %v1828
  %v2893 = vpop.f32.mrf.mxu0
  %v2894 = vadd.f32 %v2509, %v2893
  %v2895 = vpop.f32.mrf.mxu0
  %2896 = vmatprep.mubr.f32.mxu0 %v1838
  %2897 = vmatmul.mubr.f32.gmra.mxu0 %v1837
  %v2898 = vpop.f32.mrf.mxu0
  %v2899 = vadd.f32 %v2514, %v2898
  %v2900 = vpop.f32.mrf.mxu0
  %2901 = vmatprep.mubr.f32.mxu0 %v1847
  %2902 = vmatmul.mubr.f32.gmra.mxu0 %v1846
  %v2903 = vpop.f32.mrf.mxu0
  %v2904 = vadd.f32 %v2519, %v2903
  %v2905 = vpop.f32.mrf.mxu0
  %2906 = vmatprep.mubr.f32.mxu0 %v1856
  %2907 = vmatmul.mubr.f32.gmra.mxu0 %v1855
  %v2908 = vpop.f32.mrf.mxu0
  %v2909 = vadd.f32 %v2524, %v2908
  %v2910 = vpop.f32.mrf.mxu0
  %2911 = vmatprep.mubr.f32.mxu0 %v1865
  %2912 = vmatmul.mubr.f32.gmra.mxu0 %v1864
  %v2913 = vpop.f32.mrf.mxu0
  %v2914 = vadd.f32 %v2529, %v2913
  %v2915 = vpop.f32.mrf.mxu0
  %2916 = vmatprep.mubr.f32.mxu0 %v1874
  %2917 = vmatmul.mubr.f32.gmra.mxu0 %v1873
  %v2918 = vpop.f32.mrf.mxu0
  %v2919 = vadd.f32 %v2534, %v2918
  %v2920 = vpop.f32.mrf.mxu0
  %2921 = vmatprep.mubr.f32.mxu0 %v1883
  %2922 = vmatmul.mubr.f32.gmra.mxu0 %v1882
  %v2923 = vpop.f32.mrf.mxu0
  %v2924 = vadd.f32 %v2539, %v2923
  %v2925 = vpop.f32.mrf.mxu0
  %2926 = vmatprep.mubr.f32.mxu0 %v1892
  %2927 = vmatmul.mubr.f32.gmra.mxu0 %v1891
  %v2928 = vpop.f32.mrf.mxu0
  %v2929 = vadd.f32 %v2544, %v2928
  %v2930 = vpop.f32.mrf.mxu0
  %2931 = vmatprep.mubr.f32.mxu0 %v1901
  %2932 = vmatmul.mubr.f32.gmra.mxu0 %v1900
  %v2933 = vpop.f32.mrf.mxu0
  %v2934 = vadd.f32 %v2549, %v2933
  %v2935 = vpop.f32.mrf.mxu0
  %2936 = vmatprep.mubr.f32.mxu0 %v1910
  %2937 = vmatmul.mubr.f32.gmra.mxu0 %v1909
  %v2938 = vpop.f32.mrf.mxu0
  %v2939 = vadd.f32 %v2554, %v2938
  %v2940 = vpop.f32.mrf.mxu0
  %2941 = vmatprep.mubr.f32.mxu0 %v1919
  %2942 = vmatmul.mubr.f32.gmra.mxu0 %v1918
  %v2943 = vpop.f32.mrf.mxu0
  %v2944 = vadd.f32 %v2559, %v2943
  %v2945 = vpop.f32.mrf.mxu0
  %2946 = vmatprep.mubr.f32.mxu0 %v1928
  %2947 = vmatmul.mubr.f32.gmra.mxu0 %v1927
  %v2948 = vpop.f32.mrf.mxu0
  %v2949 = vadd.f32 %v2564, %v2948
  %v2950 = vpop.f32.mrf.mxu0
  %2951 = vmatprep.mubr.f32.mxu0 %v1937
  %2952 = vmatmul.mubr.f32.gmra.mxu0 %v1936
  %v2953 = vpop.f32.mrf.mxu0
  %v2954 = vadd.f32 %v2569, %v2953
  %v2955 = vpop.f32.mrf.mxu0
  %2956 = vmatprep.mubr.f32.mxu0 %v1946
  %2957 = vmatmul.mubr.f32.gmra.mxu0 %v1945
  %v2958 = vpop.f32.mrf.mxu0
  %v2959 = vadd.f32 %v2574, %v2958
  %v2960 = vpop.f32.mrf.mxu0
  %2961 = vmatprep.mubr.f32.mxu0 %v1955
  %2962 = vmatmul.mubr.f32.gmra.mxu0 %v1954
  %v2963 = vpop.f32.mrf.mxu0
  %v2964 = vadd.f32 %v2579, %v2963
  %v2965 = vpop.f32.mrf.mxu0
  %2966 = vmatprep.mubr.f32.mxu0 %v1964
  %2967 = vmatmul.mubr.f32.gmra.mxu0 %v1963
  %v2968 = vpop.f32.mrf.mxu0
  %v2969 = vadd.f32 %v2584, %v2968
  %v2970 = vpop.f32.mrf.mxu0
  %2971 = vmatprep.mubr.f32.mxu0 %v1973
  %2972 = vmatmul.mubr.f32.gmra.mxu0 %v1972
  %v2973 = vpop.f32.mrf.mxu0
  %v2974 = vadd.f32 %v2589, %v2973
  %v2975 = vpop.f32.mrf.mxu0
  %2976 = vmatprep.mubr.f32.mxu0 %v1982
  %2977 = vmatmul.mubr.f32.gmra.mxu0 %v1981
  %v2978 = vpop.f32.mrf.mxu0
  %v2979 = vadd.f32 %v2594, %v2978
  %v2980 = vpop.f32.mrf.mxu0
  %2981 = vmatprep.mubr.f32.mxu0 %v1991
  %2982 = vmatmul.mubr.f32.gmra.mxu0 %v1990
  %v2983 = vpop.f32.mrf.mxu0
  %v2984 = vadd.f32 %v2599, %v2983
  %v2985 = vpop.f32.mrf.mxu0
  %2986 = vmatprep.mubr.f32.mxu0 %v2000
  %2987 = vmatmul.mubr.f32.gmra.mxu0 %v1999
  %v2988 = vpop.f32.mrf.mxu0
  %v2989 = vadd.f32 %v2604, %v2988
  %v2990 = vpop.f32.mrf.mxu0
  %2991 = vmatprep.mubr.f32.mxu0 %v2009
  %2992 = vmatmul.mubr.f32.gmra.mxu0 %v2008
  %v2993 = vpop.f32.mrf.mxu0
  %v2994 = vadd.f32 %v2609, %v2993
  %v2995 = vpop.f32.mrf.mxu0
  %2996 = vmatprep.mubr.f32.mxu0 %v2018
  %2997 = vmatmul.mubr.f32.gmra.mxu0 %v2017
  %v2998 = vpop.f32.mrf.mxu0
  %v2999 = vadd.f32 %v2614, %v2998
  %v3000 = vpop.f32.mrf.mxu0
  %3001 = vmatprep.mubr.f32.mxu0 %v2027
  %3002 = vmatmul.mubr.f32.gmra.mxu0 %v2026
  %v3003 = vpop.f32.mrf.mxu0
  %v3004 = vadd.f32 %v2619, %v3003
  %v3005 = vpop.f32.mrf.mxu0
  %3006 = vmatprep.mubr.f32.mxu0 %v2036
  %3007 = vmatmul.mubr.f32.gmra.mxu0 %v2035
  %v3008 = vpop.f32.mrf.mxu0
  %v3009 = vadd.f32 %v2624, %v3008
  %v3010 = vpop.f32.mrf.mxu0
  %3011 = vmatprep.mubr.f32.mxu0 %v2045
  %3012 = vmatmul.mubr.f32.gmra.mxu0 %v2044
  %v3013 = vpop.f32.mrf.mxu0
  %v3014 = vadd.f32 %v2629, %v3013
  %v3015 = vpop.f32.mrf.mxu0
  %3016 = vmatprep.mubr.f32.mxu0 %v2054
  %3017 = vmatmul.mubr.f32.gmra.mxu0 %v2053
  %v3018 = vpop.f32.mrf.mxu0
  %v3019 = vadd.f32 %v2634, %v3018
  %v3020 = vpop.f32.mrf.mxu0
  %3021 = vmatprep.mubr.f32.mxu0 %v2063
  %3022 = vmatmul.mubr.f32.gmra.mxu0 %v2062
  %v3023 = vpop.f32.mrf.mxu0
  %v3024 = vadd.f32 %v2639, %v3023
  %v3025 = vpop.f32.mrf.mxu0
  %3026 = vmatprep.mubr.f32.mxu0 %v2072
  %3027 = vmatmul.mubr.f32.gmra.mxu0 %v2071
  %v3028 = vpop.f32.mrf.mxu0
  %v3029 = vadd.f32 %v2644, %v3028
  %v3030 = vpop.f32.mrf.mxu0
  %3031 = vmatprep.mubr.f32.mxu0 %v2081
  %3032 = vmatmul.mubr.f32.gmra.mxu0 %v2080
  %v3033 = vpop.f32.mrf.mxu0
  %v3034 = vadd.f32 %v2649, %v3033
  %v3035 = vpop.f32.mrf.mxu0
  %3036 = vmatprep.mubr.f32.mxu0 %v2090
  %3037 = vmatmul.mubr.f32.gmra.mxu0 %v2089
  %v3038 = vpop.f32.mrf.mxu0
  %v3039 = vadd.f32 %v2654, %v3038
  %v3040 = vpop.f32.mrf.mxu0
  %3041 = vmatprep.mubr.f32.mxu0 %v2099
  %3042 = vmatmul.mubr.f32.gmra.mxu0 %v2098
  %v3043 = vpop.f32.mrf.mxu0
  %v3044 = vadd.f32 %v2659, %v3043
  %v3045 = vpop.f32.mrf.mxu0
  %3046 = vmatprep.mubr.f32.mxu0 %v2108
  %3047 = vmatmul.mubr.f32.gmra.mxu0 %v2107
  %v3048 = vpop.f32.mrf.mxu0
  %v3049 = vadd.f32 %v2664, %v3048
  %v3050 = vpop.f32.mrf.mxu0
  %3051 = vmatprep.mubr.f32.mxu0 %v2117
  %3052 = vmatmul.mubr.f32.gmra.mxu0 %v2116
  %v3053 = vpop.f32.mrf.mxu0
  %v3054 = vadd.f32 %v2669, %v3053
  %v3055 = vpop.f32.mrf.mxu0
  %3056 = vmatprep.mubr.f32.mxu0 %v2126
  %3057 = vmatmul.mubr.f32.gmra.mxu0 %v2125
  %v3058 = vpop.f32.mrf.mxu0
  %v3059 = vadd.f32 %v2674, %v3058
  %v3060 = vpop.f32.mrf.mxu0
  %3061 = vmatprep.mubr.f32.mxu0 %v2135
  %3062 = vmatmul.mubr.f32.gmra.mxu0 %v2134
  %v3063 = vpop.f32.mrf.mxu0
  %v3064 = vadd.f32 %v2679, %v3063
  %v3065 = vpop.f32.mrf.mxu0
  %3066 = vmatprep.mubr.f32.mxu0 %v2144
  %3067 = vmatmul.mubr.f32.gmra.mxu0 %v2143
  %v3068 = vpop.f32.mrf.mxu0
  %v3069 = vadd.f32 %v2684, %v3068
  %v3070 = vpop.f32.mrf.mxu0
  %3071 = vmatprep.mubr.f32.mxu0 %v2153
  %3072 = vmatmul.mubr.f32.gmra.mxu0 %v2152
  %v3073 = vpop.f32.mrf.mxu0
  %v3074 = vadd.f32 %v2689, %v3073
  %v3075 = vpop.f32.mrf.mxu0
  %3076 = vmatprep.mubr.f32.mxu0 %v2162
  %3077 = vmatmul.mubr.f32.gmra.mxu0 %v2161
  %v3078 = vpop.f32.mrf.mxu0
  %v3079 = vadd.f32 %v2694, %v3078
  %v3080 = vpop.f32.mrf.mxu0
  %3081 = vdwg.mxu0
  %3082 = vmatprep.subr.mxu0 0.0
  %3083 = vmatpush1.msra.mxu0 %v2247
  %3084 = vmatprep.subr.mxu0 0.0
  %3085 = vmatpush1.msra.mxu0 %v2246
  %3086 = vmatprep.subr.mxu0 0.0
  %3087 = vmatpush1.msra.mxu0 %v2245
  %3088 = vmatprep.subr.mxu0 0.0
  %3089 = vmatpush1.msra.mxu0 %v2244
  %3090 = vmatprep.subr.mxu0 0.0
  %3091 = vmatpush1.msra.mxu0 %v2243
  %3092 = vmatprep.subr.mxu0 0.0
  %3093 = vmatpush1.msra.mxu0 %v2242
  %3094 = vmatprep.subr.mxu0 0.0
  %3095 = vmatpush1.msra.mxu0 %v2241
  %3096 = vmatprep.subr.mxu0 0.0
  %3097 = vmatpush1.msra.mxu0 %v2240
  %3098 = vmatprep.subr.mxu0 0.0
  %3099 = vmatpush1.msra.mxu0 %v2239
  %3100 = vmatprep.subr.mxu0 0.0
  %3101 = vmatpush1.msra.mxu0 %v2238
  %3102 = vmatprep.subr.mxu0 0.0
  %3103 = vmatpush1.msra.mxu0 %v2237
  %3104 = vmatprep.subr.mxu0 0.0
  %3105 = vmatpush1.msra.mxu0 %v2236
  %3106 = vmatprep.subr.mxu0 0.0
  %3107 = vmatpush1.msra.mxu0 %v2235
  %3108 = vmatprep.subr.mxu0 0.0
  %3109 = vmatpush1.msra.mxu0 %v2234
  %3110 = vmatprep.subr.mxu0 0.0
  %3111 = vmatpush1.msra.mxu0 %v2233
  %3112 = vmatprep.subr.mxu0 0.0
  %3113 = vmatpush1.msra.mxu0 %v2232
  %3114 = vmatprep.subr.mxu0 0.0
  %3115 = vmatpush2.msra.mxu0 %v2263
  %3116 = vmatprep.subr.mxu0 0.0
  %3117 = vmatpush2.msra.mxu0 %v2262
  %3118 = vmatprep.subr.mxu0 0.0
  %3119 = vmatpush2.msra.mxu0 %v2261
  %3120 = vmatprep.subr.mxu0 0.0
  %3121 = vmatpush2.msra.mxu0 %v2260
  %3122 = vmatprep.subr.mxu0 0.0
  %3123 = vmatpush2.msra.mxu0 %v2259
  %3124 = vmatprep.subr.mxu0 0.0
  %3125 = vmatpush2.msra.mxu0 %v2258
  %3126 = vmatprep.subr.mxu0 0.0
  %3127 = vmatpush2.msra.mxu0 %v2257
  %3128 = vmatprep.subr.mxu0 0.0
  %3129 = vmatpush2.msra.mxu0 %v2256
  %3130 = vmatprep.subr.mxu0 0.0
  %3131 = vmatpush2.msra.mxu0 %v2255
  %3132 = vmatprep.subr.mxu0 0.0
  %3133 = vmatpush2.msra.mxu0 %v2254
  %3134 = vmatprep.subr.mxu0 0.0
  %3135 = vmatpush2.msra.mxu0 %v2253
  %3136 = vmatprep.subr.mxu0 0.0
  %3137 = vmatpush2.msra.mxu0 %v2252
  %3138 = vmatprep.subr.mxu0 0.0
  %3139 = vmatpush2.msra.mxu0 %v2251
  %3140 = vmatprep.subr.mxu0 0.0
  %3141 = vmatpush2.msra.mxu0 %v2250
  %3142 = vmatprep.subr.mxu0 0.0
  %3143 = vmatpush2.msra.mxu0 %v2249
  %3144 = vmatprep.subr.mxu0 0.0
  %3145 = vmatpush2.msra.mxu0 %v2248
  %3146 = vmatprep.mubr.f32.mxu0 %v1597
  %3147 = vmatmul.mubr.f32.gmra.mxu0 %v1596
  %v3148 = vpop.f32.mrf.mxu0
  %v3149 = vadd.f32 %v2764, %v3148
  %v3150 = vpop.f32.mrf.mxu0
  %3151 = vmatprep.mubr.f32.mxu0 %v1606
  %3152 = vmatmul.mubr.f32.gmra.mxu0 %v1605
  %v3153 = vpop.f32.mrf.mxu0
  %v3154 = vadd.f32 %v2769, %v3153
  %v3155 = vpop.f32.mrf.mxu0
  %3156 = vmatprep.mubr.f32.mxu0 %v1615
  %3157 = vmatmul.mubr.f32.gmra.mxu0 %v1614
  %v3158 = vpop.f32.mrf.mxu0
  %v3159 = vadd.f32 %v2774, %v3158
  %v3160 = vpop.f32.mrf.mxu0
  %3161 = vmatprep.mubr.f32.mxu0 %v1624
  %3162 = vmatmul.mubr.f32.gmra.mxu0 %v1623
  %v3163 = vpop.f32.mrf.mxu0
  %v3164 = vadd.f32 %v2779, %v3163
  %v3165 = vpop.f32.mrf.mxu0
  %3166 = vmatprep.mubr.f32.mxu0 %v1633
  %3167 = vmatmul.mubr.f32.gmra.mxu0 %v1632
  %v3168 = vpop.f32.mrf.mxu0
  %v3169 = vadd.f32 %v2784, %v3168
  %v3170 = vpop.f32.mrf.mxu0
  %3171 = vmatprep.mubr.f32.mxu0 %v1642
  %3172 = vmatmul.mubr.f32.gmra.mxu0 %v1641
  %v3173 = vpop.f32.mrf.mxu0
  %v3174 = vadd.f32 %v2789, %v3173
  %v3175 = vpop.f32.mrf.mxu0
  %3176 = vmatprep.mubr.f32.mxu0 %v1651
  %3177 = vmatmul.mubr.f32.gmra.mxu0 %v1650
  %v3178 = vpop.f32.mrf.mxu0
  %v3179 = vadd.f32 %v2794, %v3178
  %v3180 = vpop.f32.mrf.mxu0
  %3181 = vmatprep.mubr.f32.mxu0 %v1660
  %3182 = vmatmul.mubr.f32.gmra.mxu0 %v1659
  %v3183 = vpop.f32.mrf.mxu0
  %v3184 = vadd.f32 %v2799, %v3183
  %v3185 = vpop.f32.mrf.mxu0
  %3186 = vmatprep.mubr.f32.mxu0 %v1669
  %3187 = vmatmul.mubr.f32.gmra.mxu0 %v1668
  %v3188 = vpop.f32.mrf.mxu0
  %v3189 = vadd.f32 %v2804, %v3188
  %v3190 = vpop.f32.mrf.mxu0
  %3191 = vmatprep.mubr.f32.mxu0 %v1678
  %3192 = vmatmul.mubr.f32.gmra.mxu0 %v1677
  %v3193 = vpop.f32.mrf.mxu0
  %v3194 = vadd.f32 %v2809, %v3193
  %v3195 = vpop.f32.mrf.mxu0
  %3196 = vmatprep.mubr.f32.mxu0 %v1687
  %3197 = vmatmul.mubr.f32.gmra.mxu0 %v1686
  %v3198 = vpop.f32.mrf.mxu0
  %v3199 = vadd.f32 %v2814, %v3198
  %v3200 = vpop.f32.mrf.mxu0
  %3201 = vmatprep.mubr.f32.mxu0 %v1696
  %3202 = vmatmul.mubr.f32.gmra.mxu0 %v1695
  %v3203 = vpop.f32.mrf.mxu0
  %v3204 = vadd.f32 %v2819, %v3203
  %v3205 = vpop.f32.mrf.mxu0
  %3206 = vmatprep.mubr.f32.mxu0 %v1705
  %3207 = vmatmul.mubr.f32.gmra.mxu0 %v1704
  %v3208 = vpop.f32.mrf.mxu0
  %v3209 = vadd.f32 %v2824, %v3208
  %v3210 = vpop.f32.mrf.mxu0
  %3211 = vmatprep.mubr.f32.mxu0 %v1714
  %3212 = vmatmul.mubr.f32.gmra.mxu0 %v1713
  %v3213 = vpop.f32.mrf.mxu0
  %v3214 = vadd.f32 %v2829, %v3213
  %v3215 = vpop.f32.mrf.mxu0
  %3216 = vmatprep.mubr.f32.mxu0 %v1723
  %3217 = vmatmul.mubr.f32.gmra.mxu0 %v1722
  %v3218 = vpop.f32.mrf.mxu0
  %v3219 = vadd.f32 %v2834, %v3218
  %v3220 = vpop.f32.mrf.mxu0
  %3221 = vmatprep.mubr.f32.mxu0 %v1732
  %3222 = vmatmul.mubr.f32.gmra.mxu0 %v1731
  %v3223 = vpop.f32.mrf.mxu0
  %v3224 = vadd.f32 %v2839, %v3223
  %v3225 = vpop.f32.mrf.mxu0
  %3226 = vmatprep.mubr.f32.mxu0 %v1741
  %3227 = vmatmul.mubr.f32.gmra.mxu0 %v1740
  %v3228 = vpop.f32.mrf.mxu0
  %v3229 = vadd.f32 %v2844, %v3228
  %v3230 = vpop.f32.mrf.mxu0
  %3231 = vmatprep.mubr.f32.mxu0 %v1750
  %3232 = vmatmul.mubr.f32.gmra.mxu0 %v1749
  %v3233 = vpop.f32.mrf.mxu0
  %v3234 = vadd.f32 %v2849, %v3233
  %v3235 = vpop.f32.mrf.mxu0
  %3236 = vmatprep.mubr.f32.mxu0 %v1759
  %3237 = vmatmul.mubr.f32.gmra.mxu0 %v1758
  %v3238 = vpop.f32.mrf.mxu0
  %v3239 = vadd.f32 %v2854, %v3238
  %v3240 = vpop.f32.mrf.mxu0
  %3241 = vmatprep.mubr.f32.mxu0 %v1768
  %3242 = vmatmul.mubr.f32.gmra.mxu0 %v1767
  %v3243 = vpop.f32.mrf.mxu0
  %v3244 = vadd.f32 %v2859, %v3243
  %v3245 = vpop.f32.mrf.mxu0
  %3246 = vmatprep.mubr.f32.mxu0 %v1777
  %3247 = vmatmul.mubr.f32.gmra.mxu0 %v1776
  %v3248 = vpop.f32.mrf.mxu0
  %v3249 = vadd.f32 %v2864, %v3248
  %v3250 = vpop.f32.mrf.mxu0
  %3251 = vmatprep.mubr.f32.mxu0 %v1786
  %3252 = vmatmul.mubr.f32.gmra.mxu0 %v1785
  %v3253 = vpop.f32.mrf.mxu0
  %v3254 = vadd.f32 %v2869, %v3253
  %v3255 = vpop.f32.mrf.mxu0
  %3256 = vmatprep.mubr.f32.mxu0 %v1795
  %3257 = vmatmul.mubr.f32.gmra.mxu0 %v1794
  %v3258 = vpop.f32.mrf.mxu0
  %v3259 = vadd.f32 %v2874, %v3258
  %v3260 = vpop.f32.mrf.mxu0
  %3261 = vmatprep.mubr.f32.mxu0 %v1804
  %3262 = vmatmul.mubr.f32.gmra.mxu0 %v1803
  %v3263 = vpop.f32.mrf.mxu0
  %v3264 = vadd.f32 %v2879, %v3263
  %v3265 = vpop.f32.mrf.mxu0
  %3266 = vmatprep.mubr.f32.mxu0 %v1813
  %3267 = vmatmul.mubr.f32.gmra.mxu0 %v1812
  %v3268 = vpop.f32.mrf.mxu0
  %v3269 = vadd.f32 %v2884, %v3268
  %v3270 = vpop.f32.mrf.mxu0
  %3271 = vmatprep.mubr.f32.mxu0 %v1822
  %3272 = vmatmul.mubr.f32.gmra.mxu0 %v1821
  %v3273 = vpop.f32.mrf.mxu0
  %v3274 = vadd.f32 %v2889, %v3273
  %v3275 = vpop.f32.mrf.mxu0
  %3276 = vmatprep.mubr.f32.mxu0 %v1831
  %3277 = vmatmul.mubr.f32.gmra.mxu0 %v1830
  %v3278 = vpop.f32.mrf.mxu0
  %v3279 = vadd.f32 %v2894, %v3278
  %v3280 = vpop.f32.mrf.mxu0
  %3281 = vmatprep.mubr.f32.mxu0 %v1840
  %3282 = vmatmul.mubr.f32.gmra.mxu0 %v1839
  %v3283 = vpop.f32.mrf.mxu0
  %v3284 = vadd.f32 %v2899, %v3283
  %v3285 = vpop.f32.mrf.mxu0
  %3286 = vmatprep.mubr.f32.mxu0 %v1849
  %3287 = vmatmul.mubr.f32.gmra.mxu0 %v1848
  %v3288 = vpop.f32.mrf.mxu0
  %v3289 = vadd.f32 %v2904, %v3288
  %v3290 = vpop.f32.mrf.mxu0
  %3291 = vmatprep.mubr.f32.mxu0 %v1858
  %3292 = vmatmul.mubr.f32.gmra.mxu0 %v1857
  %v3293 = vpop.f32.mrf.mxu0
  %v3294 = vadd.f32 %v2909, %v3293
  %v3295 = vpop.f32.mrf.mxu0
  %3296 = vmatprep.mubr.f32.mxu0 %v1867
  %3297 = vmatmul.mubr.f32.gmra.mxu0 %v1866
  %v3298 = vpop.f32.mrf.mxu0
  %v3299 = vadd.f32 %v2914, %v3298
  %v3300 = vpop.f32.mrf.mxu0
  %3301 = vmatprep.mubr.f32.mxu0 %v1876
  %3302 = vmatmul.mubr.f32.gmra.mxu0 %v1875
  %v3303 = vpop.f32.mrf.mxu0
  %v3304 = vadd.f32 %v2919, %v3303
  %v3305 = vpop.f32.mrf.mxu0
  %3306 = vmatprep.mubr.f32.mxu0 %v1885
  %3307 = vmatmul.mubr.f32.gmra.mxu0 %v1884
  %v3308 = vpop.f32.mrf.mxu0
  %v3309 = vadd.f32 %v2924, %v3308
  %v3310 = vpop.f32.mrf.mxu0
  %3311 = vmatprep.mubr.f32.mxu0 %v1894
  %3312 = vmatmul.mubr.f32.gmra.mxu0 %v1893
  %v3313 = vpop.f32.mrf.mxu0
  %v3314 = vadd.f32 %v2929, %v3313
  %v3315 = vpop.f32.mrf.mxu0
  %3316 = vmatprep.mubr.f32.mxu0 %v1903
  %3317 = vmatmul.mubr.f32.gmra.mxu0 %v1902
  %v3318 = vpop.f32.mrf.mxu0
  %v3319 = vadd.f32 %v2934, %v3318
  %v3320 = vpop.f32.mrf.mxu0
  %3321 = vmatprep.mubr.f32.mxu0 %v1912
  %3322 = vmatmul.mubr.f32.gmra.mxu0 %v1911
  %v3323 = vpop.f32.mrf.mxu0
  %v3324 = vadd.f32 %v2939, %v3323
  %v3325 = vpop.f32.mrf.mxu0
  %3326 = vmatprep.mubr.f32.mxu0 %v1921
  %3327 = vmatmul.mubr.f32.gmra.mxu0 %v1920
  %v3328 = vpop.f32.mrf.mxu0
  %v3329 = vadd.f32 %v2944, %v3328
  %v3330 = vpop.f32.mrf.mxu0
  %3331 = vmatprep.mubr.f32.mxu0 %v1930
  %3332 = vmatmul.mubr.f32.gmra.mxu0 %v1929
  %v3333 = vpop.f32.mrf.mxu0
  %v3334 = vadd.f32 %v2949, %v3333
  %v3335 = vpop.f32.mrf.mxu0
  %3336 = vmatprep.mubr.f32.mxu0 %v1939
  %3337 = vmatmul.mubr.f32.gmra.mxu0 %v1938
  %v3338 = vpop.f32.mrf.mxu0
  %v3339 = vadd.f32 %v2954, %v3338
  %v3340 = vpop.f32.mrf.mxu0
  %3341 = vmatprep.mubr.f32.mxu0 %v1948
  %3342 = vmatmul.mubr.f32.gmra.mxu0 %v1947
  %v3343 = vpop.f32.mrf.mxu0
  %v3344 = vadd.f32 %v2959, %v3343
  %v3345 = vpop.f32.mrf.mxu0
  %3346 = vmatprep.mubr.f32.mxu0 %v1957
  %3347 = vmatmul.mubr.f32.gmra.mxu0 %v1956
  %v3348 = vpop.f32.mrf.mxu0
  %v3349 = vadd.f32 %v2964, %v3348
  %v3350 = vpop.f32.mrf.mxu0
  %3351 = vmatprep.mubr.f32.mxu0 %v1966
  %3352 = vmatmul.mubr.f32.gmra.mxu0 %v1965
  %v3353 = vpop.f32.mrf.mxu0
  %v3354 = vadd.f32 %v2969, %v3353
  %v3355 = vpop.f32.mrf.mxu0
  %3356 = vmatprep.mubr.f32.mxu0 %v1975
  %3357 = vmatmul.mubr.f32.gmra.mxu0 %v1974
  %v3358 = vpop.f32.mrf.mxu0
  %v3359 = vadd.f32 %v2974, %v3358
  %v3360 = vpop.f32.mrf.mxu0
  %3361 = vmatprep.mubr.f32.mxu0 %v1984
  %3362 = vmatmul.mubr.f32.gmra.mxu0 %v1983
  %v3363 = vpop.f32.mrf.mxu0
  %v3364 = vadd.f32 %v2979, %v3363
  %v3365 = vpop.f32.mrf.mxu0
  %3366 = vmatprep.mubr.f32.mxu0 %v1993
  %3367 = vmatmul.mubr.f32.gmra.mxu0 %v1992
  %v3368 = vpop.f32.mrf.mxu0
  %v3369 = vadd.f32 %v2984, %v3368
  %v3370 = vpop.f32.mrf.mxu0
  %3371 = vmatprep.mubr.f32.mxu0 %v2002
  %3372 = vmatmul.mubr.f32.gmra.mxu0 %v2001
  %v3373 = vpop.f32.mrf.mxu0
  %v3374 = vadd.f32 %v2989, %v3373
  %v3375 = vpop.f32.mrf.mxu0
  %3376 = vmatprep.mubr.f32.mxu0 %v2011
  %3377 = vmatmul.mubr.f32.gmra.mxu0 %v2010
  %v3378 = vpop.f32.mrf.mxu0
  %v3379 = vadd.f32 %v2994, %v3378
  %v3380 = vpop.f32.mrf.mxu0
  %3381 = vmatprep.mubr.f32.mxu0 %v2020
  %3382 = vmatmul.mubr.f32.gmra.mxu0 %v2019
  %v3383 = vpop.f32.mrf.mxu0
  %v3384 = vadd.f32 %v2999, %v3383
  %v3385 = vpop.f32.mrf.mxu0
  %3386 = vmatprep.mubr.f32.mxu0 %v2029
  %3387 = vmatmul.mubr.f32.gmra.mxu0 %v2028
  %v3388 = vpop.f32.mrf.mxu0
  %v3389 = vadd.f32 %v3004, %v3388
  %v3390 = vpop.f32.mrf.mxu0
  %3391 = vmatprep.mubr.f32.mxu0 %v2038
  %3392 = vmatmul.mubr.f32.gmra.mxu0 %v2037
  %v3393 = vpop.f32.mrf.mxu0
  %v3394 = vadd.f32 %v3009, %v3393
  %v3395 = vpop.f32.mrf.mxu0
  %3396 = vmatprep.mubr.f32.mxu0 %v2047
  %3397 = vmatmul.mubr.f32.gmra.mxu0 %v2046
  %v3398 = vpop.f32.mrf.mxu0
  %v3399 = vadd.f32 %v3014, %v3398
  %v3400 = vpop.f32.mrf.mxu0
  %3401 = vmatprep.mubr.f32.mxu0 %v2056
  %3402 = vmatmul.mubr.f32.gmra.mxu0 %v2055
  %v3403 = vpop.f32.mrf.mxu0
  %v3404 = vadd.f32 %v3019, %v3403
  %v3405 = vpop.f32.mrf.mxu0
  %3406 = vmatprep.mubr.f32.mxu0 %v2065
  %3407 = vmatmul.mubr.f32.gmra.mxu0 %v2064
  %v3408 = vpop.f32.mrf.mxu0
  %v3409 = vadd.f32 %v3024, %v3408
  %v3410 = vpop.f32.mrf.mxu0
  %3411 = vmatprep.mubr.f32.mxu0 %v2074
  %3412 = vmatmul.mubr.f32.gmra.mxu0 %v2073
  %v3413 = vpop.f32.mrf.mxu0
  %v3414 = vadd.f32 %v3029, %v3413
  %v3415 = vpop.f32.mrf.mxu0
  %3416 = vmatprep.mubr.f32.mxu0 %v2083
  %3417 = vmatmul.mubr.f32.gmra.mxu0 %v2082
  %v3418 = vpop.f32.mrf.mxu0
  %v3419 = vadd.f32 %v3034, %v3418
  %v3420 = vpop.f32.mrf.mxu0
  %3421 = vmatprep.mubr.f32.mxu0 %v2092
  %3422 = vmatmul.mubr.f32.gmra.mxu0 %v2091
  %v3423 = vpop.f32.mrf.mxu0
  %v3424 = vadd.f32 %v3039, %v3423
  %v3425 = vpop.f32.mrf.mxu0
  %3426 = vmatprep.mubr.f32.mxu0 %v2101
  %3427 = vmatmul.mubr.f32.gmra.mxu0 %v2100
  %v3428 = vpop.f32.mrf.mxu0
  %v3429 = vadd.f32 %v3044, %v3428
  %v3430 = vpop.f32.mrf.mxu0
  %3431 = vmatprep.mubr.f32.mxu0 %v2110
  %3432 = vmatmul.mubr.f32.gmra.mxu0 %v2109
  %v3433 = vpop.f32.mrf.mxu0
  %v3434 = vadd.f32 %v3049, %v3433
  %v3435 = vpop.f32.mrf.mxu0
  %3436 = vmatprep.mubr.f32.mxu0 %v2119
  %3437 = vmatmul.mubr.f32.gmra.mxu0 %v2118
  %v3438 = vpop.f32.mrf.mxu0
  %v3439 = vadd.f32 %v3054, %v3438
  %v3440 = vpop.f32.mrf.mxu0
  %3441 = vmatprep.mubr.f32.mxu0 %v2128
  %3442 = vmatmul.mubr.f32.gmra.mxu0 %v2127
  %v3443 = vpop.f32.mrf.mxu0
  %v3444 = vadd.f32 %v3059, %v3443
  %v3445 = vpop.f32.mrf.mxu0
  %3446 = vmatprep.mubr.f32.mxu0 %v2137
  %3447 = vmatmul.mubr.f32.gmra.mxu0 %v2136
  %v3448 = vpop.f32.mrf.mxu0
  %v3449 = vadd.f32 %v3064, %v3448
  %v3450 = vpop.f32.mrf.mxu0
  %3451 = vmatprep.mubr.f32.mxu0 %v2146
  %3452 = vmatmul.mubr.f32.gmra.mxu0 %v2145
  %v3453 = vpop.f32.mrf.mxu0
  %v3454 = vadd.f32 %v3069, %v3453
  %v3455 = vpop.f32.mrf.mxu0
  %3456 = vmatprep.mubr.f32.mxu0 %v2155
  %3457 = vmatmul.mubr.f32.gmra.mxu0 %v2154
  %v3458 = vpop.f32.mrf.mxu0
  %v3459 = vadd.f32 %v3074, %v3458
  %v3460 = vpop.f32.mrf.mxu0
  %3461 = vmatprep.mubr.f32.mxu0 %v2164
  %3462 = vmatmul.mubr.f32.gmra.mxu0 %v2163
  %v3463 = vpop.f32.mrf.mxu0
  %v3464 = vadd.f32 %v3079, %v3463
  %v3465 = vpop.f32.mrf.mxu0
  %3466 = vdwg.mxu0
  %3467 = vmatprep.subr.mxu0 0.0
  %3468 = vmatpush1.msra.mxu0 %v2279
  %3469 = vmatprep.subr.mxu0 0.0
  %3470 = vmatpush1.msra.mxu0 %v2278
  %3471 = vmatprep.subr.mxu0 0.0
  %3472 = vmatpush1.msra.mxu0 %v2277
  %3473 = vmatprep.subr.mxu0 0.0
  %3474 = vmatpush1.msra.mxu0 %v2276
  %3475 = vmatprep.subr.mxu0 0.0
  %3476 = vmatpush1.msra.mxu0 %v2275
  %3477 = vmatprep.subr.mxu0 0.0
  %3478 = vmatpush1.msra.mxu0 %v2274
  %3479 = vmatprep.subr.mxu0 0.0
  %3480 = vmatpush1.msra.mxu0 %v2273
  %3481 = vmatprep.subr.mxu0 0.0
  %3482 = vmatpush1.msra.mxu0 %v2272
  %3483 = vmatprep.subr.mxu0 0.0
  %3484 = vmatpush1.msra.mxu0 %v2271
  %3485 = vmatprep.subr.mxu0 0.0
  %3486 = vmatpush1.msra.mxu0 %v2270
  %3487 = vmatprep.subr.mxu0 0.0
  %3488 = vmatpush1.msra.mxu0 %v2269
  %3489 = vmatprep.subr.mxu0 0.0
  %3490 = vmatpush1.msra.mxu0 %v2268
  %3491 = vmatprep.subr.mxu0 0.0
  %3492 = vmatpush1.msra.mxu0 %v2267
  %3493 = vmatprep.subr.mxu0 0.0
  %3494 = vmatpush1.msra.mxu0 %v2266
  %3495 = vmatprep.subr.mxu0 0.0
  %3496 = vmatpush1.msra.mxu0 %v2265
  %3497 = vmatprep.subr.mxu0 0.0
  %3498 = vmatpush1.msra.mxu0 %v2264
  %3499 = vmatprep.subr.mxu0 0.0
  %3500 = vmatpush2.msra.mxu0 %v2295
  %3501 = vmatprep.subr.mxu0 0.0
  %3502 = vmatpush2.msra.mxu0 %v2294
  %3503 = vmatprep.subr.mxu0 0.0
  %3504 = vmatpush2.msra.mxu0 %v2293
  %3505 = vmatprep.subr.mxu0 0.0
  %3506 = vmatpush2.msra.mxu0 %v2292
  %3507 = vmatprep.subr.mxu0 0.0
  %3508 = vmatpush2.msra.mxu0 %v2291
  %3509 = vmatprep.subr.mxu0 0.0
  %3510 = vmatpush2.msra.mxu0 %v2290
  %3511 = vmatprep.subr.mxu0 0.0
  %3512 = vmatpush2.msra.mxu0 %v2289
  %3513 = vmatprep.subr.mxu0 0.0
  %3514 = vmatpush2.msra.mxu0 %v2288
  %3515 = vmatprep.subr.mxu0 0.0
  %3516 = vmatpush2.msra.mxu0 %v2287
  %3517 = vmatprep.subr.mxu0 0.0
  %3518 = vmatpush2.msra.mxu0 %v2286
  %3519 = vmatprep.subr.mxu0 0.0
  %3520 = vmatpush2.msra.mxu0 %v2285
  %3521 = vmatprep.subr.mxu0 0.0
  %3522 = vmatpush2.msra.mxu0 %v2284
  %3523 = vmatprep.subr.mxu0 0.0
  %3524 = vmatpush2.msra.mxu0 %v2283
  %3525 = vmatprep.subr.mxu0 0.0
  %3526 = vmatpush2.msra.mxu0 %v2282
  %3527 = vmatprep.subr.mxu0 0.0
  %3528 = vmatpush2.msra.mxu0 %v2281
  %3529 = vmatprep.subr.mxu0 0.0
  %3530 = vmatpush2.msra.mxu0 %v2280
  %3531 = vmatprep.mubr.f32.mxu0 %v1599
  %3532 = vmatmul.mubr.f32.gmra.mxu0 %v1598
  %v3533 = vpop.f32.mrf.mxu0
  %v3534 = vadd.f32 %v3149, %v3533
  %v3535 = vpop.f32.mrf.mxu0
  %3536 = vmatprep.mubr.f32.mxu0 %v1608
  %3537 = vmatmul.mubr.f32.gmra.mxu0 %v1607
  %v3538 = vpop.f32.mrf.mxu0
  %v3539 = vadd.f32 %v3154, %v3538
  %v3540 = vpop.f32.mrf.mxu0
  %3541 = vmatprep.mubr.f32.mxu0 %v1617
  %3542 = vmatmul.mubr.f32.gmra.mxu0 %v1616
  %v3543 = vpop.f32.mrf.mxu0
  %v3544 = vadd.f32 %v3159, %v3543
  %v3545 = vpop.f32.mrf.mxu0
  %3546 = vmatprep.mubr.f32.mxu0 %v1626
  %3547 = vmatmul.mubr.f32.gmra.mxu0 %v1625
  %v3548 = vpop.f32.mrf.mxu0
  %v3549 = vadd.f32 %v3164, %v3548
  %v3550 = vpop.f32.mrf.mxu0
  %3551 = vmatprep.mubr.f32.mxu0 %v1635
  %3552 = vmatmul.mubr.f32.gmra.mxu0 %v1634
  %v3553 = vpop.f32.mrf.mxu0
  %v3554 = vadd.f32 %v3169, %v3553
  %v3555 = vpop.f32.mrf.mxu0
  %3556 = vmatprep.mubr.f32.mxu0 %v1644
  %3557 = vmatmul.mubr.f32.gmra.mxu0 %v1643
  %v3558 = vpop.f32.mrf.mxu0
  %v3559 = vadd.f32 %v3174, %v3558
  %v3560 = vpop.f32.mrf.mxu0
  %3561 = vmatprep.mubr.f32.mxu0 %v1653
  %3562 = vmatmul.mubr.f32.gmra.mxu0 %v1652
  %v3563 = vpop.f32.mrf.mxu0
  %v3564 = vadd.f32 %v3179, %v3563
  %v3565 = vpop.f32.mrf.mxu0
  %3566 = vmatprep.mubr.f32.mxu0 %v1662
  %3567 = vmatmul.mubr.f32.gmra.mxu0 %v1661
  %v3568 = vpop.f32.mrf.mxu0
  %v3569 = vadd.f32 %v3184, %v3568
  %v3570 = vpop.f32.mrf.mxu0
  %3571 = vmatprep.mubr.f32.mxu0 %v1671
  %3572 = vmatmul.mubr.f32.gmra.mxu0 %v1670
  %v3573 = vpop.f32.mrf.mxu0
  %v3574 = vadd.f32 %v3189, %v3573
  %v3575 = vpop.f32.mrf.mxu0
  %3576 = vmatprep.mubr.f32.mxu0 %v1680
  %3577 = vmatmul.mubr.f32.gmra.mxu0 %v1679
  %v3578 = vpop.f32.mrf.mxu0
  %v3579 = vadd.f32 %v3194, %v3578
  %v3580 = vpop.f32.mrf.mxu0
  %3581 = vmatprep.mubr.f32.mxu0 %v1689
  %3582 = vmatmul.mubr.f32.gmra.mxu0 %v1688
  %v3583 = vpop.f32.mrf.mxu0
  %v3584 = vadd.f32 %v3199, %v3583
  %v3585 = vpop.f32.mrf.mxu0
  %3586 = vmatprep.mubr.f32.mxu0 %v1698
  %3587 = vmatmul.mubr.f32.gmra.mxu0 %v1697
  %v3588 = vpop.f32.mrf.mxu0
  %v3589 = vadd.f32 %v3204, %v3588
  %v3590 = vpop.f32.mrf.mxu0
  %3591 = vmatprep.mubr.f32.mxu0 %v1707
  %3592 = vmatmul.mubr.f32.gmra.mxu0 %v1706
  %v3593 = vpop.f32.mrf.mxu0
  %v3594 = vadd.f32 %v3209, %v3593
  %v3595 = vpop.f32.mrf.mxu0
  %3596 = vmatprep.mubr.f32.mxu0 %v1716
  %3597 = vmatmul.mubr.f32.gmra.mxu0 %v1715
  %v3598 = vpop.f32.mrf.mxu0
  %v3599 = vadd.f32 %v3214, %v3598
  %v3600 = vpop.f32.mrf.mxu0
  %3601 = vmatprep.mubr.f32.mxu0 %v1725
  %3602 = vmatmul.mubr.f32.gmra.mxu0 %v1724
  %v3603 = vpop.f32.mrf.mxu0
  %v3604 = vadd.f32 %v3219, %v3603
  %v3605 = vpop.f32.mrf.mxu0
  %3606 = vmatprep.mubr.f32.mxu0 %v1734
  %3607 = vmatmul.mubr.f32.gmra.mxu0 %v1733
  %v3608 = vpop.f32.mrf.mxu0
  %v3609 = vadd.f32 %v3224, %v3608
  %v3610 = vpop.f32.mrf.mxu0
  %3611 = vmatprep.mubr.f32.mxu0 %v1743
  %3612 = vmatmul.mubr.f32.gmra.mxu0 %v1742
  %v3613 = vpop.f32.mrf.mxu0
  %v3614 = vadd.f32 %v3229, %v3613
  %v3615 = vpop.f32.mrf.mxu0
  %3616 = vmatprep.mubr.f32.mxu0 %v1752
  %3617 = vmatmul.mubr.f32.gmra.mxu0 %v1751
  %v3618 = vpop.f32.mrf.mxu0
  %v3619 = vadd.f32 %v3234, %v3618
  %v3620 = vpop.f32.mrf.mxu0
  %3621 = vmatprep.mubr.f32.mxu0 %v1761
  %3622 = vmatmul.mubr.f32.gmra.mxu0 %v1760
  %v3623 = vpop.f32.mrf.mxu0
  %v3624 = vadd.f32 %v3239, %v3623
  %v3625 = vpop.f32.mrf.mxu0
  %3626 = vmatprep.mubr.f32.mxu0 %v1770
  %3627 = vmatmul.mubr.f32.gmra.mxu0 %v1769
  %v3628 = vpop.f32.mrf.mxu0
  %v3629 = vadd.f32 %v3244, %v3628
  %v3630 = vpop.f32.mrf.mxu0
  %3631 = vmatprep.mubr.f32.mxu0 %v1779
  %3632 = vmatmul.mubr.f32.gmra.mxu0 %v1778
  %v3633 = vpop.f32.mrf.mxu0
  %v3634 = vadd.f32 %v3249, %v3633
  %v3635 = vpop.f32.mrf.mxu0
  %3636 = vmatprep.mubr.f32.mxu0 %v1788
  %3637 = vmatmul.mubr.f32.gmra.mxu0 %v1787
  %v3638 = vpop.f32.mrf.mxu0
  %v3639 = vadd.f32 %v3254, %v3638
  %v3640 = vpop.f32.mrf.mxu0
  %3641 = vmatprep.mubr.f32.mxu0 %v1797
  %3642 = vmatmul.mubr.f32.gmra.mxu0 %v1796
  %v3643 = vpop.f32.mrf.mxu0
  %v3644 = vadd.f32 %v3259, %v3643
  %v3645 = vpop.f32.mrf.mxu0
  %3646 = vmatprep.mubr.f32.mxu0 %v1806
  %3647 = vmatmul.mubr.f32.gmra.mxu0 %v1805
  %v3648 = vpop.f32.mrf.mxu0
  %v3649 = vadd.f32 %v3264, %v3648
  %v3650 = vpop.f32.mrf.mxu0
  %3651 = vmatprep.mubr.f32.mxu0 %v1815
  %3652 = vmatmul.mubr.f32.gmra.mxu0 %v1814
  %v3653 = vpop.f32.mrf.mxu0
  %v3654 = vadd.f32 %v3269, %v3653
  %v3655 = vpop.f32.mrf.mxu0
  %3656 = vmatprep.mubr.f32.mxu0 %v1824
  %3657 = vmatmul.mubr.f32.gmra.mxu0 %v1823
  %v3658 = vpop.f32.mrf.mxu0
  %v3659 = vadd.f32 %v3274, %v3658
  %v3660 = vpop.f32.mrf.mxu0
  %3661 = vmatprep.mubr.f32.mxu0 %v1833
  %3662 = vmatmul.mubr.f32.gmra.mxu0 %v1832
  %v3663 = vpop.f32.mrf.mxu0
  %v3664 = vadd.f32 %v3279, %v3663
  %v3665 = vpop.f32.mrf.mxu0
  %3666 = vmatprep.mubr.f32.mxu0 %v1842
  %3667 = vmatmul.mubr.f32.gmra.mxu0 %v1841
  %v3668 = vpop.f32.mrf.mxu0
  %v3669 = vadd.f32 %v3284, %v3668
  %v3670 = vpop.f32.mrf.mxu0
  %3671 = vmatprep.mubr.f32.mxu0 %v1851
  %3672 = vmatmul.mubr.f32.gmra.mxu0 %v1850
  %v3673 = vpop.f32.mrf.mxu0
  %v3674 = vadd.f32 %v3289, %v3673
  %v3675 = vpop.f32.mrf.mxu0
  %3676 = vmatprep.mubr.f32.mxu0 %v1860
  %3677 = vmatmul.mubr.f32.gmra.mxu0 %v1859
  %v3678 = vpop.f32.mrf.mxu0
  %v3679 = vadd.f32 %v3294, %v3678
  %v3680 = vpop.f32.mrf.mxu0
  %3681 = vmatprep.mubr.f32.mxu0 %v1869
  %3682 = vmatmul.mubr.f32.gmra.mxu0 %v1868
  %v3683 = vpop.f32.mrf.mxu0
  %v3684 = vadd.f32 %v3299, %v3683
  %v3685 = vpop.f32.mrf.mxu0
  %3686 = vmatprep.mubr.f32.mxu0 %v1878
  %3687 = vmatmul.mubr.f32.gmra.mxu0 %v1877
  %v3688 = vpop.f32.mrf.mxu0
  %v3689 = vadd.f32 %v3304, %v3688
  %v3690 = vpop.f32.mrf.mxu0
  %3691 = vmatprep.mubr.f32.mxu0 %v1887
  %3692 = vmatmul.mubr.f32.gmra.mxu0 %v1886
  %v3693 = vpop.f32.mrf.mxu0
  %v3694 = vadd.f32 %v3309, %v3693
  %v3695 = vpop.f32.mrf.mxu0
  %3696 = vmatprep.mubr.f32.mxu0 %v1896
  %3697 = vmatmul.mubr.f32.gmra.mxu0 %v1895
  %v3698 = vpop.f32.mrf.mxu0
  %v3699 = vadd.f32 %v3314, %v3698
  %v3700 = vpop.f32.mrf.mxu0
  %3701 = vmatprep.mubr.f32.mxu0 %v1905
  %3702 = vmatmul.mubr.f32.gmra.mxu0 %v1904
  %v3703 = vpop.f32.mrf.mxu0
  %v3704 = vadd.f32 %v3319, %v3703
  %v3705 = vpop.f32.mrf.mxu0
  %3706 = vmatprep.mubr.f32.mxu0 %v1914
  %3707 = vmatmul.mubr.f32.gmra.mxu0 %v1913
  %v3708 = vpop.f32.mrf.mxu0
  %v3709 = vadd.f32 %v3324, %v3708
  %v3710 = vpop.f32.mrf.mxu0
  %3711 = vmatprep.mubr.f32.mxu0 %v1923
  %3712 = vmatmul.mubr.f32.gmra.mxu0 %v1922
  %v3713 = vpop.f32.mrf.mxu0
  %v3714 = vadd.f32 %v3329, %v3713
  %v3715 = vpop.f32.mrf.mxu0
  %3716 = vmatprep.mubr.f32.mxu0 %v1932
  %3717 = vmatmul.mubr.f32.gmra.mxu0 %v1931
  %v3718 = vpop.f32.mrf.mxu0
  %v3719 = vadd.f32 %v3334, %v3718
  %v3720 = vpop.f32.mrf.mxu0
  %3721 = vmatprep.mubr.f32.mxu0 %v1941
  %3722 = vmatmul.mubr.f32.gmra.mxu0 %v1940
  %v3723 = vpop.f32.mrf.mxu0
  %v3724 = vadd.f32 %v3339, %v3723
  %v3725 = vpop.f32.mrf.mxu0
  %3726 = vmatprep.mubr.f32.mxu0 %v1950
  %3727 = vmatmul.mubr.f32.gmra.mxu0 %v1949
  %v3728 = vpop.f32.mrf.mxu0
  %v3729 = vadd.f32 %v3344, %v3728
  %v3730 = vpop.f32.mrf.mxu0
  %3731 = vmatprep.mubr.f32.mxu0 %v1959
  %3732 = vmatmul.mubr.f32.gmra.mxu0 %v1958
  %v3733 = vpop.f32.mrf.mxu0
  %v3734 = vadd.f32 %v3349, %v3733
  %v3735 = vpop.f32.mrf.mxu0
  %3736 = vmatprep.mubr.f32.mxu0 %v1968
  %3737 = vmatmul.mubr.f32.gmra.mxu0 %v1967
  %v3738 = vpop.f32.mrf.mxu0
  %v3739 = vadd.f32 %v3354, %v3738
  %v3740 = vpop.f32.mrf.mxu0
  %3741 = vmatprep.mubr.f32.mxu0 %v1977
  %3742 = vmatmul.mubr.f32.gmra.mxu0 %v1976
  %v3743 = vpop.f32.mrf.mxu0
  %v3744 = vadd.f32 %v3359, %v3743
  %v3745 = vpop.f32.mrf.mxu0
  %3746 = vmatprep.mubr.f32.mxu0 %v1986
  %3747 = vmatmul.mubr.f32.gmra.mxu0 %v1985
  %v3748 = vpop.f32.mrf.mxu0
  %v3749 = vadd.f32 %v3364, %v3748
  %v3750 = vpop.f32.mrf.mxu0
  %3751 = vmatprep.mubr.f32.mxu0 %v1995
  %3752 = vmatmul.mubr.f32.gmra.mxu0 %v1994
  %v3753 = vpop.f32.mrf.mxu0
  %v3754 = vadd.f32 %v3369, %v3753
  %v3755 = vpop.f32.mrf.mxu0
  %3756 = vmatprep.mubr.f32.mxu0 %v2004
  %3757 = vmatmul.mubr.f32.gmra.mxu0 %v2003
  %v3758 = vpop.f32.mrf.mxu0
  %v3759 = vadd.f32 %v3374, %v3758
  %v3760 = vpop.f32.mrf.mxu0
  %3761 = vmatprep.mubr.f32.mxu0 %v2013
  %3762 = vmatmul.mubr.f32.gmra.mxu0 %v2012
  %v3763 = vpop.f32.mrf.mxu0
  %v3764 = vadd.f32 %v3379, %v3763
  %v3765 = vpop.f32.mrf.mxu0
  %3766 = vmatprep.mubr.f32.mxu0 %v2022
  %3767 = vmatmul.mubr.f32.gmra.mxu0 %v2021
  %v3768 = vpop.f32.mrf.mxu0
  %v3769 = vadd.f32 %v3384, %v3768
  %v3770 = vpop.f32.mrf.mxu0
  %3771 = vmatprep.mubr.f32.mxu0 %v2031
  %3772 = vmatmul.mubr.f32.gmra.mxu0 %v2030
  %v3773 = vpop.f32.mrf.mxu0
  %v3774 = vadd.f32 %v3389, %v3773
  %v3775 = vpop.f32.mrf.mxu0
  %3776 = vmatprep.mubr.f32.mxu0 %v2040
  %3777 = vmatmul.mubr.f32.gmra.mxu0 %v2039
  %v3778 = vpop.f32.mrf.mxu0
  %v3779 = vadd.f32 %v3394, %v3778
  %v3780 = vpop.f32.mrf.mxu0
  %3781 = vmatprep.mubr.f32.mxu0 %v2049
  %3782 = vmatmul.mubr.f32.gmra.mxu0 %v2048
  %v3783 = vpop.f32.mrf.mxu0
  %v3784 = vadd.f32 %v3399, %v3783
  %v3785 = vpop.f32.mrf.mxu0
  %3786 = vmatprep.mubr.f32.mxu0 %v2058
  %3787 = vmatmul.mubr.f32.gmra.mxu0 %v2057
  %v3788 = vpop.f32.mrf.mxu0
  %v3789 = vadd.f32 %v3404, %v3788
  %v3790 = vpop.f32.mrf.mxu0
  %3791 = vmatprep.mubr.f32.mxu0 %v2067
  %3792 = vmatmul.mubr.f32.gmra.mxu0 %v2066
  %v3793 = vpop.f32.mrf.mxu0
  %v3794 = vadd.f32 %v3409, %v3793
  %v3795 = vpop.f32.mrf.mxu0
  %3796 = vmatprep.mubr.f32.mxu0 %v2076
  %3797 = vmatmul.mubr.f32.gmra.mxu0 %v2075
  %v3798 = vpop.f32.mrf.mxu0
  %v3799 = vadd.f32 %v3414, %v3798
  %v3800 = vpop.f32.mrf.mxu0
  %3801 = vmatprep.mubr.f32.mxu0 %v2085
  %3802 = vmatmul.mubr.f32.gmra.mxu0 %v2084
  %v3803 = vpop.f32.mrf.mxu0
  %v3804 = vadd.f32 %v3419, %v3803
  %v3805 = vpop.f32.mrf.mxu0
  %3806 = vmatprep.mubr.f32.mxu0 %v2094
  %3807 = vmatmul.mubr.f32.gmra.mxu0 %v2093
  %v3808 = vpop.f32.mrf.mxu0
  %v3809 = vadd.f32 %v3424, %v3808
  %v3810 = vpop.f32.mrf.mxu0
  %3811 = vmatprep.mubr.f32.mxu0 %v2103
  %3812 = vmatmul.mubr.f32.gmra.mxu0 %v2102
  %v3813 = vpop.f32.mrf.mxu0
  %v3814 = vadd.f32 %v3429, %v3813
  %v3815 = vpop.f32.mrf.mxu0
  %3816 = vmatprep.mubr.f32.mxu0 %v2112
  %3817 = vmatmul.mubr.f32.gmra.mxu0 %v2111
  %v3818 = vpop.f32.mrf.mxu0
  %v3819 = vadd.f32 %v3434, %v3818
  %v3820 = vpop.f32.mrf.mxu0
  %3821 = vmatprep.mubr.f32.mxu0 %v2121
  %3822 = vmatmul.mubr.f32.gmra.mxu0 %v2120
  %v3823 = vpop.f32.mrf.mxu0
  %v3824 = vadd.f32 %v3439, %v3823
  %v3825 = vpop.f32.mrf.mxu0
  %3826 = vmatprep.mubr.f32.mxu0 %v2130
  %3827 = vmatmul.mubr.f32.gmra.mxu0 %v2129
  %v3828 = vpop.f32.mrf.mxu0
  %v3829 = vadd.f32 %v3444, %v3828
  %v3830 = vpop.f32.mrf.mxu0
  %3831 = vmatprep.mubr.f32.mxu0 %v2139
  %3832 = vmatmul.mubr.f32.gmra.mxu0 %v2138
  %v3833 = vpop.f32.mrf.mxu0
  %v3834 = vadd.f32 %v3449, %v3833
  %v3835 = vpop.f32.mrf.mxu0
  %3836 = vmatprep.mubr.f32.mxu0 %v2148
  %3837 = vmatmul.mubr.f32.gmra.mxu0 %v2147
  %v3838 = vpop.f32.mrf.mxu0
  %v3839 = vadd.f32 %v3454, %v3838
  %v3840 = vpop.f32.mrf.mxu0
  %3841 = vmatprep.mubr.f32.mxu0 %v2157
  %3842 = vmatmul.mubr.f32.gmra.mxu0 %v2156
  %v3843 = vpop.f32.mrf.mxu0
  %v3844 = vadd.f32 %v3459, %v3843
  %v3845 = vpop.f32.mrf.mxu0
  %3846 = vmatprep.mubr.f32.mxu0 %v2166
  %3847 = vmatmul.mubr.f32.gmra.mxu0 %v2165
  %v3848 = vpop.f32.mrf.mxu0
  %v3849 = vadd.f32 %v3464, %v3848
  %v3850 = vpop.f32.mrf.mxu0
  %3851 = vdwg.mxu0
  %3852 = vmatprep.subr.mxu0 0.0
  %3853 = vmatpush1.msra.mxu0 %v2311
  %3854 = vmatprep.subr.mxu0 0.0
  %3855 = vmatpush1.msra.mxu0 %v2310
  %3856 = vmatprep.subr.mxu0 0.0
  %3857 = vmatpush1.msra.mxu0 %v2309
  %3858 = vmatprep.subr.mxu0 0.0
  %3859 = vmatpush1.msra.mxu0 %v2308
  %3860 = vmatprep.subr.mxu0 0.0
  %3861 = vmatpush1.msra.mxu0 %v2307
  %3862 = vmatprep.subr.mxu0 0.0
  %3863 = vmatpush1.msra.mxu0 %v2306
  %3864 = vmatprep.subr.mxu0 0.0
  %3865 = vmatpush1.msra.mxu0 %v2305
  %3866 = vmatprep.subr.mxu0 0.0
  %3867 = vmatpush1.msra.mxu0 %v2304
  %3868 = vmatprep.subr.mxu0 0.0
  %3869 = vmatpush1.msra.mxu0 %v2303
  %3870 = vmatprep.subr.mxu0 0.0
  %3871 = vmatpush1.msra.mxu0 %v2302
  %3872 = vmatprep.subr.mxu0 0.0
  %3873 = vmatpush1.msra.mxu0 %v2301
  %3874 = vmatprep.subr.mxu0 0.0
  %3875 = vmatpush1.msra.mxu0 %v2300
  %3876 = vmatprep.subr.mxu0 0.0
  %3877 = vmatpush1.msra.mxu0 %v2299
  %3878 = vmatprep.subr.mxu0 0.0
  %3879 = vmatpush1.msra.mxu0 %v2298
  %3880 = vmatprep.subr.mxu0 0.0
  %3881 = vmatpush1.msra.mxu0 %v2297
  %3882 = vmatprep.subr.mxu0 0.0
  %3883 = vmatpush1.msra.mxu0 %v2296
  %3884 = vmatprep.subr.mxu0 0.0
  %3885 = vmatpush2.msra.mxu0 0.0
  %3886 = vmatprep.subr.mxu0 0.0
  %3887 = vmatpush2.msra.mxu0 0.0
  %3888 = vmatprep.subr.mxu0 0.0
  %3889 = vmatpush2.msra.mxu0 0.0
  %3890 = vmatprep.subr.mxu0 0.0
  %3891 = vmatpush2.msra.mxu0 0.0
  %3892 = vmatprep.subr.mxu0 0.0
  %3893 = vmatpush2.msra.mxu0 0.0
  %3894 = vmatprep.subr.mxu0 0.0
  %3895 = vmatpush2.msra.mxu0 0.0
  %3896 = vmatprep.subr.mxu0 0.0
  %3897 = vmatpush2.msra.mxu0 0.0
  %3898 = vmatprep.subr.mxu0 0.0
  %3899 = vmatpush2.msra.mxu0 0.0
  %3900 = vmatprep.subr.mxu0 0.0
  %3901 = vmatpush2.msra.mxu0 0.0
  %3902 = vmatprep.subr.mxu0 0.0
  %3903 = vmatpush2.msra.mxu0 0.0
  %3904 = vmatprep.subr.mxu0 0.0
  %3905 = vmatpush2.msra.mxu0 0.0
  %3906 = vmatprep.subr.mxu0 0.0
  %3907 = vmatpush2.msra.mxu0 0.0
  %3908 = vmatprep.subr.mxu0 0.0
  %3909 = vmatpush2.msra.mxu0 0.0
  %3910 = vmatprep.subr.mxu0 0.0
  %3911 = vmatpush2.msra.mxu0 0.0
  %3912 = vmatprep.subr.mxu0 0.0
  %3913 = vmatpush2.msra.mxu0 0.0
  %3914 = vmatprep.subr.mxu0 0.0
  %3915 = vmatpush2.msra.mxu0 0.0
  %3916 = vmatprep.mubr.f32.mxu0 0.0
  %3917 = vmatmul.mubr.f32.gmra.mxu0 %v1600
  %v3918 = vpop.f32.mrf.mxu0
  %v3919 = vadd.f32 %v3534, %v3918
  %v3920 = vpop.f32.mrf.mxu0
  %3921 = vmatprep.mubr.f32.mxu0 0.0
  %3922 = vmatmul.mubr.f32.gmra.mxu0 %v1609
  %v3923 = vpop.f32.mrf.mxu0
  %v3924 = vadd.f32 %v3539, %v3923
  %v3925 = vpop.f32.mrf.mxu0
  %3926 = vmatprep.mubr.f32.mxu0 0.0
  %3927 = vmatmul.mubr.f32.gmra.mxu0 %v1618
  %v3928 = vpop.f32.mrf.mxu0
  %v3929 = vadd.f32 %v3544, %v3928
  %v3930 = vpop.f32.mrf.mxu0
  %3931 = vmatprep.mubr.f32.mxu0 0.0
  %3932 = vmatmul.mubr.f32.gmra.mxu0 %v1627
  %v3933 = vpop.f32.mrf.mxu0
  %v3934 = vadd.f32 %v3549, %v3933
  %v3935 = vpop.f32.mrf.mxu0
  %3936 = vmatprep.mubr.f32.mxu0 0.0
  %3937 = vmatmul.mubr.f32.gmra.mxu0 %v1636
  %v3938 = vpop.f32.mrf.mxu0
  %v3939 = vadd.f32 %v3554, %v3938
  %v3940 = vpop.f32.mrf.mxu0
  %3941 = vmatprep.mubr.f32.mxu0 0.0
  %3942 = vmatmul.mubr.f32.gmra.mxu0 %v1645
  %v3943 = vpop.f32.mrf.mxu0
  %v3944 = vadd.f32 %v3559, %v3943
  %v3945 = vpop.f32.mrf.mxu0
  %3946 = vmatprep.mubr.f32.mxu0 0.0
  %3947 = vmatmul.mubr.f32.gmra.mxu0 %v1654
  %v3948 = vpop.f32.mrf.mxu0
  %v3949 = vadd.f32 %v3564, %v3948
  %v3950 = vpop.f32.mrf.mxu0
  %3951 = vmatprep.mubr.f32.mxu0 0.0
  %3952 = vmatmul.mubr.f32.gmra.mxu0 %v1663
  %v3953 = vpop.f32.mrf.mxu0
  %v3954 = vadd.f32 %v3569, %v3953
  %v3955 = vpop.f32.mrf.mxu0
  %3956 = vmatprep.mubr.f32.mxu0 0.0
  %3957 = vmatmul.mubr.f32.gmra.mxu0 %v1672
  %v3958 = vpop.f32.mrf.mxu0
  %v3959 = vadd.f32 %v3574, %v3958
  %v3960 = vpop.f32.mrf.mxu0
  %3961 = vmatprep.mubr.f32.mxu0 0.0
  %3962 = vmatmul.mubr.f32.gmra.mxu0 %v1681
  %v3963 = vpop.f32.mrf.mxu0
  %v3964 = vadd.f32 %v3579, %v3963
  %v3965 = vpop.f32.mrf.mxu0
  %3966 = vmatprep.mubr.f32.mxu0 0.0
  %3967 = vmatmul.mubr.f32.gmra.mxu0 %v1690
  %v3968 = vpop.f32.mrf.mxu0
  %v3969 = vadd.f32 %v3584, %v3968
  %v3970 = vpop.f32.mrf.mxu0
  %3971 = vmatprep.mubr.f32.mxu0 0.0
  %3972 = vmatmul.mubr.f32.gmra.mxu0 %v1699
  %v3973 = vpop.f32.mrf.mxu0
  %v3974 = vadd.f32 %v3589, %v3973
  %v3975 = vpop.f32.mrf.mxu0
  %3976 = vmatprep.mubr.f32.mxu0 0.0
  %3977 = vmatmul.mubr.f32.gmra.mxu0 %v1708
  %v3978 = vpop.f32.mrf.mxu0
  %v3979 = vadd.f32 %v3594, %v3978
  %v3980 = vpop.f32.mrf.mxu0
  %3981 = vmatprep.mubr.f32.mxu0 0.0
  %3982 = vmatmul.mubr.f32.gmra.mxu0 %v1717
  %v3983 = vpop.f32.mrf.mxu0
  %v3984 = vadd.f32 %v3599, %v3983
  %v3985 = vpop.f32.mrf.mxu0
  %3986 = vmatprep.mubr.f32.mxu0 0.0
  %3987 = vmatmul.mubr.f32.gmra.mxu0 %v1726
  %v3988 = vpop.f32.mrf.mxu0
  %v3989 = vadd.f32 %v3604, %v3988
  %v3990 = vpop.f32.mrf.mxu0
  %3991 = vmatprep.mubr.f32.mxu0 0.0
  %3992 = vmatmul.mubr.f32.gmra.mxu0 %v1735
  %v3993 = vpop.f32.mrf.mxu0
  %v3994 = vadd.f32 %v3609, %v3993
  %v3995 = vpop.f32.mrf.mxu0
  %3996 = vmatprep.mubr.f32.mxu0 0.0
  %3997 = vmatmul.mubr.f32.gmra.mxu0 %v1744
  %v3998 = vpop.f32.mrf.mxu0
  %v3999 = vadd.f32 %v3614, %v3998
  %v4000 = vpop.f32.mrf.mxu0
  %4001 = vmatprep.mubr.f32.mxu0 0.0
  %4002 = vmatmul.mubr.f32.gmra.mxu0 %v1753
  %v4003 = vpop.f32.mrf.mxu0
  %v4004 = vadd.f32 %v3619, %v4003
  %v4005 = vpop.f32.mrf.mxu0
  %4006 = vmatprep.mubr.f32.mxu0 0.0
  %4007 = vmatmul.mubr.f32.gmra.mxu0 %v1762
  %v4008 = vpop.f32.mrf.mxu0
  %v4009 = vadd.f32 %v3624, %v4008
  %v4010 = vpop.f32.mrf.mxu0
  %4011 = vmatprep.mubr.f32.mxu0 0.0
  %4012 = vmatmul.mubr.f32.gmra.mxu0 %v1771
  %v4013 = vpop.f32.mrf.mxu0
  %v4014 = vadd.f32 %v3629, %v4013
  %v4015 = vpop.f32.mrf.mxu0
  %4016 = vmatprep.mubr.f32.mxu0 0.0
  %4017 = vmatmul.mubr.f32.gmra.mxu0 %v1780
  %v4018 = vpop.f32.mrf.mxu0
  %v4019 = vadd.f32 %v3634, %v4018
  %v4020 = vpop.f32.mrf.mxu0
  %4021 = vmatprep.mubr.f32.mxu0 0.0
  %4022 = vmatmul.mubr.f32.gmra.mxu0 %v1789
  %v4023 = vpop.f32.mrf.mxu0
  %v4024 = vadd.f32 %v3639, %v4023
  %v4025 = vpop.f32.mrf.mxu0
  %4026 = vmatprep.mubr.f32.mxu0 0.0
  %4027 = vmatmul.mubr.f32.gmra.mxu0 %v1798
  %v4028 = vpop.f32.mrf.mxu0
  %v4029 = vadd.f32 %v3644, %v4028
  %v4030 = vpop.f32.mrf.mxu0
  %4031 = vmatprep.mubr.f32.mxu0 0.0
  %4032 = vmatmul.mubr.f32.gmra.mxu0 %v1807
  %v4033 = vpop.f32.mrf.mxu0
  %v4034 = vadd.f32 %v3649, %v4033
  %v4035 = vpop.f32.mrf.mxu0
  %4036 = vmatprep.mubr.f32.mxu0 0.0
  %4037 = vmatmul.mubr.f32.gmra.mxu0 %v1816
  %v4038 = vpop.f32.mrf.mxu0
  %v4039 = vadd.f32 %v3654, %v4038
  %v4040 = vpop.f32.mrf.mxu0
  %4041 = vmatprep.mubr.f32.mxu0 0.0
  %4042 = vmatmul.mubr.f32.gmra.mxu0 %v1825
  %v4043 = vpop.f32.mrf.mxu0
  %v4044 = vadd.f32 %v3659, %v4043
  %v4045 = vpop.f32.mrf.mxu0
  %4046 = vmatprep.mubr.f32.mxu0 0.0
  %4047 = vmatmul.mubr.f32.gmra.mxu0 %v1834
  %v4048 = vpop.f32.mrf.mxu0
  %v4049 = vadd.f32 %v3664, %v4048
  %v4050 = vpop.f32.mrf.mxu0
  %4051 = vmatprep.mubr.f32.mxu0 0.0
  %4052 = vmatmul.mubr.f32.gmra.mxu0 %v1843
  %v4053 = vpop.f32.mrf.mxu0
  %v4054 = vadd.f32 %v3669, %v4053
  %v4055 = vpop.f32.mrf.mxu0
  %4056 = vmatprep.mubr.f32.mxu0 0.0
  %4057 = vmatmul.mubr.f32.gmra.mxu0 %v1852
  %v4058 = vpop.f32.mrf.mxu0
  %v4059 = vadd.f32 %v3674, %v4058
  %v4060 = vpop.f32.mrf.mxu0
  %4061 = vmatprep.mubr.f32.mxu0 0.0
  %4062 = vmatmul.mubr.f32.gmra.mxu0 %v1861
  %v4063 = vpop.f32.mrf.mxu0
  %v4064 = vadd.f32 %v3679, %v4063
  %v4065 = vpop.f32.mrf.mxu0
  %4066 = vmatprep.mubr.f32.mxu0 0.0
  %4067 = vmatmul.mubr.f32.gmra.mxu0 %v1870
  %v4068 = vpop.f32.mrf.mxu0
  %v4069 = vadd.f32 %v3684, %v4068
  %v4070 = vpop.f32.mrf.mxu0
  %4071 = vmatprep.mubr.f32.mxu0 0.0
  %4072 = vmatmul.mubr.f32.gmra.mxu0 %v1879
  %v4073 = vpop.f32.mrf.mxu0
  %v4074 = vadd.f32 %v3689, %v4073
  %v4075 = vpop.f32.mrf.mxu0
  %4076 = vmatprep.mubr.f32.mxu0 0.0
  %4077 = vmatmul.mubr.f32.gmra.mxu0 %v1888
  %v4078 = vpop.f32.mrf.mxu0
  %v4079 = vadd.f32 %v3694, %v4078
  %v4080 = vpop.f32.mrf.mxu0
  %4081 = vmatprep.mubr.f32.mxu0 0.0
  %4082 = vmatmul.mubr.f32.gmra.mxu0 %v1897
  %v4083 = vpop.f32.mrf.mxu0
  %v4084 = vadd.f32 %v3699, %v4083
  %v4085 = vpop.f32.mrf.mxu0
  %4086 = vmatprep.mubr.f32.mxu0 0.0
  %4087 = vmatmul.mubr.f32.gmra.mxu0 %v1906
  %v4088 = vpop.f32.mrf.mxu0
  %v4089 = vadd.f32 %v3704, %v4088
  %v4090 = vpop.f32.mrf.mxu0
  %4091 = vmatprep.mubr.f32.mxu0 0.0
  %4092 = vmatmul.mubr.f32.gmra.mxu0 %v1915
  %v4093 = vpop.f32.mrf.mxu0
  %v4094 = vadd.f32 %v3709, %v4093
  %v4095 = vpop.f32.mrf.mxu0
  %4096 = vmatprep.mubr.f32.mxu0 0.0
  %4097 = vmatmul.mubr.f32.gmra.mxu0 %v1924
  %v4098 = vpop.f32.mrf.mxu0
  %v4099 = vadd.f32 %v3714, %v4098
  %v4100 = vpop.f32.mrf.mxu0
  %4101 = vmatprep.mubr.f32.mxu0 0.0
  %4102 = vmatmul.mubr.f32.gmra.mxu0 %v1933
  %v4103 = vpop.f32.mrf.mxu0
  %v4104 = vadd.f32 %v3719, %v4103
  %v4105 = vpop.f32.mrf.mxu0
  %4106 = vmatprep.mubr.f32.mxu0 0.0
  %4107 = vmatmul.mubr.f32.gmra.mxu0 %v1942
  %v4108 = vpop.f32.mrf.mxu0
  %v4109 = vadd.f32 %v3724, %v4108
  %v4110 = vpop.f32.mrf.mxu0
  %4111 = vmatprep.mubr.f32.mxu0 0.0
  %4112 = vmatmul.mubr.f32.gmra.mxu0 %v1951
  %v4113 = vpop.f32.mrf.mxu0
  %v4114 = vadd.f32 %v3729, %v4113
  %v4115 = vpop.f32.mrf.mxu0
  %4116 = vmatprep.mubr.f32.mxu0 0.0
  %4117 = vmatmul.mubr.f32.gmra.mxu0 %v1960
  %v4118 = vpop.f32.mrf.mxu0
  %v4119 = vadd.f32 %v3734, %v4118
  %v4120 = vpop.f32.mrf.mxu0
  %4121 = vmatprep.mubr.f32.mxu0 0.0
  %4122 = vmatmul.mubr.f32.gmra.mxu0 %v1969
  %v4123 = vpop.f32.mrf.mxu0
  %v4124 = vadd.f32 %v3739, %v4123
  %v4125 = vpop.f32.mrf.mxu0
  %4126 = vmatprep.mubr.f32.mxu0 0.0
  %4127 = vmatmul.mubr.f32.gmra.mxu0 %v1978
  %v4128 = vpop.f32.mrf.mxu0
  %v4129 = vadd.f32 %v3744, %v4128
  %v4130 = vpop.f32.mrf.mxu0
  %4131 = vmatprep.mubr.f32.mxu0 0.0
  %4132 = vmatmul.mubr.f32.gmra.mxu0 %v1987
  %v4133 = vpop.f32.mrf.mxu0
  %v4134 = vadd.f32 %v3749, %v4133
  %v4135 = vpop.f32.mrf.mxu0
  %4136 = vmatprep.mubr.f32.mxu0 0.0
  %4137 = vmatmul.mubr.f32.gmra.mxu0 %v1996
  %v4138 = vpop.f32.mrf.mxu0
  %v4139 = vadd.f32 %v3754, %v4138
  %v4140 = vpop.f32.mrf.mxu0
  %4141 = vmatprep.mubr.f32.mxu0 0.0
  %4142 = vmatmul.mubr.f32.gmra.mxu0 %v2005
  %v4143 = vpop.f32.mrf.mxu0
  %v4144 = vadd.f32 %v3759, %v4143
  %v4145 = vpop.f32.mrf.mxu0
  %4146 = vmatprep.mubr.f32.mxu0 0.0
  %4147 = vmatmul.mubr.f32.gmra.mxu0 %v2014
  %v4148 = vpop.f32.mrf.mxu0
  %v4149 = vadd.f32 %v3764, %v4148
  %v4150 = vpop.f32.mrf.mxu0
  %4151 = vmatprep.mubr.f32.mxu0 0.0
  %4152 = vmatmul.mubr.f32.gmra.mxu0 %v2023
  %v4153 = vpop.f32.mrf.mxu0
  %v4154 = vadd.f32 %v3769, %v4153
  %v4155 = vpop.f32.mrf.mxu0
  %4156 = vmatprep.mubr.f32.mxu0 0.0
  %4157 = vmatmul.mubr.f32.gmra.mxu0 %v2032
  %v4158 = vpop.f32.mrf.mxu0
  %v4159 = vadd.f32 %v3774, %v4158
  %v4160 = vpop.f32.mrf.mxu0
  %4161 = vmatprep.mubr.f32.mxu0 0.0
  %4162 = vmatmul.mubr.f32.gmra.mxu0 %v2041
  %v4163 = vpop.f32.mrf.mxu0
  %v4164 = vadd.f32 %v3779, %v4163
  %v4165 = vpop.f32.mrf.mxu0
  %4166 = vmatprep.mubr.f32.mxu0 0.0
  %4167 = vmatmul.mubr.f32.gmra.mxu0 %v2050
  %v4168 = vpop.f32.mrf.mxu0
  %v4169 = vadd.f32 %v3784, %v4168
  %v4170 = vpop.f32.mrf.mxu0
  %4171 = vmatprep.mubr.f32.mxu0 0.0
  %4172 = vmatmul.mubr.f32.gmra.mxu0 %v2059
  %v4173 = vpop.f32.mrf.mxu0
  %v4174 = vadd.f32 %v3789, %v4173
  %v4175 = vpop.f32.mrf.mxu0
  %4176 = vmatprep.mubr.f32.mxu0 0.0
  %4177 = vmatmul.mubr.f32.gmra.mxu0 %v2068
  %v4178 = vpop.f32.mrf.mxu0
  %v4179 = vadd.f32 %v3794, %v4178
  %v4180 = vpop.f32.mrf.mxu0
  %4181 = vmatprep.mubr.f32.mxu0 0.0
  %4182 = vmatmul.mubr.f32.gmra.mxu0 %v2077
  %v4183 = vpop.f32.mrf.mxu0
  %v4184 = vadd.f32 %v3799, %v4183
  %v4185 = vpop.f32.mrf.mxu0
  %4186 = vmatprep.mubr.f32.mxu0 0.0
  %4187 = vmatmul.mubr.f32.gmra.mxu0 %v2086
  %v4188 = vpop.f32.mrf.mxu0
  %v4189 = vadd.f32 %v3804, %v4188
  %v4190 = vpop.f32.mrf.mxu0
  %4191 = vmatprep.mubr.f32.mxu0 0.0
  %4192 = vmatmul.mubr.f32.gmra.mxu0 %v2095
  %v4193 = vpop.f32.mrf.mxu0
  %v4194 = vadd.f32 %v3809, %v4193
  %v4195 = vpop.f32.mrf.mxu0
  %4196 = vmatprep.mubr.f32.mxu0 0.0
  %4197 = vmatmul.mubr.f32.gmra.mxu0 %v2104
  %v4198 = vpop.f32.mrf.mxu0
  %v4199 = vadd.f32 %v3814, %v4198
  %v4200 = vpop.f32.mrf.mxu0
  %4201 = vmatprep.mubr.f32.mxu0 0.0
  %4202 = vmatmul.mubr.f32.gmra.mxu0 %v2113
  %v4203 = vpop.f32.mrf.mxu0
  %v4204 = vadd.f32 %v3819, %v4203
  %v4205 = vpop.f32.mrf.mxu0
  %4206 = vmatprep.mubr.f32.mxu0 0.0
  %4207 = vmatmul.mubr.f32.gmra.mxu0 %v2122
  %v4208 = vpop.f32.mrf.mxu0
  %v4209 = vadd.f32 %v3824, %v4208
  %v4210 = vpop.f32.mrf.mxu0
  %4211 = vmatprep.mubr.f32.mxu0 0.0
  %4212 = vmatmul.mubr.f32.gmra.mxu0 %v2131
  %v4213 = vpop.f32.mrf.mxu0
  %v4214 = vadd.f32 %v3829, %v4213
  %v4215 = vpop.f32.mrf.mxu0
  %4216 = vmatprep.mubr.f32.mxu0 0.0
  %4217 = vmatmul.mubr.f32.gmra.mxu0 %v2140
  %v4218 = vpop.f32.mrf.mxu0
  %v4219 = vadd.f32 %v3834, %v4218
  %v4220 = vpop.f32.mrf.mxu0
  %4221 = vmatprep.mubr.f32.mxu0 0.0
  %4222 = vmatmul.mubr.f32.gmra.mxu0 %v2149
  %v4223 = vpop.f32.mrf.mxu0
  %v4224 = vadd.f32 %v3839, %v4223
  %v4225 = vpop.f32.mrf.mxu0
  %4226 = vmatprep.mubr.f32.mxu0 0.0
  %4227 = vmatmul.mubr.f32.gmra.mxu0 %v2158
  %v4228 = vpop.f32.mrf.mxu0
  %v4229 = vadd.f32 %v3844, %v4228
  %v4230 = vpop.f32.mrf.mxu0
  %4231 = vmatprep.mubr.f32.mxu0 0.0
  %4232 = vmatmul.mubr.f32.gmra.mxu0 %v2167
  %v4233 = vpop.f32.mrf.mxu0
  %v4234 = vadd.f32 %v3849, %v4233
  %v4235 = vpop.f32.mrf.mxu0
  %4236 = vdwg.mxu0
  %4237 = vst [vmem:[%s4] sm:$0xff] %v3919
  %4238 = vst [vmem:[%s4 + $0x8] sm:$0xff] %v3924
  %4239 = vst [vmem:[%s4 + $0x10] sm:$0xff] %v3929
  %4240 = vst [vmem:[%s4 + $0x18] sm:$0xff] %v3934
  %4241 = vst [vmem:[%s4 + $0x20] sm:$0xff] %v3939
  %4242 = vst [vmem:[%s4 + $0x28] sm:$0xff] %v3944
  %4243 = vst [vmem:[%s4 + $0x30] sm:$0xff] %v3949
  %4244 = vst [vmem:[%s4 + $0x38] sm:$0xff] %v3954
  %4245 = vst [vmem:[%s4 + $0x40] sm:$0xff] %v3959
  %4246 = vst [vmem:[%s4 + $0x48] sm:$0xff] %v3964
  %4247 = vst [vmem:[%s4 + $0x50] sm:$0xff] %v3969
  %4248 = vst [vmem:[%s4 + $0x58] sm:$0xff] %v3974
  %4249 = vst [vmem:[%s4 + $0x60] sm:$0xff] %v3979
  %4250 = vst [vmem:[%s4 + $0x68] sm:$0xff] %v3984
  %4251 = vst [vmem:[%s4 + $0x70] sm:$0xff] %v3989
  %4252 = vst [vmem:[%s4 + $0x78] sm:$0xff] %v3994
  %4253 = vst [vmem:[%s4 + $0x80] sm:$0xff] %v3999
  %4254 = vst [vmem:[%s4 + $0x88] sm:$0xff] %v4004
  %4255 = vst [vmem:[%s4 + $0x90] sm:$0xff] %v4009
  %4256 = vst [vmem:[%s4 + $0x98] sm:$0xff] %v4014
  %4257 = vst [vmem:[%s4 + $0xa0] sm:$0xff] %v4019
  %4258 = vst [vmem:[%s4 + $0xa8] sm:$0xff] %v4024
  %4259 = vst [vmem:[%s4 + $0xb0] sm:$0xff] %v4029
  %4260 = vst [vmem:[%s4 + $0xb8] sm:$0xff] %v4034
  %4261 = vst [vmem:[%s4 + $0xc0] sm:$0xff] %v4039
  %4262 = vst [vmem:[%s4 + $0xc8] sm:$0xff] %v4044
  %4263 = vst [vmem:[%s4 + $0xd0] sm:$0xff] %v4049
  %4264 = vst [vmem:[%s4 + $0xd8] sm:$0xff] %v4054
  %4265 = vst [vmem:[%s4 + $0xe0] sm:$0xff] %v4059
  %4266 = vst [vmem:[%s4 + $0xe8] sm:$0xff] %v4064
  %4267 = vst [vmem:[%s4 + $0xf0] sm:$0xff] %v4069
  %4268 = vst [vmem:[%s4 + $0xf8] sm:$0xff] %v4074
  %4269 = vst [vmem:[%s4 + $0x100] sm:$0xff] %v4079
  %4270 = vst [vmem:[%s4 + $0x108] sm:$0xff] %v4084
  %4271 = vst [vmem:[%s4 + $0x110] sm:$0xff] %v4089
  %4272 = vst [vmem:[%s4 + $0x118] sm:$0xff] %v4094
  %4273 = vst [vmem:[%s4 + $0x120] sm:$0xff] %v4099
  %4274 = vst [vmem:[%s4 + $0x128] sm:$0xff] %v4104
  %4275 = vst [vmem:[%s4 + $0x130] sm:$0xff] %v4109
  %4276 = vst [vmem:[%s4 + $0x138] sm:$0xff] %v4114
  %4277 = vst [vmem:[%s4 + $0x140] sm:$0xff] %v4119
  %4278 = vst [vmem:[%s4 + $0x148] sm:$0xff] %v4124
  %4279 = vst [vmem:[%s4 + $0x150] sm:$0xff] %v4129
  %4280 = vst [vmem:[%s4 + $0x158] sm:$0xff] %v4134
  %4281 = vst [vmem:[%s4 + $0x160] sm:$0xff] %v4139
  %4282 = vst [vmem:[%s4 + $0x168] sm:$0xff] %v4144
  %4283 = vst [vmem:[%s4 + $0x170] sm:$0xff] %v4149
  %4284 = vst [vmem:[%s4 + $0x178] sm:$0xff] %v4154
  %4285 = vst [vmem:[%s4 + $0x180] sm:$0xff] %v4159
  %4286 = vst [vmem:[%s4 + $0x188] sm:$0xff] %v4164
  %4287 = vst [vmem:[%s4 + $0x190] sm:$0xff] %v4169
  %4288 = vst [vmem:[%s4 + $0x198] sm:$0xff] %v4174
  %4289 = vst [vmem:[%s4 + $0x1a0] sm:$0xff] %v4179
  %4290 = vst [vmem:[%s4 + $0x1a8] sm:$0xff] %v4184
  %4291 = vst [vmem:[%s4 + $0x1b0] sm:$0xff] %v4189
  %4292 = vst [vmem:[%s4 + $0x1b8] sm:$0xff] %v4194
  %4293 = vst [vmem:[%s4 + $0x1c0] sm:$0xff] %v4199
  %4294 = vst [vmem:[%s4 + $0x1c8] sm:$0xff] %v4204
  %4295 = vst [vmem:[%s4 + $0x1d0] sm:$0xff] %v4209
  %4296 = vst [vmem:[%s4 + $0x1d8] sm:$0xff] %v4214
  %4297 = vst [vmem:[%s4 + $0x1e0] sm:$0xff] %v4219
  %4298 = vst [vmem:[%s4 + $0x1e8] sm:$0xff] %v4224
  %4299 = vst [vmem:[%s4 + $0x1f0] sm:$0xff] %v4229
  %4300 = vst [vmem:[%s4 + $0x1f8] sm:$0xff] %v4234
  %v4301 = vadd.f32 %v3919, %v3924
  %v4302 = vadd.f32 %v4301, %v3929
  %v4303 = vadd.f32 %v4302, %v3934
  %v4304 = vadd.f32 %v4303, %v3939
  %v4305 = vadd.f32 %v4304, %v3944
  %v4306 = vadd.f32 %v4305, %v3949
  %v4307 = vadd.f32 %v4306, %v3954
  %v4308 = vadd.f32 %v4307, %v3959
  %v4309 = vadd.f32 %v4308, %v3964
  %v4310 = vadd.f32 %v4309, %v3969
  %v4311 = vadd.f32 %v4310, %v3974
  %v4312 = vadd.f32 %v4311, %v3979
  %v4313 = vadd.f32 %v4312, %v3984
  %v4314 = vadd.f32 %v4313, %v3989
  %v4315 = vadd.f32 %v4314, %v3994
  %v4316 = vadd.f32 %v4315, %v3999
  %v4317 = vadd.f32 %v4316, %v4004
  %v4318 = vadd.f32 %v4317, %v4009
  %v4319 = vadd.f32 %v4318, %v4014
  %v4320 = vadd.f32 %v4319, %v4019
  %v4321 = vadd.f32 %v4320, %v4024
  %v4322 = vadd.f32 %v4321, %v4029
  %v4323 = vadd.f32 %v4322, %v4034
  %v4324 = vadd.f32 %v4323, %v4039
  %v4325 = vadd.f32 %v4324, %v4044
  %v4326 = vadd.f32 %v4325, %v4049
  %v4327 = vadd.f32 %v4326, %v4054
  %v4328 = vadd.f32 %v4327, %v4059
  %v4329 = vadd.f32 %v4328, %v4064
  %v4330 = vadd.f32 %v4329, %v4069
  %v4331 = vadd.f32 %v4330, %v4074
  %v4332 = vadd.f32 %v4331, %v4079
  %v4333 = vadd.f32 %v4332, %v4084
  %v4334 = vadd.f32 %v4333, %v4089
  %v4335 = vadd.f32 %v4334, %v4094
  %v4336 = vadd.f32 %v4335, %v4099
  %v4337 = vadd.f32 %v4336, %v4104
  %v4338 = vadd.f32 %v4337, %v4109
  %v4339 = vadd.f32 %v4338, %v4114
  %v4340 = vadd.f32 %v4339, %v4119
  %v4341 = vadd.f32 %v4340, %v4124
  %v4342 = vadd.f32 %v4341, %v4129
  %v4343 = vadd.f32 %v4342, %v4134
  %v4344 = vadd.f32 %v4343, %v4139
  %v4345 = vadd.f32 %v4344, %v4144
  %v4346 = vadd.f32 %v4345, %v4149
  %v4347 = vadd.f32 %v4346, %v4154
  %v4348 = vadd.f32 %v4347, %v4159
  %v4349 = vadd.f32 %v4348, %v4164
  %v4350 = vadd.f32 %v4349, %v4169
  %v4351 = vadd.f32 %v4350, %v4174
  %v4352 = vadd.f32 %v4351, %v4179
  %v4353 = vadd.f32 %v4352, %v4184
  %v4354 = vadd.f32 %v4353, %v4189
  %v4355 = vadd.f32 %v4354, %v4194
  %v4356 = vadd.f32 %v4355, %v4199
  %v4357 = vadd.f32 %v4356, %v4204
  %v4358 = vadd.f32 %v4357, %v4209
  %v4359 = vadd.f32 %v4358, %v4214
  %v4360 = vadd.f32 %v4359, %v4219
  %v4361 = vadd.f32 %v4360, %v4224
  %v4362 = vadd.f32 %v4361, %v4229
  %v4363 = vadd.f32 %v4362, %v4234
  %v4364 = vrot.slane %v4363, 4
  %v4365 = vadd.f32 %v4363, %v4364
  %v4366 = vrot.slane %v4365, 2
  %v4367 = vadd.f32 %v4365, %v4366
  %v4368 = vrot.slane %v4367, 1
  %v4369 = vadd.f32 %v4367, %v4368
  %v4370 = vmul.f32 %v3919, %v3919
  %v4371 = vmul.f32 %v3924, %v3924
  %v4372 = vmul.f32 %v3929, %v3929
  %v4373 = vmul.f32 %v3934, %v3934
  %v4374 = vmul.f32 %v3939, %v3939
  %v4375 = vmul.f32 %v3944, %v3944
  %v4376 = vmul.f32 %v3949, %v3949
  %v4377 = vmul.f32 %v3954, %v3954
  %v4378 = vmul.f32 %v3959, %v3959
  %v4379 = vmul.f32 %v3964, %v3964
  %v4380 = vmul.f32 %v3969, %v3969
  %v4381 = vmul.f32 %v3974, %v3974
  %v4382 = vmul.f32 %v3979, %v3979
  %v4383 = vmul.f32 %v3984, %v3984
  %v4384 = vmul.f32 %v3989, %v3989
  %v4385 = vmul.f32 %v3994, %v3994
  %v4386 = vmul.f32 %v3999, %v3999
  %v4387 = vmul.f32 %v4004, %v4004
  %v4388 = vmul.f32 %v4009, %v4009
  %v4389 = vmul.f32 %v4014, %v4014
  %v4390 = vmul.f32 %v4019, %v4019
  %v4391 = vmul.f32 %v4024, %v4024
  %v4392 = vmul.f32 %v4029, %v4029
  %v4393 = vmul.f32 %v4034, %v4034
  %v4394 = vmul.f32 %v4039, %v4039
  %v4395 = vmul.f32 %v4044, %v4044
  %v4396 = vmul.f32 %v4049, %v4049
  %v4397 = vmul.f32 %v4054, %v4054
  %v4398 = vmul.f32 %v4059, %v4059
  %v4399 = vmul.f32 %v4064, %v4064
  %v4400 = vmul.f32 %v4069, %v4069
  %v4401 = vmul.f32 %v4074, %v4074
  %v4402 = vmul.f32 %v4079, %v4079
  %v4403 = vmul.f32 %v4084, %v4084
  %v4404 = vmul.f32 %v4089, %v4089
  %v4405 = vmul.f32 %v4094, %v4094
  %v4406 = vmul.f32 %v4099, %v4099
  %v4407 = vmul.f32 %v4104, %v4104
  %v4408 = vmul.f32 %v4109, %v4109
  %v4409 = vmul.f32 %v4114, %v4114
  %v4410 = vmul.f32 %v4119, %v4119
  %v4411 = vmul.f32 %v4124, %v4124
  %v4412 = vmul.f32 %v4129, %v4129
  %v4413 = vmul.f32 %v4134, %v4134
  %v4414 = vmul.f32 %v4139, %v4139
  %v4415 = vmul.f32 %v4144, %v4144
  %v4416 = vmul.f32 %v4149, %v4149
  %v4417 = vmul.f32 %v4154, %v4154
  %v4418 = vmul.f32 %v4159, %v4159
  %v4419 = vmul.f32 %v4164, %v4164
  %v4420 = vmul.f32 %v4169, %v4169
  %v4421 = vmul.f32 %v4174, %v4174
  %v4422 = vmul.f32 %v4179, %v4179
  %v4423 = vmul.f32 %v4184, %v4184
  %v4424 = vmul.f32 %v4189, %v4189
  %v4425 = vmul.f32 %v4194, %v4194
  %v4426 = vmul.f32 %v4199, %v4199
  %v4427 = vmul.f32 %v4204, %v4204
  %v4428 = vmul.f32 %v4209, %v4209
  %v4429 = vmul.f32 %v4214, %v4214
  %v4430 = vmul.f32 %v4219, %v4219
  %v4431 = vmul.f32 %v4224, %v4224
  %v4432 = vmul.f32 %v4229, %v4229
  %v4433 = vmul.f32 %v4234, %v4234
  %v4434 = vadd.f32 %v4370, %v4371
  %v4435 = vadd.f32 %v4434, %v4372
  %v4436 = vadd.f32 %v4435, %v4373
  %v4437 = vadd.f32 %v4436, %v4374
  %v4438 = vadd.f32 %v4437, %v4375
  %v4439 = vadd.f32 %v4438, %v4376
  %v4440 = vadd.f32 %v4439, %v4377
  %v4441 = vadd.f32 %v4440, %v4378
  %v4442 = vadd.f32 %v4441, %v4379
  %v4443 = vadd.f32 %v4442, %v4380
  %v4444 = vadd.f32 %v4443, %v4381
  %v4445 = vadd.f32 %v4444, %v4382
  %v4446 = vadd.f32 %v4445, %v4383
  %v4447 = vadd.f32 %v4446, %v4384
  %v4448 = vadd.f32 %v4447, %v4385
  %v4449 = vadd.f32 %v4448, %v4386
  %v4450 = vadd.f32 %v4449, %v4387
  %v4451 = vadd.f32 %v4450, %v4388
  %v4452 = vadd.f32 %v4451, %v4389
  %v4453 = vadd.f32 %v4452, %v4390
  %v4454 = vadd.f32 %v4453, %v4391
  %v4455 = vadd.f32 %v4454, %v4392
  %v4456 = vadd.f32 %v4455, %v4393
  %v4457 = vadd.f32 %v4456, %v4394
  %v4458 = vadd.f32 %v4457, %v4395
  %v4459 = vadd.f32 %v4458, %v4396
  %v4460 = vadd.f32 %v4459, %v4397
  %v4461 = vadd.f32 %v4460, %v4398
  %v4462 = vadd.f32 %v4461, %v4399
  %v4463 = vadd.f32 %v4462, %v4400
  %v4464 = vadd.f32 %v4463, %v4401
  %v4465 = vadd.f32 %v4464, %v4402
  %v4466 = vadd.f32 %v4465, %v4403
  %v4467 = vadd.f32 %v4466, %v4404
  %v4468 = vadd.f32 %v4467, %v4405
  %v4469 = vadd.f32 %v4468, %v4406
  %v4470 = vadd.f32 %v4469, %v4407
  %v4471 = vadd.f32 %v4470, %v4408
  %v4472 = vadd.f32 %v4471, %v4409
  %v4473 = vadd.f32 %v4472, %v4410
  %v4474 = vadd.f32 %v4473, %v4411
  %v4475 = vadd.f32 %v4474, %v4412
  %v4476 = vadd.f32 %v4475, %v4413
  %v4477 = vadd.f32 %v4476, %v4414
  %v4478 = vadd.f32 %v4477, %v4415
  %v4479 = vadd.f32 %v4478, %v4416
  %v4480 = vadd.f32 %v4479, %v4417
  %v4481 = vadd.f32 %v4480, %v4418
  %v4482 = vadd.f32 %v4481, %v4419
  %v4483 = vadd.f32 %v4482, %v4420
  %v4484 = vadd.f32 %v4483, %v4421
  %v4485 = vadd.f32 %v4484, %v4422
  %v4486 = vadd.f32 %v4485, %v4423
  %v4487 = vadd.f32 %v4486, %v4424
  %v4488 = vadd.f32 %v4487, %v4425
  %v4489 = vadd.f32 %v4488, %v4426
  %v4490 = vadd.f32 %v4489, %v4427
  %v4491 = vadd.f32 %v4490, %v4428
  %v4492 = vadd.f32 %v4491, %v4429
  %v4493 = vadd.f32 %v4492, %v4430
  %v4494 = vadd.f32 %v4493, %v4431
  %v4495 = vadd.f32 %v4494, %v4432
  %v4496 = vadd.f32 %v4495, %v4433
  %v4497 = vrot.slane %v4496, 4
  %v4498 = vadd.f32 %v4496, %v4497
  %v4499 = vrot.slane %v4498, 2
  %v4500 = vadd.f32 %v4498, %v4499
  %v4501 = vrot.slane %v4500, 1
  %v4502 = vadd.f32 %v4500, %v4501
  %vm4503 = vcmask 1040384
  %v4504 = vsel %vm4503, %v4369, %v4502
  %4505 = vst [vmem:[%s5] sm:$0x3] %v4504
  // Predicated region
  $region18: #{basic_block_forward.4} parent=0 // pred_check
    _
  $region19: #{basic_block_forward.4} parent=0 // pred_check_branch
    %4507 = sbr.rel (0) target = $region21
  $region20: #{basic_block_forward.4} parent=0 // pred_region
    _
  $region21: #{basic_block_forward.4} parent=0 // pred_fallthru
    _
  // Predicated region
  $region22: #{basic_block_forward.4} parent=0 // pred_check
    _
  $region23: #{basic_block_forward.4} parent=0 // pred_check_branch
    %4509 = sbr.rel (0) target = $region25
  $region24: #{basic_block_forward.4} parent=0 // pred_region
    _
  $region25: #{basic_block_forward.4} parent=0 // pred_fallthru
    _
  // Predicated region
  $region26: #{basic_block_forward.4} parent=0 // pred_check
    _
  $region27: #{basic_block_forward.4} parent=0 // pred_check_branch
    %4511 = sbr.rel (0) target = $region29
  $region28: #{basic_block_forward.4} parent=0 // pred_region
    _
  $region29: #{basic_block_forward.4} parent=0 // pred_fallthru
    _
  // Predicated region
  $region30: #{basic_block_forward.4} parent=0 // pred_check
    _
  $region31: #{basic_block_forward.4} parent=0 // pred_check_branch
    %4513 = sbr.rel (0) target = $region33
  $region32: #{basic_block_forward.4} parent=0 // pred_region
    _
  $region33: #{basic_block_forward.4} parent=0 // pred_fallthru
    _

</llo_original>
